<compile_context>
chip_gen: v7x
topology: tpu7x:2x2x1
jax: 0.10.0
libtpu: 0.0.40
codegen_flags: <defaults>
</compile_context>

<pallas_src>
import functools

import jax
import jax.numpy as jnp
from jax.experimental import pallas as pl
from jax.experimental.pallas import tpu as pltpu


def _qat_fused_kernel(x_ref, w1_ref, s1_ref, b1_ref, w2_ref, s2_ref, b2_ref,
                      o_ref, pad1_ref, pad2_ref, im1_ref, im2_ref, *,
                      N, H, W, C1, C2, C3, KH, KW, abit):
    """Fused (conv3x3 + BN(eval) + Activate) x 2 for the whole batch.

    x_ref  : (N, H, W, C1)       network input (NHWC)
    w1_ref : (KH*KW*C1, C2)      full-precision weight, tap order (kh, kw, cin)
    w2_ref : (KH*KW*C2, C3)      DoReFa-quantized weight (bf16)
    s*/b*  : (1, C)              folded BatchNorm scale / bias (inference stats)
    o_ref  : (N, H, W, C3)       output (NHWC)
    scratch: pad1 (N,H+2,W+2,C1), pad2 (N,H+2,W+2,C2),
             im1 (N*H*W, 9*C1),  im2 (N*H*W, 9*C2)
    """
    rows = N * H * W

    def activate(y):
        # Activate(wbit_list): clamp to [0,1], then k-bit uniform quantization.
        if abit >= 32:
            return jnp.maximum(y, 0.0)
        n = float(2 ** abit - 1)
        return jnp.round(jnp.clip(y, 0.0, 1.0) * n) * (1.0 / n)

    def im2col(pad_ref, im_ref, cin):
        # Assemble the (rows, KH*KW*cin) patch matrix with static-offset VMEM
        # stores; all reshapes keep the lane (last) dim unchanged.
        for kh in range(KH):
            for kw in range(KW):
                tap = (kh * KW + kw) * cin
                t = pad_ref[:, kh:kh + H, kw:kw + W, :].reshape(rows, cin)
                im_ref[:, tap:tap + cin] = t
        return im_ref[...]

    # ---------------- in-kernel zero padding of the network input ----------------
    pad1_ref[...] = jnp.zeros_like(pad1_ref)
    pad1_ref[:, 1:H + 1, 1:W + 1, :] = x_ref[...]

    # ------------- block 1: full-precision conv + folded BN + Activate -----------
    p1 = im2col(pad1_ref, im1_ref, C1)                                  # (rows, 9*C1) f32
    y1 = jnp.dot(p1, w1_ref[...], preferred_element_type=jnp.float32)   # one MXU matmul
    y1 = y1 * s1_ref[...] + b1_ref[...]                                 # BN (running stats)
    y1 = activate(y1)

    # -------------- zero-pad the block-1 output (stays in VMEM) ------------------
    pad2_ref[...] = jnp.zeros_like(pad2_ref)
    pad2_ref[:, 1:H + 1, 1:W + 1, :] = y1.reshape(N, H, W, C2)

    # ------ block 2: DoReFa-quantized conv (bf16 MXU operands) + BN + Activate ---
    p2 = im2col(pad2_ref, im2_ref, C2).astype(jnp.bfloat16)             # (rows, 9*C2)
    y2 = jnp.dot(p2, w2_ref[...], preferred_element_type=jnp.float32)   # one MXU matmul
    y2 = y2 * s2_ref[...] + b2_ref[...]
    y2 = activate(y2)

    o_ref[...] = y2.reshape(N, H, W, C3).astype(o_ref.dtype)


# ------------------------- wrapper-side pure precompute --------------------------

def _dorefa_quantize_weight(w, wbit):
    """DoReFa weight quantization (weight_fn of conv2d_quantize_fn); pure fn of w."""
    if wbit >= 32:
        return w
    e = jnp.mean(jnp.abs(w))                                    # E = mean(|w|)
    t = jnp.tanh(w)
    t = t / (2.0 * jnp.maximum(jnp.max(jnp.abs(t)), 1e-12)) + 0.5
    n = float(2 ** wbit - 1)
    return (2.0 * (jnp.round(t * n) / n) - 1.0) * e


def _fold_bn(gamma, beta, mean, var, eps=1e-5):
    """BatchNorm2d inference stats -> per-channel (scale, bias)."""
    scale = gamma * jax.lax.rsqrt(var + eps)
    bias = beta - mean * scale
    return (scale.reshape(1, -1).astype(jnp.float32),
            bias.reshape(1, -1).astype(jnp.float32))


def _torch_weight_to_2d(w_oihw):
    """(Cout, Cin, KH, KW) -> (KH*KW*Cin, Cout), tap order (kh, kw, cin)."""
    cout, cin, kh, kw = w_oihw.shape
    return jnp.transpose(w_oihw, (2, 3, 1, 0)).reshape(kh * kw * cin, cout)


@functools.partial(jax.jit, static_argnames=("wbit", "abit"))
def qat_forward(x_nchw, params, *, wbit, abit):
    """Forward pass of QATModule(model, wbit_list, abit_list) at inference.

    x_nchw: (N, 4, 16, 16) float32 (PyTorch NCHW). Returns NCHW (N, 16, 16, 16).
    """
    N, C1, H, W = x_nchw.shape
    KH = KW = 3
    C2 = params["w1"].shape[-1]
    C3 = params["w2"].shape[-1]

    x = jnp.transpose(x_nchw, (0, 2, 3, 1)).astype(jnp.float32)     # NCHW -> NHWC

    # Grid-invariant precompute (pure functions of parameters).
    w1 = params["w1"].astype(jnp.float32)                           # first conv: full precision
    w2 = _dorefa_quantize_weight(params["w2"].astype(jnp.float32),
                                 wbit).astype(jnp.bfloat16)         # quantized conv weight
    s1, b1 = _fold_bn(params["bn1_gamma"], params["bn1_beta"],
                      params["bn1_mean"], params["bn1_var"])
    s2, b2 = _fold_bn(params["bn2_gamma"], params["bn2_beta"],
                      params["bn2_mean"], params["bn2_var"])

    kernel = functools.partial(
        _qat_fused_kernel, N=N, H=H, W=W, C1=C1, C2=C2, C3=C3,
        KH=KH, KW=KW, abit=abit)

    out_nhwc = pl.pallas_call(
        kernel,
        out_shape=jax.ShapeDtypeStruct((N, H, W, C3), jnp.float32),
        scratch_shapes=[
            pltpu.VMEM((N, H + KH - 1, W + KW - 1, C1), jnp.float32),  # padded input
            pltpu.VMEM((N, H + KH - 1, W + KW - 1, C2), jnp.float32),  # padded block-1 output
            pltpu.VMEM((N * H * W, KH * KW * C1), jnp.float32),        # im2col, block 1
            pltpu.VMEM((N * H * W, KH * KW * C2), jnp.float32),        # im2col, block 2
        ],
    )(x, w1, s1, b1, w2, s2, b2)

    return jnp.transpose(out_nhwc, (0, 3, 1, 2))                     # NHWC -> NCHW


def make_params(key):
    ks = jax.random.split(key, 10)
    w1 = 0.2 * jax.random.normal(ks[0], (8, 4, 3, 3), jnp.float32)    # torch OIHW
    w2 = 0.2 * jax.random.normal(ks[1], (16, 8, 3, 3), jnp.float32)
    params = {
        "w1": _torch_weight_to_2d(w1),
        "w2": _torch_weight_to_2d(w2),
        # Synthetic (deterministic) BN params for the active bit-width branch.
        "bn1_gamma": (0.5 + jax.random.uniform(ks[2], (1, 8))).astype(jnp.float32),
        "bn1_beta": 0.1 * jax.random.normal(ks[3], (1, 8), jnp.float32),
        "bn1_mean": 0.1 * jax.random.normal(ks[4], (1, 8), jnp.float32),
        "bn1_var": (0.5 + jax.random.uniform(ks[5], (1, 8))).astype(jnp.float32),
        "bn2_gamma": (0.5 + jax.random.uniform(ks[6], (1, 16))).astype(jnp.float32),
        "bn2_beta": 0.1 * jax.random.normal(ks[7], (1, 16), jnp.float32),
        "bn2_mean": 0.1 * jax.random.normal(ks[8], (1, 16), jnp.float32),
        "bn2_var": (0.5 + jax.random.uniform(ks[9], (1, 16))).astype(jnp.float32),
    }
    return params


if __name__ == "__main__":
    # wbit_list / abit_list (QATModule uses the active / last bit-width).
    wbit_list = [4]
    abit_list = [4]
    # NOTE: quant_model replaces nn.ReLU with Activate(wbit_list), so the activation
    # bit-width follows wbit_list (matches the source code).
    act_bit = wbit_list[-1]

    key = jax.random.PRNGKey(0)
    k_x, k_p = jax.random.split(key)
    x = jax.random.normal(k_x, (2, 4, 16, 16), jnp.float32)   # NCHW, like PyTorch
    params = make_params(k_p)

    # TODO(synk): training-mode BatchNorm (batch statistics) not implemented; the
    # SwitchBatchNorm2d inference path (running statistics) is used.
    out = qat_forward(x, params, wbit=wbit_list[-1], abit=act_bit)
    out = jax.block_until_ready(out)

    assert out.shape == (2, 16, 16, 16)
    assert bool(jnp.all(jnp.isfinite(out)))
    # Activations are 4-bit quantized to the grid k/15, k in [0, 15].
    assert float(jnp.max(out)) <= 1.0 + 1e-6 and float(jnp.min(out)) >= -1e-6
    print("KERNEL_OK")
</pallas_src>

<mosaic_0001>
module attributes {stable_mosaic.version = 11 : i64} {
  func.func @_qat_fused_kernel(%arg0: memref<2x16x16x4xf32, #tpu.memory_space<vmem>>, %arg1: memref<36x8xf32, #tpu.memory_space<vmem>>, %arg2: memref<1x8xf32, #tpu.memory_space<vmem>>, %arg3: memref<1x8xf32, #tpu.memory_space<vmem>>, %arg4: memref<72x16xbf16, #tpu.memory_space<vmem>>, %arg5: memref<1x16xf32, #tpu.memory_space<vmem>>, %arg6: memref<1x16xf32, #tpu.memory_space<vmem>>, %arg7: memref<2x16x16x16xf32, #tpu.memory_space<vmem>>, %arg8: memref<2x18x18x4xf32, #tpu.memory_space<vmem>>, %arg9: memref<2x18x18x8xf32, #tpu.memory_space<vmem>>, %arg10: memref<512x36xf32, #tpu.memory_space<vmem>>, %arg11: memref<512x72xf32, #tpu.memory_space<vmem>>) attributes {dimension_semantics = [], scalar_prefetch = 0 : i64, scratch_operands = 4 : i64, tpu.core_type = #tpu.core_type<tc>} {
    %cst = arith.constant 0.000000e+00 : f32
    %0 = vector.broadcast %cst : f32 to vector<2x18x18x4xf32>
    %c0 = arith.constant 0 : index
    %c0_0 = arith.constant 0 : index
    %c0_1 = arith.constant 0 : index
    %c0_2 = arith.constant 0 : index
    %1 = vector.load %arg8[%c0, %c0_0, %c0_1, %c0_2] : memref<2x18x18x4xf32, #tpu.memory_space<vmem>>, vector<2x18x18x4xf32>
    tpu.vector_store %arg8[%c0, %c0_0, %c0_1, %c0_2], %0 {strides = array<i32>} : memref<2x18x18x4xf32, #tpu.memory_space<vmem>>, vector<2x18x18x4xf32>,
    %c0_3 = arith.constant 0 : index
    %c0_4 = arith.constant 0 : index
    %c0_5 = arith.constant 0 : index
    %c0_6 = arith.constant 0 : index
    %2 = vector.load %arg0[%c0_3, %c0_4, %c0_5, %c0_6] : memref<2x16x16x4xf32, #tpu.memory_space<vmem>>, vector<2x16x16x4xf32>
    %c0_7 = arith.constant 0 : index
    %c1 = arith.constant 1 : index
    %c1_8 = arith.constant 1 : index
    %c0_9 = arith.constant 0 : index
    %3 = vector.load %arg8[%c0_7, %c1, %c1_8, %c0_9] : memref<2x18x18x4xf32, #tpu.memory_space<vmem>>, vector<2x16x16x4xf32>
    tpu.vector_store %arg8[%c0_7, %c1, %c1_8, %c0_9], %2 {strides = array<i32>} : memref<2x18x18x4xf32, #tpu.memory_space<vmem>>, vector<2x16x16x4xf32>,
    %c0_10 = arith.constant 0 : index
    %c0_11 = arith.constant 0 : index
    %c0_12 = arith.constant 0 : index
    %c0_13 = arith.constant 0 : index
    %4 = vector.load %arg8[%c0_10, %c0_11, %c0_12, %c0_13] : memref<2x18x18x4xf32, #tpu.memory_space<vmem>>, vector<2x16x16x4xf32>
    %5 = vector.shape_cast %4 : vector<2x16x16x4xf32> to vector<512x4xf32>
    %c0_14 = arith.constant 0 : index
    %c0_15 = arith.constant 0 : index
    %6 = vector.load %arg10[%c0_14, %c0_15] : memref<512x36xf32, #tpu.memory_space<vmem>>, vector<512x4xf32>
    tpu.vector_store %arg10[%c0_14, %c0_15], %5 {strides = array<i32>} : memref<512x36xf32, #tpu.memory_space<vmem>>, vector<512x4xf32>,
    %c0_16 = arith.constant 0 : index
    %c0_17 = arith.constant 0 : index
    %c1_18 = arith.constant 1 : index
    %c0_19 = arith.constant 0 : index
    %7 = vector.load %arg8[%c0_16, %c0_17, %c1_18, %c0_19] : memref<2x18x18x4xf32, #tpu.memory_space<vmem>>, vector<2x16x16x4xf32>
    %8 = vector.shape_cast %7 : vector<2x16x16x4xf32> to vector<512x4xf32>
    %c0_20 = arith.constant 0 : index
    %c4 = arith.constant 4 : index
    %9 = vector.load %arg10[%c0_20, %c4] : memref<512x36xf32, #tpu.memory_space<vmem>>, vector<512x4xf32>
    tpu.vector_store %arg10[%c0_20, %c4], %8 {strides = array<i32>} : memref<512x36xf32, #tpu.memory_space<vmem>>, vector<512x4xf32>,
    %c0_21 = arith.constant 0 : index
    %c0_22 = arith.constant 0 : index
    %c2 = arith.constant 2 : index
    %c0_23 = arith.constant 0 : index
    %10 = vector.load %arg8[%c0_21, %c0_22, %c2, %c0_23] : memref<2x18x18x4xf32, #tpu.memory_space<vmem>>, vector<2x16x16x4xf32>
    %11 = vector.shape_cast %10 : vector<2x16x16x4xf32> to vector<512x4xf32>
    %c0_24 = arith.constant 0 : index
    %c8 = arith.constant 8 : index
    %12 = vector.load %arg10[%c0_24, %c8] : memref<512x36xf32, #tpu.memory_space<vmem>>, vector<512x4xf32>
    tpu.vector_store %arg10[%c0_24, %c8], %11 {strides = array<i32>} : memref<512x36xf32, #tpu.memory_space<vmem>>, vector<512x4xf32>,
    %c0_25 = arith.constant 0 : index
    %c1_26 = arith.constant 1 : index
    %c0_27 = arith.constant 0 : index
    %c0_28 = arith.constant 0 : index
    %13 = vector.load %arg8[%c0_25, %c1_26, %c0_27, %c0_28] : memref<2x18x18x4xf32, #tpu.memory_space<vmem>>, vector<2x16x16x4xf32>
    %14 = vector.shape_cast %13 : vector<2x16x16x4xf32> to vector<512x4xf32>
    %c0_29 = arith.constant 0 : index
    %c12 = arith.constant 12 : index
    %15 = vector.load %arg10[%c0_29, %c12] : memref<512x36xf32, #tpu.memory_space<vmem>>, vector<512x4xf32>
    tpu.vector_store %arg10[%c0_29, %c12], %14 {strides = array<i32>} : memref<512x36xf32, #tpu.memory_space<vmem>>, vector<512x4xf32>,
    %c0_30 = arith.constant 0 : index
    %c1_31 = arith.constant 1 : index
    %c1_32 = arith.constant 1 : index
    %c0_33 = arith.constant 0 : index
    %16 = vector.load %arg8[%c0_30, %c1_31, %c1_32, %c0_33] : memref<2x18x18x4xf32, #tpu.memory_space<vmem>>, vector<2x16x16x4xf32>
    %17 = vector.shape_cast %16 : vector<2x16x16x4xf32> to vector<512x4xf32>
    %c0_34 = arith.constant 0 : index
    %c16 = arith.constant 16 : index
    %18 = vector.load %arg10[%c0_34, %c16] : memref<512x36xf32, #tpu.memory_space<vmem>>, vector<512x4xf32>
    tpu.vector_store %arg10[%c0_34, %c16], %17 {strides = array<i32>} : memref<512x36xf32, #tpu.memory_space<vmem>>, vector<512x4xf32>,
    %c0_35 = arith.constant 0 : index
    %c1_36 = arith.constant 1 : index
    %c2_37 = arith.constant 2 : index
    %c0_38 = arith.constant 0 : index
    %19 = vector.load %arg8[%c0_35, %c1_36, %c2_37, %c0_38] : memref<2x18x18x4xf32, #tpu.memory_space<vmem>>, vector<2x16x16x4xf32>
    %20 = vector.shape_cast %19 : vector<2x16x16x4xf32> to vector<512x4xf32>
    %c0_39 = arith.constant 0 : index
    %c20 = arith.constant 20 : index
    %21 = vector.load %arg10[%c0_39, %c20] : memref<512x36xf32, #tpu.memory_space<vmem>>, vector<512x4xf32>
    tpu.vector_store %arg10[%c0_39, %c20], %20 {strides = array<i32>} : memref<512x36xf32, #tpu.memory_space<vmem>>, vector<512x4xf32>,
    %c0_40 = arith.constant 0 : index
    %c2_41 = arith.constant 2 : index
    %c0_42 = arith.constant 0 : index
    %c0_43 = arith.constant 0 : index
    %22 = vector.load %arg8[%c0_40, %c2_41, %c0_42, %c0_43] : memref<2x18x18x4xf32, #tpu.memory_space<vmem>>, vector<2x16x16x4xf32>
    %23 = vector.shape_cast %22 : vector<2x16x16x4xf32> to vector<512x4xf32>
    %c0_44 = arith.constant 0 : index
    %c24 = arith.constant 24 : index
    %24 = vector.load %arg10[%c0_44, %c24] : memref<512x36xf32, #tpu.memory_space<vmem>>, vector<512x4xf32>
    tpu.vector_store %arg10[%c0_44, %c24], %23 {strides = array<i32>} : memref<512x36xf32, #tpu.memory_space<vmem>>, vector<512x4xf32>,
    %c0_45 = arith.constant 0 : index
    %c2_46 = arith.constant 2 : index
    %c1_47 = arith.constant 1 : index
    %c0_48 = arith.constant 0 : index
    %25 = vector.load %arg8[%c0_45, %c2_46, %c1_47, %c0_48] : memref<2x18x18x4xf32, #tpu.memory_space<vmem>>, vector<2x16x16x4xf32>
    %26 = vector.shape_cast %25 : vector<2x16x16x4xf32> to vector<512x4xf32>
    %c0_49 = arith.constant 0 : index
    %c28 = arith.constant 28 : index
    %27 = vector.load %arg10[%c0_49, %c28] : memref<512x36xf32, #tpu.memory_space<vmem>>, vector<512x4xf32>
    tpu.vector_store %arg10[%c0_49, %c28], %26 {strides = array<i32>} : memref<512x36xf32, #tpu.memory_space<vmem>>, vector<512x4xf32>,
    %c0_50 = arith.constant 0 : index
    %c2_51 = arith.constant 2 : index
    %c2_52 = arith.constant 2 : index
    %c0_53 = arith.constant 0 : index
    %28 = vector.load %arg8[%c0_50, %c2_51, %c2_52, %c0_53] : memref<2x18x18x4xf32, #tpu.memory_space<vmem>>, vector<2x16x16x4xf32>
    %29 = vector.shape_cast %28 : vector<2x16x16x4xf32> to vector<512x4xf32>
    %c0_54 = arith.constant 0 : index
    %c32 = arith.constant 32 : index
    %30 = vector.load %arg10[%c0_54, %c32] : memref<512x36xf32, #tpu.memory_space<vmem>>, vector<512x4xf32>
    tpu.vector_store %arg10[%c0_54, %c32], %29 {strides = array<i32>} : memref<512x36xf32, #tpu.memory_space<vmem>>, vector<512x4xf32>,
    %c0_55 = arith.constant 0 : index
    %c0_56 = arith.constant 0 : index
    %31 = vector.load %arg10[%c0_55, %c0_56] : memref<512x36xf32, #tpu.memory_space<vmem>>, vector<512x36xf32>
    %c0_57 = arith.constant 0 : index
    %c0_58 = arith.constant 0 : index
    %32 = vector.load %arg1[%c0_57, %c0_58] : memref<36x8xf32, #tpu.memory_space<vmem>>, vector<36x8xf32>
    %cst_59 = arith.constant dense<0.000000e+00> : vector<512x8xf32>
    %33 = tpu.matmul %31, %32, %cst_59 {dimension_numbers = #tpu.dot_dimension_numbers<[1], [0], [0], [1], [0, 0, 1, 1], [], []>} : vector<512x36xf32>, vector<36x8xf32>, vector<512x8xf32> -> vector<512x8xf32>
    %c0_60 = arith.constant 0 : index
    %c0_61 = arith.constant 0 : index
    %34 = vector.load %arg2[%c0_60, %c0_61] : memref<1x8xf32, #tpu.memory_space<vmem>>, vector<1x8xf32>
    %35 = vector.broadcast %34 : vector<1x8xf32> to vector<512x8xf32>
    %36 = arith.mulf %33, %35 : vector<512x8xf32>
    %c0_62 = arith.constant 0 : index
    %c0_63 = arith.constant 0 : index
    %37 = vector.load %arg3[%c0_62, %c0_63] : memref<1x8xf32, #tpu.memory_space<vmem>>, vector<1x8xf32>
    %38 = vector.broadcast %37 : vector<1x8xf32> to vector<512x8xf32>
    %39 = arith.addf %36, %38 : vector<512x8xf32>
    %cst_64 = arith.constant 0.000000e+00 : f32
    %cst_65 = arith.constant 1.000000e+00 : f32
    %40 = vector.broadcast %cst_64 : f32 to vector<512x8xf32>
    %41 = arith.maximumf %40, %39 : vector<512x8xf32>
    %42 = vector.broadcast %cst_65 : f32 to vector<512x8xf32>
    %43 = arith.minimumf %42, %41 : vector<512x8xf32>
    %cst_66 = arith.constant 1.500000e+01 : f32
    %44 = vector.broadcast %cst_66 : f32 to vector<512x8xf32>
    %45 = arith.mulf %43, %44 : vector<512x8xf32>
    %46 = math.roundeven %45 : vector<512x8xf32>
    %cst_67 = arith.constant 0.0666666701 : f32
    %47 = vector.broadcast %cst_67 : f32 to vector<512x8xf32>
    %48 = arith.mulf %46, %47 : vector<512x8xf32>
    %cst_68 = arith.constant 0.000000e+00 : f32
    %49 = vector.broadcast %cst_68 : f32 to vector<2x18x18x8xf32>
    %c0_69 = arith.constant 0 : index
    %c0_70 = arith.constant 0 : index
    %c0_71 = arith.constant 0 : index
    %c0_72 = arith.constant 0 : index
    %50 = vector.load %arg9[%c0_69, %c0_70, %c0_71, %c0_72] : memref<2x18x18x8xf32, #tpu.memory_space<vmem>>, vector<2x18x18x8xf32>
    tpu.vector_store %arg9[%c0_69, %c0_70, %c0_71, %c0_72], %49 {strides = array<i32>} : memref<2x18x18x8xf32, #tpu.memory_space<vmem>>, vector<2x18x18x8xf32>,
    %51 = vector.shape_cast %48 : vector<512x8xf32> to vector<2x16x16x8xf32>
    %c0_73 = arith.constant 0 : index
    %c1_74 = arith.constant 1 : index
    %c1_75 = arith.constant 1 : index
    %c0_76 = arith.constant 0 : index
    %52 = vector.load %arg9[%c0_73, %c1_74, %c1_75, %c0_76] : memref<2x18x18x8xf32, #tpu.memory_space<vmem>>, vector<2x16x16x8xf32>
    tpu.vector_store %arg9[%c0_73, %c1_74, %c1_75, %c0_76], %51 {strides = array<i32>} : memref<2x18x18x8xf32, #tpu.memory_space<vmem>>, vector<2x16x16x8xf32>,
    %c0_77 = arith.constant 0 : index
    %c0_78 = arith.constant 0 : index
    %c0_79 = arith.constant 0 : index
    %c0_80 = arith.constant 0 : index
    %53 = vector.load %arg9[%c0_77, %c0_78, %c0_79, %c0_80] : memref<2x18x18x8xf32, #tpu.memory_space<vmem>>, vector<2x16x16x8xf32>
    %54 = vector.shape_cast %53 : vector<2x16x16x8xf32> to vector<512x8xf32>
    %c0_81 = arith.constant 0 : index
    %c0_82 = arith.constant 0 : index
    %55 = vector.load %arg11[%c0_81, %c0_82] : memref<512x72xf32, #tpu.memory_space<vmem>>, vector<512x8xf32>
    tpu.vector_store %arg11[%c0_81, %c0_82], %54 {strides = array<i32>} : memref<512x72xf32, #tpu.memory_space<vmem>>, vector<512x8xf32>,
    %c0_83 = arith.constant 0 : index
    %c0_84 = arith.constant 0 : index
    %c1_85 = arith.constant 1 : index
    %c0_86 = arith.constant 0 : index
    %56 = vector.load %arg9[%c0_83, %c0_84, %c1_85, %c0_86] : memref<2x18x18x8xf32, #tpu.memory_space<vmem>>, vector<2x16x16x8xf32>
    %57 = vector.shape_cast %56 : vector<2x16x16x8xf32> to vector<512x8xf32>
    %c0_87 = arith.constant 0 : index
    %c8_88 = arith.constant 8 : index
    %58 = vector.load %arg11[%c0_87, %c8_88] : memref<512x72xf32, #tpu.memory_space<vmem>>, vector<512x8xf32>
    tpu.vector_store %arg11[%c0_87, %c8_88], %57 {strides = array<i32>} : memref<512x72xf32, #tpu.memory_space<vmem>>, vector<512x8xf32>,
    %c0_89 = arith.constant 0 : index
    %c0_90 = arith.constant 0 : index
    %c2_91 = arith.constant 2 : index
    %c0_92 = arith.constant 0 : index
    %59 = vector.load %arg9[%c0_89, %c0_90, %c2_91, %c0_92] : memref<2x18x18x8xf32, #tpu.memory_space<vmem>>, vector<2x16x16x8xf32>
    %60 = vector.shape_cast %59 : vector<2x16x16x8xf32> to vector<512x8xf32>
    %c0_93 = arith.constant 0 : index
    %c16_94 = arith.constant 16 : index
    %61 = vector.load %arg11[%c0_93, %c16_94] : memref<512x72xf32, #tpu.memory_space<vmem>>, vector<512x8xf32>
    tpu.vector_store %arg11[%c0_93, %c16_94], %60 {strides = array<i32>} : memref<512x72xf32, #tpu.memory_space<vmem>>, vector<512x8xf32>,
    %c0_95 = arith.constant 0 : index
    %c1_96 = arith.constant 1 : index
    %c0_97 = arith.constant 0 : index
    %c0_98 = arith.constant 0 : index
    %62 = vector.load %arg9[%c0_95, %c1_96, %c0_97, %c0_98] : memref<2x18x18x8xf32, #tpu.memory_space<vmem>>, vector<2x16x16x8xf32>
    %63 = vector.shape_cast %62 : vector<2x16x16x8xf32> to vector<512x8xf32>
    %c0_99 = arith.constant 0 : index
    %c24_100 = arith.constant 24 : index
    %64 = vector.load %arg11[%c0_99, %c24_100] : memref<512x72xf32, #tpu.memory_space<vmem>>, vector<512x8xf32>
    tpu.vector_store %arg11[%c0_99, %c24_100], %63 {strides = array<i32>} : memref<512x72xf32, #tpu.memory_space<vmem>>, vector<512x8xf32>,
    %c0_101 = arith.constant 0 : index
    %c1_102 = arith.constant 1 : index
    %c1_103 = arith.constant 1 : index
    %c0_104 = arith.constant 0 : index
    %65 = vector.load %arg9[%c0_101, %c1_102, %c1_103, %c0_104] : memref<2x18x18x8xf32, #tpu.memory_space<vmem>>, vector<2x16x16x8xf32>
    %66 = vector.shape_cast %65 : vector<2x16x16x8xf32> to vector<512x8xf32>
    %c0_105 = arith.constant 0 : index
    %c32_106 = arith.constant 32 : index
    %67 = vector.load %arg11[%c0_105, %c32_106] : memref<512x72xf32, #tpu.memory_space<vmem>>, vector<512x8xf32>
    tpu.vector_store %arg11[%c0_105, %c32_106], %66 {strides = array<i32>} : memref<512x72xf32, #tpu.memory_space<vmem>>, vector<512x8xf32>,
    %c0_107 = arith.constant 0 : index
    %c1_108 = arith.constant 1 : index
    %c2_109 = arith.constant 2 : index
    %c0_110 = arith.constant 0 : index
    %68 = vector.load %arg9[%c0_107, %c1_108, %c2_109, %c0_110] : memref<2x18x18x8xf32, #tpu.memory_space<vmem>>, vector<2x16x16x8xf32>
    %69 = vector.shape_cast %68 : vector<2x16x16x8xf32> to vector<512x8xf32>
    %c0_111 = arith.constant 0 : index
    %c40 = arith.constant 40 : index
    %70 = vector.load %arg11[%c0_111, %c40] : memref<512x72xf32, #tpu.memory_space<vmem>>, vector<512x8xf32>
    tpu.vector_store %arg11[%c0_111, %c40], %69 {strides = array<i32>} : memref<512x72xf32, #tpu.memory_space<vmem>>, vector<512x8xf32>,
    %c0_112 = arith.constant 0 : index
    %c2_113 = arith.constant 2 : index
    %c0_114 = arith.constant 0 : index
    %c0_115 = arith.constant 0 : index
    %71 = vector.load %arg9[%c0_112, %c2_113, %c0_114, %c0_115] : memref<2x18x18x8xf32, #tpu.memory_space<vmem>>, vector<2x16x16x8xf32>
    %72 = vector.shape_cast %71 : vector<2x16x16x8xf32> to vector<512x8xf32>
    %c0_116 = arith.constant 0 : index
    %c48 = arith.constant 48 : index
    %73 = vector.load %arg11[%c0_116, %c48] : memref<512x72xf32, #tpu.memory_space<vmem>>, vector<512x8xf32>
    tpu.vector_store %arg11[%c0_116, %c48], %72 {strides = array<i32>} : memref<512x72xf32, #tpu.memory_space<vmem>>, vector<512x8xf32>,
    %c0_117 = arith.constant 0 : index
    %c2_118 = arith.constant 2 : index
    %c1_119 = arith.constant 1 : index
    %c0_120 = arith.constant 0 : index
    %74 = vector.load %arg9[%c0_117, %c2_118, %c1_119, %c0_120] : memref<2x18x18x8xf32, #tpu.memory_space<vmem>>, vector<2x16x16x8xf32>
    %75 = vector.shape_cast %74 : vector<2x16x16x8xf32> to vector<512x8xf32>
    %c0_121 = arith.constant 0 : index
    %c56 = arith.constant 56 : index
    %76 = vector.load %arg11[%c0_121, %c56] : memref<512x72xf32, #tpu.memory_space<vmem>>, vector<512x8xf32>
    tpu.vector_store %arg11[%c0_121, %c56], %75 {strides = array<i32>} : memref<512x72xf32, #tpu.memory_space<vmem>>, vector<512x8xf32>,
    %c0_122 = arith.constant 0 : index
    %c2_123 = arith.constant 2 : index
    %c2_124 = arith.constant 2 : index
    %c0_125 = arith.constant 0 : index
    %77 = vector.load %arg9[%c0_122, %c2_123, %c2_124, %c0_125] : memref<2x18x18x8xf32, #tpu.memory_space<vmem>>, vector<2x16x16x8xf32>
    %78 = vector.shape_cast %77 : vector<2x16x16x8xf32> to vector<512x8xf32>
    %c0_126 = arith.constant 0 : index
    %c64 = arith.constant 64 : index
    %79 = vector.load %arg11[%c0_126, %c64] : memref<512x72xf32, #tpu.memory_space<vmem>>, vector<512x8xf32>
    tpu.vector_store %arg11[%c0_126, %c64], %78 {strides = array<i32>} : memref<512x72xf32, #tpu.memory_space<vmem>>, vector<512x8xf32>,
    %c0_127 = arith.constant 0 : index
    %c0_128 = arith.constant 0 : index
    %80 = vector.load %arg11[%c0_127, %c0_128] : memref<512x72xf32, #tpu.memory_space<vmem>>, vector<512x72xf32>
    %81 = arith.truncf %80 : vector<512x72xf32> to vector<512x72xbf16>
    %c0_129 = arith.constant 0 : index
    %c0_130 = arith.constant 0 : index
    %82 = vector.load %arg4[%c0_129, %c0_130] : memref<72x16xbf16, #tpu.memory_space<vmem>>, vector<72x16xbf16>
    %cst_131 = arith.constant dense<0.000000e+00> : vector<512x16xf32>
    %83 = tpu.matmul %81, %82, %cst_131 {dimension_numbers = #tpu.dot_dimension_numbers<[1], [0], [0], [1], [0, 0, 1, 1], [], []>} : vector<512x72xbf16>, vector<72x16xbf16>, vector<512x16xf32> -> vector<512x16xf32>
    %c0_132 = arith.constant 0 : index
    %c0_133 = arith.constant 0 : index
    %84 = vector.load %arg5[%c0_132, %c0_133] : memref<1x16xf32, #tpu.memory_space<vmem>>, vector<1x16xf32>
    %85 = vector.broadcast %84 : vector<1x16xf32> to vector<512x16xf32>
    %86 = arith.mulf %83, %85 : vector<512x16xf32>
    %c0_134 = arith.constant 0 : index
    %c0_135 = arith.constant 0 : index
    %87 = vector.load %arg6[%c0_134, %c0_135] : memref<1x16xf32, #tpu.memory_space<vmem>>, vector<1x16xf32>
    %88 = vector.broadcast %87 : vector<1x16xf32> to vector<512x16xf32>
    %89 = arith.addf %86, %88 : vector<512x16xf32>
    %cst_136 = arith.constant 0.000000e+00 : f32
    %cst_137 = arith.constant 1.000000e+00 : f32
    %90 = vector.broadcast %cst_136 : f32 to vector<512x16xf32>
    %91 = arith.maximumf %90, %89 : vector<512x16xf32>
    %92 = vector.broadcast %cst_137 : f32 to vector<512x16xf32>
    %93 = arith.minimumf %92, %91 : vector<512x16xf32>
    %cst_138 = arith.constant 1.500000e+01 : f32
    %94 = vector.broadcast %cst_138 : f32 to vector<512x16xf32>
    %95 = arith.mulf %93, %94 : vector<512x16xf32>
    %96 = math.roundeven %95 : vector<512x16xf32>
    %cst_139 = arith.constant 0.0666666701 : f32
    %97 = vector.broadcast %cst_139 : f32 to vector<512x16xf32>
    %98 = arith.mulf %96, %97 : vector<512x16xf32>
    %99 = vector.shape_cast %98 : vector<512x16xf32> to vector<2x16x16x16xf32>
    %c0_140 = arith.constant 0 : index
    %c0_141 = arith.constant 0 : index
    %c0_142 = arith.constant 0 : index
    %c0_143 = arith.constant 0 : index
    %100 = vector.load %arg7[%c0_140, %c0_141, %c0_142, %c0_143] : memref<2x16x16x16xf32, #tpu.memory_space<vmem>>, vector<2x16x16x16xf32>
    tpu.vector_store %arg7[%c0_140, %c0_141, %c0_142, %c0_143], %99 {strides = array<i32>} : memref<2x16x16x16xf32, #tpu.memory_space<vmem>>, vector<2x16x16x16xf32>,
    return
  }
}

</mosaic_0001>

<llo_original>
// kernel: qat_forward.1
$region0: #{qat_forward.1}
  #allocation0 [shape = 'u32[]', space=smem, size = 0x4, offset = 0x4, fixed_abs, tag = 'smem constant byte address 0x4 - core index']
  #allocation1 [shape = 'u32[144,128]{1,0:T(1,128)}', space=vmem, size = 0x12000, scoped, tag = 'internal scratch']
  #allocation2 [shape = 'f32[2,18,18,4]{3,2,1,0:T(8,128)}', space=vmem, size = 0x6c000, scoped, tag = 'scratch operand']
  #allocation3 [shape = 'f32[2,18,18,8]{3,2,1,0:T(8,128)}', space=vmem, size = 0x6c000, scoped, tag = 'scratch operand']
  #allocation4 [shape = 'f32[512,36]{1,0:T(8,128)}', space=vmem, size = 0x40000, scoped, tag = 'scratch operand']
  #allocation5 [shape = 'f32[512,72]{1,0:T(8,128)}', space=vmem, size = 0x40000, scoped, tag = 'scratch operand']
  %s0 = inlined_call_operand.vmem [shape: f32[2,16,16,4], index: 0, kind: input, shape index: {}]
  %s1 = inlined_call_operand.vmem [shape: f32[36,8], index: 1, kind: input, shape index: {}]
  %s2 = inlined_call_operand.vmem [shape: f32[1,8], index: 2, kind: input, shape index: {}]
  %s3 = inlined_call_operand.vmem [shape: f32[1,8], index: 3, kind: input, shape index: {}]
  %s4 = inlined_call_operand.vmem [shape: bf16[72,16], index: 4, kind: input, shape index: {}]
  %s5 = inlined_call_operand.vmem [shape: f32[1,16], index: 5, kind: input, shape index: {}]
  %s6 = inlined_call_operand.vmem [shape: f32[1,16], index: 6, kind: input, shape index: {}]
  %s7 = inlined_call_operand.vmem [shape: f32[2,16,16,16], index: 7, kind: output, shape index: {}]
  %s8 = sld [smem:[#allocation0]]
  $region38: #{qat_forward.1} parent=0
    _
  %s10 = ssub.s32 1, %s8
  %s11 = scalar_select 0, %s10, %s8
  // Predicated region
  $region2: #{qat_forward.1} parent=0 // pred_check
    _
  $region3: #{qat_forward.1} parent=0 // pred_check_branch
    %13 = sbr.rel (0) target = $region5
  $region4: #{qat_forward.1} parent=0 // pred_region
    _
  $region5: #{qat_forward.1} parent=0 // pred_fallthru
    _
  // Predicated region
  $region6: #{qat_forward.1} parent=0 // pred_check
    _
  $region7: #{qat_forward.1} parent=0 // pred_check_branch
    %15 = sbr.rel (0) target = $region9
  $region8: #{qat_forward.1} parent=0 // pred_region
    _
  $region9: #{qat_forward.1} parent=0 // pred_fallthru
    _
  // Predicated region
  $region10: #{qat_forward.1} parent=0 // pred_check
    _
  $region11: #{qat_forward.1} parent=0 // pred_check_branch
    %17 = sbr.rel (0) target = $region13
  $region12: #{qat_forward.1} parent=0 // pred_region
    _
  $region13: #{qat_forward.1} parent=0 // pred_fallthru
    _
  // Predicated region
  $region14: #{qat_forward.1} parent=0 // pred_check
    _
  $region15: #{qat_forward.1} parent=0 // pred_check_branch
    %19 = sbr.rel (0) target = $region17
  $region16: #{qat_forward.1} parent=0 // pred_region
    _
  $region17: #{qat_forward.1} parent=0 // pred_fallthru
    _
  // Predicated region
  $region18: #{qat_forward.1} parent=0 // pred_check
    _
  $region19: #{qat_forward.1} parent=0 // pred_check_branch
    %21 = sbr.rel (0) target = $region21
  $region20: #{qat_forward.1} parent=0 // pred_region
    _
  $region21: #{qat_forward.1} parent=0 // pred_fallthru
    _
  // Predicated region
  $region22: #{qat_forward.1} parent=0 // pred_check
    _
  $region23: #{qat_forward.1} parent=0 // pred_check_branch
    %23 = sbr.rel (0) target = $region25
  $region24: #{qat_forward.1} parent=0 // pred_region
    _
  $region25: #{qat_forward.1} parent=0 // pred_fallthru
    _
  // Predicated region
  $region26: #{qat_forward.1} parent=0 // pred_check
    _
  $region27: #{qat_forward.1} parent=0 // pred_check_branch
    %25 = sbr.rel (0) target = $region29
  $region28: #{qat_forward.1} parent=0 // pred_region
    _
  $region29: #{qat_forward.1} parent=0 // pred_fallthru
    _
  %vm27 = vcmask 31744
  %28 = vst.msk [vmem:[#allocation2] sm:$0xff] %vm27, 0.0
  %29 = vst.msk [vmem:[#allocation2 + $0x8] sm:$0xff] %vm27, 0.0
  %vm30 = vcmask 25600
  %31 = vst.msk [vmem:[#allocation2 + $0x10] sm:$0x3] %vm30, 0.0
  %32 = vst.msk [vmem:[#allocation2 + $0x18] sm:$0xff] %vm27, 0.0
  %33 = vst.msk [vmem:[#allocation2 + $0x20] sm:$0xff] %vm27, 0.0
  %34 = vst.msk [vmem:[#allocation2 + $0x28] sm:$0x3] %vm30, 0.0
  %35 = vst.msk [vmem:[#allocation2 + $0x30] sm:$0xff] %vm27, 0.0
  %36 = vst.msk [vmem:[#allocation2 + $0x38] sm:$0xff] %vm27, 0.0
  %37 = vst.msk [vmem:[#allocation2 + $0x40] sm:$0x3] %vm30, 0.0
  %38 = vst.msk [vmem:[#allocation2 + $0x48] sm:$0xff] %vm27, 0.0
  %39 = vst.msk [vmem:[#allocation2 + $0x50] sm:$0xff] %vm27, 0.0
  %40 = vst.msk [vmem:[#allocation2 + $0x58] sm:$0x3] %vm30, 0.0
  %41 = vst.msk [vmem:[#allocation2 + $0x60] sm:$0xff] %vm27, 0.0
  %42 = vst.msk [vmem:[#allocation2 + $0x68] sm:$0xff] %vm27, 0.0
  %43 = vst.msk [vmem:[#allocation2 + $0x70] sm:$0x3] %vm30, 0.0
  %44 = vst.msk [vmem:[#allocation2 + $0x78] sm:$0xff] %vm27, 0.0
  %45 = vst.msk [vmem:[#allocation2 + $0x80] sm:$0xff] %vm27, 0.0
  %46 = vst.msk [vmem:[#allocation2 + $0x88] sm:$0x3] %vm30, 0.0
  %47 = vst.msk [vmem:[#allocation2 + $0x90] sm:$0xff] %vm27, 0.0
  %48 = vst.msk [vmem:[#allocation2 + $0x98] sm:$0xff] %vm27, 0.0
  %49 = vst.msk [vmem:[#allocation2 + $0xa0] sm:$0x3] %vm30, 0.0
  %50 = vst.msk [vmem:[#allocation2 + $0xa8] sm:$0xff] %vm27, 0.0
  %51 = vst.msk [vmem:[#allocation2 + $0xb0] sm:$0xff] %vm27, 0.0
  %52 = vst.msk [vmem:[#allocation2 + $0xb8] sm:$0x3] %vm30, 0.0
  %53 = vst.msk [vmem:[#allocation2 + $0xc0] sm:$0xff] %vm27, 0.0
  %54 = vst.msk [vmem:[#allocation2 + $0xc8] sm:$0xff] %vm27, 0.0
  %55 = vst.msk [vmem:[#allocation2 + $0xd0] sm:$0x3] %vm30, 0.0
  %56 = vst.msk [vmem:[#allocation2 + $0xd8] sm:$0xff] %vm27, 0.0
  %57 = vst.msk [vmem:[#allocation2 + $0xe0] sm:$0xff] %vm27, 0.0
  %58 = vst.msk [vmem:[#allocation2 + $0xe8] sm:$0x3] %vm30, 0.0
  %59 = vst.msk [vmem:[#allocation2 + $0xf0] sm:$0xff] %vm27, 0.0
  %60 = vst.msk [vmem:[#allocation2 + $0xf8] sm:$0xff] %vm27, 0.0
  %61 = vst.msk [vmem:[#allocation2 + $0x100] sm:$0x3] %vm30, 0.0
  %62 = vst.msk [vmem:[#allocation2 + $0x108] sm:$0xff] %vm27, 0.0
  %63 = vst.msk [vmem:[#allocation2 + $0x110] sm:$0xff] %vm27, 0.0
  %64 = vst.msk [vmem:[#allocation2 + $0x118] sm:$0x3] %vm30, 0.0
  %65 = vst.msk [vmem:[#allocation2 + $0x120] sm:$0xff] %vm27, 0.0
  %66 = vst.msk [vmem:[#allocation2 + $0x128] sm:$0xff] %vm27, 0.0
  %67 = vst.msk [vmem:[#allocation2 + $0x130] sm:$0x3] %vm30, 0.0
  %68 = vst.msk [vmem:[#allocation2 + $0x138] sm:$0xff] %vm27, 0.0
  %69 = vst.msk [vmem:[#allocation2 + $0x140] sm:$0xff] %vm27, 0.0
  %70 = vst.msk [vmem:[#allocation2 + $0x148] sm:$0x3] %vm30, 0.0
  %71 = vst.msk [vmem:[#allocation2 + $0x150] sm:$0xff] %vm27, 0.0
  %72 = vst.msk [vmem:[#allocation2 + $0x158] sm:$0xff] %vm27, 0.0
  %73 = vst.msk [vmem:[#allocation2 + $0x160] sm:$0x3] %vm30, 0.0
  %74 = vst.msk [vmem:[#allocation2 + $0x168] sm:$0xff] %vm27, 0.0
  %75 = vst.msk [vmem:[#allocation2 + $0x170] sm:$0xff] %vm27, 0.0
  %76 = vst.msk [vmem:[#allocation2 + $0x178] sm:$0x3] %vm30, 0.0
  %77 = vst.msk [vmem:[#allocation2 + $0x180] sm:$0xff] %vm27, 0.0
  %78 = vst.msk [vmem:[#allocation2 + $0x188] sm:$0xff] %vm27, 0.0
  %79 = vst.msk [vmem:[#allocation2 + $0x190] sm:$0x3] %vm30, 0.0
  %80 = vst.msk [vmem:[#allocation2 + $0x198] sm:$0xff] %vm27, 0.0
  %81 = vst.msk [vmem:[#allocation2 + $0x1a0] sm:$0xff] %vm27, 0.0
  %82 = vst.msk [vmem:[#allocation2 + $0x1a8] sm:$0x3] %vm30, 0.0
  %83 = vst.msk [vmem:[#allocation2 + $0x1b0] sm:$0xff] %vm27, 0.0
  %84 = vst.msk [vmem:[#allocation2 + $0x1b8] sm:$0xff] %vm27, 0.0
  %85 = vst.msk [vmem:[#allocation2 + $0x1c0] sm:$0x3] %vm30, 0.0
  %86 = vst.msk [vmem:[#allocation2 + $0x1c8] sm:$0xff] %vm27, 0.0
  %87 = vst.msk [vmem:[#allocation2 + $0x1d0] sm:$0xff] %vm27, 0.0
  %88 = vst.msk [vmem:[#allocation2 + $0x1d8] sm:$0x3] %vm30, 0.0
  %89 = vst.msk [vmem:[#allocation2 + $0x1e0] sm:$0xff] %vm27, 0.0
  %90 = vst.msk [vmem:[#allocation2 + $0x1e8] sm:$0xff] %vm27, 0.0
  %91 = vst.msk [vmem:[#allocation2 + $0x1f0] sm:$0x3] %vm30, 0.0
  %92 = vst.msk [vmem:[#allocation2 + $0x1f8] sm:$0xff] %vm27, 0.0
  %93 = vst.msk [vmem:[#allocation2 + $0x200] sm:$0xff] %vm27, 0.0
  %94 = vst.msk [vmem:[#allocation2 + $0x208] sm:$0x3] %vm30, 0.0
  %95 = vst.msk [vmem:[#allocation2 + $0x210] sm:$0xff] %vm27, 0.0
  %96 = vst.msk [vmem:[#allocation2 + $0x218] sm:$0xff] %vm27, 0.0
  %97 = vst.msk [vmem:[#allocation2 + $0x220] sm:$0x3] %vm30, 0.0
  %98 = vst.msk [vmem:[#allocation2 + $0x228] sm:$0xff] %vm27, 0.0
  %99 = vst.msk [vmem:[#allocation2 + $0x230] sm:$0xff] %vm27, 0.0
  %100 = vst.msk [vmem:[#allocation2 + $0x238] sm:$0x3] %vm30, 0.0
  %101 = vst.msk [vmem:[#allocation2 + $0x240] sm:$0xff] %vm27, 0.0
  %102 = vst.msk [vmem:[#allocation2 + $0x248] sm:$0xff] %vm27, 0.0
  %103 = vst.msk [vmem:[#allocation2 + $0x250] sm:$0x3] %vm30, 0.0
  %104 = vst.msk [vmem:[#allocation2 + $0x258] sm:$0xff] %vm27, 0.0
  %105 = vst.msk [vmem:[#allocation2 + $0x260] sm:$0xff] %vm27, 0.0
  %106 = vst.msk [vmem:[#allocation2 + $0x268] sm:$0x3] %vm30, 0.0
  %107 = vst.msk [vmem:[#allocation2 + $0x270] sm:$0xff] %vm27, 0.0
  %108 = vst.msk [vmem:[#allocation2 + $0x278] sm:$0xff] %vm27, 0.0
  %109 = vst.msk [vmem:[#allocation2 + $0x280] sm:$0x3] %vm30, 0.0
  %110 = vst.msk [vmem:[#allocation2 + $0x288] sm:$0xff] %vm27, 0.0
  %111 = vst.msk [vmem:[#allocation2 + $0x290] sm:$0xff] %vm27, 0.0
  %112 = vst.msk [vmem:[#allocation2 + $0x298] sm:$0x3] %vm30, 0.0
  %113 = vst.msk [vmem:[#allocation2 + $0x2a0] sm:$0xff] %vm27, 0.0
  %114 = vst.msk [vmem:[#allocation2 + $0x2a8] sm:$0xff] %vm27, 0.0
  %115 = vst.msk [vmem:[#allocation2 + $0x2b0] sm:$0x3] %vm30, 0.0
  %116 = vst.msk [vmem:[#allocation2 + $0x2b8] sm:$0xff] %vm27, 0.0
  %117 = vst.msk [vmem:[#allocation2 + $0x2c0] sm:$0xff] %vm27, 0.0
  %118 = vst.msk [vmem:[#allocation2 + $0x2c8] sm:$0x3] %vm30, 0.0
  %119 = vst.msk [vmem:[#allocation2 + $0x2d0] sm:$0xff] %vm27, 0.0
  %120 = vst.msk [vmem:[#allocation2 + $0x2d8] sm:$0xff] %vm27, 0.0
  %121 = vst.msk [vmem:[#allocation2 + $0x2e0] sm:$0x3] %vm30, 0.0
  %122 = vst.msk [vmem:[#allocation2 + $0x2e8] sm:$0xff] %vm27, 0.0
  %123 = vst.msk [vmem:[#allocation2 + $0x2f0] sm:$0xff] %vm27, 0.0
  %124 = vst.msk [vmem:[#allocation2 + $0x2f8] sm:$0x3] %vm30, 0.0
  %125 = vst.msk [vmem:[#allocation2 + $0x300] sm:$0xff] %vm27, 0.0
  %126 = vst.msk [vmem:[#allocation2 + $0x308] sm:$0xff] %vm27, 0.0
  %127 = vst.msk [vmem:[#allocation2 + $0x310] sm:$0x3] %vm30, 0.0
  %128 = vst.msk [vmem:[#allocation2 + $0x318] sm:$0xff] %vm27, 0.0
  %129 = vst.msk [vmem:[#allocation2 + $0x320] sm:$0xff] %vm27, 0.0
  %130 = vst.msk [vmem:[#allocation2 + $0x328] sm:$0x3] %vm30, 0.0
  %131 = vst.msk [vmem:[#allocation2 + $0x330] sm:$0xff] %vm27, 0.0
  %132 = vst.msk [vmem:[#allocation2 + $0x338] sm:$0xff] %vm27, 0.0
  %133 = vst.msk [vmem:[#allocation2 + $0x340] sm:$0x3] %vm30, 0.0
  %134 = vst.msk [vmem:[#allocation2 + $0x348] sm:$0xff] %vm27, 0.0
  %135 = vst.msk [vmem:[#allocation2 + $0x350] sm:$0xff] %vm27, 0.0
  %136 = vst.msk [vmem:[#allocation2 + $0x358] sm:$0x3] %vm30, 0.0
  %v137 = vld [vmem:[%s0] sm:$0xff]
  %v138 = vld [vmem:[%s0 + $0x8] sm:$0xff]
  %v139 = vld [vmem:[%s0 + $0x10] sm:$0xff]
  %v140 = vld [vmem:[%s0 + $0x18] sm:$0xff]
  %v141 = vld [vmem:[%s0 + $0x20] sm:$0xff]
  %v142 = vld [vmem:[%s0 + $0x28] sm:$0xff]
  %v143 = vld [vmem:[%s0 + $0x30] sm:$0xff]
  %v144 = vld [vmem:[%s0 + $0x38] sm:$0xff]
  %v145 = vld [vmem:[%s0 + $0x40] sm:$0xff]
  %v146 = vld [vmem:[%s0 + $0x48] sm:$0xff]
  %v147 = vld [vmem:[%s0 + $0x50] sm:$0xff]
  %v148 = vld [vmem:[%s0 + $0x58] sm:$0xff]
  %v149 = vld [vmem:[%s0 + $0x60] sm:$0xff]
  %v150 = vld [vmem:[%s0 + $0x68] sm:$0xff]
  %v151 = vld [vmem:[%s0 + $0x70] sm:$0xff]
  %v152 = vld [vmem:[%s0 + $0x78] sm:$0xff]
  %v153 = vld [vmem:[%s0 + $0x80] sm:$0xff]
  %v154 = vld [vmem:[%s0 + $0x88] sm:$0xff]
  %v155 = vld [vmem:[%s0 + $0x90] sm:$0xff]
  %v156 = vld [vmem:[%s0 + $0x98] sm:$0xff]
  %v157 = vld [vmem:[%s0 + $0xa0] sm:$0xff]
  %v158 = vld [vmem:[%s0 + $0xa8] sm:$0xff]
  %v159 = vld [vmem:[%s0 + $0xb0] sm:$0xff]
  %v160 = vld [vmem:[%s0 + $0xb8] sm:$0xff]
  %v161 = vld [vmem:[%s0 + $0xc0] sm:$0xff]
  %v162 = vld [vmem:[%s0 + $0xc8] sm:$0xff]
  %v163 = vld [vmem:[%s0 + $0xd0] sm:$0xff]
  %v164 = vld [vmem:[%s0 + $0xd8] sm:$0xff]
  %v165 = vld [vmem:[%s0 + $0xe0] sm:$0xff]
  %v166 = vld [vmem:[%s0 + $0xe8] sm:$0xff]
  %v167 = vld [vmem:[%s0 + $0xf0] sm:$0xff]
  %v168 = vld [vmem:[%s0 + $0xf8] sm:$0xff]
  %v169 = vld [vmem:[%s0 + $0x100] sm:$0xff]
  %v170 = vld [vmem:[%s0 + $0x108] sm:$0xff]
  %v171 = vld [vmem:[%s0 + $0x110] sm:$0xff]
  %v172 = vld [vmem:[%s0 + $0x118] sm:$0xff]
  %v173 = vld [vmem:[%s0 + $0x120] sm:$0xff]
  %v174 = vld [vmem:[%s0 + $0x128] sm:$0xff]
  %v175 = vld [vmem:[%s0 + $0x130] sm:$0xff]
  %v176 = vld [vmem:[%s0 + $0x138] sm:$0xff]
  %v177 = vld [vmem:[%s0 + $0x140] sm:$0xff]
  %v178 = vld [vmem:[%s0 + $0x148] sm:$0xff]
  %v179 = vld [vmem:[%s0 + $0x150] sm:$0xff]
  %v180 = vld [vmem:[%s0 + $0x158] sm:$0xff]
  %v181 = vld [vmem:[%s0 + $0x160] sm:$0xff]
  %v182 = vld [vmem:[%s0 + $0x168] sm:$0xff]
  %v183 = vld [vmem:[%s0 + $0x170] sm:$0xff]
  %v184 = vld [vmem:[%s0 + $0x178] sm:$0xff]
  %v185 = vld [vmem:[%s0 + $0x180] sm:$0xff]
  %v186 = vld [vmem:[%s0 + $0x188] sm:$0xff]
  %v187 = vld [vmem:[%s0 + $0x190] sm:$0xff]
  %v188 = vld [vmem:[%s0 + $0x198] sm:$0xff]
  %v189 = vld [vmem:[%s0 + $0x1a0] sm:$0xff]
  %v190 = vld [vmem:[%s0 + $0x1a8] sm:$0xff]
  %v191 = vld [vmem:[%s0 + $0x1b0] sm:$0xff]
  %v192 = vld [vmem:[%s0 + $0x1b8] sm:$0xff]
  %v193 = vld [vmem:[%s0 + $0x1c0] sm:$0xff]
  %v194 = vld [vmem:[%s0 + $0x1c8] sm:$0xff]
  %v195 = vld [vmem:[%s0 + $0x1d0] sm:$0xff]
  %v196 = vld [vmem:[%s0 + $0x1d8] sm:$0xff]
  %v197 = vld [vmem:[%s0 + $0x1e0] sm:$0xff]
  %v198 = vld [vmem:[%s0 + $0x1e8] sm:$0xff]
  %v199 = vld [vmem:[%s0 + $0x1f0] sm:$0xff]
  %v200 = vld [vmem:[%s0 + $0x1f8] sm:$0xff]
  %s201 = scalar_lea.vmem [#allocation2], 24
  %202 = vst.msk [vmem:[%s201 + $0x1] sm:$0xff] %vm27, %v137
  %203 = vst.msk [vmem:[%s201 + $0x9] sm:$0xff] %vm27, %v138
  %204 = vst.msk [vmem:[%s201 + $0x19] sm:$0xff] %vm27, %v139
  %205 = vst.msk [vmem:[%s201 + $0x21] sm:$0xff] %vm27, %v140
  %206 = vst.msk [vmem:[%s201 + $0x31] sm:$0xff] %vm27, %v141
  %207 = vst.msk [vmem:[%s201 + $0x39] sm:$0xff] %vm27, %v142
  %208 = vst.msk [vmem:[%s201 + $0x49] sm:$0xff] %vm27, %v143
  %209 = vst.msk [vmem:[%s201 + $0x51] sm:$0xff] %vm27, %v144
  %210 = vst.msk [vmem:[%s201 + $0x61] sm:$0xff] %vm27, %v145
  %211 = vst.msk [vmem:[%s201 + $0x69] sm:$0xff] %vm27, %v146
  %212 = vst.msk [vmem:[%s201 + $0x79] sm:$0xff] %vm27, %v147
  %213 = vst.msk [vmem:[%s201 + $0x81] sm:$0xff] %vm27, %v148
  %214 = vst.msk [vmem:[%s201 + $0x91] sm:$0xff] %vm27, %v149
  %215 = vst.msk [vmem:[%s201 + $0x99] sm:$0xff] %vm27, %v150
  %216 = vst.msk [vmem:[%s201 + $0xa9] sm:$0xff] %vm27, %v151
  %217 = vst.msk [vmem:[%s201 + $0xb1] sm:$0xff] %vm27, %v152
  %218 = vst.msk [vmem:[%s201 + $0xc1] sm:$0xff] %vm27, %v153
  %219 = vst.msk [vmem:[%s201 + $0xc9] sm:$0xff] %vm27, %v154
  %220 = vst.msk [vmem:[%s201 + $0xd9] sm:$0xff] %vm27, %v155
  %221 = vst.msk [vmem:[%s201 + $0xe1] sm:$0xff] %vm27, %v156
  %222 = vst.msk [vmem:[%s201 + $0xf1] sm:$0xff] %vm27, %v157
  %223 = vst.msk [vmem:[%s201 + $0xf9] sm:$0xff] %vm27, %v158
  %224 = vst.msk [vmem:[%s201 + $0x109] sm:$0xff] %vm27, %v159
  %225 = vst.msk [vmem:[%s201 + $0x111] sm:$0xff] %vm27, %v160
  %226 = vst.msk [vmem:[%s201 + $0x121] sm:$0xff] %vm27, %v161
  %227 = vst.msk [vmem:[%s201 + $0x129] sm:$0xff] %vm27, %v162
  %228 = vst.msk [vmem:[%s201 + $0x139] sm:$0xff] %vm27, %v163
  %229 = vst.msk [vmem:[%s201 + $0x141] sm:$0xff] %vm27, %v164
  %230 = vst.msk [vmem:[%s201 + $0x151] sm:$0xff] %vm27, %v165
  %231 = vst.msk [vmem:[%s201 + $0x159] sm:$0xff] %vm27, %v166
  %232 = vst.msk [vmem:[%s201 + $0x169] sm:$0xff] %vm27, %v167
  %233 = vst.msk [vmem:[%s201 + $0x171] sm:$0xff] %vm27, %v168
  %234 = vst.msk [vmem:[%s201 + $0x1b1] sm:$0xff] %vm27, %v169
  %235 = vst.msk [vmem:[%s201 + $0x1b9] sm:$0xff] %vm27, %v170
  %236 = vst.msk [vmem:[%s201 + $0x1c9] sm:$0xff] %vm27, %v171
  %237 = vst.msk [vmem:[%s201 + $0x1d1] sm:$0xff] %vm27, %v172
  %238 = vst.msk [vmem:[%s201 + $0x1e1] sm:$0xff] %vm27, %v173
  %239 = vst.msk [vmem:[%s201 + $0x1e9] sm:$0xff] %vm27, %v174
  %240 = vst.msk [vmem:[%s201 + $0x1f9] sm:$0xff] %vm27, %v175
  %241 = vst.msk [vmem:[%s201 + $0x201] sm:$0xff] %vm27, %v176
  %242 = vst.msk [vmem:[%s201 + $0x211] sm:$0xff] %vm27, %v177
  %243 = vst.msk [vmem:[%s201 + $0x219] sm:$0xff] %vm27, %v178
  %244 = vst.msk [vmem:[%s201 + $0x229] sm:$0xff] %vm27, %v179
  %245 = vst.msk [vmem:[%s201 + $0x231] sm:$0xff] %vm27, %v180
  %246 = vst.msk [vmem:[%s201 + $0x241] sm:$0xff] %vm27, %v181
  %247 = vst.msk [vmem:[%s201 + $0x249] sm:$0xff] %vm27, %v182
  %248 = vst.msk [vmem:[%s201 + $0x259] sm:$0xff] %vm27, %v183
  %249 = vst.msk [vmem:[%s201 + $0x261] sm:$0xff] %vm27, %v184
  %250 = vst.msk [vmem:[%s201 + $0x271] sm:$0xff] %vm27, %v185
  %251 = vst.msk [vmem:[%s201 + $0x279] sm:$0xff] %vm27, %v186
  %252 = vst.msk [vmem:[%s201 + $0x289] sm:$0xff] %vm27, %v187
  %253 = vst.msk [vmem:[%s201 + $0x291] sm:$0xff] %vm27, %v188
  %254 = vst.msk [vmem:[%s201 + $0x2a1] sm:$0xff] %vm27, %v189
  %255 = vst.msk [vmem:[%s201 + $0x2a9] sm:$0xff] %vm27, %v190
  %256 = vst.msk [vmem:[%s201 + $0x2b9] sm:$0xff] %vm27, %v191
  %257 = vst.msk [vmem:[%s201 + $0x2c1] sm:$0xff] %vm27, %v192
  %258 = vst.msk [vmem:[%s201 + $0x2d1] sm:$0xff] %vm27, %v193
  %259 = vst.msk [vmem:[%s201 + $0x2d9] sm:$0xff] %vm27, %v194
  %260 = vst.msk [vmem:[%s201 + $0x2e9] sm:$0xff] %vm27, %v195
  %261 = vst.msk [vmem:[%s201 + $0x2f1] sm:$0xff] %vm27, %v196
  %262 = vst.msk [vmem:[%s201 + $0x301] sm:$0xff] %vm27, %v197
  %263 = vst.msk [vmem:[%s201 + $0x309] sm:$0xff] %vm27, %v198
  %264 = vst.msk [vmem:[%s201 + $0x319] sm:$0xff] %vm27, %v199
  %265 = vst.msk [vmem:[%s201 + $0x321] sm:$0xff] %vm27, %v200
  %v266 = vld [vmem:[#allocation2] sm:$0xff]
  %v267 = vld [vmem:[#allocation2 + $0x8] sm:$0xff]
  %v268 = vld [vmem:[#allocation2 + $0x18] sm:$0xff]
  %v269 = vld [vmem:[#allocation2 + $0x20] sm:$0xff]
  %v270 = vld [vmem:[#allocation2 + $0x30] sm:$0xff]
  %v271 = vld [vmem:[#allocation2 + $0x38] sm:$0xff]
  %v272 = vld [vmem:[#allocation2 + $0x48] sm:$0xff]
  %v273 = vld [vmem:[#allocation2 + $0x50] sm:$0xff]
  %v274 = vld [vmem:[#allocation2 + $0x60] sm:$0xff]
  %v275 = vld [vmem:[#allocation2 + $0x68] sm:$0xff]
  %v276 = vld [vmem:[#allocation2 + $0x78] sm:$0xff]
  %v277 = vld [vmem:[#allocation2 + $0x80] sm:$0xff]
  %v278 = vld [vmem:[#allocation2 + $0x90] sm:$0xff]
  %v279 = vld [vmem:[#allocation2 + $0x98] sm:$0xff]
  %v280 = vld [vmem:[#allocation2 + $0xa8] sm:$0xff]
  %v281 = vld [vmem:[#allocation2 + $0xb0] sm:$0xff]
  %v282 = vld [vmem:[#allocation2 + $0xc0] sm:$0xff]
  %v283 = vld [vmem:[#allocation2 + $0xc8] sm:$0xff]
  %v284 = vld [vmem:[#allocation2 + $0xd8] sm:$0xff]
  %v285 = vld [vmem:[#allocation2 + $0xe0] sm:$0xff]
  %v286 = vld [vmem:[#allocation2 + $0xf0] sm:$0xff]
  %v287 = vld [vmem:[#allocation2 + $0xf8] sm:$0xff]
  %v288 = vld [vmem:[#allocation2 + $0x108] sm:$0xff]
  %v289 = vld [vmem:[#allocation2 + $0x110] sm:$0xff]
  %v290 = vld [vmem:[#allocation2 + $0x120] sm:$0xff]
  %v291 = vld [vmem:[#allocation2 + $0x128] sm:$0xff]
  %v292 = vld [vmem:[#allocation2 + $0x138] sm:$0xff]
  %v293 = vld [vmem:[#allocation2 + $0x140] sm:$0xff]
  %v294 = vld [vmem:[#allocation2 + $0x150] sm:$0xff]
  %v295 = vld [vmem:[#allocation2 + $0x158] sm:$0xff]
  %v296 = vld [vmem:[#allocation2 + $0x168] sm:$0xff]
  %v297 = vld [vmem:[#allocation2 + $0x170] sm:$0xff]
  %v298 = vld [vmem:[#allocation2 + $0x1b0] sm:$0xff]
  %v299 = vld [vmem:[#allocation2 + $0x1b8] sm:$0xff]
  %v300 = vld [vmem:[#allocation2 + $0x1c8] sm:$0xff]
  %v301 = vld [vmem:[#allocation2 + $0x1d0] sm:$0xff]
  %v302 = vld [vmem:[#allocation2 + $0x1e0] sm:$0xff]
  %v303 = vld [vmem:[#allocation2 + $0x1e8] sm:$0xff]
  %v304 = vld [vmem:[#allocation2 + $0x1f8] sm:$0xff]
  %v305 = vld [vmem:[#allocation2 + $0x200] sm:$0xff]
  %v306 = vld [vmem:[#allocation2 + $0x210] sm:$0xff]
  %v307 = vld [vmem:[#allocation2 + $0x218] sm:$0xff]
  %v308 = vld [vmem:[#allocation2 + $0x228] sm:$0xff]
  %v309 = vld [vmem:[#allocation2 + $0x230] sm:$0xff]
  %v310 = vld [vmem:[#allocation2 + $0x240] sm:$0xff]
  %v311 = vld [vmem:[#allocation2 + $0x248] sm:$0xff]
  %v312 = vld [vmem:[#allocation2 + $0x258] sm:$0xff]
  %v313 = vld [vmem:[#allocation2 + $0x260] sm:$0xff]
  %v314 = vld [vmem:[#allocation2 + $0x270] sm:$0xff]
  %v315 = vld [vmem:[#allocation2 + $0x278] sm:$0xff]
  %v316 = vld [vmem:[#allocation2 + $0x288] sm:$0xff]
  %v317 = vld [vmem:[#allocation2 + $0x290] sm:$0xff]
  %v318 = vld [vmem:[#allocation2 + $0x2a0] sm:$0xff]
  %v319 = vld [vmem:[#allocation2 + $0x2a8] sm:$0xff]
  %v320 = vld [vmem:[#allocation2 + $0x2b8] sm:$0xff]
  %v321 = vld [vmem:[#allocation2 + $0x2c0] sm:$0xff]
  %v322 = vld [vmem:[#allocation2 + $0x2d0] sm:$0xff]
  %v323 = vld [vmem:[#allocation2 + $0x2d8] sm:$0xff]
  %v324 = vld [vmem:[#allocation2 + $0x2e8] sm:$0xff]
  %v325 = vld [vmem:[#allocation2 + $0x2f0] sm:$0xff]
  %v326 = vld [vmem:[#allocation2 + $0x300] sm:$0xff]
  %v327 = vld [vmem:[#allocation2 + $0x308] sm:$0xff]
  %v328 = vld [vmem:[#allocation2 + $0x318] sm:$0xff]
  %v329 = vld [vmem:[#allocation2 + $0x320] sm:$0xff]
  %330 = vst.msk [vmem:[#allocation4] sm:$0xff] %vm27, %v266
  %331 = vst.msk [vmem:[#allocation4 + $0x8] sm:$0xff] %vm27, %v267
  %332 = vst.msk [vmem:[#allocation4 + $0x10] sm:$0xff] %vm27, %v268
  %333 = vst.msk [vmem:[#allocation4 + $0x18] sm:$0xff] %vm27, %v269
  %334 = vst.msk [vmem:[#allocation4 + $0x20] sm:$0xff] %vm27, %v270
  %335 = vst.msk [vmem:[#allocation4 + $0x28] sm:$0xff] %vm27, %v271
  %336 = vst.msk [vmem:[#allocation4 + $0x30] sm:$0xff] %vm27, %v272
  %337 = vst.msk [vmem:[#allocation4 + $0x38] sm:$0xff] %vm27, %v273
  %338 = vst.msk [vmem:[#allocation4 + $0x40] sm:$0xff] %vm27, %v274
  %339 = vst.msk [vmem:[#allocation4 + $0x48] sm:$0xff] %vm27, %v275
  %340 = vst.msk [vmem:[#allocation4 + $0x50] sm:$0xff] %vm27, %v276
  %341 = vst.msk [vmem:[#allocation4 + $0x58] sm:$0xff] %vm27, %v277
  %342 = vst.msk [vmem:[#allocation4 + $0x60] sm:$0xff] %vm27, %v278
  %343 = vst.msk [vmem:[#allocation4 + $0x68] sm:$0xff] %vm27, %v279
  %344 = vst.msk [vmem:[#allocation4 + $0x70] sm:$0xff] %vm27, %v280
  %345 = vst.msk [vmem:[#allocation4 + $0x78] sm:$0xff] %vm27, %v281
  %346 = vst.msk [vmem:[#allocation4 + $0x80] sm:$0xff] %vm27, %v282
  %347 = vst.msk [vmem:[#allocation4 + $0x88] sm:$0xff] %vm27, %v283
  %348 = vst.msk [vmem:[#allocation4 + $0x90] sm:$0xff] %vm27, %v284
  %349 = vst.msk [vmem:[#allocation4 + $0x98] sm:$0xff] %vm27, %v285
  %350 = vst.msk [vmem:[#allocation4 + $0xa0] sm:$0xff] %vm27, %v286
  %351 = vst.msk [vmem:[#allocation4 + $0xa8] sm:$0xff] %vm27, %v287
  %352 = vst.msk [vmem:[#allocation4 + $0xb0] sm:$0xff] %vm27, %v288
  %353 = vst.msk [vmem:[#allocation4 + $0xb8] sm:$0xff] %vm27, %v289
  %354 = vst.msk [vmem:[#allocation4 + $0xc0] sm:$0xff] %vm27, %v290
  %355 = vst.msk [vmem:[#allocation4 + $0xc8] sm:$0xff] %vm27, %v291
  %356 = vst.msk [vmem:[#allocation4 + $0xd0] sm:$0xff] %vm27, %v292
  %357 = vst.msk [vmem:[#allocation4 + $0xd8] sm:$0xff] %vm27, %v293
  %358 = vst.msk [vmem:[#allocation4 + $0xe0] sm:$0xff] %vm27, %v294
  %359 = vst.msk [vmem:[#allocation4 + $0xe8] sm:$0xff] %vm27, %v295
  %360 = vst.msk [vmem:[#allocation4 + $0xf0] sm:$0xff] %vm27, %v296
  %361 = vst.msk [vmem:[#allocation4 + $0xf8] sm:$0xff] %vm27, %v297
  %362 = vst.msk [vmem:[#allocation4 + $0x100] sm:$0xff] %vm27, %v298
  %363 = vst.msk [vmem:[#allocation4 + $0x108] sm:$0xff] %vm27, %v299
  %364 = vst.msk [vmem:[#allocation4 + $0x110] sm:$0xff] %vm27, %v300
  %365 = vst.msk [vmem:[#allocation4 + $0x118] sm:$0xff] %vm27, %v301
  %366 = vst.msk [vmem:[#allocation4 + $0x120] sm:$0xff] %vm27, %v302
  %367 = vst.msk [vmem:[#allocation4 + $0x128] sm:$0xff] %vm27, %v303
  %368 = vst.msk [vmem:[#allocation4 + $0x130] sm:$0xff] %vm27, %v304
  %369 = vst.msk [vmem:[#allocation4 + $0x138] sm:$0xff] %vm27, %v305
  %370 = vst.msk [vmem:[#allocation4 + $0x140] sm:$0xff] %vm27, %v306
  %371 = vst.msk [vmem:[#allocation4 + $0x148] sm:$0xff] %vm27, %v307
  %372 = vst.msk [vmem:[#allocation4 + $0x150] sm:$0xff] %vm27, %v308
  %373 = vst.msk [vmem:[#allocation4 + $0x158] sm:$0xff] %vm27, %v309
  %374 = vst.msk [vmem:[#allocation4 + $0x160] sm:$0xff] %vm27, %v310
  %375 = vst.msk [vmem:[#allocation4 + $0x168] sm:$0xff] %vm27, %v311
  %376 = vst.msk [vmem:[#allocation4 + $0x170] sm:$0xff] %vm27, %v312
  %377 = vst.msk [vmem:[#allocation4 + $0x178] sm:$0xff] %vm27, %v313
  %378 = vst.msk [vmem:[#allocation4 + $0x180] sm:$0xff] %vm27, %v314
  %379 = vst.msk [vmem:[#allocation4 + $0x188] sm:$0xff] %vm27, %v315
  %380 = vst.msk [vmem:[#allocation4 + $0x190] sm:$0xff] %vm27, %v316
  %381 = vst.msk [vmem:[#allocation4 + $0x198] sm:$0xff] %vm27, %v317
  %382 = vst.msk [vmem:[#allocation4 + $0x1a0] sm:$0xff] %vm27, %v318
  %383 = vst.msk [vmem:[#allocation4 + $0x1a8] sm:$0xff] %vm27, %v319
  %384 = vst.msk [vmem:[#allocation4 + $0x1b0] sm:$0xff] %vm27, %v320
  %385 = vst.msk [vmem:[#allocation4 + $0x1b8] sm:$0xff] %vm27, %v321
  %386 = vst.msk [vmem:[#allocation4 + $0x1c0] sm:$0xff] %vm27, %v322
  %387 = vst.msk [vmem:[#allocation4 + $0x1c8] sm:$0xff] %vm27, %v323
  %388 = vst.msk [vmem:[#allocation4 + $0x1d0] sm:$0xff] %vm27, %v324
  %389 = vst.msk [vmem:[#allocation4 + $0x1d8] sm:$0xff] %vm27, %v325
  %390 = vst.msk [vmem:[#allocation4 + $0x1e0] sm:$0xff] %vm27, %v326
  %391 = vst.msk [vmem:[#allocation4 + $0x1e8] sm:$0xff] %vm27, %v327
  %392 = vst.msk [vmem:[#allocation4 + $0x1f0] sm:$0xff] %vm27, %v328
  %393 = vst.msk [vmem:[#allocation4 + $0x1f8] sm:$0xff] %vm27, %v329
  %v394 = vld [vmem:[#allocation2 + $0x1] sm:$0xff]
  %v395 = vld [vmem:[#allocation2 + $0x9] sm:$0xff]
  %v396 = vld [vmem:[#allocation2 + $0x19] sm:$0xff]
  %v397 = vld [vmem:[#allocation2 + $0x21] sm:$0xff]
  %v398 = vld [vmem:[#allocation2 + $0x31] sm:$0xff]
  %v399 = vld [vmem:[#allocation2 + $0x39] sm:$0xff]
  %v400 = vld [vmem:[#allocation2 + $0x49] sm:$0xff]
  %v401 = vld [vmem:[#allocation2 + $0x51] sm:$0xff]
  %v402 = vld [vmem:[#allocation2 + $0x61] sm:$0xff]
  %v403 = vld [vmem:[#allocation2 + $0x69] sm:$0xff]
  %v404 = vld [vmem:[#allocation2 + $0x79] sm:$0xff]
  %v405 = vld [vmem:[#allocation2 + $0x81] sm:$0xff]
  %v406 = vld [vmem:[#allocation2 + $0x91] sm:$0xff]
  %v407 = vld [vmem:[#allocation2 + $0x99] sm:$0xff]
  %v408 = vld [vmem:[#allocation2 + $0xa9] sm:$0xff]
  %v409 = vld [vmem:[#allocation2 + $0xb1] sm:$0xff]
  %v410 = vld [vmem:[#allocation2 + $0xc1] sm:$0xff]
  %v411 = vld [vmem:[#allocation2 + $0xc9] sm:$0xff]
  %v412 = vld [vmem:[#allocation2 + $0xd9] sm:$0xff]
  %v413 = vld [vmem:[#allocation2 + $0xe1] sm:$0xff]
  %v414 = vld [vmem:[#allocation2 + $0xf1] sm:$0xff]
  %v415 = vld [vmem:[#allocation2 + $0xf9] sm:$0xff]
  %v416 = vld [vmem:[#allocation2 + $0x109] sm:$0xff]
  %v417 = vld [vmem:[#allocation2 + $0x111] sm:$0xff]
  %v418 = vld [vmem:[#allocation2 + $0x121] sm:$0xff]
  %v419 = vld [vmem:[#allocation2 + $0x129] sm:$0xff]
  %v420 = vld [vmem:[#allocation2 + $0x139] sm:$0xff]
  %v421 = vld [vmem:[#allocation2 + $0x141] sm:$0xff]
  %v422 = vld [vmem:[#allocation2 + $0x151] sm:$0xff]
  %v423 = vld [vmem:[#allocation2 + $0x159] sm:$0xff]
  %v424 = vld [vmem:[#allocation2 + $0x169] sm:$0xff]
  %v425 = vld [vmem:[#allocation2 + $0x171] sm:$0xff]
  %v426 = vld [vmem:[#allocation2 + $0x1b1] sm:$0xff]
  %v427 = vld [vmem:[#allocation2 + $0x1b9] sm:$0xff]
  %v428 = vld [vmem:[#allocation2 + $0x1c9] sm:$0xff]
  %v429 = vld [vmem:[#allocation2 + $0x1d1] sm:$0xff]
  %v430 = vld [vmem:[#allocation2 + $0x1e1] sm:$0xff]
  %v431 = vld [vmem:[#allocation2 + $0x1e9] sm:$0xff]
  %v432 = vld [vmem:[#allocation2 + $0x1f9] sm:$0xff]
  %v433 = vld [vmem:[#allocation2 + $0x201] sm:$0xff]
  %v434 = vld [vmem:[#allocation2 + $0x211] sm:$0xff]
  %v435 = vld [vmem:[#allocation2 + $0x219] sm:$0xff]
  %v436 = vld [vmem:[#allocation2 + $0x229] sm:$0xff]
  %v437 = vld [vmem:[#allocation2 + $0x231] sm:$0xff]
  %v438 = vld [vmem:[#allocation2 + $0x241] sm:$0xff]
  %v439 = vld [vmem:[#allocation2 + $0x249] sm:$0xff]
  %v440 = vld [vmem:[#allocation2 + $0x259] sm:$0xff]
  %v441 = vld [vmem:[#allocation2 + $0x261] sm:$0xff]
  %v442 = vld [vmem:[#allocation2 + $0x271] sm:$0xff]
  %v443 = vld [vmem:[#allocation2 + $0x279] sm:$0xff]
  %v444 = vld [vmem:[#allocation2 + $0x289] sm:$0xff]
  %v445 = vld [vmem:[#allocation2 + $0x291] sm:$0xff]
  %v446 = vld [vmem:[#allocation2 + $0x2a1] sm:$0xff]
  %v447 = vld [vmem:[#allocation2 + $0x2a9] sm:$0xff]
  %v448 = vld [vmem:[#allocation2 + $0x2b9] sm:$0xff]
  %v449 = vld [vmem:[#allocation2 + $0x2c1] sm:$0xff]
  %v450 = vld [vmem:[#allocation2 + $0x2d1] sm:$0xff]
  %v451 = vld [vmem:[#allocation2 + $0x2d9] sm:$0xff]
  %v452 = vld [vmem:[#allocation2 + $0x2e9] sm:$0xff]
  %v453 = vld [vmem:[#allocation2 + $0x2f1] sm:$0xff]
  %v454 = vld [vmem:[#allocation2 + $0x301] sm:$0xff]
  %v455 = vld [vmem:[#allocation2 + $0x309] sm:$0xff]
  %v456 = vld [vmem:[#allocation2 + $0x319] sm:$0xff]
  %v457 = vld [vmem:[#allocation2 + $0x321] sm:$0xff]
  %522 = vrot.lane.b32.xlu0 %v394, 4
  %v523 = vpop.permute.xlu0 %522
  %524 = vrot.lane.b32.xlu0 %v395, 4
  %v525 = vpop.permute.xlu0 %524
  %526 = vrot.lane.b32.xlu0 %v396, 4
  %v527 = vpop.permute.xlu0 %526
  %528 = vrot.lane.b32.xlu0 %v397, 4
  %v529 = vpop.permute.xlu0 %528
  %530 = vrot.lane.b32.xlu0 %v398, 4
  %v531 = vpop.permute.xlu0 %530
  %532 = vrot.lane.b32.xlu0 %v399, 4
  %v533 = vpop.permute.xlu0 %532
  %534 = vrot.lane.b32.xlu0 %v400, 4
  %v535 = vpop.permute.xlu0 %534
  %536 = vrot.lane.b32.xlu0 %v401, 4
  %v537 = vpop.permute.xlu0 %536
  %538 = vrot.lane.b32.xlu0 %v402, 4
  %v539 = vpop.permute.xlu0 %538
  %540 = vrot.lane.b32.xlu0 %v403, 4
  %v541 = vpop.permute.xlu0 %540
  %542 = vrot.lane.b32.xlu0 %v404, 4
  %v543 = vpop.permute.xlu0 %542
  %544 = vrot.lane.b32.xlu0 %v405, 4
  %v545 = vpop.permute.xlu0 %544
  %546 = vrot.lane.b32.xlu0 %v406, 4
  %v547 = vpop.permute.xlu0 %546
  %548 = vrot.lane.b32.xlu0 %v407, 4
  %v549 = vpop.permute.xlu0 %548
  %550 = vrot.lane.b32.xlu0 %v408, 4
  %v551 = vpop.permute.xlu0 %550
  %552 = vrot.lane.b32.xlu0 %v409, 4
  %v553 = vpop.permute.xlu0 %552
  %554 = vrot.lane.b32.xlu0 %v410, 4
  %v555 = vpop.permute.xlu0 %554
  %556 = vrot.lane.b32.xlu0 %v411, 4
  %v557 = vpop.permute.xlu0 %556
  %558 = vrot.lane.b32.xlu0 %v412, 4
  %v559 = vpop.permute.xlu0 %558
  %560 = vrot.lane.b32.xlu0 %v413, 4
  %v561 = vpop.permute.xlu0 %560
  %562 = vrot.lane.b32.xlu0 %v414, 4
  %v563 = vpop.permute.xlu0 %562
  %564 = vrot.lane.b32.xlu0 %v415, 4
  %v565 = vpop.permute.xlu0 %564
  %566 = vrot.lane.b32.xlu0 %v416, 4
  %v567 = vpop.permute.xlu0 %566
  %568 = vrot.lane.b32.xlu0 %v417, 4
  %v569 = vpop.permute.xlu0 %568
  %570 = vrot.lane.b32.xlu0 %v418, 4
  %v571 = vpop.permute.xlu0 %570
  %572 = vrot.lane.b32.xlu0 %v419, 4
  %v573 = vpop.permute.xlu0 %572
  %574 = vrot.lane.b32.xlu0 %v420, 4
  %v575 = vpop.permute.xlu0 %574
  %576 = vrot.lane.b32.xlu0 %v421, 4
  %v577 = vpop.permute.xlu0 %576
  %578 = vrot.lane.b32.xlu0 %v422, 4
  %v579 = vpop.permute.xlu0 %578
  %580 = vrot.lane.b32.xlu0 %v423, 4
  %v581 = vpop.permute.xlu0 %580
  %582 = vrot.lane.b32.xlu0 %v424, 4
  %v583 = vpop.permute.xlu0 %582
  %584 = vrot.lane.b32.xlu0 %v425, 4
  %v585 = vpop.permute.xlu0 %584
  %586 = vrot.lane.b32.xlu0 %v426, 4
  %v587 = vpop.permute.xlu0 %586
  %588 = vrot.lane.b32.xlu0 %v427, 4
  %v589 = vpop.permute.xlu0 %588
  %590 = vrot.lane.b32.xlu0 %v428, 4
  %v591 = vpop.permute.xlu0 %590
  %592 = vrot.lane.b32.xlu0 %v429, 4
  %v593 = vpop.permute.xlu0 %592
  %594 = vrot.lane.b32.xlu0 %v430, 4
  %v595 = vpop.permute.xlu0 %594
  %596 = vrot.lane.b32.xlu0 %v431, 4
  %v597 = vpop.permute.xlu0 %596
  %598 = vrot.lane.b32.xlu0 %v432, 4
  %v599 = vpop.permute.xlu0 %598
  %600 = vrot.lane.b32.xlu0 %v433, 4
  %v601 = vpop.permute.xlu0 %600
  %602 = vrot.lane.b32.xlu0 %v434, 4
  %v603 = vpop.permute.xlu0 %602
  %604 = vrot.lane.b32.xlu0 %v435, 4
  %v605 = vpop.permute.xlu0 %604
  %606 = vrot.lane.b32.xlu0 %v436, 4
  %v607 = vpop.permute.xlu0 %606
  %608 = vrot.lane.b32.xlu0 %v437, 4
  %v609 = vpop.permute.xlu0 %608
  %610 = vrot.lane.b32.xlu0 %v438, 4
  %v611 = vpop.permute.xlu0 %610
  %612 = vrot.lane.b32.xlu0 %v439, 4
  %v613 = vpop.permute.xlu0 %612
  %614 = vrot.lane.b32.xlu0 %v440, 4
  %v615 = vpop.permute.xlu0 %614
  %616 = vrot.lane.b32.xlu0 %v441, 4
  %v617 = vpop.permute.xlu0 %616
  %618 = vrot.lane.b32.xlu0 %v442, 4
  %v619 = vpop.permute.xlu0 %618
  %620 = vrot.lane.b32.xlu0 %v443, 4
  %v621 = vpop.permute.xlu0 %620
  %622 = vrot.lane.b32.xlu0 %v444, 4
  %v623 = vpop.permute.xlu0 %622
  %624 = vrot.lane.b32.xlu0 %v445, 4
  %v625 = vpop.permute.xlu0 %624
  %626 = vrot.lane.b32.xlu0 %v446, 4
  %v627 = vpop.permute.xlu0 %626
  %628 = vrot.lane.b32.xlu0 %v447, 4
  %v629 = vpop.permute.xlu0 %628
  %630 = vrot.lane.b32.xlu0 %v448, 4
  %v631 = vpop.permute.xlu0 %630
  %632 = vrot.lane.b32.xlu0 %v449, 4
  %v633 = vpop.permute.xlu0 %632
  %634 = vrot.lane.b32.xlu0 %v450, 4
  %v635 = vpop.permute.xlu0 %634
  %636 = vrot.lane.b32.xlu0 %v451, 4
  %v637 = vpop.permute.xlu0 %636
  %638 = vrot.lane.b32.xlu0 %v452, 4
  %v639 = vpop.permute.xlu0 %638
  %640 = vrot.lane.b32.xlu0 %v453, 4
  %v641 = vpop.permute.xlu0 %640
  %642 = vrot.lane.b32.xlu0 %v454, 4
  %v643 = vpop.permute.xlu0 %642
  %644 = vrot.lane.b32.xlu0 %v455, 4
  %v645 = vpop.permute.xlu0 %644
  %646 = vrot.lane.b32.xlu0 %v456, 4
  %v647 = vpop.permute.xlu0 %646
  %648 = vrot.lane.b32.xlu0 %v457, 4
  %v649 = vpop.permute.xlu0 %648
  %vm714 = vcmask 64544
  %715 = vst.msk [vmem:[#allocation4] sm:$0xff] %vm714, %v523
  %716 = vst.msk [vmem:[#allocation4 + $0x8] sm:$0xff] %vm714, %v525
  %717 = vst.msk [vmem:[#allocation4 + $0x10] sm:$0xff] %vm714, %v527
  %718 = vst.msk [vmem:[#allocation4 + $0x18] sm:$0xff] %vm714, %v529
  %719 = vst.msk [vmem:[#allocation4 + $0x20] sm:$0xff] %vm714, %v531
  %720 = vst.msk [vmem:[#allocation4 + $0x28] sm:$0xff] %vm714, %v533
  %721 = vst.msk [vmem:[#allocation4 + $0x30] sm:$0xff] %vm714, %v535
  %722 = vst.msk [vmem:[#allocation4 + $0x38] sm:$0xff] %vm714, %v537
  %723 = vst.msk [vmem:[#allocation4 + $0x40] sm:$0xff] %vm714, %v539
  %724 = vst.msk [vmem:[#allocation4 + $0x48] sm:$0xff] %vm714, %v541
  %725 = vst.msk [vmem:[#allocation4 + $0x50] sm:$0xff] %vm714, %v543
  %726 = vst.msk [vmem:[#allocation4 + $0x58] sm:$0xff] %vm714, %v545
  %727 = vst.msk [vmem:[#allocation4 + $0x60] sm:$0xff] %vm714, %v547
  %728 = vst.msk [vmem:[#allocation4 + $0x68] sm:$0xff] %vm714, %v549
  %729 = vst.msk [vmem:[#allocation4 + $0x70] sm:$0xff] %vm714, %v551
  %730 = vst.msk [vmem:[#allocation4 + $0x78] sm:$0xff] %vm714, %v553
  %731 = vst.msk [vmem:[#allocation4 + $0x80] sm:$0xff] %vm714, %v555
  %732 = vst.msk [vmem:[#allocation4 + $0x88] sm:$0xff] %vm714, %v557
  %733 = vst.msk [vmem:[#allocation4 + $0x90] sm:$0xff] %vm714, %v559
  %734 = vst.msk [vmem:[#allocation4 + $0x98] sm:$0xff] %vm714, %v561
  %735 = vst.msk [vmem:[#allocation4 + $0xa0] sm:$0xff] %vm714, %v563
  %736 = vst.msk [vmem:[#allocation4 + $0xa8] sm:$0xff] %vm714, %v565
  %737 = vst.msk [vmem:[#allocation4 + $0xb0] sm:$0xff] %vm714, %v567
  %738 = vst.msk [vmem:[#allocation4 + $0xb8] sm:$0xff] %vm714, %v569
  %739 = vst.msk [vmem:[#allocation4 + $0xc0] sm:$0xff] %vm714, %v571
  %740 = vst.msk [vmem:[#allocation4 + $0xc8] sm:$0xff] %vm714, %v573
  %741 = vst.msk [vmem:[#allocation4 + $0xd0] sm:$0xff] %vm714, %v575
  %742 = vst.msk [vmem:[#allocation4 + $0xd8] sm:$0xff] %vm714, %v577
  %743 = vst.msk [vmem:[#allocation4 + $0xe0] sm:$0xff] %vm714, %v579
  %744 = vst.msk [vmem:[#allocation4 + $0xe8] sm:$0xff] %vm714, %v581
  %745 = vst.msk [vmem:[#allocation4 + $0xf0] sm:$0xff] %vm714, %v583
  %746 = vst.msk [vmem:[#allocation4 + $0xf8] sm:$0xff] %vm714, %v585
  %747 = vst.msk [vmem:[#allocation4 + $0x100] sm:$0xff] %vm714, %v587
  %748 = vst.msk [vmem:[#allocation4 + $0x108] sm:$0xff] %vm714, %v589
  %749 = vst.msk [vmem:[#allocation4 + $0x110] sm:$0xff] %vm714, %v591
  %750 = vst.msk [vmem:[#allocation4 + $0x118] sm:$0xff] %vm714, %v593
  %751 = vst.msk [vmem:[#allocation4 + $0x120] sm:$0xff] %vm714, %v595
  %752 = vst.msk [vmem:[#allocation4 + $0x128] sm:$0xff] %vm714, %v597
  %753 = vst.msk [vmem:[#allocation4 + $0x130] sm:$0xff] %vm714, %v599
  %754 = vst.msk [vmem:[#allocation4 + $0x138] sm:$0xff] %vm714, %v601
  %755 = vst.msk [vmem:[#allocation4 + $0x140] sm:$0xff] %vm714, %v603
  %756 = vst.msk [vmem:[#allocation4 + $0x148] sm:$0xff] %vm714, %v605
  %757 = vst.msk [vmem:[#allocation4 + $0x150] sm:$0xff] %vm714, %v607
  %758 = vst.msk [vmem:[#allocation4 + $0x158] sm:$0xff] %vm714, %v609
  %759 = vst.msk [vmem:[#allocation4 + $0x160] sm:$0xff] %vm714, %v611
  %760 = vst.msk [vmem:[#allocation4 + $0x168] sm:$0xff] %vm714, %v613
  %761 = vst.msk [vmem:[#allocation4 + $0x170] sm:$0xff] %vm714, %v615
  %762 = vst.msk [vmem:[#allocation4 + $0x178] sm:$0xff] %vm714, %v617
  %763 = vst.msk [vmem:[#allocation4 + $0x180] sm:$0xff] %vm714, %v619
  %764 = vst.msk [vmem:[#allocation4 + $0x188] sm:$0xff] %vm714, %v621
  %765 = vst.msk [vmem:[#allocation4 + $0x190] sm:$0xff] %vm714, %v623
  %766 = vst.msk [vmem:[#allocation4 + $0x198] sm:$0xff] %vm714, %v625
  %767 = vst.msk [vmem:[#allocation4 + $0x1a0] sm:$0xff] %vm714, %v627
  %768 = vst.msk [vmem:[#allocation4 + $0x1a8] sm:$0xff] %vm714, %v629
  %769 = vst.msk [vmem:[#allocation4 + $0x1b0] sm:$0xff] %vm714, %v631
  %770 = vst.msk [vmem:[#allocation4 + $0x1b8] sm:$0xff] %vm714, %v633
  %771 = vst.msk [vmem:[#allocation4 + $0x1c0] sm:$0xff] %vm714, %v635
  %772 = vst.msk [vmem:[#allocation4 + $0x1c8] sm:$0xff] %vm714, %v637
  %773 = vst.msk [vmem:[#allocation4 + $0x1d0] sm:$0xff] %vm714, %v639
  %774 = vst.msk [vmem:[#allocation4 + $0x1d8] sm:$0xff] %vm714, %v641
  %775 = vst.msk [vmem:[#allocation4 + $0x1e0] sm:$0xff] %vm714, %v643
  %776 = vst.msk [vmem:[#allocation4 + $0x1e8] sm:$0xff] %vm714, %v645
  %777 = vst.msk [vmem:[#allocation4 + $0x1f0] sm:$0xff] %vm714, %v647
  %778 = vst.msk [vmem:[#allocation4 + $0x1f8] sm:$0xff] %vm714, %v649
  %v779 = vld [vmem:[#allocation2 + $0x2] sm:$0xff]
  %v780 = vld [vmem:[#allocation2 + $0xa] sm:$0xff]
  %v781 = vld [vmem:[#allocation2 + $0x1a] sm:$0xff]
  %v782 = vld [vmem:[#allocation2 + $0x22] sm:$0xff]
  %v783 = vld [vmem:[#allocation2 + $0x32] sm:$0xff]
  %v784 = vld [vmem:[#allocation2 + $0x3a] sm:$0xff]
  %v785 = vld [vmem:[#allocation2 + $0x4a] sm:$0xff]
  %v786 = vld [vmem:[#allocation2 + $0x52] sm:$0xff]
  %v787 = vld [vmem:[#allocation2 + $0x62] sm:$0xff]
  %v788 = vld [vmem:[#allocation2 + $0x6a] sm:$0xff]
  %v789 = vld [vmem:[#allocation2 + $0x7a] sm:$0xff]
  %v790 = vld [vmem:[#allocation2 + $0x82] sm:$0xff]
  %v791 = vld [vmem:[#allocation2 + $0x92] sm:$0xff]
  %v792 = vld [vmem:[#allocation2 + $0x9a] sm:$0xff]
  %v793 = vld [vmem:[#allocation2 + $0xaa] sm:$0xff]
  %v794 = vld [vmem:[#allocation2 + $0xb2] sm:$0xff]
  %v795 = vld [vmem:[#allocation2 + $0xc2] sm:$0xff]
  %v796 = vld [vmem:[#allocation2 + $0xca] sm:$0xff]
  %v797 = vld [vmem:[#allocation2 + $0xda] sm:$0xff]
  %v798 = vld [vmem:[#allocation2 + $0xe2] sm:$0xff]
  %v799 = vld [vmem:[#allocation2 + $0xf2] sm:$0xff]
  %v800 = vld [vmem:[#allocation2 + $0xfa] sm:$0xff]
  %v801 = vld [vmem:[#allocation2 + $0x10a] sm:$0xff]
  %v802 = vld [vmem:[#allocation2 + $0x112] sm:$0xff]
  %v803 = vld [vmem:[#allocation2 + $0x122] sm:$0xff]
  %v804 = vld [vmem:[#allocation2 + $0x12a] sm:$0xff]
  %v805 = vld [vmem:[#allocation2 + $0x13a] sm:$0xff]
  %v806 = vld [vmem:[#allocation2 + $0x142] sm:$0xff]
  %v807 = vld [vmem:[#allocation2 + $0x152] sm:$0xff]
  %v808 = vld [vmem:[#allocation2 + $0x15a] sm:$0xff]
  %v809 = vld [vmem:[#allocation2 + $0x16a] sm:$0xff]
  %v810 = vld [vmem:[#allocation2 + $0x172] sm:$0xff]
  %v811 = vld [vmem:[#allocation2 + $0x1b2] sm:$0xff]
  %v812 = vld [vmem:[#allocation2 + $0x1ba] sm:$0xff]
  %v813 = vld [vmem:[#allocation2 + $0x1ca] sm:$0xff]
  %v814 = vld [vmem:[#allocation2 + $0x1d2] sm:$0xff]
  %v815 = vld [vmem:[#allocation2 + $0x1e2] sm:$0xff]
  %v816 = vld [vmem:[#allocation2 + $0x1ea] sm:$0xff]
  %v817 = vld [vmem:[#allocation2 + $0x1fa] sm:$0xff]
  %v818 = vld [vmem:[#allocation2 + $0x202] sm:$0xff]
  %v819 = vld [vmem:[#allocation2 + $0x212] sm:$0xff]
  %v820 = vld [vmem:[#allocation2 + $0x21a] sm:$0xff]
  %v821 = vld [vmem:[#allocation2 + $0x22a] sm:$0xff]
  %v822 = vld [vmem:[#allocation2 + $0x232] sm:$0xff]
  %v823 = vld [vmem:[#allocation2 + $0x242] sm:$0xff]
  %v824 = vld [vmem:[#allocation2 + $0x24a] sm:$0xff]
  %v825 = vld [vmem:[#allocation2 + $0x25a] sm:$0xff]
  %v826 = vld [vmem:[#allocation2 + $0x262] sm:$0xff]
  %v827 = vld [vmem:[#allocation2 + $0x272] sm:$0xff]
  %v828 = vld [vmem:[#allocation2 + $0x27a] sm:$0xff]
  %v829 = vld [vmem:[#allocation2 + $0x28a] sm:$0xff]
  %v830 = vld [vmem:[#allocation2 + $0x292] sm:$0xff]
  %v831 = vld [vmem:[#allocation2 + $0x2a2] sm:$0xff]
  %v832 = vld [vmem:[#allocation2 + $0x2aa] sm:$0xff]
  %v833 = vld [vmem:[#allocation2 + $0x2ba] sm:$0xff]
  %v834 = vld [vmem:[#allocation2 + $0x2c2] sm:$0xff]
  %v835 = vld [vmem:[#allocation2 + $0x2d2] sm:$0xff]
  %v836 = vld [vmem:[#allocation2 + $0x2da] sm:$0xff]
  %v837 = vld [vmem:[#allocation2 + $0x2ea] sm:$0xff]
  %v838 = vld [vmem:[#allocation2 + $0x2f2] sm:$0xff]
  %v839 = vld [vmem:[#allocation2 + $0x302] sm:$0xff]
  %v840 = vld [vmem:[#allocation2 + $0x30a] sm:$0xff]
  %v841 = vld [vmem:[#allocation2 + $0x31a] sm:$0xff]
  %v842 = vld [vmem:[#allocation2 + $0x322] sm:$0xff]
  %907 = vrot.lane.b32.xlu0 %v779, 8
  %v908 = vpop.permute.xlu0 %907
  %909 = vrot.lane.b32.xlu0 %v780, 8
  %v910 = vpop.permute.xlu0 %909
  %911 = vrot.lane.b32.xlu0 %v781, 8
  %v912 = vpop.permute.xlu0 %911
  %913 = vrot.lane.b32.xlu0 %v782, 8
  %v914 = vpop.permute.xlu0 %913
  %915 = vrot.lane.b32.xlu0 %v783, 8
  %v916 = vpop.permute.xlu0 %915
  %917 = vrot.lane.b32.xlu0 %v784, 8
  %v918 = vpop.permute.xlu0 %917
  %919 = vrot.lane.b32.xlu0 %v785, 8
  %v920 = vpop.permute.xlu0 %919
  %921 = vrot.lane.b32.xlu0 %v786, 8
  %v922 = vpop.permute.xlu0 %921
  %923 = vrot.lane.b32.xlu0 %v787, 8
  %v924 = vpop.permute.xlu0 %923
  %925 = vrot.lane.b32.xlu0 %v788, 8
  %v926 = vpop.permute.xlu0 %925
  %927 = vrot.lane.b32.xlu0 %v789, 8
  %v928 = vpop.permute.xlu0 %927
  %929 = vrot.lane.b32.xlu0 %v790, 8
  %v930 = vpop.permute.xlu0 %929
  %931 = vrot.lane.b32.xlu0 %v791, 8
  %v932 = vpop.permute.xlu0 %931
  %933 = vrot.lane.b32.xlu0 %v792, 8
  %v934 = vpop.permute.xlu0 %933
  %935 = vrot.lane.b32.xlu0 %v793, 8
  %v936 = vpop.permute.xlu0 %935
  %937 = vrot.lane.b32.xlu0 %v794, 8
  %v938 = vpop.permute.xlu0 %937
  %939 = vrot.lane.b32.xlu0 %v795, 8
  %v940 = vpop.permute.xlu0 %939
  %941 = vrot.lane.b32.xlu0 %v796, 8
  %v942 = vpop.permute.xlu0 %941
  %943 = vrot.lane.b32.xlu0 %v797, 8
  %v944 = vpop.permute.xlu0 %943
  %945 = vrot.lane.b32.xlu0 %v798, 8
  %v946 = vpop.permute.xlu0 %945
  %947 = vrot.lane.b32.xlu0 %v799, 8
  %v948 = vpop.permute.xlu0 %947
  %949 = vrot.lane.b32.xlu0 %v800, 8
  %v950 = vpop.permute.xlu0 %949
  %951 = vrot.lane.b32.xlu0 %v801, 8
  %v952 = vpop.permute.xlu0 %951
  %953 = vrot.lane.b32.xlu0 %v802, 8
  %v954 = vpop.permute.xlu0 %953
  %955 = vrot.lane.b32.xlu0 %v803, 8
  %v956 = vpop.permute.xlu0 %955
  %957 = vrot.lane.b32.xlu0 %v804, 8
  %v958 = vpop.permute.xlu0 %957
  %959 = vrot.lane.b32.xlu0 %v805, 8
  %v960 = vpop.permute.xlu0 %959
  %961 = vrot.lane.b32.xlu0 %v806, 8
  %v962 = vpop.permute.xlu0 %961
  %963 = vrot.lane.b32.xlu0 %v807, 8
  %v964 = vpop.permute.xlu0 %963
  %965 = vrot.lane.b32.xlu0 %v808, 8
  %v966 = vpop.permute.xlu0 %965
  %967 = vrot.lane.b32.xlu0 %v809, 8
  %v968 = vpop.permute.xlu0 %967
  %969 = vrot.lane.b32.xlu0 %v810, 8
  %v970 = vpop.permute.xlu0 %969
  %971 = vrot.lane.b32.xlu0 %v811, 8
  %v972 = vpop.permute.xlu0 %971
  %973 = vrot.lane.b32.xlu0 %v812, 8
  %v974 = vpop.permute.xlu0 %973
  %975 = vrot.lane.b32.xlu0 %v813, 8
  %v976 = vpop.permute.xlu0 %975
  %977 = vrot.lane.b32.xlu0 %v814, 8
  %v978 = vpop.permute.xlu0 %977
  %979 = vrot.lane.b32.xlu0 %v815, 8
  %v980 = vpop.permute.xlu0 %979
  %981 = vrot.lane.b32.xlu0 %v816, 8
  %v982 = vpop.permute.xlu0 %981
  %983 = vrot.lane.b32.xlu0 %v817, 8
  %v984 = vpop.permute.xlu0 %983
  %985 = vrot.lane.b32.xlu0 %v818, 8
  %v986 = vpop.permute.xlu0 %985
  %987 = vrot.lane.b32.xlu0 %v819, 8
  %v988 = vpop.permute.xlu0 %987
  %989 = vrot.lane.b32.xlu0 %v820, 8
  %v990 = vpop.permute.xlu0 %989
  %991 = vrot.lane.b32.xlu0 %v821, 8
  %v992 = vpop.permute.xlu0 %991
  %993 = vrot.lane.b32.xlu0 %v822, 8
  %v994 = vpop.permute.xlu0 %993
  %995 = vrot.lane.b32.xlu0 %v823, 8
  %v996 = vpop.permute.xlu0 %995
  %997 = vrot.lane.b32.xlu0 %v824, 8
  %v998 = vpop.permute.xlu0 %997
  %999 = vrot.lane.b32.xlu0 %v825, 8
  %v1000 = vpop.permute.xlu0 %999
  %1001 = vrot.lane.b32.xlu0 %v826, 8
  %v1002 = vpop.permute.xlu0 %1001
  %1003 = vrot.lane.b32.xlu0 %v827, 8
  %v1004 = vpop.permute.xlu0 %1003
  %1005 = vrot.lane.b32.xlu0 %v828, 8
  %v1006 = vpop.permute.xlu0 %1005
  %1007 = vrot.lane.b32.xlu0 %v829, 8
  %v1008 = vpop.permute.xlu0 %1007
  %1009 = vrot.lane.b32.xlu0 %v830, 8
  %v1010 = vpop.permute.xlu0 %1009
  %1011 = vrot.lane.b32.xlu0 %v831, 8
  %v1012 = vpop.permute.xlu0 %1011
  %1013 = vrot.lane.b32.xlu0 %v832, 8
  %v1014 = vpop.permute.xlu0 %1013
  %1015 = vrot.lane.b32.xlu0 %v833, 8
  %v1016 = vpop.permute.xlu0 %1015
  %1017 = vrot.lane.b32.xlu0 %v834, 8
  %v1018 = vpop.permute.xlu0 %1017
  %1019 = vrot.lane.b32.xlu0 %v835, 8
  %v1020 = vpop.permute.xlu0 %1019
  %1021 = vrot.lane.b32.xlu0 %v836, 8
  %v1022 = vpop.permute.xlu0 %1021
  %1023 = vrot.lane.b32.xlu0 %v837, 8
  %v1024 = vpop.permute.xlu0 %1023
  %1025 = vrot.lane.b32.xlu0 %v838, 8
  %v1026 = vpop.permute.xlu0 %1025
  %1027 = vrot.lane.b32.xlu0 %v839, 8
  %v1028 = vpop.permute.xlu0 %1027
  %1029 = vrot.lane.b32.xlu0 %v840, 8
  %v1030 = vpop.permute.xlu0 %1029
  %1031 = vrot.lane.b32.xlu0 %v841, 8
  %v1032 = vpop.permute.xlu0 %1031
  %1033 = vrot.lane.b32.xlu0 %v842, 8
  %v1034 = vpop.permute.xlu0 %1033
  %vm1099 = vcmask 97344
  %1100 = vst.msk [vmem:[#allocation4] sm:$0xff] %vm1099, %v908
  %1101 = vst.msk [vmem:[#allocation4 + $0x8] sm:$0xff] %vm1099, %v910
  %1102 = vst.msk [vmem:[#allocation4 + $0x10] sm:$0xff] %vm1099, %v912
  %1103 = vst.msk [vmem:[#allocation4 + $0x18] sm:$0xff] %vm1099, %v914
  %1104 = vst.msk [vmem:[#allocation4 + $0x20] sm:$0xff] %vm1099, %v916
  %1105 = vst.msk [vmem:[#allocation4 + $0x28] sm:$0xff] %vm1099, %v918
  %1106 = vst.msk [vmem:[#allocation4 + $0x30] sm:$0xff] %vm1099, %v920
  %1107 = vst.msk [vmem:[#allocation4 + $0x38] sm:$0xff] %vm1099, %v922
  %1108 = vst.msk [vmem:[#allocation4 + $0x40] sm:$0xff] %vm1099, %v924
  %1109 = vst.msk [vmem:[#allocation4 + $0x48] sm:$0xff] %vm1099, %v926
  %1110 = vst.msk [vmem:[#allocation4 + $0x50] sm:$0xff] %vm1099, %v928
  %1111 = vst.msk [vmem:[#allocation4 + $0x58] sm:$0xff] %vm1099, %v930
  %1112 = vst.msk [vmem:[#allocation4 + $0x60] sm:$0xff] %vm1099, %v932
  %1113 = vst.msk [vmem:[#allocation4 + $0x68] sm:$0xff] %vm1099, %v934
  %1114 = vst.msk [vmem:[#allocation4 + $0x70] sm:$0xff] %vm1099, %v936
  %1115 = vst.msk [vmem:[#allocation4 + $0x78] sm:$0xff] %vm1099, %v938
  %1116 = vst.msk [vmem:[#allocation4 + $0x80] sm:$0xff] %vm1099, %v940
  %1117 = vst.msk [vmem:[#allocation4 + $0x88] sm:$0xff] %vm1099, %v942
  %1118 = vst.msk [vmem:[#allocation4 + $0x90] sm:$0xff] %vm1099, %v944
  %1119 = vst.msk [vmem:[#allocation4 + $0x98] sm:$0xff] %vm1099, %v946
  %1120 = vst.msk [vmem:[#allocation4 + $0xa0] sm:$0xff] %vm1099, %v948
  %1121 = vst.msk [vmem:[#allocation4 + $0xa8] sm:$0xff] %vm1099, %v950
  %1122 = vst.msk [vmem:[#allocation4 + $0xb0] sm:$0xff] %vm1099, %v952
  %1123 = vst.msk [vmem:[#allocation4 + $0xb8] sm:$0xff] %vm1099, %v954
  %1124 = vst.msk [vmem:[#allocation4 + $0xc0] sm:$0xff] %vm1099, %v956
  %1125 = vst.msk [vmem:[#allocation4 + $0xc8] sm:$0xff] %vm1099, %v958
  %1126 = vst.msk [vmem:[#allocation4 + $0xd0] sm:$0xff] %vm1099, %v960
  %1127 = vst.msk [vmem:[#allocation4 + $0xd8] sm:$0xff] %vm1099, %v962
  %1128 = vst.msk [vmem:[#allocation4 + $0xe0] sm:$0xff] %vm1099, %v964
  %1129 = vst.msk [vmem:[#allocation4 + $0xe8] sm:$0xff] %vm1099, %v966
  %1130 = vst.msk [vmem:[#allocation4 + $0xf0] sm:$0xff] %vm1099, %v968
  %1131 = vst.msk [vmem:[#allocation4 + $0xf8] sm:$0xff] %vm1099, %v970
  %1132 = vst.msk [vmem:[#allocation4 + $0x100] sm:$0xff] %vm1099, %v972
  %1133 = vst.msk [vmem:[#allocation4 + $0x108] sm:$0xff] %vm1099, %v974
  %1134 = vst.msk [vmem:[#allocation4 + $0x110] sm:$0xff] %vm1099, %v976
  %1135 = vst.msk [vmem:[#allocation4 + $0x118] sm:$0xff] %vm1099, %v978
  %1136 = vst.msk [vmem:[#allocation4 + $0x120] sm:$0xff] %vm1099, %v980
  %1137 = vst.msk [vmem:[#allocation4 + $0x128] sm:$0xff] %vm1099, %v982
  %1138 = vst.msk [vmem:[#allocation4 + $0x130] sm:$0xff] %vm1099, %v984
  %1139 = vst.msk [vmem:[#allocation4 + $0x138] sm:$0xff] %vm1099, %v986
  %1140 = vst.msk [vmem:[#allocation4 + $0x140] sm:$0xff] %vm1099, %v988
  %1141 = vst.msk [vmem:[#allocation4 + $0x148] sm:$0xff] %vm1099, %v990
  %1142 = vst.msk [vmem:[#allocation4 + $0x150] sm:$0xff] %vm1099, %v992
  %1143 = vst.msk [vmem:[#allocation4 + $0x158] sm:$0xff] %vm1099, %v994
  %1144 = vst.msk [vmem:[#allocation4 + $0x160] sm:$0xff] %vm1099, %v996
  %1145 = vst.msk [vmem:[#allocation4 + $0x168] sm:$0xff] %vm1099, %v998
  %1146 = vst.msk [vmem:[#allocation4 + $0x170] sm:$0xff] %vm1099, %v1000
  %1147 = vst.msk [vmem:[#allocation4 + $0x178] sm:$0xff] %vm1099, %v1002
  %1148 = vst.msk [vmem:[#allocation4 + $0x180] sm:$0xff] %vm1099, %v1004
  %1149 = vst.msk [vmem:[#allocation4 + $0x188] sm:$0xff] %vm1099, %v1006
  %1150 = vst.msk [vmem:[#allocation4 + $0x190] sm:$0xff] %vm1099, %v1008
  %1151 = vst.msk [vmem:[#allocation4 + $0x198] sm:$0xff] %vm1099, %v1010
  %1152 = vst.msk [vmem:[#allocation4 + $0x1a0] sm:$0xff] %vm1099, %v1012
  %1153 = vst.msk [vmem:[#allocation4 + $0x1a8] sm:$0xff] %vm1099, %v1014
  %1154 = vst.msk [vmem:[#allocation4 + $0x1b0] sm:$0xff] %vm1099, %v1016
  %1155 = vst.msk [vmem:[#allocation4 + $0x1b8] sm:$0xff] %vm1099, %v1018
  %1156 = vst.msk [vmem:[#allocation4 + $0x1c0] sm:$0xff] %vm1099, %v1020
  %1157 = vst.msk [vmem:[#allocation4 + $0x1c8] sm:$0xff] %vm1099, %v1022
  %1158 = vst.msk [vmem:[#allocation4 + $0x1d0] sm:$0xff] %vm1099, %v1024
  %1159 = vst.msk [vmem:[#allocation4 + $0x1d8] sm:$0xff] %vm1099, %v1026
  %1160 = vst.msk [vmem:[#allocation4 + $0x1e0] sm:$0xff] %vm1099, %v1028
  %1161 = vst.msk [vmem:[#allocation4 + $0x1e8] sm:$0xff] %vm1099, %v1030
  %1162 = vst.msk [vmem:[#allocation4 + $0x1f0] sm:$0xff] %vm1099, %v1032
  %1163 = vst.msk [vmem:[#allocation4 + $0x1f8] sm:$0xff] %vm1099, %v1034
  %v1164 = vld [vmem:[%s201] sm:$0xff]
  %v1165 = vld [vmem:[%s201 + $0x8] sm:$0xff]
  %v1166 = vld [vmem:[%s201 + $0x18] sm:$0xff]
  %v1167 = vld [vmem:[%s201 + $0x20] sm:$0xff]
  %v1168 = vld [vmem:[%s201 + $0x30] sm:$0xff]
  %v1169 = vld [vmem:[%s201 + $0x38] sm:$0xff]
  %v1170 = vld [vmem:[%s201 + $0x48] sm:$0xff]
  %v1171 = vld [vmem:[%s201 + $0x50] sm:$0xff]
  %v1172 = vld [vmem:[%s201 + $0x60] sm:$0xff]
  %v1173 = vld [vmem:[%s201 + $0x68] sm:$0xff]
  %v1174 = vld [vmem:[%s201 + $0x78] sm:$0xff]
  %v1175 = vld [vmem:[%s201 + $0x80] sm:$0xff]
  %v1176 = vld [vmem:[%s201 + $0x90] sm:$0xff]
  %v1177 = vld [vmem:[%s201 + $0x98] sm:$0xff]
  %v1178 = vld [vmem:[%s201 + $0xa8] sm:$0xff]
  %v1179 = vld [vmem:[%s201 + $0xb0] sm:$0xff]
  %v1180 = vld [vmem:[%s201 + $0xc0] sm:$0xff]
  %v1181 = vld [vmem:[%s201 + $0xc8] sm:$0xff]
  %v1182 = vld [vmem:[%s201 + $0xd8] sm:$0xff]
  %v1183 = vld [vmem:[%s201 + $0xe0] sm:$0xff]
  %v1184 = vld [vmem:[%s201 + $0xf0] sm:$0xff]
  %v1185 = vld [vmem:[%s201 + $0xf8] sm:$0xff]
  %v1186 = vld [vmem:[%s201 + $0x108] sm:$0xff]
  %v1187 = vld [vmem:[%s201 + $0x110] sm:$0xff]
  %v1188 = vld [vmem:[%s201 + $0x120] sm:$0xff]
  %v1189 = vld [vmem:[%s201 + $0x128] sm:$0xff]
  %v1190 = vld [vmem:[%s201 + $0x138] sm:$0xff]
  %v1191 = vld [vmem:[%s201 + $0x140] sm:$0xff]
  %v1192 = vld [vmem:[%s201 + $0x150] sm:$0xff]
  %v1193 = vld [vmem:[%s201 + $0x158] sm:$0xff]
  %v1194 = vld [vmem:[%s201 + $0x168] sm:$0xff]
  %v1195 = vld [vmem:[%s201 + $0x170] sm:$0xff]
  %v1196 = vld [vmem:[%s201 + $0x1b0] sm:$0xff]
  %v1197 = vld [vmem:[%s201 + $0x1b8] sm:$0xff]
  %v1198 = vld [vmem:[%s201 + $0x1c8] sm:$0xff]
  %v1199 = vld [vmem:[%s201 + $0x1d0] sm:$0xff]
  %v1200 = vld [vmem:[%s201 + $0x1e0] sm:$0xff]
  %v1201 = vld [vmem:[%s201 + $0x1e8] sm:$0xff]
  %v1202 = vld [vmem:[%s201 + $0x1f8] sm:$0xff]
  %v1203 = vld [vmem:[%s201 + $0x200] sm:$0xff]
  %v1204 = vld [vmem:[%s201 + $0x210] sm:$0xff]
  %v1205 = vld [vmem:[%s201 + $0x218] sm:$0xff]
  %v1206 = vld [vmem:[%s201 + $0x228] sm:$0xff]
  %v1207 = vld [vmem:[%s201 + $0x230] sm:$0xff]
  %v1208 = vld [vmem:[%s201 + $0x240] sm:$0xff]
  %v1209 = vld [vmem:[%s201 + $0x248] sm:$0xff]
  %v1210 = vld [vmem:[%s201 + $0x258] sm:$0xff]
  %v1211 = vld [vmem:[%s201 + $0x260] sm:$0xff]
  %v1212 = vld [vmem:[%s201 + $0x270] sm:$0xff]
  %v1213 = vld [vmem:[%s201 + $0x278] sm:$0xff]
  %v1214 = vld [vmem:[%s201 + $0x288] sm:$0xff]
  %v1215 = vld [vmem:[%s201 + $0x290] sm:$0xff]
  %v1216 = vld [vmem:[%s201 + $0x2a0] sm:$0xff]
  %v1217 = vld [vmem:[%s201 + $0x2a8] sm:$0xff]
  %v1218 = vld [vmem:[%s201 + $0x2b8] sm:$0xff]
  %v1219 = vld [vmem:[%s201 + $0x2c0] sm:$0xff]
  %v1220 = vld [vmem:[%s201 + $0x2d0] sm:$0xff]
  %v1221 = vld [vmem:[%s201 + $0x2d8] sm:$0xff]
  %v1222 = vld [vmem:[%s201 + $0x2e8] sm:$0xff]
  %v1223 = vld [vmem:[%s201 + $0x2f0] sm:$0xff]
  %v1224 = vld [vmem:[%s201 + $0x300] sm:$0xff]
  %v1225 = vld [vmem:[%s201 + $0x308] sm:$0xff]
  %v1226 = vld [vmem:[%s201 + $0x318] sm:$0xff]
  %v1227 = vld [vmem:[%s201 + $0x320] sm:$0xff]
  %1292 = vrot.lane.b32.xlu0 %v1164, 12
  %v1293 = vpop.permute.xlu0 %1292
  %1294 = vrot.lane.b32.xlu0 %v1165, 12
  %v1295 = vpop.permute.xlu0 %1294
  %1296 = vrot.lane.b32.xlu0 %v1166, 12
  %v1297 = vpop.permute.xlu0 %1296
  %1298 = vrot.lane.b32.xlu0 %v1167, 12
  %v1299 = vpop.permute.xlu0 %1298
  %1300 = vrot.lane.b32.xlu0 %v1168, 12
  %v1301 = vpop.permute.xlu0 %1300
  %1302 = vrot.lane.b32.xlu0 %v1169, 12
  %v1303 = vpop.permute.xlu0 %1302
  %1304 = vrot.lane.b32.xlu0 %v1170, 12
  %v1305 = vpop.permute.xlu0 %1304
  %1306 = vrot.lane.b32.xlu0 %v1171, 12
  %v1307 = vpop.permute.xlu0 %1306
  %1308 = vrot.lane.b32.xlu0 %v1172, 12
  %v1309 = vpop.permute.xlu0 %1308
  %1310 = vrot.lane.b32.xlu0 %v1173, 12
  %v1311 = vpop.permute.xlu0 %1310
  %1312 = vrot.lane.b32.xlu0 %v1174, 12
  %v1313 = vpop.permute.xlu0 %1312
  %1314 = vrot.lane.b32.xlu0 %v1175, 12
  %v1315 = vpop.permute.xlu0 %1314
  %1316 = vrot.lane.b32.xlu0 %v1176, 12
  %v1317 = vpop.permute.xlu0 %1316
  %1318 = vrot.lane.b32.xlu0 %v1177, 12
  %v1319 = vpop.permute.xlu0 %1318
  %1320 = vrot.lane.b32.xlu0 %v1178, 12
  %v1321 = vpop.permute.xlu0 %1320
  %1322 = vrot.lane.b32.xlu0 %v1179, 12
  %v1323 = vpop.permute.xlu0 %1322
  %1324 = vrot.lane.b32.xlu0 %v1180, 12
  %v1325 = vpop.permute.xlu0 %1324
  %1326 = vrot.lane.b32.xlu0 %v1181, 12
  %v1327 = vpop.permute.xlu0 %1326
  %1328 = vrot.lane.b32.xlu0 %v1182, 12
  %v1329 = vpop.permute.xlu0 %1328
  %1330 = vrot.lane.b32.xlu0 %v1183, 12
  %v1331 = vpop.permute.xlu0 %1330
  %1332 = vrot.lane.b32.xlu0 %v1184, 12
  %v1333 = vpop.permute.xlu0 %1332
  %1334 = vrot.lane.b32.xlu0 %v1185, 12
  %v1335 = vpop.permute.xlu0 %1334
  %1336 = vrot.lane.b32.xlu0 %v1186, 12
  %v1337 = vpop.permute.xlu0 %1336
  %1338 = vrot.lane.b32.xlu0 %v1187, 12
  %v1339 = vpop.permute.xlu0 %1338
  %1340 = vrot.lane.b32.xlu0 %v1188, 12
  %v1341 = vpop.permute.xlu0 %1340
  %1342 = vrot.lane.b32.xlu0 %v1189, 12
  %v1343 = vpop.permute.xlu0 %1342
  %1344 = vrot.lane.b32.xlu0 %v1190, 12
  %v1345 = vpop.permute.xlu0 %1344
  %1346 = vrot.lane.b32.xlu0 %v1191, 12
  %v1347 = vpop.permute.xlu0 %1346
  %1348 = vrot.lane.b32.xlu0 %v1192, 12
  %v1349 = vpop.permute.xlu0 %1348
  %1350 = vrot.lane.b32.xlu0 %v1193, 12
  %v1351 = vpop.permute.xlu0 %1350
  %1352 = vrot.lane.b32.xlu0 %v1194, 12
  %v1353 = vpop.permute.xlu0 %1352
  %1354 = vrot.lane.b32.xlu0 %v1195, 12
  %v1355 = vpop.permute.xlu0 %1354
  %1356 = vrot.lane.b32.xlu0 %v1196, 12
  %v1357 = vpop.permute.xlu0 %1356
  %1358 = vrot.lane.b32.xlu0 %v1197, 12
  %v1359 = vpop.permute.xlu0 %1358
  %1360 = vrot.lane.b32.xlu0 %v1198, 12
  %v1361 = vpop.permute.xlu0 %1360
  %1362 = vrot.lane.b32.xlu0 %v1199, 12
  %v1363 = vpop.permute.xlu0 %1362
  %1364 = vrot.lane.b32.xlu0 %v1200, 12
  %v1365 = vpop.permute.xlu0 %1364
  %1366 = vrot.lane.b32.xlu0 %v1201, 12
  %v1367 = vpop.permute.xlu0 %1366
  %1368 = vrot.lane.b32.xlu0 %v1202, 12
  %v1369 = vpop.permute.xlu0 %1368
  %1370 = vrot.lane.b32.xlu0 %v1203, 12
  %v1371 = vpop.permute.xlu0 %1370
  %1372 = vrot.lane.b32.xlu0 %v1204, 12
  %v1373 = vpop.permute.xlu0 %1372
  %1374 = vrot.lane.b32.xlu0 %v1205, 12
  %v1375 = vpop.permute.xlu0 %1374
  %1376 = vrot.lane.b32.xlu0 %v1206, 12
  %v1377 = vpop.permute.xlu0 %1376
  %1378 = vrot.lane.b32.xlu0 %v1207, 12
  %v1379 = vpop.permute.xlu0 %1378
  %1380 = vrot.lane.b32.xlu0 %v1208, 12
  %v1381 = vpop.permute.xlu0 %1380
  %1382 = vrot.lane.b32.xlu0 %v1209, 12
  %v1383 = vpop.permute.xlu0 %1382
  %1384 = vrot.lane.b32.xlu0 %v1210, 12
  %v1385 = vpop.permute.xlu0 %1384
  %1386 = vrot.lane.b32.xlu0 %v1211, 12
  %v1387 = vpop.permute.xlu0 %1386
  %1388 = vrot.lane.b32.xlu0 %v1212, 12
  %v1389 = vpop.permute.xlu0 %1388
  %1390 = vrot.lane.b32.xlu0 %v1213, 12
  %v1391 = vpop.permute.xlu0 %1390
  %1392 = vrot.lane.b32.xlu0 %v1214, 12
  %v1393 = vpop.permute.xlu0 %1392
  %1394 = vrot.lane.b32.xlu0 %v1215, 12
  %v1395 = vpop.permute.xlu0 %1394
  %1396 = vrot.lane.b32.xlu0 %v1216, 12
  %v1397 = vpop.permute.xlu0 %1396
  %1398 = vrot.lane.b32.xlu0 %v1217, 12
  %v1399 = vpop.permute.xlu0 %1398
  %1400 = vrot.lane.b32.xlu0 %v1218, 12
  %v1401 = vpop.permute.xlu0 %1400
  %1402 = vrot.lane.b32.xlu0 %v1219, 12
  %v1403 = vpop.permute.xlu0 %1402
  %1404 = vrot.lane.b32.xlu0 %v1220, 12
  %v1405 = vpop.permute.xlu0 %1404
  %1406 = vrot.lane.b32.xlu0 %v1221, 12
  %v1407 = vpop.permute.xlu0 %1406
  %1408 = vrot.lane.b32.xlu0 %v1222, 12
  %v1409 = vpop.permute.xlu0 %1408
  %1410 = vrot.lane.b32.xlu0 %v1223, 12
  %v1411 = vpop.permute.xlu0 %1410
  %1412 = vrot.lane.b32.xlu0 %v1224, 12
  %v1413 = vpop.permute.xlu0 %1412
  %1414 = vrot.lane.b32.xlu0 %v1225, 12
  %v1415 = vpop.permute.xlu0 %1414
  %1416 = vrot.lane.b32.xlu0 %v1226, 12
  %v1417 = vpop.permute.xlu0 %1416
  %1418 = vrot.lane.b32.xlu0 %v1227, 12
  %v1419 = vpop.permute.xlu0 %1418
  %vm1484 = vcmask 130144
  %1485 = vst.msk [vmem:[#allocation4] sm:$0xff] %vm1484, %v1293
  %1486 = vst.msk [vmem:[#allocation4 + $0x8] sm:$0xff] %vm1484, %v1295
  %1487 = vst.msk [vmem:[#allocation4 + $0x10] sm:$0xff] %vm1484, %v1297
  %1488 = vst.msk [vmem:[#allocation4 + $0x18] sm:$0xff] %vm1484, %v1299
  %1489 = vst.msk [vmem:[#allocation4 + $0x20] sm:$0xff] %vm1484, %v1301
  %1490 = vst.msk [vmem:[#allocation4 + $0x28] sm:$0xff] %vm1484, %v1303
  %1491 = vst.msk [vmem:[#allocation4 + $0x30] sm:$0xff] %vm1484, %v1305
  %1492 = vst.msk [vmem:[#allocation4 + $0x38] sm:$0xff] %vm1484, %v1307
  %1493 = vst.msk [vmem:[#allocation4 + $0x40] sm:$0xff] %vm1484, %v1309
  %1494 = vst.msk [vmem:[#allocation4 + $0x48] sm:$0xff] %vm1484, %v1311
  %1495 = vst.msk [vmem:[#allocation4 + $0x50] sm:$0xff] %vm1484, %v1313
  %1496 = vst.msk [vmem:[#allocation4 + $0x58] sm:$0xff] %vm1484, %v1315
  %1497 = vst.msk [vmem:[#allocation4 + $0x60] sm:$0xff] %vm1484, %v1317
  %1498 = vst.msk [vmem:[#allocation4 + $0x68] sm:$0xff] %vm1484, %v1319
  %1499 = vst.msk [vmem:[#allocation4 + $0x70] sm:$0xff] %vm1484, %v1321
  %1500 = vst.msk [vmem:[#allocation4 + $0x78] sm:$0xff] %vm1484, %v1323
  %1501 = vst.msk [vmem:[#allocation4 + $0x80] sm:$0xff] %vm1484, %v1325
  %1502 = vst.msk [vmem:[#allocation4 + $0x88] sm:$0xff] %vm1484, %v1327
  %1503 = vst.msk [vmem:[#allocation4 + $0x90] sm:$0xff] %vm1484, %v1329
  %1504 = vst.msk [vmem:[#allocation4 + $0x98] sm:$0xff] %vm1484, %v1331
  %1505 = vst.msk [vmem:[#allocation4 + $0xa0] sm:$0xff] %vm1484, %v1333
  %1506 = vst.msk [vmem:[#allocation4 + $0xa8] sm:$0xff] %vm1484, %v1335
  %1507 = vst.msk [vmem:[#allocation4 + $0xb0] sm:$0xff] %vm1484, %v1337
  %1508 = vst.msk [vmem:[#allocation4 + $0xb8] sm:$0xff] %vm1484, %v1339
  %1509 = vst.msk [vmem:[#allocation4 + $0xc0] sm:$0xff] %vm1484, %v1341
  %1510 = vst.msk [vmem:[#allocation4 + $0xc8] sm:$0xff] %vm1484, %v1343
  %1511 = vst.msk [vmem:[#allocation4 + $0xd0] sm:$0xff] %vm1484, %v1345
  %1512 = vst.msk [vmem:[#allocation4 + $0xd8] sm:$0xff] %vm1484, %v1347
  %1513 = vst.msk [vmem:[#allocation4 + $0xe0] sm:$0xff] %vm1484, %v1349
  %1514 = vst.msk [vmem:[#allocation4 + $0xe8] sm:$0xff] %vm1484, %v1351
  %1515 = vst.msk [vmem:[#allocation4 + $0xf0] sm:$0xff] %vm1484, %v1353
  %1516 = vst.msk [vmem:[#allocation4 + $0xf8] sm:$0xff] %vm1484, %v1355
  %1517 = vst.msk [vmem:[#allocation4 + $0x100] sm:$0xff] %vm1484, %v1357
  %1518 = vst.msk [vmem:[#allocation4 + $0x108] sm:$0xff] %vm1484, %v1359
  %1519 = vst.msk [vmem:[#allocation4 + $0x110] sm:$0xff] %vm1484, %v1361
  %1520 = vst.msk [vmem:[#allocation4 + $0x118] sm:$0xff] %vm1484, %v1363
  %1521 = vst.msk [vmem:[#allocation4 + $0x120] sm:$0xff] %vm1484, %v1365
  %1522 = vst.msk [vmem:[#allocation4 + $0x128] sm:$0xff] %vm1484, %v1367
  %1523 = vst.msk [vmem:[#allocation4 + $0x130] sm:$0xff] %vm1484, %v1369
  %1524 = vst.msk [vmem:[#allocation4 + $0x138] sm:$0xff] %vm1484, %v1371
  %1525 = vst.msk [vmem:[#allocation4 + $0x140] sm:$0xff] %vm1484, %v1373
  %1526 = vst.msk [vmem:[#allocation4 + $0x148] sm:$0xff] %vm1484, %v1375
  %1527 = vst.msk [vmem:[#allocation4 + $0x150] sm:$0xff] %vm1484, %v1377
  %1528 = vst.msk [vmem:[#allocation4 + $0x158] sm:$0xff] %vm1484, %v1379
  %1529 = vst.msk [vmem:[#allocation4 + $0x160] sm:$0xff] %vm1484, %v1381
  %1530 = vst.msk [vmem:[#allocation4 + $0x168] sm:$0xff] %vm1484, %v1383
  %1531 = vst.msk [vmem:[#allocation4 + $0x170] sm:$0xff] %vm1484, %v1385
  %1532 = vst.msk [vmem:[#allocation4 + $0x178] sm:$0xff] %vm1484, %v1387
  %1533 = vst.msk [vmem:[#allocation4 + $0x180] sm:$0xff] %vm1484, %v1389
  %1534 = vst.msk [vmem:[#allocation4 + $0x188] sm:$0xff] %vm1484, %v1391
  %1535 = vst.msk [vmem:[#allocation4 + $0x190] sm:$0xff] %vm1484, %v1393
  %1536 = vst.msk [vmem:[#allocation4 + $0x198] sm:$0xff] %vm1484, %v1395
  %1537 = vst.msk [vmem:[#allocation4 + $0x1a0] sm:$0xff] %vm1484, %v1397
  %1538 = vst.msk [vmem:[#allocation4 + $0x1a8] sm:$0xff] %vm1484, %v1399
  %1539 = vst.msk [vmem:[#allocation4 + $0x1b0] sm:$0xff] %vm1484, %v1401
  %1540 = vst.msk [vmem:[#allocation4 + $0x1b8] sm:$0xff] %vm1484, %v1403
  %1541 = vst.msk [vmem:[#allocation4 + $0x1c0] sm:$0xff] %vm1484, %v1405
  %1542 = vst.msk [vmem:[#allocation4 + $0x1c8] sm:$0xff] %vm1484, %v1407
  %1543 = vst.msk [vmem:[#allocation4 + $0x1d0] sm:$0xff] %vm1484, %v1409
  %1544 = vst.msk [vmem:[#allocation4 + $0x1d8] sm:$0xff] %vm1484, %v1411
  %1545 = vst.msk [vmem:[#allocation4 + $0x1e0] sm:$0xff] %vm1484, %v1413
  %1546 = vst.msk [vmem:[#allocation4 + $0x1e8] sm:$0xff] %vm1484, %v1415
  %1547 = vst.msk [vmem:[#allocation4 + $0x1f0] sm:$0xff] %vm1484, %v1417
  %1548 = vst.msk [vmem:[#allocation4 + $0x1f8] sm:$0xff] %vm1484, %v1419
  %v1549 = vld [vmem:[%s201 + $0x1] sm:$0xff]
  %v1550 = vld [vmem:[%s201 + $0x9] sm:$0xff]
  %v1551 = vld [vmem:[%s201 + $0x19] sm:$0xff]
  %v1552 = vld [vmem:[%s201 + $0x21] sm:$0xff]
  %v1553 = vld [vmem:[%s201 + $0x31] sm:$0xff]
  %v1554 = vld [vmem:[%s201 + $0x39] sm:$0xff]
  %v1555 = vld [vmem:[%s201 + $0x49] sm:$0xff]
  %v1556 = vld [vmem:[%s201 + $0x51] sm:$0xff]
  %v1557 = vld [vmem:[%s201 + $0x61] sm:$0xff]
  %v1558 = vld [vmem:[%s201 + $0x69] sm:$0xff]
  %v1559 = vld [vmem:[%s201 + $0x79] sm:$0xff]
  %v1560 = vld [vmem:[%s201 + $0x81] sm:$0xff]
  %v1561 = vld [vmem:[%s201 + $0x91] sm:$0xff]
  %v1562 = vld [vmem:[%s201 + $0x99] sm:$0xff]
  %v1563 = vld [vmem:[%s201 + $0xa9] sm:$0xff]
  %v1564 = vld [vmem:[%s201 + $0xb1] sm:$0xff]
  %v1565 = vld [vmem:[%s201 + $0xc1] sm:$0xff]
  %v1566 = vld [vmem:[%s201 + $0xc9] sm:$0xff]
  %v1567 = vld [vmem:[%s201 + $0xd9] sm:$0xff]
  %v1568 = vld [vmem:[%s201 + $0xe1] sm:$0xff]
  %v1569 = vld [vmem:[%s201 + $0xf1] sm:$0xff]
  %v1570 = vld [vmem:[%s201 + $0xf9] sm:$0xff]
  %v1571 = vld [vmem:[%s201 + $0x109] sm:$0xff]
  %v1572 = vld [vmem:[%s201 + $0x111] sm:$0xff]
  %v1573 = vld [vmem:[%s201 + $0x121] sm:$0xff]
  %v1574 = vld [vmem:[%s201 + $0x129] sm:$0xff]
  %v1575 = vld [vmem:[%s201 + $0x139] sm:$0xff]
  %v1576 = vld [vmem:[%s201 + $0x141] sm:$0xff]
  %v1577 = vld [vmem:[%s201 + $0x151] sm:$0xff]
  %v1578 = vld [vmem:[%s201 + $0x159] sm:$0xff]
  %v1579 = vld [vmem:[%s201 + $0x169] sm:$0xff]
  %v1580 = vld [vmem:[%s201 + $0x171] sm:$0xff]
  %v1581 = vld [vmem:[%s201 + $0x1b1] sm:$0xff]
  %v1582 = vld [vmem:[%s201 + $0x1b9] sm:$0xff]
  %v1583 = vld [vmem:[%s201 + $0x1c9] sm:$0xff]
  %v1584 = vld [vmem:[%s201 + $0x1d1] sm:$0xff]
  %v1585 = vld [vmem:[%s201 + $0x1e1] sm:$0xff]
  %v1586 = vld [vmem:[%s201 + $0x1e9] sm:$0xff]
  %v1587 = vld [vmem:[%s201 + $0x1f9] sm:$0xff]
  %v1588 = vld [vmem:[%s201 + $0x201] sm:$0xff]
  %v1589 = vld [vmem:[%s201 + $0x211] sm:$0xff]
  %v1590 = vld [vmem:[%s201 + $0x219] sm:$0xff]
  %v1591 = vld [vmem:[%s201 + $0x229] sm:$0xff]
  %v1592 = vld [vmem:[%s201 + $0x231] sm:$0xff]
  %v1593 = vld [vmem:[%s201 + $0x241] sm:$0xff]
  %v1594 = vld [vmem:[%s201 + $0x249] sm:$0xff]
  %v1595 = vld [vmem:[%s201 + $0x259] sm:$0xff]
  %v1596 = vld [vmem:[%s201 + $0x261] sm:$0xff]
  %v1597 = vld [vmem:[%s201 + $0x271] sm:$0xff]
  %v1598 = vld [vmem:[%s201 + $0x279] sm:$0xff]
  %v1599 = vld [vmem:[%s201 + $0x289] sm:$0xff]
  %v1600 = vld [vmem:[%s201 + $0x291] sm:$0xff]
  %v1601 = vld [vmem:[%s201 + $0x2a1] sm:$0xff]
  %v1602 = vld [vmem:[%s201 + $0x2a9] sm:$0xff]
  %v1603 = vld [vmem:[%s201 + $0x2b9] sm:$0xff]
  %v1604 = vld [vmem:[%s201 + $0x2c1] sm:$0xff]
  %v1605 = vld [vmem:[%s201 + $0x2d1] sm:$0xff]
  %v1606 = vld [vmem:[%s201 + $0x2d9] sm:$0xff]
  %v1607 = vld [vmem:[%s201 + $0x2e9] sm:$0xff]
  %v1608 = vld [vmem:[%s201 + $0x2f1] sm:$0xff]
  %v1609 = vld [vmem:[%s201 + $0x301] sm:$0xff]
  %v1610 = vld [vmem:[%s201 + $0x309] sm:$0xff]
  %v1611 = vld [vmem:[%s201 + $0x319] sm:$0xff]
  %v1612 = vld [vmem:[%s201 + $0x321] sm:$0xff]
  %1677 = vrot.lane.b32.xlu0 %v1549, 16
  %v1678 = vpop.permute.xlu0 %1677
  %1679 = vrot.lane.b32.xlu0 %v1550, 16
  %v1680 = vpop.permute.xlu0 %1679
  %1681 = vrot.lane.b32.xlu0 %v1551, 16
  %v1682 = vpop.permute.xlu0 %1681
  %1683 = vrot.lane.b32.xlu0 %v1552, 16
  %v1684 = vpop.permute.xlu0 %1683
  %1685 = vrot.lane.b32.xlu0 %v1553, 16
  %v1686 = vpop.permute.xlu0 %1685
  %1687 = vrot.lane.b32.xlu0 %v1554, 16
  %v1688 = vpop.permute.xlu0 %1687
  %1689 = vrot.lane.b32.xlu0 %v1555, 16
  %v1690 = vpop.permute.xlu0 %1689
  %1691 = vrot.lane.b32.xlu0 %v1556, 16
  %v1692 = vpop.permute.xlu0 %1691
  %1693 = vrot.lane.b32.xlu0 %v1557, 16
  %v1694 = vpop.permute.xlu0 %1693
  %1695 = vrot.lane.b32.xlu0 %v1558, 16
  %v1696 = vpop.permute.xlu0 %1695
  %1697 = vrot.lane.b32.xlu0 %v1559, 16
  %v1698 = vpop.permute.xlu0 %1697
  %1699 = vrot.lane.b32.xlu0 %v1560, 16
  %v1700 = vpop.permute.xlu0 %1699
  %1701 = vrot.lane.b32.xlu0 %v1561, 16
  %v1702 = vpop.permute.xlu0 %1701
  %1703 = vrot.lane.b32.xlu0 %v1562, 16
  %v1704 = vpop.permute.xlu0 %1703
  %1705 = vrot.lane.b32.xlu0 %v1563, 16
  %v1706 = vpop.permute.xlu0 %1705
  %1707 = vrot.lane.b32.xlu0 %v1564, 16
  %v1708 = vpop.permute.xlu0 %1707
  %1709 = vrot.lane.b32.xlu0 %v1565, 16
  %v1710 = vpop.permute.xlu0 %1709
  %1711 = vrot.lane.b32.xlu0 %v1566, 16
  %v1712 = vpop.permute.xlu0 %1711
  %1713 = vrot.lane.b32.xlu0 %v1567, 16
  %v1714 = vpop.permute.xlu0 %1713
  %1715 = vrot.lane.b32.xlu0 %v1568, 16
  %v1716 = vpop.permute.xlu0 %1715
  %1717 = vrot.lane.b32.xlu0 %v1569, 16
  %v1718 = vpop.permute.xlu0 %1717
  %1719 = vrot.lane.b32.xlu0 %v1570, 16
  %v1720 = vpop.permute.xlu0 %1719
  %1721 = vrot.lane.b32.xlu0 %v1571, 16
  %v1722 = vpop.permute.xlu0 %1721
  %1723 = vrot.lane.b32.xlu0 %v1572, 16
  %v1724 = vpop.permute.xlu0 %1723
  %1725 = vrot.lane.b32.xlu0 %v1573, 16
  %v1726 = vpop.permute.xlu0 %1725
  %1727 = vrot.lane.b32.xlu0 %v1574, 16
  %v1728 = vpop.permute.xlu0 %1727
  %1729 = vrot.lane.b32.xlu0 %v1575, 16
  %v1730 = vpop.permute.xlu0 %1729
  %1731 = vrot.lane.b32.xlu0 %v1576, 16
  %v1732 = vpop.permute.xlu0 %1731
  %1733 = vrot.lane.b32.xlu0 %v1577, 16
  %v1734 = vpop.permute.xlu0 %1733
  %1735 = vrot.lane.b32.xlu0 %v1578, 16
  %v1736 = vpop.permute.xlu0 %1735
  %1737 = vrot.lane.b32.xlu0 %v1579, 16
  %v1738 = vpop.permute.xlu0 %1737
  %1739 = vrot.lane.b32.xlu0 %v1580, 16
  %v1740 = vpop.permute.xlu0 %1739
  %1741 = vrot.lane.b32.xlu0 %v1581, 16
  %v1742 = vpop.permute.xlu0 %1741
  %1743 = vrot.lane.b32.xlu0 %v1582, 16
  %v1744 = vpop.permute.xlu0 %1743
  %1745 = vrot.lane.b32.xlu0 %v1583, 16
  %v1746 = vpop.permute.xlu0 %1745
  %1747 = vrot.lane.b32.xlu0 %v1584, 16
  %v1748 = vpop.permute.xlu0 %1747
  %1749 = vrot.lane.b32.xlu0 %v1585, 16
  %v1750 = vpop.permute.xlu0 %1749
  %1751 = vrot.lane.b32.xlu0 %v1586, 16
  %v1752 = vpop.permute.xlu0 %1751
  %1753 = vrot.lane.b32.xlu0 %v1587, 16
  %v1754 = vpop.permute.xlu0 %1753
  %1755 = vrot.lane.b32.xlu0 %v1588, 16
  %v1756 = vpop.permute.xlu0 %1755
  %1757 = vrot.lane.b32.xlu0 %v1589, 16
  %v1758 = vpop.permute.xlu0 %1757
  %1759 = vrot.lane.b32.xlu0 %v1590, 16
  %v1760 = vpop.permute.xlu0 %1759
  %1761 = vrot.lane.b32.xlu0 %v1591, 16
  %v1762 = vpop.permute.xlu0 %1761
  %1763 = vrot.lane.b32.xlu0 %v1592, 16
  %v1764 = vpop.permute.xlu0 %1763
  %1765 = vrot.lane.b32.xlu0 %v1593, 16
  %v1766 = vpop.permute.xlu0 %1765
  %1767 = vrot.lane.b32.xlu0 %v1594, 16
  %v1768 = vpop.permute.xlu0 %1767
  %1769 = vrot.lane.b32.xlu0 %v1595, 16
  %v1770 = vpop.permute.xlu0 %1769
  %1771 = vrot.lane.b32.xlu0 %v1596, 16
  %v1772 = vpop.permute.xlu0 %1771
  %1773 = vrot.lane.b32.xlu0 %v1597, 16
  %v1774 = vpop.permute.xlu0 %1773
  %1775 = vrot.lane.b32.xlu0 %v1598, 16
  %v1776 = vpop.permute.xlu0 %1775
  %1777 = vrot.lane.b32.xlu0 %v1599, 16
  %v1778 = vpop.permute.xlu0 %1777
  %1779 = vrot.lane.b32.xlu0 %v1600, 16
  %v1780 = vpop.permute.xlu0 %1779
  %1781 = vrot.lane.b32.xlu0 %v1601, 16
  %v1782 = vpop.permute.xlu0 %1781
  %1783 = vrot.lane.b32.xlu0 %v1602, 16
  %v1784 = vpop.permute.xlu0 %1783
  %1785 = vrot.lane.b32.xlu0 %v1603, 16
  %v1786 = vpop.permute.xlu0 %1785
  %1787 = vrot.lane.b32.xlu0 %v1604, 16
  %v1788 = vpop.permute.xlu0 %1787
  %1789 = vrot.lane.b32.xlu0 %v1605, 16
  %v1790 = vpop.permute.xlu0 %1789
  %1791 = vrot.lane.b32.xlu0 %v1606, 16
  %v1792 = vpop.permute.xlu0 %1791
  %1793 = vrot.lane.b32.xlu0 %v1607, 16
  %v1794 = vpop.permute.xlu0 %1793
  %1795 = vrot.lane.b32.xlu0 %v1608, 16
  %v1796 = vpop.permute.xlu0 %1795
  %1797 = vrot.lane.b32.xlu0 %v1609, 16
  %v1798 = vpop.permute.xlu0 %1797
  %1799 = vrot.lane.b32.xlu0 %v1610, 16
  %v1800 = vpop.permute.xlu0 %1799
  %1801 = vrot.lane.b32.xlu0 %v1611, 16
  %v1802 = vpop.permute.xlu0 %1801
  %1803 = vrot.lane.b32.xlu0 %v1612, 16
  %v1804 = vpop.permute.xlu0 %1803
  %vm1869 = vcmask 162944
  %1870 = vst.msk [vmem:[#allocation4] sm:$0xff] %vm1869, %v1678
  %1871 = vst.msk [vmem:[#allocation4 + $0x8] sm:$0xff] %vm1869, %v1680
  %1872 = vst.msk [vmem:[#allocation4 + $0x10] sm:$0xff] %vm1869, %v1682
  %1873 = vst.msk [vmem:[#allocation4 + $0x18] sm:$0xff] %vm1869, %v1684
  %1874 = vst.msk [vmem:[#allocation4 + $0x20] sm:$0xff] %vm1869, %v1686
  %1875 = vst.msk [vmem:[#allocation4 + $0x28] sm:$0xff] %vm1869, %v1688
  %1876 = vst.msk [vmem:[#allocation4 + $0x30] sm:$0xff] %vm1869, %v1690
  %1877 = vst.msk [vmem:[#allocation4 + $0x38] sm:$0xff] %vm1869, %v1692
  %1878 = vst.msk [vmem:[#allocation4 + $0x40] sm:$0xff] %vm1869, %v1694
  %1879 = vst.msk [vmem:[#allocation4 + $0x48] sm:$0xff] %vm1869, %v1696
  %1880 = vst.msk [vmem:[#allocation4 + $0x50] sm:$0xff] %vm1869, %v1698
  %1881 = vst.msk [vmem:[#allocation4 + $0x58] sm:$0xff] %vm1869, %v1700
  %1882 = vst.msk [vmem:[#allocation4 + $0x60] sm:$0xff] %vm1869, %v1702
  %1883 = vst.msk [vmem:[#allocation4 + $0x68] sm:$0xff] %vm1869, %v1704
  %1884 = vst.msk [vmem:[#allocation4 + $0x70] sm:$0xff] %vm1869, %v1706
  %1885 = vst.msk [vmem:[#allocation4 + $0x78] sm:$0xff] %vm1869, %v1708
  %1886 = vst.msk [vmem:[#allocation4 + $0x80] sm:$0xff] %vm1869, %v1710
  %1887 = vst.msk [vmem:[#allocation4 + $0x88] sm:$0xff] %vm1869, %v1712
  %1888 = vst.msk [vmem:[#allocation4 + $0x90] sm:$0xff] %vm1869, %v1714
  %1889 = vst.msk [vmem:[#allocation4 + $0x98] sm:$0xff] %vm1869, %v1716
  %1890 = vst.msk [vmem:[#allocation4 + $0xa0] sm:$0xff] %vm1869, %v1718
  %1891 = vst.msk [vmem:[#allocation4 + $0xa8] sm:$0xff] %vm1869, %v1720
  %1892 = vst.msk [vmem:[#allocation4 + $0xb0] sm:$0xff] %vm1869, %v1722
  %1893 = vst.msk [vmem:[#allocation4 + $0xb8] sm:$0xff] %vm1869, %v1724
  %1894 = vst.msk [vmem:[#allocation4 + $0xc0] sm:$0xff] %vm1869, %v1726
  %1895 = vst.msk [vmem:[#allocation4 + $0xc8] sm:$0xff] %vm1869, %v1728
  %1896 = vst.msk [vmem:[#allocation4 + $0xd0] sm:$0xff] %vm1869, %v1730
  %1897 = vst.msk [vmem:[#allocation4 + $0xd8] sm:$0xff] %vm1869, %v1732
  %1898 = vst.msk [vmem:[#allocation4 + $0xe0] sm:$0xff] %vm1869, %v1734
  %1899 = vst.msk [vmem:[#allocation4 + $0xe8] sm:$0xff] %vm1869, %v1736
  %1900 = vst.msk [vmem:[#allocation4 + $0xf0] sm:$0xff] %vm1869, %v1738
  %1901 = vst.msk [vmem:[#allocation4 + $0xf8] sm:$0xff] %vm1869, %v1740
  %1902 = vst.msk [vmem:[#allocation4 + $0x100] sm:$0xff] %vm1869, %v1742
  %1903 = vst.msk [vmem:[#allocation4 + $0x108] sm:$0xff] %vm1869, %v1744
  %1904 = vst.msk [vmem:[#allocation4 + $0x110] sm:$0xff] %vm1869, %v1746
  %1905 = vst.msk [vmem:[#allocation4 + $0x118] sm:$0xff] %vm1869, %v1748
  %1906 = vst.msk [vmem:[#allocation4 + $0x120] sm:$0xff] %vm1869, %v1750
  %1907 = vst.msk [vmem:[#allocation4 + $0x128] sm:$0xff] %vm1869, %v1752
  %1908 = vst.msk [vmem:[#allocation4 + $0x130] sm:$0xff] %vm1869, %v1754
  %1909 = vst.msk [vmem:[#allocation4 + $0x138] sm:$0xff] %vm1869, %v1756
  %1910 = vst.msk [vmem:[#allocation4 + $0x140] sm:$0xff] %vm1869, %v1758
  %1911 = vst.msk [vmem:[#allocation4 + $0x148] sm:$0xff] %vm1869, %v1760
  %1912 = vst.msk [vmem:[#allocation4 + $0x150] sm:$0xff] %vm1869, %v1762
  %1913 = vst.msk [vmem:[#allocation4 + $0x158] sm:$0xff] %vm1869, %v1764
  %1914 = vst.msk [vmem:[#allocation4 + $0x160] sm:$0xff] %vm1869, %v1766
  %1915 = vst.msk [vmem:[#allocation4 + $0x168] sm:$0xff] %vm1869, %v1768
  %1916 = vst.msk [vmem:[#allocation4 + $0x170] sm:$0xff] %vm1869, %v1770
  %1917 = vst.msk [vmem:[#allocation4 + $0x178] sm:$0xff] %vm1869, %v1772
  %1918 = vst.msk [vmem:[#allocation4 + $0x180] sm:$0xff] %vm1869, %v1774
  %1919 = vst.msk [vmem:[#allocation4 + $0x188] sm:$0xff] %vm1869, %v1776
  %1920 = vst.msk [vmem:[#allocation4 + $0x190] sm:$0xff] %vm1869, %v1778
  %1921 = vst.msk [vmem:[#allocation4 + $0x198] sm:$0xff] %vm1869, %v1780
  %1922 = vst.msk [vmem:[#allocation4 + $0x1a0] sm:$0xff] %vm1869, %v1782
  %1923 = vst.msk [vmem:[#allocation4 + $0x1a8] sm:$0xff] %vm1869, %v1784
  %1924 = vst.msk [vmem:[#allocation4 + $0x1b0] sm:$0xff] %vm1869, %v1786
  %1925 = vst.msk [vmem:[#allocation4 + $0x1b8] sm:$0xff] %vm1869, %v1788
  %1926 = vst.msk [vmem:[#allocation4 + $0x1c0] sm:$0xff] %vm1869, %v1790
  %1927 = vst.msk [vmem:[#allocation4 + $0x1c8] sm:$0xff] %vm1869, %v1792
  %1928 = vst.msk [vmem:[#allocation4 + $0x1d0] sm:$0xff] %vm1869, %v1794
  %1929 = vst.msk [vmem:[#allocation4 + $0x1d8] sm:$0xff] %vm1869, %v1796
  %1930 = vst.msk [vmem:[#allocation4 + $0x1e0] sm:$0xff] %vm1869, %v1798
  %1931 = vst.msk [vmem:[#allocation4 + $0x1e8] sm:$0xff] %vm1869, %v1800
  %1932 = vst.msk [vmem:[#allocation4 + $0x1f0] sm:$0xff] %vm1869, %v1802
  %1933 = vst.msk [vmem:[#allocation4 + $0x1f8] sm:$0xff] %vm1869, %v1804
  %v1934 = vld [vmem:[%s201 + $0x2] sm:$0xff]
  %v1935 = vld [vmem:[%s201 + $0xa] sm:$0xff]
  %v1936 = vld [vmem:[%s201 + $0x1a] sm:$0xff]
  %v1937 = vld [vmem:[%s201 + $0x22] sm:$0xff]
  %v1938 = vld [vmem:[%s201 + $0x32] sm:$0xff]
  %v1939 = vld [vmem:[%s201 + $0x3a] sm:$0xff]
  %v1940 = vld [vmem:[%s201 + $0x4a] sm:$0xff]
  %v1941 = vld [vmem:[%s201 + $0x52] sm:$0xff]
  %v1942 = vld [vmem:[%s201 + $0x62] sm:$0xff]
  %v1943 = vld [vmem:[%s201 + $0x6a] sm:$0xff]
  %v1944 = vld [vmem:[%s201 + $0x7a] sm:$0xff]
  %v1945 = vld [vmem:[%s201 + $0x82] sm:$0xff]
  %v1946 = vld [vmem:[%s201 + $0x92] sm:$0xff]
  %v1947 = vld [vmem:[%s201 + $0x9a] sm:$0xff]
  %v1948 = vld [vmem:[%s201 + $0xaa] sm:$0xff]
  %v1949 = vld [vmem:[%s201 + $0xb2] sm:$0xff]
  %v1950 = vld [vmem:[%s201 + $0xc2] sm:$0xff]
  %v1951 = vld [vmem:[%s201 + $0xca] sm:$0xff]
  %v1952 = vld [vmem:[%s201 + $0xda] sm:$0xff]
  %v1953 = vld [vmem:[%s201 + $0xe2] sm:$0xff]
  %v1954 = vld [vmem:[%s201 + $0xf2] sm:$0xff]
  %v1955 = vld [vmem:[%s201 + $0xfa] sm:$0xff]
  %v1956 = vld [vmem:[%s201 + $0x10a] sm:$0xff]
  %v1957 = vld [vmem:[%s201 + $0x112] sm:$0xff]
  %v1958 = vld [vmem:[%s201 + $0x122] sm:$0xff]
  %v1959 = vld [vmem:[%s201 + $0x12a] sm:$0xff]
  %v1960 = vld [vmem:[%s201 + $0x13a] sm:$0xff]
  %v1961 = vld [vmem:[%s201 + $0x142] sm:$0xff]
  %v1962 = vld [vmem:[%s201 + $0x152] sm:$0xff]
  %v1963 = vld [vmem:[%s201 + $0x15a] sm:$0xff]
  %v1964 = vld [vmem:[%s201 + $0x16a] sm:$0xff]
  %v1965 = vld [vmem:[%s201 + $0x172] sm:$0xff]
  %v1966 = vld [vmem:[%s201 + $0x1b2] sm:$0xff]
  %v1967 = vld [vmem:[%s201 + $0x1ba] sm:$0xff]
  %v1968 = vld [vmem:[%s201 + $0x1ca] sm:$0xff]
  %v1969 = vld [vmem:[%s201 + $0x1d2] sm:$0xff]
  %v1970 = vld [vmem:[%s201 + $0x1e2] sm:$0xff]
  %v1971 = vld [vmem:[%s201 + $0x1ea] sm:$0xff]
  %v1972 = vld [vmem:[%s201 + $0x1fa] sm:$0xff]
  %v1973 = vld [vmem:[%s201 + $0x202] sm:$0xff]
  %v1974 = vld [vmem:[%s201 + $0x212] sm:$0xff]
  %v1975 = vld [vmem:[%s201 + $0x21a] sm:$0xff]
  %v1976 = vld [vmem:[%s201 + $0x22a] sm:$0xff]
  %v1977 = vld [vmem:[%s201 + $0x232] sm:$0xff]
  %v1978 = vld [vmem:[%s201 + $0x242] sm:$0xff]
  %v1979 = vld [vmem:[%s201 + $0x24a] sm:$0xff]
  %v1980 = vld [vmem:[%s201 + $0x25a] sm:$0xff]
  %v1981 = vld [vmem:[%s201 + $0x262] sm:$0xff]
  %v1982 = vld [vmem:[%s201 + $0x272] sm:$0xff]
  %v1983 = vld [vmem:[%s201 + $0x27a] sm:$0xff]
  %v1984 = vld [vmem:[%s201 + $0x28a] sm:$0xff]
  %v1985 = vld [vmem:[%s201 + $0x292] sm:$0xff]
  %v1986 = vld [vmem:[%s201 + $0x2a2] sm:$0xff]
  %v1987 = vld [vmem:[%s201 + $0x2aa] sm:$0xff]
  %v1988 = vld [vmem:[%s201 + $0x2ba] sm:$0xff]
  %v1989 = vld [vmem:[%s201 + $0x2c2] sm:$0xff]
  %v1990 = vld [vmem:[%s201 + $0x2d2] sm:$0xff]
  %v1991 = vld [vmem:[%s201 + $0x2da] sm:$0xff]
  %v1992 = vld [vmem:[%s201 + $0x2ea] sm:$0xff]
  %v1993 = vld [vmem:[%s201 + $0x2f2] sm:$0xff]
  %v1994 = vld [vmem:[%s201 + $0x302] sm:$0xff]
  %v1995 = vld [vmem:[%s201 + $0x30a] sm:$0xff]
  %v1996 = vld [vmem:[%s201 + $0x31a] sm:$0xff]
  %v1997 = vld [vmem:[%s201 + $0x322] sm:$0xff]
  %2062 = vrot.lane.b32.xlu0 %v1934, 20
  %v2063 = vpop.permute.xlu0 %2062
  %2064 = vrot.lane.b32.xlu0 %v1935, 20
  %v2065 = vpop.permute.xlu0 %2064
  %2066 = vrot.lane.b32.xlu0 %v1936, 20
  %v2067 = vpop.permute.xlu0 %2066
  %2068 = vrot.lane.b32.xlu0 %v1937, 20
  %v2069 = vpop.permute.xlu0 %2068
  %2070 = vrot.lane.b32.xlu0 %v1938, 20
  %v2071 = vpop.permute.xlu0 %2070
  %2072 = vrot.lane.b32.xlu0 %v1939, 20
  %v2073 = vpop.permute.xlu0 %2072
  %2074 = vrot.lane.b32.xlu0 %v1940, 20
  %v2075 = vpop.permute.xlu0 %2074
  %2076 = vrot.lane.b32.xlu0 %v1941, 20
  %v2077 = vpop.permute.xlu0 %2076
  %2078 = vrot.lane.b32.xlu0 %v1942, 20
  %v2079 = vpop.permute.xlu0 %2078
  %2080 = vrot.lane.b32.xlu0 %v1943, 20
  %v2081 = vpop.permute.xlu0 %2080
  %2082 = vrot.lane.b32.xlu0 %v1944, 20
  %v2083 = vpop.permute.xlu0 %2082
  %2084 = vrot.lane.b32.xlu0 %v1945, 20
  %v2085 = vpop.permute.xlu0 %2084
  %2086 = vrot.lane.b32.xlu0 %v1946, 20
  %v2087 = vpop.permute.xlu0 %2086
  %2088 = vrot.lane.b32.xlu0 %v1947, 20
  %v2089 = vpop.permute.xlu0 %2088
  %2090 = vrot.lane.b32.xlu0 %v1948, 20
  %v2091 = vpop.permute.xlu0 %2090
  %2092 = vrot.lane.b32.xlu0 %v1949, 20
  %v2093 = vpop.permute.xlu0 %2092
  %2094 = vrot.lane.b32.xlu0 %v1950, 20
  %v2095 = vpop.permute.xlu0 %2094
  %2096 = vrot.lane.b32.xlu0 %v1951, 20
  %v2097 = vpop.permute.xlu0 %2096
  %2098 = vrot.lane.b32.xlu0 %v1952, 20
  %v2099 = vpop.permute.xlu0 %2098
  %2100 = vrot.lane.b32.xlu0 %v1953, 20
  %v2101 = vpop.permute.xlu0 %2100
  %2102 = vrot.lane.b32.xlu0 %v1954, 20
  %v2103 = vpop.permute.xlu0 %2102
  %2104 = vrot.lane.b32.xlu0 %v1955, 20
  %v2105 = vpop.permute.xlu0 %2104
  %2106 = vrot.lane.b32.xlu0 %v1956, 20
  %v2107 = vpop.permute.xlu0 %2106
  %2108 = vrot.lane.b32.xlu0 %v1957, 20
  %v2109 = vpop.permute.xlu0 %2108
  %2110 = vrot.lane.b32.xlu0 %v1958, 20
  %v2111 = vpop.permute.xlu0 %2110
  %2112 = vrot.lane.b32.xlu0 %v1959, 20
  %v2113 = vpop.permute.xlu0 %2112
  %2114 = vrot.lane.b32.xlu0 %v1960, 20
  %v2115 = vpop.permute.xlu0 %2114
  %2116 = vrot.lane.b32.xlu0 %v1961, 20
  %v2117 = vpop.permute.xlu0 %2116
  %2118 = vrot.lane.b32.xlu0 %v1962, 20
  %v2119 = vpop.permute.xlu0 %2118
  %2120 = vrot.lane.b32.xlu0 %v1963, 20
  %v2121 = vpop.permute.xlu0 %2120
  %2122 = vrot.lane.b32.xlu0 %v1964, 20
  %v2123 = vpop.permute.xlu0 %2122
  %2124 = vrot.lane.b32.xlu0 %v1965, 20
  %v2125 = vpop.permute.xlu0 %2124
  %2126 = vrot.lane.b32.xlu0 %v1966, 20
  %v2127 = vpop.permute.xlu0 %2126
  %2128 = vrot.lane.b32.xlu0 %v1967, 20
  %v2129 = vpop.permute.xlu0 %2128
  %2130 = vrot.lane.b32.xlu0 %v1968, 20
  %v2131 = vpop.permute.xlu0 %2130
  %2132 = vrot.lane.b32.xlu0 %v1969, 20
  %v2133 = vpop.permute.xlu0 %2132
  %2134 = vrot.lane.b32.xlu0 %v1970, 20
  %v2135 = vpop.permute.xlu0 %2134
  %2136 = vrot.lane.b32.xlu0 %v1971, 20
  %v2137 = vpop.permute.xlu0 %2136
  %2138 = vrot.lane.b32.xlu0 %v1972, 20
  %v2139 = vpop.permute.xlu0 %2138
  %2140 = vrot.lane.b32.xlu0 %v1973, 20
  %v2141 = vpop.permute.xlu0 %2140
  %2142 = vrot.lane.b32.xlu0 %v1974, 20
  %v2143 = vpop.permute.xlu0 %2142
  %2144 = vrot.lane.b32.xlu0 %v1975, 20
  %v2145 = vpop.permute.xlu0 %2144
  %2146 = vrot.lane.b32.xlu0 %v1976, 20
  %v2147 = vpop.permute.xlu0 %2146
  %2148 = vrot.lane.b32.xlu0 %v1977, 20
  %v2149 = vpop.permute.xlu0 %2148
  %2150 = vrot.lane.b32.xlu0 %v1978, 20
  %v2151 = vpop.permute.xlu0 %2150
  %2152 = vrot.lane.b32.xlu0 %v1979, 20
  %v2153 = vpop.permute.xlu0 %2152
  %2154 = vrot.lane.b32.xlu0 %v1980, 20
  %v2155 = vpop.permute.xlu0 %2154
  %2156 = vrot.lane.b32.xlu0 %v1981, 20
  %v2157 = vpop.permute.xlu0 %2156
  %2158 = vrot.lane.b32.xlu0 %v1982, 20
  %v2159 = vpop.permute.xlu0 %2158
  %2160 = vrot.lane.b32.xlu0 %v1983, 20
  %v2161 = vpop.permute.xlu0 %2160
  %2162 = vrot.lane.b32.xlu0 %v1984, 20
  %v2163 = vpop.permute.xlu0 %2162
  %2164 = vrot.lane.b32.xlu0 %v1985, 20
  %v2165 = vpop.permute.xlu0 %2164
  %2166 = vrot.lane.b32.xlu0 %v1986, 20
  %v2167 = vpop.permute.xlu0 %2166
  %2168 = vrot.lane.b32.xlu0 %v1987, 20
  %v2169 = vpop.permute.xlu0 %2168
  %2170 = vrot.lane.b32.xlu0 %v1988, 20
  %v2171 = vpop.permute.xlu0 %2170
  %2172 = vrot.lane.b32.xlu0 %v1989, 20
  %v2173 = vpop.permute.xlu0 %2172
  %2174 = vrot.lane.b32.xlu0 %v1990, 20
  %v2175 = vpop.permute.xlu0 %2174
  %2176 = vrot.lane.b32.xlu0 %v1991, 20
  %v2177 = vpop.permute.xlu0 %2176
  %2178 = vrot.lane.b32.xlu0 %v1992, 20
  %v2179 = vpop.permute.xlu0 %2178
  %2180 = vrot.lane.b32.xlu0 %v1993, 20
  %v2181 = vpop.permute.xlu0 %2180
  %2182 = vrot.lane.b32.xlu0 %v1994, 20
  %v2183 = vpop.permute.xlu0 %2182
  %2184 = vrot.lane.b32.xlu0 %v1995, 20
  %v2185 = vpop.permute.xlu0 %2184
  %2186 = vrot.lane.b32.xlu0 %v1996, 20
  %v2187 = vpop.permute.xlu0 %2186
  %2188 = vrot.lane.b32.xlu0 %v1997, 20
  %v2189 = vpop.permute.xlu0 %2188
  %vm2254 = vcmask 195744
  %2255 = vst.msk [vmem:[#allocation4] sm:$0xff] %vm2254, %v2063
  %2256 = vst.msk [vmem:[#allocation4 + $0x8] sm:$0xff] %vm2254, %v2065
  %2257 = vst.msk [vmem:[#allocation4 + $0x10] sm:$0xff] %vm2254, %v2067
  %2258 = vst.msk [vmem:[#allocation4 + $0x18] sm:$0xff] %vm2254, %v2069
  %2259 = vst.msk [vmem:[#allocation4 + $0x20] sm:$0xff] %vm2254, %v2071
  %2260 = vst.msk [vmem:[#allocation4 + $0x28] sm:$0xff] %vm2254, %v2073
  %2261 = vst.msk [vmem:[#allocation4 + $0x30] sm:$0xff] %vm2254, %v2075
  %2262 = vst.msk [vmem:[#allocation4 + $0x38] sm:$0xff] %vm2254, %v2077
  %2263 = vst.msk [vmem:[#allocation4 + $0x40] sm:$0xff] %vm2254, %v2079
  %2264 = vst.msk [vmem:[#allocation4 + $0x48] sm:$0xff] %vm2254, %v2081
  %2265 = vst.msk [vmem:[#allocation4 + $0x50] sm:$0xff] %vm2254, %v2083
  %2266 = vst.msk [vmem:[#allocation4 + $0x58] sm:$0xff] %vm2254, %v2085
  %2267 = vst.msk [vmem:[#allocation4 + $0x60] sm:$0xff] %vm2254, %v2087
  %2268 = vst.msk [vmem:[#allocation4 + $0x68] sm:$0xff] %vm2254, %v2089
  %2269 = vst.msk [vmem:[#allocation4 + $0x70] sm:$0xff] %vm2254, %v2091
  %2270 = vst.msk [vmem:[#allocation4 + $0x78] sm:$0xff] %vm2254, %v2093
  %2271 = vst.msk [vmem:[#allocation4 + $0x80] sm:$0xff] %vm2254, %v2095
  %2272 = vst.msk [vmem:[#allocation4 + $0x88] sm:$0xff] %vm2254, %v2097
  %2273 = vst.msk [vmem:[#allocation4 + $0x90] sm:$0xff] %vm2254, %v2099
  %2274 = vst.msk [vmem:[#allocation4 + $0x98] sm:$0xff] %vm2254, %v2101
  %2275 = vst.msk [vmem:[#allocation4 + $0xa0] sm:$0xff] %vm2254, %v2103
  %2276 = vst.msk [vmem:[#allocation4 + $0xa8] sm:$0xff] %vm2254, %v2105
  %2277 = vst.msk [vmem:[#allocation4 + $0xb0] sm:$0xff] %vm2254, %v2107
  %2278 = vst.msk [vmem:[#allocation4 + $0xb8] sm:$0xff] %vm2254, %v2109
  %2279 = vst.msk [vmem:[#allocation4 + $0xc0] sm:$0xff] %vm2254, %v2111
  %2280 = vst.msk [vmem:[#allocation4 + $0xc8] sm:$0xff] %vm2254, %v2113
  %2281 = vst.msk [vmem:[#allocation4 + $0xd0] sm:$0xff] %vm2254, %v2115
  %2282 = vst.msk [vmem:[#allocation4 + $0xd8] sm:$0xff] %vm2254, %v2117
  %2283 = vst.msk [vmem:[#allocation4 + $0xe0] sm:$0xff] %vm2254, %v2119
  %2284 = vst.msk [vmem:[#allocation4 + $0xe8] sm:$0xff] %vm2254, %v2121
  %2285 = vst.msk [vmem:[#allocation4 + $0xf0] sm:$0xff] %vm2254, %v2123
  %2286 = vst.msk [vmem:[#allocation4 + $0xf8] sm:$0xff] %vm2254, %v2125
  %2287 = vst.msk [vmem:[#allocation4 + $0x100] sm:$0xff] %vm2254, %v2127
  %2288 = vst.msk [vmem:[#allocation4 + $0x108] sm:$0xff] %vm2254, %v2129
  %2289 = vst.msk [vmem:[#allocation4 + $0x110] sm:$0xff] %vm2254, %v2131
  %2290 = vst.msk [vmem:[#allocation4 + $0x118] sm:$0xff] %vm2254, %v2133
  %2291 = vst.msk [vmem:[#allocation4 + $0x120] sm:$0xff] %vm2254, %v2135
  %2292 = vst.msk [vmem:[#allocation4 + $0x128] sm:$0xff] %vm2254, %v2137
  %2293 = vst.msk [vmem:[#allocation4 + $0x130] sm:$0xff] %vm2254, %v2139
  %2294 = vst.msk [vmem:[#allocation4 + $0x138] sm:$0xff] %vm2254, %v2141
  %2295 = vst.msk [vmem:[#allocation4 + $0x140] sm:$0xff] %vm2254, %v2143
  %2296 = vst.msk [vmem:[#allocation4 + $0x148] sm:$0xff] %vm2254, %v2145
  %2297 = vst.msk [vmem:[#allocation4 + $0x150] sm:$0xff] %vm2254, %v2147
  %2298 = vst.msk [vmem:[#allocation4 + $0x158] sm:$0xff] %vm2254, %v2149
  %2299 = vst.msk [vmem:[#allocation4 + $0x160] sm:$0xff] %vm2254, %v2151
  %2300 = vst.msk [vmem:[#allocation4 + $0x168] sm:$0xff] %vm2254, %v2153
  %2301 = vst.msk [vmem:[#allocation4 + $0x170] sm:$0xff] %vm2254, %v2155
  %2302 = vst.msk [vmem:[#allocation4 + $0x178] sm:$0xff] %vm2254, %v2157
  %2303 = vst.msk [vmem:[#allocation4 + $0x180] sm:$0xff] %vm2254, %v2159
  %2304 = vst.msk [vmem:[#allocation4 + $0x188] sm:$0xff] %vm2254, %v2161
  %2305 = vst.msk [vmem:[#allocation4 + $0x190] sm:$0xff] %vm2254, %v2163
  %2306 = vst.msk [vmem:[#allocation4 + $0x198] sm:$0xff] %vm2254, %v2165
  %2307 = vst.msk [vmem:[#allocation4 + $0x1a0] sm:$0xff] %vm2254, %v2167
  %2308 = vst.msk [vmem:[#allocation4 + $0x1a8] sm:$0xff] %vm2254, %v2169
  %2309 = vst.msk [vmem:[#allocation4 + $0x1b0] sm:$0xff] %vm2254, %v2171
  %2310 = vst.msk [vmem:[#allocation4 + $0x1b8] sm:$0xff] %vm2254, %v2173
  %2311 = vst.msk [vmem:[#allocation4 + $0x1c0] sm:$0xff] %vm2254, %v2175
  %2312 = vst.msk [vmem:[#allocation4 + $0x1c8] sm:$0xff] %vm2254, %v2177
  %2313 = vst.msk [vmem:[#allocation4 + $0x1d0] sm:$0xff] %vm2254, %v2179
  %2314 = vst.msk [vmem:[#allocation4 + $0x1d8] sm:$0xff] %vm2254, %v2181
  %2315 = vst.msk [vmem:[#allocation4 + $0x1e0] sm:$0xff] %vm2254, %v2183
  %2316 = vst.msk [vmem:[#allocation4 + $0x1e8] sm:$0xff] %vm2254, %v2185
  %2317 = vst.msk [vmem:[#allocation4 + $0x1f0] sm:$0xff] %vm2254, %v2187
  %2318 = vst.msk [vmem:[#allocation4 + $0x1f8] sm:$0xff] %vm2254, %v2189
  %s2319 = scalar_lea.vmem [#allocation2], 48
  %v2320 = vld [vmem:[%s2319] sm:$0xff]
  %v2321 = vld [vmem:[%s2319 + $0x8] sm:$0xff]
  %v2322 = vld [vmem:[%s2319 + $0x18] sm:$0xff]
  %v2323 = vld [vmem:[%s2319 + $0x20] sm:$0xff]
  %v2324 = vld [vmem:[%s2319 + $0x30] sm:$0xff]
  %v2325 = vld [vmem:[%s2319 + $0x38] sm:$0xff]
  %v2326 = vld [vmem:[%s2319 + $0x48] sm:$0xff]
  %v2327 = vld [vmem:[%s2319 + $0x50] sm:$0xff]
  %v2328 = vld [vmem:[%s2319 + $0x60] sm:$0xff]
  %v2329 = vld [vmem:[%s2319 + $0x68] sm:$0xff]
  %v2330 = vld [vmem:[%s2319 + $0x78] sm:$0xff]
  %v2331 = vld [vmem:[%s2319 + $0x80] sm:$0xff]
  %v2332 = vld [vmem:[%s2319 + $0x90] sm:$0xff]
  %v2333 = vld [vmem:[%s2319 + $0x98] sm:$0xff]
  %v2334 = vld [vmem:[%s2319 + $0xa8] sm:$0xff]
  %v2335 = vld [vmem:[%s2319 + $0xb0] sm:$0xff]
  %v2336 = vld [vmem:[%s2319 + $0xc0] sm:$0xff]
  %v2337 = vld [vmem:[%s2319 + $0xc8] sm:$0xff]
  %v2338 = vld [vmem:[%s2319 + $0xd8] sm:$0xff]
  %v2339 = vld [vmem:[%s2319 + $0xe0] sm:$0xff]
  %v2340 = vld [vmem:[%s2319 + $0xf0] sm:$0xff]
  %v2341 = vld [vmem:[%s2319 + $0xf8] sm:$0xff]
  %v2342 = vld [vmem:[%s2319 + $0x108] sm:$0xff]
  %v2343 = vld [vmem:[%s2319 + $0x110] sm:$0xff]
  %v2344 = vld [vmem:[%s2319 + $0x120] sm:$0xff]
  %v2345 = vld [vmem:[%s2319 + $0x128] sm:$0xff]
  %v2346 = vld [vmem:[%s2319 + $0x138] sm:$0xff]
  %v2347 = vld [vmem:[%s2319 + $0x140] sm:$0xff]
  %v2348 = vld [vmem:[%s2319 + $0x150] sm:$0xff]
  %v2349 = vld [vmem:[%s2319 + $0x158] sm:$0xff]
  %v2350 = vld [vmem:[%s2319 + $0x168] sm:$0xff]
  %v2351 = vld [vmem:[%s2319 + $0x170] sm:$0xff]
  %v2352 = vld [vmem:[%s2319 + $0x1b0] sm:$0xff]
  %v2353 = vld [vmem:[%s2319 + $0x1b8] sm:$0xff]
  %v2354 = vld [vmem:[%s2319 + $0x1c8] sm:$0xff]
  %v2355 = vld [vmem:[%s2319 + $0x1d0] sm:$0xff]
  %v2356 = vld [vmem:[%s2319 + $0x1e0] sm:$0xff]
  %v2357 = vld [vmem:[%s2319 + $0x1e8] sm:$0xff]
  %v2358 = vld [vmem:[%s2319 + $0x1f8] sm:$0xff]
  %v2359 = vld [vmem:[%s2319 + $0x200] sm:$0xff]
  %v2360 = vld [vmem:[%s2319 + $0x210] sm:$0xff]
  %v2361 = vld [vmem:[%s2319 + $0x218] sm:$0xff]
  %v2362 = vld [vmem:[%s2319 + $0x228] sm:$0xff]
  %v2363 = vld [vmem:[%s2319 + $0x230] sm:$0xff]
  %v2364 = vld [vmem:[%s2319 + $0x240] sm:$0xff]
  %v2365 = vld [vmem:[%s2319 + $0x248] sm:$0xff]
  %v2366 = vld [vmem:[%s2319 + $0x258] sm:$0xff]
  %v2367 = vld [vmem:[%s2319 + $0x260] sm:$0xff]
  %v2368 = vld [vmem:[%s2319 + $0x270] sm:$0xff]
  %v2369 = vld [vmem:[%s2319 + $0x278] sm:$0xff]
  %v2370 = vld [vmem:[%s2319 + $0x288] sm:$0xff]
  %v2371 = vld [vmem:[%s2319 + $0x290] sm:$0xff]
  %v2372 = vld [vmem:[%s2319 + $0x2a0] sm:$0xff]
  %v2373 = vld [vmem:[%s2319 + $0x2a8] sm:$0xff]
  %v2374 = vld [vmem:[%s2319 + $0x2b8] sm:$0xff]
  %v2375 = vld [vmem:[%s2319 + $0x2c0] sm:$0xff]
  %v2376 = vld [vmem:[%s2319 + $0x2d0] sm:$0xff]
  %v2377 = vld [vmem:[%s2319 + $0x2d8] sm:$0xff]
  %v2378 = vld [vmem:[%s2319 + $0x2e8] sm:$0xff]
  %v2379 = vld [vmem:[%s2319 + $0x2f0] sm:$0xff]
  %v2380 = vld [vmem:[%s2319 + $0x300] sm:$0xff]
  %v2381 = vld [vmem:[%s2319 + $0x308] sm:$0xff]
  %v2382 = vld [vmem:[%s2319 + $0x318] sm:$0xff]
  %v2383 = vld [vmem:[%s2319 + $0x320] sm:$0xff]
  %2448 = vrot.lane.b32.xlu0 %v2320, 24
  %v2449 = vpop.permute.xlu0 %2448
  %2450 = vrot.lane.b32.xlu0 %v2321, 24
  %v2451 = vpop.permute.xlu0 %2450
  %2452 = vrot.lane.b32.xlu0 %v2322, 24
  %v2453 = vpop.permute.xlu0 %2452
  %2454 = vrot.lane.b32.xlu0 %v2323, 24
  %v2455 = vpop.permute.xlu0 %2454
  %2456 = vrot.lane.b32.xlu0 %v2324, 24
  %v2457 = vpop.permute.xlu0 %2456
  %2458 = vrot.lane.b32.xlu0 %v2325, 24
  %v2459 = vpop.permute.xlu0 %2458
  %2460 = vrot.lane.b32.xlu0 %v2326, 24
  %v2461 = vpop.permute.xlu0 %2460
  %2462 = vrot.lane.b32.xlu0 %v2327, 24
  %v2463 = vpop.permute.xlu0 %2462
  %2464 = vrot.lane.b32.xlu0 %v2328, 24
  %v2465 = vpop.permute.xlu0 %2464
  %2466 = vrot.lane.b32.xlu0 %v2329, 24
  %v2467 = vpop.permute.xlu0 %2466
  %2468 = vrot.lane.b32.xlu0 %v2330, 24
  %v2469 = vpop.permute.xlu0 %2468
  %2470 = vrot.lane.b32.xlu0 %v2331, 24
  %v2471 = vpop.permute.xlu0 %2470
  %2472 = vrot.lane.b32.xlu0 %v2332, 24
  %v2473 = vpop.permute.xlu0 %2472
  %2474 = vrot.lane.b32.xlu0 %v2333, 24
  %v2475 = vpop.permute.xlu0 %2474
  %2476 = vrot.lane.b32.xlu0 %v2334, 24
  %v2477 = vpop.permute.xlu0 %2476
  %2478 = vrot.lane.b32.xlu0 %v2335, 24
  %v2479 = vpop.permute.xlu0 %2478
  %2480 = vrot.lane.b32.xlu0 %v2336, 24
  %v2481 = vpop.permute.xlu0 %2480
  %2482 = vrot.lane.b32.xlu0 %v2337, 24
  %v2483 = vpop.permute.xlu0 %2482
  %2484 = vrot.lane.b32.xlu0 %v2338, 24
  %v2485 = vpop.permute.xlu0 %2484
  %2486 = vrot.lane.b32.xlu0 %v2339, 24
  %v2487 = vpop.permute.xlu0 %2486
  %2488 = vrot.lane.b32.xlu0 %v2340, 24
  %v2489 = vpop.permute.xlu0 %2488
  %2490 = vrot.lane.b32.xlu0 %v2341, 24
  %v2491 = vpop.permute.xlu0 %2490
  %2492 = vrot.lane.b32.xlu0 %v2342, 24
  %v2493 = vpop.permute.xlu0 %2492
  %2494 = vrot.lane.b32.xlu0 %v2343, 24
  %v2495 = vpop.permute.xlu0 %2494
  %2496 = vrot.lane.b32.xlu0 %v2344, 24
  %v2497 = vpop.permute.xlu0 %2496
  %2498 = vrot.lane.b32.xlu0 %v2345, 24
  %v2499 = vpop.permute.xlu0 %2498
  %2500 = vrot.lane.b32.xlu0 %v2346, 24
  %v2501 = vpop.permute.xlu0 %2500
  %2502 = vrot.lane.b32.xlu0 %v2347, 24
  %v2503 = vpop.permute.xlu0 %2502
  %2504 = vrot.lane.b32.xlu0 %v2348, 24
  %v2505 = vpop.permute.xlu0 %2504
  %2506 = vrot.lane.b32.xlu0 %v2349, 24
  %v2507 = vpop.permute.xlu0 %2506
  %2508 = vrot.lane.b32.xlu0 %v2350, 24
  %v2509 = vpop.permute.xlu0 %2508
  %2510 = vrot.lane.b32.xlu0 %v2351, 24
  %v2511 = vpop.permute.xlu0 %2510
  %2512 = vrot.lane.b32.xlu0 %v2352, 24
  %v2513 = vpop.permute.xlu0 %2512
  %2514 = vrot.lane.b32.xlu0 %v2353, 24
  %v2515 = vpop.permute.xlu0 %2514
  %2516 = vrot.lane.b32.xlu0 %v2354, 24
  %v2517 = vpop.permute.xlu0 %2516
  %2518 = vrot.lane.b32.xlu0 %v2355, 24
  %v2519 = vpop.permute.xlu0 %2518
  %2520 = vrot.lane.b32.xlu0 %v2356, 24
  %v2521 = vpop.permute.xlu0 %2520
  %2522 = vrot.lane.b32.xlu0 %v2357, 24
  %v2523 = vpop.permute.xlu0 %2522
  %2524 = vrot.lane.b32.xlu0 %v2358, 24
  %v2525 = vpop.permute.xlu0 %2524
  %2526 = vrot.lane.b32.xlu0 %v2359, 24
  %v2527 = vpop.permute.xlu0 %2526
  %2528 = vrot.lane.b32.xlu0 %v2360, 24
  %v2529 = vpop.permute.xlu0 %2528
  %2530 = vrot.lane.b32.xlu0 %v2361, 24
  %v2531 = vpop.permute.xlu0 %2530
  %2532 = vrot.lane.b32.xlu0 %v2362, 24
  %v2533 = vpop.permute.xlu0 %2532
  %2534 = vrot.lane.b32.xlu0 %v2363, 24
  %v2535 = vpop.permute.xlu0 %2534
  %2536 = vrot.lane.b32.xlu0 %v2364, 24
  %v2537 = vpop.permute.xlu0 %2536
  %2538 = vrot.lane.b32.xlu0 %v2365, 24
  %v2539 = vpop.permute.xlu0 %2538
  %2540 = vrot.lane.b32.xlu0 %v2366, 24
  %v2541 = vpop.permute.xlu0 %2540
  %2542 = vrot.lane.b32.xlu0 %v2367, 24
  %v2543 = vpop.permute.xlu0 %2542
  %2544 = vrot.lane.b32.xlu0 %v2368, 24
  %v2545 = vpop.permute.xlu0 %2544
  %2546 = vrot.lane.b32.xlu0 %v2369, 24
  %v2547 = vpop.permute.xlu0 %2546
  %2548 = vrot.lane.b32.xlu0 %v2370, 24
  %v2549 = vpop.permute.xlu0 %2548
  %2550 = vrot.lane.b32.xlu0 %v2371, 24
  %v2551 = vpop.permute.xlu0 %2550
  %2552 = vrot.lane.b32.xlu0 %v2372, 24
  %v2553 = vpop.permute.xlu0 %2552
  %2554 = vrot.lane.b32.xlu0 %v2373, 24
  %v2555 = vpop.permute.xlu0 %2554
  %2556 = vrot.lane.b32.xlu0 %v2374, 24
  %v2557 = vpop.permute.xlu0 %2556
  %2558 = vrot.lane.b32.xlu0 %v2375, 24
  %v2559 = vpop.permute.xlu0 %2558
  %2560 = vrot.lane.b32.xlu0 %v2376, 24
  %v2561 = vpop.permute.xlu0 %2560
  %2562 = vrot.lane.b32.xlu0 %v2377, 24
  %v2563 = vpop.permute.xlu0 %2562
  %2564 = vrot.lane.b32.xlu0 %v2378, 24
  %v2565 = vpop.permute.xlu0 %2564
  %2566 = vrot.lane.b32.xlu0 %v2379, 24
  %v2567 = vpop.permute.xlu0 %2566
  %2568 = vrot.lane.b32.xlu0 %v2380, 24
  %v2569 = vpop.permute.xlu0 %2568
  %2570 = vrot.lane.b32.xlu0 %v2381, 24
  %v2571 = vpop.permute.xlu0 %2570
  %2572 = vrot.lane.b32.xlu0 %v2382, 24
  %v2573 = vpop.permute.xlu0 %2572
  %2574 = vrot.lane.b32.xlu0 %v2383, 24
  %v2575 = vpop.permute.xlu0 %2574
  %vm2640 = vcmask 228544
  %2641 = vst.msk [vmem:[#allocation4] sm:$0xff] %vm2640, %v2449
  %2642 = vst.msk [vmem:[#allocation4 + $0x8] sm:$0xff] %vm2640, %v2451
  %2643 = vst.msk [vmem:[#allocation4 + $0x10] sm:$0xff] %vm2640, %v2453
  %2644 = vst.msk [vmem:[#allocation4 + $0x18] sm:$0xff] %vm2640, %v2455
  %2645 = vst.msk [vmem:[#allocation4 + $0x20] sm:$0xff] %vm2640, %v2457
  %2646 = vst.msk [vmem:[#allocation4 + $0x28] sm:$0xff] %vm2640, %v2459
  %2647 = vst.msk [vmem:[#allocation4 + $0x30] sm:$0xff] %vm2640, %v2461
  %2648 = vst.msk [vmem:[#allocation4 + $0x38] sm:$0xff] %vm2640, %v2463
  %2649 = vst.msk [vmem:[#allocation4 + $0x40] sm:$0xff] %vm2640, %v2465
  %2650 = vst.msk [vmem:[#allocation4 + $0x48] sm:$0xff] %vm2640, %v2467
  %2651 = vst.msk [vmem:[#allocation4 + $0x50] sm:$0xff] %vm2640, %v2469
  %2652 = vst.msk [vmem:[#allocation4 + $0x58] sm:$0xff] %vm2640, %v2471
  %2653 = vst.msk [vmem:[#allocation4 + $0x60] sm:$0xff] %vm2640, %v2473
  %2654 = vst.msk [vmem:[#allocation4 + $0x68] sm:$0xff] %vm2640, %v2475
  %2655 = vst.msk [vmem:[#allocation4 + $0x70] sm:$0xff] %vm2640, %v2477
  %2656 = vst.msk [vmem:[#allocation4 + $0x78] sm:$0xff] %vm2640, %v2479
  %2657 = vst.msk [vmem:[#allocation4 + $0x80] sm:$0xff] %vm2640, %v2481
  %2658 = vst.msk [vmem:[#allocation4 + $0x88] sm:$0xff] %vm2640, %v2483
  %2659 = vst.msk [vmem:[#allocation4 + $0x90] sm:$0xff] %vm2640, %v2485
  %2660 = vst.msk [vmem:[#allocation4 + $0x98] sm:$0xff] %vm2640, %v2487
  %2661 = vst.msk [vmem:[#allocation4 + $0xa0] sm:$0xff] %vm2640, %v2489
  %2662 = vst.msk [vmem:[#allocation4 + $0xa8] sm:$0xff] %vm2640, %v2491
  %2663 = vst.msk [vmem:[#allocation4 + $0xb0] sm:$0xff] %vm2640, %v2493
  %2664 = vst.msk [vmem:[#allocation4 + $0xb8] sm:$0xff] %vm2640, %v2495
  %2665 = vst.msk [vmem:[#allocation4 + $0xc0] sm:$0xff] %vm2640, %v2497
  %2666 = vst.msk [vmem:[#allocation4 + $0xc8] sm:$0xff] %vm2640, %v2499
  %2667 = vst.msk [vmem:[#allocation4 + $0xd0] sm:$0xff] %vm2640, %v2501
  %2668 = vst.msk [vmem:[#allocation4 + $0xd8] sm:$0xff] %vm2640, %v2503
  %2669 = vst.msk [vmem:[#allocation4 + $0xe0] sm:$0xff] %vm2640, %v2505
  %2670 = vst.msk [vmem:[#allocation4 + $0xe8] sm:$0xff] %vm2640, %v2507
  %2671 = vst.msk [vmem:[#allocation4 + $0xf0] sm:$0xff] %vm2640, %v2509
  %2672 = vst.msk [vmem:[#allocation4 + $0xf8] sm:$0xff] %vm2640, %v2511
  %2673 = vst.msk [vmem:[#allocation4 + $0x100] sm:$0xff] %vm2640, %v2513
  %2674 = vst.msk [vmem:[#allocation4 + $0x108] sm:$0xff] %vm2640, %v2515
  %2675 = vst.msk [vmem:[#allocation4 + $0x110] sm:$0xff] %vm2640, %v2517
  %2676 = vst.msk [vmem:[#allocation4 + $0x118] sm:$0xff] %vm2640, %v2519
  %2677 = vst.msk [vmem:[#allocation4 + $0x120] sm:$0xff] %vm2640, %v2521
  %2678 = vst.msk [vmem:[#allocation4 + $0x128] sm:$0xff] %vm2640, %v2523
  %2679 = vst.msk [vmem:[#allocation4 + $0x130] sm:$0xff] %vm2640, %v2525
  %2680 = vst.msk [vmem:[#allocation4 + $0x138] sm:$0xff] %vm2640, %v2527
  %2681 = vst.msk [vmem:[#allocation4 + $0x140] sm:$0xff] %vm2640, %v2529
  %2682 = vst.msk [vmem:[#allocation4 + $0x148] sm:$0xff] %vm2640, %v2531
  %2683 = vst.msk [vmem:[#allocation4 + $0x150] sm:$0xff] %vm2640, %v2533
  %2684 = vst.msk [vmem:[#allocation4 + $0x158] sm:$0xff] %vm2640, %v2535
  %2685 = vst.msk [vmem:[#allocation4 + $0x160] sm:$0xff] %vm2640, %v2537
  %2686 = vst.msk [vmem:[#allocation4 + $0x168] sm:$0xff] %vm2640, %v2539
  %2687 = vst.msk [vmem:[#allocation4 + $0x170] sm:$0xff] %vm2640, %v2541
  %2688 = vst.msk [vmem:[#allocation4 + $0x178] sm:$0xff] %vm2640, %v2543
  %2689 = vst.msk [vmem:[#allocation4 + $0x180] sm:$0xff] %vm2640, %v2545
  %2690 = vst.msk [vmem:[#allocation4 + $0x188] sm:$0xff] %vm2640, %v2547
  %2691 = vst.msk [vmem:[#allocation4 + $0x190] sm:$0xff] %vm2640, %v2549
  %2692 = vst.msk [vmem:[#allocation4 + $0x198] sm:$0xff] %vm2640, %v2551
  %2693 = vst.msk [vmem:[#allocation4 + $0x1a0] sm:$0xff] %vm2640, %v2553
  %2694 = vst.msk [vmem:[#allocation4 + $0x1a8] sm:$0xff] %vm2640, %v2555
  %2695 = vst.msk [vmem:[#allocation4 + $0x1b0] sm:$0xff] %vm2640, %v2557
  %2696 = vst.msk [vmem:[#allocation4 + $0x1b8] sm:$0xff] %vm2640, %v2559
  %2697 = vst.msk [vmem:[#allocation4 + $0x1c0] sm:$0xff] %vm2640, %v2561
  %2698 = vst.msk [vmem:[#allocation4 + $0x1c8] sm:$0xff] %vm2640, %v2563
  %2699 = vst.msk [vmem:[#allocation4 + $0x1d0] sm:$0xff] %vm2640, %v2565
  %2700 = vst.msk [vmem:[#allocation4 + $0x1d8] sm:$0xff] %vm2640, %v2567
  %2701 = vst.msk [vmem:[#allocation4 + $0x1e0] sm:$0xff] %vm2640, %v2569
  %2702 = vst.msk [vmem:[#allocation4 + $0x1e8] sm:$0xff] %vm2640, %v2571
  %2703 = vst.msk [vmem:[#allocation4 + $0x1f0] sm:$0xff] %vm2640, %v2573
  %2704 = vst.msk [vmem:[#allocation4 + $0x1f8] sm:$0xff] %vm2640, %v2575
  %v2705 = vld [vmem:[%s2319 + $0x1] sm:$0xff]
  %v2706 = vld [vmem:[%s2319 + $0x9] sm:$0xff]
  %v2707 = vld [vmem:[%s2319 + $0x19] sm:$0xff]
  %v2708 = vld [vmem:[%s2319 + $0x21] sm:$0xff]
  %v2709 = vld [vmem:[%s2319 + $0x31] sm:$0xff]
  %v2710 = vld [vmem:[%s2319 + $0x39] sm:$0xff]
  %v2711 = vld [vmem:[%s2319 + $0x49] sm:$0xff]
  %v2712 = vld [vmem:[%s2319 + $0x51] sm:$0xff]
  %v2713 = vld [vmem:[%s2319 + $0x61] sm:$0xff]
  %v2714 = vld [vmem:[%s2319 + $0x69] sm:$0xff]
  %v2715 = vld [vmem:[%s2319 + $0x79] sm:$0xff]
  %v2716 = vld [vmem:[%s2319 + $0x81] sm:$0xff]
  %v2717 = vld [vmem:[%s2319 + $0x91] sm:$0xff]
  %v2718 = vld [vmem:[%s2319 + $0x99] sm:$0xff]
  %v2719 = vld [vmem:[%s2319 + $0xa9] sm:$0xff]
  %v2720 = vld [vmem:[%s2319 + $0xb1] sm:$0xff]
  %v2721 = vld [vmem:[%s2319 + $0xc1] sm:$0xff]
  %v2722 = vld [vmem:[%s2319 + $0xc9] sm:$0xff]
  %v2723 = vld [vmem:[%s2319 + $0xd9] sm:$0xff]
  %v2724 = vld [vmem:[%s2319 + $0xe1] sm:$0xff]
  %v2725 = vld [vmem:[%s2319 + $0xf1] sm:$0xff]
  %v2726 = vld [vmem:[%s2319 + $0xf9] sm:$0xff]
  %v2727 = vld [vmem:[%s2319 + $0x109] sm:$0xff]
  %v2728 = vld [vmem:[%s2319 + $0x111] sm:$0xff]
  %v2729 = vld [vmem:[%s2319 + $0x121] sm:$0xff]
  %v2730 = vld [vmem:[%s2319 + $0x129] sm:$0xff]
  %v2731 = vld [vmem:[%s2319 + $0x139] sm:$0xff]
  %v2732 = vld [vmem:[%s2319 + $0x141] sm:$0xff]
  %v2733 = vld [vmem:[%s2319 + $0x151] sm:$0xff]
  %v2734 = vld [vmem:[%s2319 + $0x159] sm:$0xff]
  %v2735 = vld [vmem:[%s2319 + $0x169] sm:$0xff]
  %v2736 = vld [vmem:[%s2319 + $0x171] sm:$0xff]
  %v2737 = vld [vmem:[%s2319 + $0x1b1] sm:$0xff]
  %v2738 = vld [vmem:[%s2319 + $0x1b9] sm:$0xff]
  %v2739 = vld [vmem:[%s2319 + $0x1c9] sm:$0xff]
  %v2740 = vld [vmem:[%s2319 + $0x1d1] sm:$0xff]
  %v2741 = vld [vmem:[%s2319 + $0x1e1] sm:$0xff]
  %v2742 = vld [vmem:[%s2319 + $0x1e9] sm:$0xff]
  %v2743 = vld [vmem:[%s2319 + $0x1f9] sm:$0xff]
  %v2744 = vld [vmem:[%s2319 + $0x201] sm:$0xff]
  %v2745 = vld [vmem:[%s2319 + $0x211] sm:$0xff]
  %v2746 = vld [vmem:[%s2319 + $0x219] sm:$0xff]
  %v2747 = vld [vmem:[%s2319 + $0x229] sm:$0xff]
  %v2748 = vld [vmem:[%s2319 + $0x231] sm:$0xff]
  %v2749 = vld [vmem:[%s2319 + $0x241] sm:$0xff]
  %v2750 = vld [vmem:[%s2319 + $0x249] sm:$0xff]
  %v2751 = vld [vmem:[%s2319 + $0x259] sm:$0xff]
  %v2752 = vld [vmem:[%s2319 + $0x261] sm:$0xff]
  %v2753 = vld [vmem:[%s2319 + $0x271] sm:$0xff]
  %v2754 = vld [vmem:[%s2319 + $0x279] sm:$0xff]
  %v2755 = vld [vmem:[%s2319 + $0x289] sm:$0xff]
  %v2756 = vld [vmem:[%s2319 + $0x291] sm:$0xff]
  %v2757 = vld [vmem:[%s2319 + $0x2a1] sm:$0xff]
  %v2758 = vld [vmem:[%s2319 + $0x2a9] sm:$0xff]
  %v2759 = vld [vmem:[%s2319 + $0x2b9] sm:$0xff]
  %v2760 = vld [vmem:[%s2319 + $0x2c1] sm:$0xff]
  %v2761 = vld [vmem:[%s2319 + $0x2d1] sm:$0xff]
  %v2762 = vld [vmem:[%s2319 + $0x2d9] sm:$0xff]
  %v2763 = vld [vmem:[%s2319 + $0x2e9] sm:$0xff]
  %v2764 = vld [vmem:[%s2319 + $0x2f1] sm:$0xff]
  %v2765 = vld [vmem:[%s2319 + $0x301] sm:$0xff]
  %v2766 = vld [vmem:[%s2319 + $0x309] sm:$0xff]
  %v2767 = vld [vmem:[%s2319 + $0x319] sm:$0xff]
  %v2768 = vld [vmem:[%s2319 + $0x321] sm:$0xff]
  %2833 = vrot.lane.b32.xlu0 %v2705, 28
  %v2834 = vpop.permute.xlu0 %2833
  %2835 = vrot.lane.b32.xlu0 %v2706, 28
  %v2836 = vpop.permute.xlu0 %2835
  %2837 = vrot.lane.b32.xlu0 %v2707, 28
  %v2838 = vpop.permute.xlu0 %2837
  %2839 = vrot.lane.b32.xlu0 %v2708, 28
  %v2840 = vpop.permute.xlu0 %2839
  %2841 = vrot.lane.b32.xlu0 %v2709, 28
  %v2842 = vpop.permute.xlu0 %2841
  %2843 = vrot.lane.b32.xlu0 %v2710, 28
  %v2844 = vpop.permute.xlu0 %2843
  %2845 = vrot.lane.b32.xlu0 %v2711, 28
  %v2846 = vpop.permute.xlu0 %2845
  %2847 = vrot.lane.b32.xlu0 %v2712, 28
  %v2848 = vpop.permute.xlu0 %2847
  %2849 = vrot.lane.b32.xlu0 %v2713, 28
  %v2850 = vpop.permute.xlu0 %2849
  %2851 = vrot.lane.b32.xlu0 %v2714, 28
  %v2852 = vpop.permute.xlu0 %2851
  %2853 = vrot.lane.b32.xlu0 %v2715, 28
  %v2854 = vpop.permute.xlu0 %2853
  %2855 = vrot.lane.b32.xlu0 %v2716, 28
  %v2856 = vpop.permute.xlu0 %2855
  %2857 = vrot.lane.b32.xlu0 %v2717, 28
  %v2858 = vpop.permute.xlu0 %2857
  %2859 = vrot.lane.b32.xlu0 %v2718, 28
  %v2860 = vpop.permute.xlu0 %2859
  %2861 = vrot.lane.b32.xlu0 %v2719, 28
  %v2862 = vpop.permute.xlu0 %2861
  %2863 = vrot.lane.b32.xlu0 %v2720, 28
  %v2864 = vpop.permute.xlu0 %2863
  %2865 = vrot.lane.b32.xlu0 %v2721, 28
  %v2866 = vpop.permute.xlu0 %2865
  %2867 = vrot.lane.b32.xlu0 %v2722, 28
  %v2868 = vpop.permute.xlu0 %2867
  %2869 = vrot.lane.b32.xlu0 %v2723, 28
  %v2870 = vpop.permute.xlu0 %2869
  %2871 = vrot.lane.b32.xlu0 %v2724, 28
  %v2872 = vpop.permute.xlu0 %2871
  %2873 = vrot.lane.b32.xlu0 %v2725, 28
  %v2874 = vpop.permute.xlu0 %2873
  %2875 = vrot.lane.b32.xlu0 %v2726, 28
  %v2876 = vpop.permute.xlu0 %2875
  %2877 = vrot.lane.b32.xlu0 %v2727, 28
  %v2878 = vpop.permute.xlu0 %2877
  %2879 = vrot.lane.b32.xlu0 %v2728, 28
  %v2880 = vpop.permute.xlu0 %2879
  %2881 = vrot.lane.b32.xlu0 %v2729, 28
  %v2882 = vpop.permute.xlu0 %2881
  %2883 = vrot.lane.b32.xlu0 %v2730, 28
  %v2884 = vpop.permute.xlu0 %2883
  %2885 = vrot.lane.b32.xlu0 %v2731, 28
  %v2886 = vpop.permute.xlu0 %2885
  %2887 = vrot.lane.b32.xlu0 %v2732, 28
  %v2888 = vpop.permute.xlu0 %2887
  %2889 = vrot.lane.b32.xlu0 %v2733, 28
  %v2890 = vpop.permute.xlu0 %2889
  %2891 = vrot.lane.b32.xlu0 %v2734, 28
  %v2892 = vpop.permute.xlu0 %2891
  %2893 = vrot.lane.b32.xlu0 %v2735, 28
  %v2894 = vpop.permute.xlu0 %2893
  %2895 = vrot.lane.b32.xlu0 %v2736, 28
  %v2896 = vpop.permute.xlu0 %2895
  %2897 = vrot.lane.b32.xlu0 %v2737, 28
  %v2898 = vpop.permute.xlu0 %2897
  %2899 = vrot.lane.b32.xlu0 %v2738, 28
  %v2900 = vpop.permute.xlu0 %2899
  %2901 = vrot.lane.b32.xlu0 %v2739, 28
  %v2902 = vpop.permute.xlu0 %2901
  %2903 = vrot.lane.b32.xlu0 %v2740, 28
  %v2904 = vpop.permute.xlu0 %2903
  %2905 = vrot.lane.b32.xlu0 %v2741, 28
  %v2906 = vpop.permute.xlu0 %2905
  %2907 = vrot.lane.b32.xlu0 %v2742, 28
  %v2908 = vpop.permute.xlu0 %2907
  %2909 = vrot.lane.b32.xlu0 %v2743, 28
  %v2910 = vpop.permute.xlu0 %2909
  %2911 = vrot.lane.b32.xlu0 %v2744, 28
  %v2912 = vpop.permute.xlu0 %2911
  %2913 = vrot.lane.b32.xlu0 %v2745, 28
  %v2914 = vpop.permute.xlu0 %2913
  %2915 = vrot.lane.b32.xlu0 %v2746, 28
  %v2916 = vpop.permute.xlu0 %2915
  %2917 = vrot.lane.b32.xlu0 %v2747, 28
  %v2918 = vpop.permute.xlu0 %2917
  %2919 = vrot.lane.b32.xlu0 %v2748, 28
  %v2920 = vpop.permute.xlu0 %2919
  %2921 = vrot.lane.b32.xlu0 %v2749, 28
  %v2922 = vpop.permute.xlu0 %2921
  %2923 = vrot.lane.b32.xlu0 %v2750, 28
  %v2924 = vpop.permute.xlu0 %2923
  %2925 = vrot.lane.b32.xlu0 %v2751, 28
  %v2926 = vpop.permute.xlu0 %2925
  %2927 = vrot.lane.b32.xlu0 %v2752, 28
  %v2928 = vpop.permute.xlu0 %2927
  %2929 = vrot.lane.b32.xlu0 %v2753, 28
  %v2930 = vpop.permute.xlu0 %2929
  %2931 = vrot.lane.b32.xlu0 %v2754, 28
  %v2932 = vpop.permute.xlu0 %2931
  %2933 = vrot.lane.b32.xlu0 %v2755, 28
  %v2934 = vpop.permute.xlu0 %2933
  %2935 = vrot.lane.b32.xlu0 %v2756, 28
  %v2936 = vpop.permute.xlu0 %2935
  %2937 = vrot.lane.b32.xlu0 %v2757, 28
  %v2938 = vpop.permute.xlu0 %2937
  %2939 = vrot.lane.b32.xlu0 %v2758, 28
  %v2940 = vpop.permute.xlu0 %2939
  %2941 = vrot.lane.b32.xlu0 %v2759, 28
  %v2942 = vpop.permute.xlu0 %2941
  %2943 = vrot.lane.b32.xlu0 %v2760, 28
  %v2944 = vpop.permute.xlu0 %2943
  %2945 = vrot.lane.b32.xlu0 %v2761, 28
  %v2946 = vpop.permute.xlu0 %2945
  %2947 = vrot.lane.b32.xlu0 %v2762, 28
  %v2948 = vpop.permute.xlu0 %2947
  %2949 = vrot.lane.b32.xlu0 %v2763, 28
  %v2950 = vpop.permute.xlu0 %2949
  %2951 = vrot.lane.b32.xlu0 %v2764, 28
  %v2952 = vpop.permute.xlu0 %2951
  %2953 = vrot.lane.b32.xlu0 %v2765, 28
  %v2954 = vpop.permute.xlu0 %2953
  %2955 = vrot.lane.b32.xlu0 %v2766, 28
  %v2956 = vpop.permute.xlu0 %2955
  %2957 = vrot.lane.b32.xlu0 %v2767, 28
  %v2958 = vpop.permute.xlu0 %2957
  %2959 = vrot.lane.b32.xlu0 %v2768, 28
  %v2960 = vpop.permute.xlu0 %2959
  %vm3025 = vcmask 261344
  %3026 = vst.msk [vmem:[#allocation4] sm:$0xff] %vm3025, %v2834
  %3027 = vst.msk [vmem:[#allocation4 + $0x8] sm:$0xff] %vm3025, %v2836
  %3028 = vst.msk [vmem:[#allocation4 + $0x10] sm:$0xff] %vm3025, %v2838
  %3029 = vst.msk [vmem:[#allocation4 + $0x18] sm:$0xff] %vm3025, %v2840
  %3030 = vst.msk [vmem:[#allocation4 + $0x20] sm:$0xff] %vm3025, %v2842
  %3031 = vst.msk [vmem:[#allocation4 + $0x28] sm:$0xff] %vm3025, %v2844
  %3032 = vst.msk [vmem:[#allocation4 + $0x30] sm:$0xff] %vm3025, %v2846
  %3033 = vst.msk [vmem:[#allocation4 + $0x38] sm:$0xff] %vm3025, %v2848
  %3034 = vst.msk [vmem:[#allocation4 + $0x40] sm:$0xff] %vm3025, %v2850
  %3035 = vst.msk [vmem:[#allocation4 + $0x48] sm:$0xff] %vm3025, %v2852
  %3036 = vst.msk [vmem:[#allocation4 + $0x50] sm:$0xff] %vm3025, %v2854
  %3037 = vst.msk [vmem:[#allocation4 + $0x58] sm:$0xff] %vm3025, %v2856
  %3038 = vst.msk [vmem:[#allocation4 + $0x60] sm:$0xff] %vm3025, %v2858
  %3039 = vst.msk [vmem:[#allocation4 + $0x68] sm:$0xff] %vm3025, %v2860
  %3040 = vst.msk [vmem:[#allocation4 + $0x70] sm:$0xff] %vm3025, %v2862
  %3041 = vst.msk [vmem:[#allocation4 + $0x78] sm:$0xff] %vm3025, %v2864
  %3042 = vst.msk [vmem:[#allocation4 + $0x80] sm:$0xff] %vm3025, %v2866
  %3043 = vst.msk [vmem:[#allocation4 + $0x88] sm:$0xff] %vm3025, %v2868
  %3044 = vst.msk [vmem:[#allocation4 + $0x90] sm:$0xff] %vm3025, %v2870
  %3045 = vst.msk [vmem:[#allocation4 + $0x98] sm:$0xff] %vm3025, %v2872
  %3046 = vst.msk [vmem:[#allocation4 + $0xa0] sm:$0xff] %vm3025, %v2874
  %3047 = vst.msk [vmem:[#allocation4 + $0xa8] sm:$0xff] %vm3025, %v2876
  %3048 = vst.msk [vmem:[#allocation4 + $0xb0] sm:$0xff] %vm3025, %v2878
  %3049 = vst.msk [vmem:[#allocation4 + $0xb8] sm:$0xff] %vm3025, %v2880
  %3050 = vst.msk [vmem:[#allocation4 + $0xc0] sm:$0xff] %vm3025, %v2882
  %3051 = vst.msk [vmem:[#allocation4 + $0xc8] sm:$0xff] %vm3025, %v2884
  %3052 = vst.msk [vmem:[#allocation4 + $0xd0] sm:$0xff] %vm3025, %v2886
  %3053 = vst.msk [vmem:[#allocation4 + $0xd8] sm:$0xff] %vm3025, %v2888
  %3054 = vst.msk [vmem:[#allocation4 + $0xe0] sm:$0xff] %vm3025, %v2890
  %3055 = vst.msk [vmem:[#allocation4 + $0xe8] sm:$0xff] %vm3025, %v2892
  %3056 = vst.msk [vmem:[#allocation4 + $0xf0] sm:$0xff] %vm3025, %v2894
  %3057 = vst.msk [vmem:[#allocation4 + $0xf8] sm:$0xff] %vm3025, %v2896
  %3058 = vst.msk [vmem:[#allocation4 + $0x100] sm:$0xff] %vm3025, %v2898
  %3059 = vst.msk [vmem:[#allocation4 + $0x108] sm:$0xff] %vm3025, %v2900
  %3060 = vst.msk [vmem:[#allocation4 + $0x110] sm:$0xff] %vm3025, %v2902
  %3061 = vst.msk [vmem:[#allocation4 + $0x118] sm:$0xff] %vm3025, %v2904
  %3062 = vst.msk [vmem:[#allocation4 + $0x120] sm:$0xff] %vm3025, %v2906
  %3063 = vst.msk [vmem:[#allocation4 + $0x128] sm:$0xff] %vm3025, %v2908
  %3064 = vst.msk [vmem:[#allocation4 + $0x130] sm:$0xff] %vm3025, %v2910
  %3065 = vst.msk [vmem:[#allocation4 + $0x138] sm:$0xff] %vm3025, %v2912
  %3066 = vst.msk [vmem:[#allocation4 + $0x140] sm:$0xff] %vm3025, %v2914
  %3067 = vst.msk [vmem:[#allocation4 + $0x148] sm:$0xff] %vm3025, %v2916
  %3068 = vst.msk [vmem:[#allocation4 + $0x150] sm:$0xff] %vm3025, %v2918
  %3069 = vst.msk [vmem:[#allocation4 + $0x158] sm:$0xff] %vm3025, %v2920
  %3070 = vst.msk [vmem:[#allocation4 + $0x160] sm:$0xff] %vm3025, %v2922
  %3071 = vst.msk [vmem:[#allocation4 + $0x168] sm:$0xff] %vm3025, %v2924
  %3072 = vst.msk [vmem:[#allocation4 + $0x170] sm:$0xff] %vm3025, %v2926
  %3073 = vst.msk [vmem:[#allocation4 + $0x178] sm:$0xff] %vm3025, %v2928
  %3074 = vst.msk [vmem:[#allocation4 + $0x180] sm:$0xff] %vm3025, %v2930
  %3075 = vst.msk [vmem:[#allocation4 + $0x188] sm:$0xff] %vm3025, %v2932
  %3076 = vst.msk [vmem:[#allocation4 + $0x190] sm:$0xff] %vm3025, %v2934
  %3077 = vst.msk [vmem:[#allocation4 + $0x198] sm:$0xff] %vm3025, %v2936
  %3078 = vst.msk [vmem:[#allocation4 + $0x1a0] sm:$0xff] %vm3025, %v2938
  %3079 = vst.msk [vmem:[#allocation4 + $0x1a8] sm:$0xff] %vm3025, %v2940
  %3080 = vst.msk [vmem:[#allocation4 + $0x1b0] sm:$0xff] %vm3025, %v2942
  %3081 = vst.msk [vmem:[#allocation4 + $0x1b8] sm:$0xff] %vm3025, %v2944
  %3082 = vst.msk [vmem:[#allocation4 + $0x1c0] sm:$0xff] %vm3025, %v2946
  %3083 = vst.msk [vmem:[#allocation4 + $0x1c8] sm:$0xff] %vm3025, %v2948
  %3084 = vst.msk [vmem:[#allocation4 + $0x1d0] sm:$0xff] %vm3025, %v2950
  %3085 = vst.msk [vmem:[#allocation4 + $0x1d8] sm:$0xff] %vm3025, %v2952
  %3086 = vst.msk [vmem:[#allocation4 + $0x1e0] sm:$0xff] %vm3025, %v2954
  %3087 = vst.msk [vmem:[#allocation4 + $0x1e8] sm:$0xff] %vm3025, %v2956
  %3088 = vst.msk [vmem:[#allocation4 + $0x1f0] sm:$0xff] %vm3025, %v2958
  %3089 = vst.msk [vmem:[#allocation4 + $0x1f8] sm:$0xff] %vm3025, %v2960
  %v3090 = vld [vmem:[%s2319 + $0x2] sm:$0xff]
  %v3091 = vld [vmem:[%s2319 + $0xa] sm:$0xff]
  %v3092 = vld [vmem:[%s2319 + $0x1a] sm:$0xff]
  %v3093 = vld [vmem:[%s2319 + $0x22] sm:$0xff]
  %v3094 = vld [vmem:[%s2319 + $0x32] sm:$0xff]
  %v3095 = vld [vmem:[%s2319 + $0x3a] sm:$0xff]
  %v3096 = vld [vmem:[%s2319 + $0x4a] sm:$0xff]
  %v3097 = vld [vmem:[%s2319 + $0x52] sm:$0xff]
  %v3098 = vld [vmem:[%s2319 + $0x62] sm:$0xff]
  %v3099 = vld [vmem:[%s2319 + $0x6a] sm:$0xff]
  %v3100 = vld [vmem:[%s2319 + $0x7a] sm:$0xff]
  %v3101 = vld [vmem:[%s2319 + $0x82] sm:$0xff]
  %v3102 = vld [vmem:[%s2319 + $0x92] sm:$0xff]
  %v3103 = vld [vmem:[%s2319 + $0x9a] sm:$0xff]
  %v3104 = vld [vmem:[%s2319 + $0xaa] sm:$0xff]
  %v3105 = vld [vmem:[%s2319 + $0xb2] sm:$0xff]
  %v3106 = vld [vmem:[%s2319 + $0xc2] sm:$0xff]
  %v3107 = vld [vmem:[%s2319 + $0xca] sm:$0xff]
  %v3108 = vld [vmem:[%s2319 + $0xda] sm:$0xff]
  %v3109 = vld [vmem:[%s2319 + $0xe2] sm:$0xff]
  %v3110 = vld [vmem:[%s2319 + $0xf2] sm:$0xff]
  %v3111 = vld [vmem:[%s2319 + $0xfa] sm:$0xff]
  %v3112 = vld [vmem:[%s2319 + $0x10a] sm:$0xff]
  %v3113 = vld [vmem:[%s2319 + $0x112] sm:$0xff]
  %v3114 = vld [vmem:[%s2319 + $0x122] sm:$0xff]
  %v3115 = vld [vmem:[%s2319 + $0x12a] sm:$0xff]
  %v3116 = vld [vmem:[%s2319 + $0x13a] sm:$0xff]
  %v3117 = vld [vmem:[%s2319 + $0x142] sm:$0xff]
  %v3118 = vld [vmem:[%s2319 + $0x152] sm:$0xff]
  %v3119 = vld [vmem:[%s2319 + $0x15a] sm:$0xff]
  %v3120 = vld [vmem:[%s2319 + $0x16a] sm:$0xff]
  %v3121 = vld [vmem:[%s2319 + $0x172] sm:$0xff]
  %v3122 = vld [vmem:[%s2319 + $0x1b2] sm:$0xff]
  %v3123 = vld [vmem:[%s2319 + $0x1ba] sm:$0xff]
  %v3124 = vld [vmem:[%s2319 + $0x1ca] sm:$0xff]
  %v3125 = vld [vmem:[%s2319 + $0x1d2] sm:$0xff]
  %v3126 = vld [vmem:[%s2319 + $0x1e2] sm:$0xff]
  %v3127 = vld [vmem:[%s2319 + $0x1ea] sm:$0xff]
  %v3128 = vld [vmem:[%s2319 + $0x1fa] sm:$0xff]
  %v3129 = vld [vmem:[%s2319 + $0x202] sm:$0xff]
  %v3130 = vld [vmem:[%s2319 + $0x212] sm:$0xff]
  %v3131 = vld [vmem:[%s2319 + $0x21a] sm:$0xff]
  %v3132 = vld [vmem:[%s2319 + $0x22a] sm:$0xff]
  %v3133 = vld [vmem:[%s2319 + $0x232] sm:$0xff]
  %v3134 = vld [vmem:[%s2319 + $0x242] sm:$0xff]
  %v3135 = vld [vmem:[%s2319 + $0x24a] sm:$0xff]
  %v3136 = vld [vmem:[%s2319 + $0x25a] sm:$0xff]
  %v3137 = vld [vmem:[%s2319 + $0x262] sm:$0xff]
  %v3138 = vld [vmem:[%s2319 + $0x272] sm:$0xff]
  %v3139 = vld [vmem:[%s2319 + $0x27a] sm:$0xff]
  %v3140 = vld [vmem:[%s2319 + $0x28a] sm:$0xff]
  %v3141 = vld [vmem:[%s2319 + $0x292] sm:$0xff]
  %v3142 = vld [vmem:[%s2319 + $0x2a2] sm:$0xff]
  %v3143 = vld [vmem:[%s2319 + $0x2aa] sm:$0xff]
  %v3144 = vld [vmem:[%s2319 + $0x2ba] sm:$0xff]
  %v3145 = vld [vmem:[%s2319 + $0x2c2] sm:$0xff]
  %v3146 = vld [vmem:[%s2319 + $0x2d2] sm:$0xff]
  %v3147 = vld [vmem:[%s2319 + $0x2da] sm:$0xff]
  %v3148 = vld [vmem:[%s2319 + $0x2ea] sm:$0xff]
  %v3149 = vld [vmem:[%s2319 + $0x2f2] sm:$0xff]
  %v3150 = vld [vmem:[%s2319 + $0x302] sm:$0xff]
  %v3151 = vld [vmem:[%s2319 + $0x30a] sm:$0xff]
  %v3152 = vld [vmem:[%s2319 + $0x31a] sm:$0xff]
  %v3153 = vld [vmem:[%s2319 + $0x322] sm:$0xff]
  %3218 = vrot.lane.b32.xlu0 %v3090, 32
  %v3219 = vpop.permute.xlu0 %3218
  %3220 = vrot.lane.b32.xlu0 %v3091, 32
  %v3221 = vpop.permute.xlu0 %3220
  %3222 = vrot.lane.b32.xlu0 %v3092, 32
  %v3223 = vpop.permute.xlu0 %3222
  %3224 = vrot.lane.b32.xlu0 %v3093, 32
  %v3225 = vpop.permute.xlu0 %3224
  %3226 = vrot.lane.b32.xlu0 %v3094, 32
  %v3227 = vpop.permute.xlu0 %3226
  %3228 = vrot.lane.b32.xlu0 %v3095, 32
  %v3229 = vpop.permute.xlu0 %3228
  %3230 = vrot.lane.b32.xlu0 %v3096, 32
  %v3231 = vpop.permute.xlu0 %3230
  %3232 = vrot.lane.b32.xlu0 %v3097, 32
  %v3233 = vpop.permute.xlu0 %3232
  %3234 = vrot.lane.b32.xlu0 %v3098, 32
  %v3235 = vpop.permute.xlu0 %3234
  %3236 = vrot.lane.b32.xlu0 %v3099, 32
  %v3237 = vpop.permute.xlu0 %3236
  %3238 = vrot.lane.b32.xlu0 %v3100, 32
  %v3239 = vpop.permute.xlu0 %3238
  %3240 = vrot.lane.b32.xlu0 %v3101, 32
  %v3241 = vpop.permute.xlu0 %3240
  %3242 = vrot.lane.b32.xlu0 %v3102, 32
  %v3243 = vpop.permute.xlu0 %3242
  %3244 = vrot.lane.b32.xlu0 %v3103, 32
  %v3245 = vpop.permute.xlu0 %3244
  %3246 = vrot.lane.b32.xlu0 %v3104, 32
  %v3247 = vpop.permute.xlu0 %3246
  %3248 = vrot.lane.b32.xlu0 %v3105, 32
  %v3249 = vpop.permute.xlu0 %3248
  %3250 = vrot.lane.b32.xlu0 %v3106, 32
  %v3251 = vpop.permute.xlu0 %3250
  %3252 = vrot.lane.b32.xlu0 %v3107, 32
  %v3253 = vpop.permute.xlu0 %3252
  %3254 = vrot.lane.b32.xlu0 %v3108, 32
  %v3255 = vpop.permute.xlu0 %3254
  %3256 = vrot.lane.b32.xlu0 %v3109, 32
  %v3257 = vpop.permute.xlu0 %3256
  %3258 = vrot.lane.b32.xlu0 %v3110, 32
  %v3259 = vpop.permute.xlu0 %3258
  %3260 = vrot.lane.b32.xlu0 %v3111, 32
  %v3261 = vpop.permute.xlu0 %3260
  %3262 = vrot.lane.b32.xlu0 %v3112, 32
  %v3263 = vpop.permute.xlu0 %3262
  %3264 = vrot.lane.b32.xlu0 %v3113, 32
  %v3265 = vpop.permute.xlu0 %3264
  %3266 = vrot.lane.b32.xlu0 %v3114, 32
  %v3267 = vpop.permute.xlu0 %3266
  %3268 = vrot.lane.b32.xlu0 %v3115, 32
  %v3269 = vpop.permute.xlu0 %3268
  %3270 = vrot.lane.b32.xlu0 %v3116, 32
  %v3271 = vpop.permute.xlu0 %3270
  %3272 = vrot.lane.b32.xlu0 %v3117, 32
  %v3273 = vpop.permute.xlu0 %3272
  %3274 = vrot.lane.b32.xlu0 %v3118, 32
  %v3275 = vpop.permute.xlu0 %3274
  %3276 = vrot.lane.b32.xlu0 %v3119, 32
  %v3277 = vpop.permute.xlu0 %3276
  %3278 = vrot.lane.b32.xlu0 %v3120, 32
  %v3279 = vpop.permute.xlu0 %3278
  %3280 = vrot.lane.b32.xlu0 %v3121, 32
  %v3281 = vpop.permute.xlu0 %3280
  %3282 = vrot.lane.b32.xlu0 %v3122, 32
  %v3283 = vpop.permute.xlu0 %3282
  %3284 = vrot.lane.b32.xlu0 %v3123, 32
  %v3285 = vpop.permute.xlu0 %3284
  %3286 = vrot.lane.b32.xlu0 %v3124, 32
  %v3287 = vpop.permute.xlu0 %3286
  %3288 = vrot.lane.b32.xlu0 %v3125, 32
  %v3289 = vpop.permute.xlu0 %3288
  %3290 = vrot.lane.b32.xlu0 %v3126, 32
  %v3291 = vpop.permute.xlu0 %3290
  %3292 = vrot.lane.b32.xlu0 %v3127, 32
  %v3293 = vpop.permute.xlu0 %3292
  %3294 = vrot.lane.b32.xlu0 %v3128, 32
  %v3295 = vpop.permute.xlu0 %3294
  %3296 = vrot.lane.b32.xlu0 %v3129, 32
  %v3297 = vpop.permute.xlu0 %3296
  %3298 = vrot.lane.b32.xlu0 %v3130, 32
  %v3299 = vpop.permute.xlu0 %3298
  %3300 = vrot.lane.b32.xlu0 %v3131, 32
  %v3301 = vpop.permute.xlu0 %3300
  %3302 = vrot.lane.b32.xlu0 %v3132, 32
  %v3303 = vpop.permute.xlu0 %3302
  %3304 = vrot.lane.b32.xlu0 %v3133, 32
  %v3305 = vpop.permute.xlu0 %3304
  %3306 = vrot.lane.b32.xlu0 %v3134, 32
  %v3307 = vpop.permute.xlu0 %3306
  %3308 = vrot.lane.b32.xlu0 %v3135, 32
  %v3309 = vpop.permute.xlu0 %3308
  %3310 = vrot.lane.b32.xlu0 %v3136, 32
  %v3311 = vpop.permute.xlu0 %3310
  %3312 = vrot.lane.b32.xlu0 %v3137, 32
  %v3313 = vpop.permute.xlu0 %3312
  %3314 = vrot.lane.b32.xlu0 %v3138, 32
  %v3315 = vpop.permute.xlu0 %3314
  %3316 = vrot.lane.b32.xlu0 %v3139, 32
  %v3317 = vpop.permute.xlu0 %3316
  %3318 = vrot.lane.b32.xlu0 %v3140, 32
  %v3319 = vpop.permute.xlu0 %3318
  %3320 = vrot.lane.b32.xlu0 %v3141, 32
  %v3321 = vpop.permute.xlu0 %3320
  %3322 = vrot.lane.b32.xlu0 %v3142, 32
  %v3323 = vpop.permute.xlu0 %3322
  %3324 = vrot.lane.b32.xlu0 %v3143, 32
  %v3325 = vpop.permute.xlu0 %3324
  %3326 = vrot.lane.b32.xlu0 %v3144, 32
  %v3327 = vpop.permute.xlu0 %3326
  %3328 = vrot.lane.b32.xlu0 %v3145, 32
  %v3329 = vpop.permute.xlu0 %3328
  %3330 = vrot.lane.b32.xlu0 %v3146, 32
  %v3331 = vpop.permute.xlu0 %3330
  %3332 = vrot.lane.b32.xlu0 %v3147, 32
  %v3333 = vpop.permute.xlu0 %3332
  %3334 = vrot.lane.b32.xlu0 %v3148, 32
  %v3335 = vpop.permute.xlu0 %3334
  %3336 = vrot.lane.b32.xlu0 %v3149, 32
  %v3337 = vpop.permute.xlu0 %3336
  %3338 = vrot.lane.b32.xlu0 %v3150, 32
  %v3339 = vpop.permute.xlu0 %3338
  %3340 = vrot.lane.b32.xlu0 %v3151, 32
  %v3341 = vpop.permute.xlu0 %3340
  %3342 = vrot.lane.b32.xlu0 %v3152, 32
  %v3343 = vpop.permute.xlu0 %3342
  %3344 = vrot.lane.b32.xlu0 %v3153, 32
  %v3345 = vpop.permute.xlu0 %3344
  %vm3410 = vcmask 294144
  %3411 = vst.msk [vmem:[#allocation4] sm:$0xff] %vm3410, %v3219
  %3412 = vst.msk [vmem:[#allocation4 + $0x8] sm:$0xff] %vm3410, %v3221
  %3413 = vst.msk [vmem:[#allocation4 + $0x10] sm:$0xff] %vm3410, %v3223
  %3414 = vst.msk [vmem:[#allocation4 + $0x18] sm:$0xff] %vm3410, %v3225
  %3415 = vst.msk [vmem:[#allocation4 + $0x20] sm:$0xff] %vm3410, %v3227
  %3416 = vst.msk [vmem:[#allocation4 + $0x28] sm:$0xff] %vm3410, %v3229
  %3417 = vst.msk [vmem:[#allocation4 + $0x30] sm:$0xff] %vm3410, %v3231
  %3418 = vst.msk [vmem:[#allocation4 + $0x38] sm:$0xff] %vm3410, %v3233
  %3419 = vst.msk [vmem:[#allocation4 + $0x40] sm:$0xff] %vm3410, %v3235
  %3420 = vst.msk [vmem:[#allocation4 + $0x48] sm:$0xff] %vm3410, %v3237
  %3421 = vst.msk [vmem:[#allocation4 + $0x50] sm:$0xff] %vm3410, %v3239
  %3422 = vst.msk [vmem:[#allocation4 + $0x58] sm:$0xff] %vm3410, %v3241
  %3423 = vst.msk [vmem:[#allocation4 + $0x60] sm:$0xff] %vm3410, %v3243
  %3424 = vst.msk [vmem:[#allocation4 + $0x68] sm:$0xff] %vm3410, %v3245
  %3425 = vst.msk [vmem:[#allocation4 + $0x70] sm:$0xff] %vm3410, %v3247
  %3426 = vst.msk [vmem:[#allocation4 + $0x78] sm:$0xff] %vm3410, %v3249
  %3427 = vst.msk [vmem:[#allocation4 + $0x80] sm:$0xff] %vm3410, %v3251
  %3428 = vst.msk [vmem:[#allocation4 + $0x88] sm:$0xff] %vm3410, %v3253
  %3429 = vst.msk [vmem:[#allocation4 + $0x90] sm:$0xff] %vm3410, %v3255
  %3430 = vst.msk [vmem:[#allocation4 + $0x98] sm:$0xff] %vm3410, %v3257
  %3431 = vst.msk [vmem:[#allocation4 + $0xa0] sm:$0xff] %vm3410, %v3259
  %3432 = vst.msk [vmem:[#allocation4 + $0xa8] sm:$0xff] %vm3410, %v3261
  %3433 = vst.msk [vmem:[#allocation4 + $0xb0] sm:$0xff] %vm3410, %v3263
  %3434 = vst.msk [vmem:[#allocation4 + $0xb8] sm:$0xff] %vm3410, %v3265
  %3435 = vst.msk [vmem:[#allocation4 + $0xc0] sm:$0xff] %vm3410, %v3267
  %3436 = vst.msk [vmem:[#allocation4 + $0xc8] sm:$0xff] %vm3410, %v3269
  %3437 = vst.msk [vmem:[#allocation4 + $0xd0] sm:$0xff] %vm3410, %v3271
  %3438 = vst.msk [vmem:[#allocation4 + $0xd8] sm:$0xff] %vm3410, %v3273
  %3439 = vst.msk [vmem:[#allocation4 + $0xe0] sm:$0xff] %vm3410, %v3275
  %3440 = vst.msk [vmem:[#allocation4 + $0xe8] sm:$0xff] %vm3410, %v3277
  %3441 = vst.msk [vmem:[#allocation4 + $0xf0] sm:$0xff] %vm3410, %v3279
  %3442 = vst.msk [vmem:[#allocation4 + $0xf8] sm:$0xff] %vm3410, %v3281
  %3443 = vst.msk [vmem:[#allocation4 + $0x100] sm:$0xff] %vm3410, %v3283
  %3444 = vst.msk [vmem:[#allocation4 + $0x108] sm:$0xff] %vm3410, %v3285
  %3445 = vst.msk [vmem:[#allocation4 + $0x110] sm:$0xff] %vm3410, %v3287
  %3446 = vst.msk [vmem:[#allocation4 + $0x118] sm:$0xff] %vm3410, %v3289
  %3447 = vst.msk [vmem:[#allocation4 + $0x120] sm:$0xff] %vm3410, %v3291
  %3448 = vst.msk [vmem:[#allocation4 + $0x128] sm:$0xff] %vm3410, %v3293
  %3449 = vst.msk [vmem:[#allocation4 + $0x130] sm:$0xff] %vm3410, %v3295
  %3450 = vst.msk [vmem:[#allocation4 + $0x138] sm:$0xff] %vm3410, %v3297
  %3451 = vst.msk [vmem:[#allocation4 + $0x140] sm:$0xff] %vm3410, %v3299
  %3452 = vst.msk [vmem:[#allocation4 + $0x148] sm:$0xff] %vm3410, %v3301
  %3453 = vst.msk [vmem:[#allocation4 + $0x150] sm:$0xff] %vm3410, %v3303
  %3454 = vst.msk [vmem:[#allocation4 + $0x158] sm:$0xff] %vm3410, %v3305
  %3455 = vst.msk [vmem:[#allocation4 + $0x160] sm:$0xff] %vm3410, %v3307
  %3456 = vst.msk [vmem:[#allocation4 + $0x168] sm:$0xff] %vm3410, %v3309
  %3457 = vst.msk [vmem:[#allocation4 + $0x170] sm:$0xff] %vm3410, %v3311
  %3458 = vst.msk [vmem:[#allocation4 + $0x178] sm:$0xff] %vm3410, %v3313
  %3459 = vst.msk [vmem:[#allocation4 + $0x180] sm:$0xff] %vm3410, %v3315
  %3460 = vst.msk [vmem:[#allocation4 + $0x188] sm:$0xff] %vm3410, %v3317
  %3461 = vst.msk [vmem:[#allocation4 + $0x190] sm:$0xff] %vm3410, %v3319
  %3462 = vst.msk [vmem:[#allocation4 + $0x198] sm:$0xff] %vm3410, %v3321
  %3463 = vst.msk [vmem:[#allocation4 + $0x1a0] sm:$0xff] %vm3410, %v3323
  %3464 = vst.msk [vmem:[#allocation4 + $0x1a8] sm:$0xff] %vm3410, %v3325
  %3465 = vst.msk [vmem:[#allocation4 + $0x1b0] sm:$0xff] %vm3410, %v3327
  %3466 = vst.msk [vmem:[#allocation4 + $0x1b8] sm:$0xff] %vm3410, %v3329
  %3467 = vst.msk [vmem:[#allocation4 + $0x1c0] sm:$0xff] %vm3410, %v3331
  %3468 = vst.msk [vmem:[#allocation4 + $0x1c8] sm:$0xff] %vm3410, %v3333
  %3469 = vst.msk [vmem:[#allocation4 + $0x1d0] sm:$0xff] %vm3410, %v3335
  %3470 = vst.msk [vmem:[#allocation4 + $0x1d8] sm:$0xff] %vm3410, %v3337
  %3471 = vst.msk [vmem:[#allocation4 + $0x1e0] sm:$0xff] %vm3410, %v3339
  %3472 = vst.msk [vmem:[#allocation4 + $0x1e8] sm:$0xff] %vm3410, %v3341
  %3473 = vst.msk [vmem:[#allocation4 + $0x1f0] sm:$0xff] %vm3410, %v3343
  %3474 = vst.msk [vmem:[#allocation4 + $0x1f8] sm:$0xff] %vm3410, %v3345
  %v3475 = vld [vmem:[#allocation4] sm:$0xff]
  %v3476 = vld [vmem:[#allocation4 + $0x8] sm:$0xff]
  %v3477 = vld [vmem:[#allocation4 + $0x10] sm:$0xff]
  %v3478 = vld [vmem:[#allocation4 + $0x18] sm:$0xff]
  %v3479 = vld [vmem:[#allocation4 + $0x20] sm:$0xff]
  %v3480 = vld [vmem:[#allocation4 + $0x28] sm:$0xff]
  %v3481 = vld [vmem:[#allocation4 + $0x30] sm:$0xff]
  %v3482 = vld [vmem:[#allocation4 + $0x38] sm:$0xff]
  %v3483 = vld [vmem:[#allocation4 + $0x40] sm:$0xff]
  %v3484 = vld [vmem:[#allocation4 + $0x48] sm:$0xff]
  %v3485 = vld [vmem:[#allocation4 + $0x50] sm:$0xff]
  %v3486 = vld [vmem:[#allocation4 + $0x58] sm:$0xff]
  %v3487 = vld [vmem:[#allocation4 + $0x60] sm:$0xff]
  %v3488 = vld [vmem:[#allocation4 + $0x68] sm:$0xff]
  %v3489 = vld [vmem:[#allocation4 + $0x70] sm:$0xff]
  %v3490 = vld [vmem:[#allocation4 + $0x78] sm:$0xff]
  %v3491 = vld [vmem:[#allocation4 + $0x80] sm:$0xff]
  %v3492 = vld [vmem:[#allocation4 + $0x88] sm:$0xff]
  %v3493 = vld [vmem:[#allocation4 + $0x90] sm:$0xff]
  %v3494 = vld [vmem:[#allocation4 + $0x98] sm:$0xff]
  %v3495 = vld [vmem:[#allocation4 + $0xa0] sm:$0xff]
  %v3496 = vld [vmem:[#allocation4 + $0xa8] sm:$0xff]
  %v3497 = vld [vmem:[#allocation4 + $0xb0] sm:$0xff]
  %v3498 = vld [vmem:[#allocation4 + $0xb8] sm:$0xff]
  %v3499 = vld [vmem:[#allocation4 + $0xc0] sm:$0xff]
  %v3500 = vld [vmem:[#allocation4 + $0xc8] sm:$0xff]
  %v3501 = vld [vmem:[#allocation4 + $0xd0] sm:$0xff]
  %v3502 = vld [vmem:[#allocation4 + $0xd8] sm:$0xff]
  %v3503 = vld [vmem:[#allocation4 + $0xe0] sm:$0xff]
  %v3504 = vld [vmem:[#allocation4 + $0xe8] sm:$0xff]
  %v3505 = vld [vmem:[#allocation4 + $0xf0] sm:$0xff]
  %v3506 = vld [vmem:[#allocation4 + $0xf8] sm:$0xff]
  %v3507 = vld [vmem:[#allocation4 + $0x100] sm:$0xff]
  %v3508 = vld [vmem:[#allocation4 + $0x108] sm:$0xff]
  %v3509 = vld [vmem:[#allocation4 + $0x110] sm:$0xff]
  %v3510 = vld [vmem:[#allocation4 + $0x118] sm:$0xff]
  %v3511 = vld [vmem:[#allocation4 + $0x120] sm:$0xff]
  %v3512 = vld [vmem:[#allocation4 + $0x128] sm:$0xff]
  %v3513 = vld [vmem:[#allocation4 + $0x130] sm:$0xff]
  %v3514 = vld [vmem:[#allocation4 + $0x138] sm:$0xff]
  %v3515 = vld [vmem:[#allocation4 + $0x140] sm:$0xff]
  %v3516 = vld [vmem:[#allocation4 + $0x148] sm:$0xff]
  %v3517 = vld [vmem:[#allocation4 + $0x150] sm:$0xff]
  %v3518 = vld [vmem:[#allocation4 + $0x158] sm:$0xff]
  %v3519 = vld [vmem:[#allocation4 + $0x160] sm:$0xff]
  %v3520 = vld [vmem:[#allocation4 + $0x168] sm:$0xff]
  %v3521 = vld [vmem:[#allocation4 + $0x170] sm:$0xff]
  %v3522 = vld [vmem:[#allocation4 + $0x178] sm:$0xff]
  %v3523 = vld [vmem:[#allocation4 + $0x180] sm:$0xff]
  %v3524 = vld [vmem:[#allocation4 + $0x188] sm:$0xff]
  %v3525 = vld [vmem:[#allocation4 + $0x190] sm:$0xff]
  %v3526 = vld [vmem:[#allocation4 + $0x198] sm:$0xff]
  %v3527 = vld [vmem:[#allocation4 + $0x1a0] sm:$0xff]
  %v3528 = vld [vmem:[#allocation4 + $0x1a8] sm:$0xff]
  %v3529 = vld [vmem:[#allocation4 + $0x1b0] sm:$0xff]
  %v3530 = vld [vmem:[#allocation4 + $0x1b8] sm:$0xff]
  %v3531 = vld [vmem:[#allocation4 + $0x1c0] sm:$0xff]
  %v3532 = vld [vmem:[#allocation4 + $0x1c8] sm:$0xff]
  %v3533 = vld [vmem:[#allocation4 + $0x1d0] sm:$0xff]
  %v3534 = vld [vmem:[#allocation4 + $0x1d8] sm:$0xff]
  %v3535 = vld [vmem:[#allocation4 + $0x1e0] sm:$0xff]
  %v3536 = vld [vmem:[#allocation4 + $0x1e8] sm:$0xff]
  %v3537 = vld [vmem:[#allocation4 + $0x1f0] sm:$0xff]
  %v3538 = vld [vmem:[#allocation4 + $0x1f8] sm:$0xff]
  %v3539 = vld [vmem:[%s1] sm:$0xff]
  %v3540 = vld [vmem:[%s1 + $0x8] sm:$0xff]
  %v3541 = vld [vmem:[%s1 + $0x10] sm:$0xff]
  %v3542 = vld [vmem:[%s1 + $0x18] sm:$0xff]
  %v3543 = vld [vmem:[%s1 + $0x20] sm:$0xf]
  %vm3544 = vcmask 293888
  %v3546 = vsel %vm3544, %v3475, 0
  %v3549 = vsel %vm3544, %v3476, 0
  %v3552 = vsel %vm3544, %v3477, 0
  %v3555 = vsel %vm3544, %v3478, 0
  %v3558 = vsel %vm3544, %v3479, 0
  %v3561 = vsel %vm3544, %v3480, 0
  %v3564 = vsel %vm3544, %v3481, 0
  %v3567 = vsel %vm3544, %v3482, 0
  %v3570 = vsel %vm3544, %v3483, 0
  %v3573 = vsel %vm3544, %v3484, 0
  %v3576 = vsel %vm3544, %v3485, 0
  %v3579 = vsel %vm3544, %v3486, 0
  %v3582 = vsel %vm3544, %v3487, 0
  %v3585 = vsel %vm3544, %v3488, 0
  %v3588 = vsel %vm3544, %v3489, 0
  %v3591 = vsel %vm3544, %v3490, 0
  %v3594 = vsel %vm3544, %v3491, 0
  %v3597 = vsel %vm3544, %v3492, 0
  %v3600 = vsel %vm3544, %v3493, 0
  %v3603 = vsel %vm3544, %v3494, 0
  %v3606 = vsel %vm3544, %v3495, 0
  %v3609 = vsel %vm3544, %v3496, 0
  %v3612 = vsel %vm3544, %v3497, 0
  %v3615 = vsel %vm3544, %v3498, 0
  %v3618 = vsel %vm3544, %v3499, 0
  %v3621 = vsel %vm3544, %v3500, 0
  %v3624 = vsel %vm3544, %v3501, 0
  %v3627 = vsel %vm3544, %v3502, 0
  %v3630 = vsel %vm3544, %v3503, 0
  %v3633 = vsel %vm3544, %v3504, 0
  %v3636 = vsel %vm3544, %v3505, 0
  %v3639 = vsel %vm3544, %v3506, 0
  %v3642 = vsel %vm3544, %v3507, 0
  %v3645 = vsel %vm3544, %v3508, 0
  %v3648 = vsel %vm3544, %v3509, 0
  %v3651 = vsel %vm3544, %v3510, 0
  %v3654 = vsel %vm3544, %v3511, 0
  %v3657 = vsel %vm3544, %v3512, 0
  %v3660 = vsel %vm3544, %v3513, 0
  %v3663 = vsel %vm3544, %v3514, 0
  %v3666 = vsel %vm3544, %v3515, 0
  %v3669 = vsel %vm3544, %v3516, 0
  %v3672 = vsel %vm3544, %v3517, 0
  %v3675 = vsel %vm3544, %v3518, 0
  %v3678 = vsel %vm3544, %v3519, 0
  %v3681 = vsel %vm3544, %v3520, 0
  %v3684 = vsel %vm3544, %v3521, 0
  %v3687 = vsel %vm3544, %v3522, 0
  %v3690 = vsel %vm3544, %v3523, 0
  %v3693 = vsel %vm3544, %v3524, 0
  %v3696 = vsel %vm3544, %v3525, 0
  %v3699 = vsel %vm3544, %v3526, 0
  %v3702 = vsel %vm3544, %v3527, 0
  %v3705 = vsel %vm3544, %v3528, 0
  %v3708 = vsel %vm3544, %v3529, 0
  %v3711 = vsel %vm3544, %v3530, 0
  %v3714 = vsel %vm3544, %v3531, 0
  %v3717 = vsel %vm3544, %v3532, 0
  %v3720 = vsel %vm3544, %v3533, 0
  %v3723 = vsel %vm3544, %v3534, 0
  %v3726 = vsel %vm3544, %v3535, 0
  %v3729 = vsel %vm3544, %v3536, 0
  %v3732 = vsel %vm3544, %v3537, 0
  %v3735 = vsel %vm3544, %v3538, 0
  %vm3737 = vcmask 1043456
  %v3739 = vsel %vm3737, %v3543, 0
  %3741 = vmatprep.subr.mxu0 0.0
  %3742 = vmatpush1.msra.mxu0 %v3539
  %3743 = vmatprep.subr.mxu0 0.0
  %3744 = vmatpush1.msra.mxu0 %v3540
  %3745 = vmatprep.subr.mxu0 0.0
  %3746 = vmatpush1.msra.mxu0 %v3541
  %3747 = vmatprep.subr.mxu0 0.0
  %3748 = vmatpush1.msra.mxu0 %v3542
  %3749 = vmatprep.subr.mxu0 0.0
  %3750 = vmatpush1.msra.mxu0 %v3739
  %3751 = vmatprep.subr.mxu0 0.0
  %3752 = vmatpush1.msra.mxu0 0.0
  %3753 = vmatprep.subr.mxu0 0.0
  %3754 = vmatpush1.msra.mxu0 0.0
  %3755 = vmatprep.subr.mxu0 0.0
  %3756 = vmatpush1.msra.mxu0 0.0
  %3757 = vmatprep.subr.mxu0 0.0
  %3758 = vmatpush1.msra.mxu0 0.0
  %3759 = vmatprep.subr.mxu0 0.0
  %3760 = vmatpush1.msra.mxu0 0.0
  %3761 = vmatprep.subr.mxu0 0.0
  %3762 = vmatpush1.msra.mxu0 0.0
  %3763 = vmatprep.subr.mxu0 0.0
  %3764 = vmatpush1.msra.mxu0 0.0
  %3765 = vmatprep.subr.mxu0 0.0
  %3766 = vmatpush1.msra.mxu0 0.0
  %3767 = vmatprep.subr.mxu0 0.0
  %3768 = vmatpush1.msra.mxu0 0.0
  %3769 = vmatprep.subr.mxu0 0.0
  %3770 = vmatpush1.msra.mxu0 0.0
  %3771 = vmatprep.subr.mxu0 0.0
  %3772 = vmatpush1.msra.mxu0 0.0
  %3773 = vmatprep.subr.mxu0 0.0
  %3774 = vmatpush1.msra.mxu0 0.0
  %3775 = vmatprep.subr.mxu0 0.0
  %3776 = vmatpush1.msra.mxu0 0.0
  %3777 = vmatprep.subr.mxu0 0.0
  %3778 = vmatpush1.msra.mxu0 0.0
  %3779 = vmatprep.subr.mxu0 0.0
  %3780 = vmatpush1.msra.mxu0 0.0
  %3781 = vmatprep.subr.mxu0 0.0
  %3782 = vmatpush1.msra.mxu0 0.0
  %3783 = vmatprep.subr.mxu0 0.0
  %3784 = vmatpush1.msra.mxu0 0.0
  %3785 = vmatprep.subr.mxu0 0.0
  %3786 = vmatpush1.msra.mxu0 0.0
  %3787 = vmatprep.subr.mxu0 0.0
  %3788 = vmatpush1.msra.mxu0 0.0
  %3789 = vmatprep.subr.mxu0 0.0
  %3790 = vmatpush1.msra.mxu0 0.0
  %3791 = vmatprep.subr.mxu0 0.0
  %3792 = vmatpush1.msra.mxu0 0.0
  %3793 = vmatprep.subr.mxu0 0.0
  %3794 = vmatpush1.msra.mxu0 0.0
  %3795 = vmatprep.subr.mxu0 0.0
  %3796 = vmatpush1.msra.mxu0 0.0
  %3797 = vmatprep.subr.mxu0 0.0
  %3798 = vmatpush1.msra.mxu0 0.0
  %3799 = vmatprep.subr.mxu0 0.0
  %3800 = vmatpush1.msra.mxu0 0.0
  %3801 = vmatprep.subr.mxu0 0.0
  %3802 = vmatpush1.msra.mxu0 0.0
  %3803 = vmatprep.subr.mxu0 0.0
  %3804 = vmatpush1.msra.mxu0 0.0
  %3805 = vmatprep.mubr.f32.mxu0 0.0
  %3806 = vmatmul.mubr.f32.gmra.mrb[0].mxu0 %v3546
  %v3807 = vpop.f32.mrb[0].mxu0
  %v3808 = vadd.f32 0.0, %v3807
  %v3809 = vpop.f32.mrb[0].mxu0
  %3810 = vmatprep.mubr.f32.mxu0 0.0
  %3811 = vmatmul.mubr.f32.gmra.mrb[0].mxu0 %v3549
  %v3812 = vpop.f32.mrb[0].mxu0
  %v3813 = vadd.f32 0.0, %v3812
  %v3814 = vpop.f32.mrb[0].mxu0
  %3815 = vmatprep.mubr.f32.mxu0 0.0
  %3816 = vmatmul.mubr.f32.gmra.mrb[0].mxu0 %v3552
  %v3817 = vpop.f32.mrb[0].mxu0
  %v3818 = vadd.f32 0.0, %v3817
  %v3819 = vpop.f32.mrb[0].mxu0
  %3820 = vmatprep.mubr.f32.mxu0 0.0
  %3821 = vmatmul.mubr.f32.gmra.mrb[0].mxu0 %v3555
  %v3822 = vpop.f32.mrb[0].mxu0
  %v3823 = vadd.f32 0.0, %v3822
  %v3824 = vpop.f32.mrb[0].mxu0
  %3825 = vmatprep.mubr.f32.mxu0 0.0
  %3826 = vmatmul.mubr.f32.gmra.mrb[0].mxu0 %v3558
  %v3827 = vpop.f32.mrb[0].mxu0
  %v3828 = vadd.f32 0.0, %v3827
  %v3829 = vpop.f32.mrb[0].mxu0
  %3830 = vmatprep.mubr.f32.mxu0 0.0
  %3831 = vmatmul.mubr.f32.gmra.mrb[0].mxu0 %v3561
  %v3832 = vpop.f32.mrb[0].mxu0
  %v3833 = vadd.f32 0.0, %v3832
  %v3834 = vpop.f32.mrb[0].mxu0
  %3835 = vmatprep.mubr.f32.mxu0 0.0
  %3836 = vmatmul.mubr.f32.gmra.mrb[0].mxu0 %v3564
  %v3837 = vpop.f32.mrb[0].mxu0
  %v3838 = vadd.f32 0.0, %v3837
  %v3839 = vpop.f32.mrb[0].mxu0
  %3840 = vmatprep.mubr.f32.mxu0 0.0
  %3841 = vmatmul.mubr.f32.gmra.mrb[0].mxu0 %v3567
  %v3842 = vpop.f32.mrb[0].mxu0
  %v3843 = vadd.f32 0.0, %v3842
  %v3844 = vpop.f32.mrb[0].mxu0
  %3845 = vmatprep.mubr.f32.mxu0 0.0
  %3846 = vmatmul.mubr.f32.gmra.mrb[0].mxu0 %v3570
  %v3847 = vpop.f32.mrb[0].mxu0
  %v3848 = vadd.f32 0.0, %v3847
  %v3849 = vpop.f32.mrb[0].mxu0
  %3850 = vmatprep.mubr.f32.mxu0 0.0
  %3851 = vmatmul.mubr.f32.gmra.mrb[0].mxu0 %v3573
  %v3852 = vpop.f32.mrb[0].mxu0
  %v3853 = vadd.f32 0.0, %v3852
  %v3854 = vpop.f32.mrb[0].mxu0
  %3855 = vmatprep.mubr.f32.mxu0 0.0
  %3856 = vmatmul.mubr.f32.gmra.mrb[0].mxu0 %v3576
  %v3857 = vpop.f32.mrb[0].mxu0
  %v3858 = vadd.f32 0.0, %v3857
  %v3859 = vpop.f32.mrb[0].mxu0
  %3860 = vmatprep.mubr.f32.mxu0 0.0
  %3861 = vmatmul.mubr.f32.gmra.mrb[0].mxu0 %v3579
  %v3862 = vpop.f32.mrb[0].mxu0
  %v3863 = vadd.f32 0.0, %v3862
  %v3864 = vpop.f32.mrb[0].mxu0
  %3865 = vmatprep.mubr.f32.mxu0 0.0
  %3866 = vmatmul.mubr.f32.gmra.mrb[0].mxu0 %v3582
  %v3867 = vpop.f32.mrb[0].mxu0
  %v3868 = vadd.f32 0.0, %v3867
  %v3869 = vpop.f32.mrb[0].mxu0
  %3870 = vmatprep.mubr.f32.mxu0 0.0
  %3871 = vmatmul.mubr.f32.gmra.mrb[0].mxu0 %v3585
  %v3872 = vpop.f32.mrb[0].mxu0
  %v3873 = vadd.f32 0.0, %v3872
  %v3874 = vpop.f32.mrb[0].mxu0
  %3875 = vmatprep.mubr.f32.mxu0 0.0
  %3876 = vmatmul.mubr.f32.gmra.mrb[0].mxu0 %v3588
  %v3877 = vpop.f32.mrb[0].mxu0
  %v3878 = vadd.f32 0.0, %v3877
  %v3879 = vpop.f32.mrb[0].mxu0
  %3880 = vmatprep.mubr.f32.mxu0 0.0
  %3881 = vmatmul.mubr.f32.gmra.mrb[0].mxu0 %v3591
  %v3882 = vpop.f32.mrb[0].mxu0
  %v3883 = vadd.f32 0.0, %v3882
  %v3884 = vpop.f32.mrb[0].mxu0
  %3885 = vmatprep.mubr.f32.mxu0 0.0
  %3886 = vmatmul.mubr.f32.gmra.mrb[0].mxu0 %v3594
  %v3887 = vpop.f32.mrb[0].mxu0
  %v3888 = vadd.f32 0.0, %v3887
  %v3889 = vpop.f32.mrb[0].mxu0
  %3890 = vmatprep.mubr.f32.mxu0 0.0
  %3891 = vmatmul.mubr.f32.gmra.mrb[0].mxu0 %v3597
  %v3892 = vpop.f32.mrb[0].mxu0
  %v3893 = vadd.f32 0.0, %v3892
  %v3894 = vpop.f32.mrb[0].mxu0
  %3895 = vmatprep.mubr.f32.mxu0 0.0
  %3896 = vmatmul.mubr.f32.gmra.mrb[0].mxu0 %v3600
  %v3897 = vpop.f32.mrb[0].mxu0
  %v3898 = vadd.f32 0.0, %v3897
  %v3899 = vpop.f32.mrb[0].mxu0
  %3900 = vmatprep.mubr.f32.mxu0 0.0
  %3901 = vmatmul.mubr.f32.gmra.mrb[0].mxu0 %v3603
  %v3902 = vpop.f32.mrb[0].mxu0
  %v3903 = vadd.f32 0.0, %v3902
  %v3904 = vpop.f32.mrb[0].mxu0
  %3905 = vmatprep.mubr.f32.mxu0 0.0
  %3906 = vmatmul.mubr.f32.gmra.mrb[0].mxu0 %v3606
  %v3907 = vpop.f32.mrb[0].mxu0
  %v3908 = vadd.f32 0.0, %v3907
  %v3909 = vpop.f32.mrb[0].mxu0
  %3910 = vmatprep.mubr.f32.mxu0 0.0
  %3911 = vmatmul.mubr.f32.gmra.mrb[0].mxu0 %v3609
  %v3912 = vpop.f32.mrb[0].mxu0
  %v3913 = vadd.f32 0.0, %v3912
  %v3914 = vpop.f32.mrb[0].mxu0
  %3915 = vmatprep.mubr.f32.mxu0 0.0
  %3916 = vmatmul.mubr.f32.gmra.mrb[0].mxu0 %v3612
  %v3917 = vpop.f32.mrb[0].mxu0
  %v3918 = vadd.f32 0.0, %v3917
  %v3919 = vpop.f32.mrb[0].mxu0
  %3920 = vmatprep.mubr.f32.mxu0 0.0
  %3921 = vmatmul.mubr.f32.gmra.mrb[0].mxu0 %v3615
  %v3922 = vpop.f32.mrb[0].mxu0
  %v3923 = vadd.f32 0.0, %v3922
  %v3924 = vpop.f32.mrb[0].mxu0
  %3925 = vmatprep.mubr.f32.mxu0 0.0
  %3926 = vmatmul.mubr.f32.gmra.mrb[0].mxu0 %v3618
  %v3927 = vpop.f32.mrb[0].mxu0
  %v3928 = vadd.f32 0.0, %v3927
  %v3929 = vpop.f32.mrb[0].mxu0
  %3930 = vmatprep.mubr.f32.mxu0 0.0
  %3931 = vmatmul.mubr.f32.gmra.mrb[0].mxu0 %v3621
  %v3932 = vpop.f32.mrb[0].mxu0
  %v3933 = vadd.f32 0.0, %v3932
  %v3934 = vpop.f32.mrb[0].mxu0
  %3935 = vmatprep.mubr.f32.mxu0 0.0
  %3936 = vmatmul.mubr.f32.gmra.mrb[0].mxu0 %v3624
  %v3937 = vpop.f32.mrb[0].mxu0
  %v3938 = vadd.f32 0.0, %v3937
  %v3939 = vpop.f32.mrb[0].mxu0
  %3940 = vmatprep.mubr.f32.mxu0 0.0
  %3941 = vmatmul.mubr.f32.gmra.mrb[0].mxu0 %v3627
  %v3942 = vpop.f32.mrb[0].mxu0
  %v3943 = vadd.f32 0.0, %v3942
  %v3944 = vpop.f32.mrb[0].mxu0
  %3945 = vmatprep.mubr.f32.mxu0 0.0
  %3946 = vmatmul.mubr.f32.gmra.mrb[0].mxu0 %v3630
  %v3947 = vpop.f32.mrb[0].mxu0
  %v3948 = vadd.f32 0.0, %v3947
  %v3949 = vpop.f32.mrb[0].mxu0
  %3950 = vmatprep.mubr.f32.mxu0 0.0
  %3951 = vmatmul.mubr.f32.gmra.mrb[0].mxu0 %v3633
  %v3952 = vpop.f32.mrb[0].mxu0
  %v3953 = vadd.f32 0.0, %v3952
  %v3954 = vpop.f32.mrb[0].mxu0
  %3955 = vmatprep.mubr.f32.mxu0 0.0
  %3956 = vmatmul.mubr.f32.gmra.mrb[0].mxu0 %v3636
  %v3957 = vpop.f32.mrb[0].mxu0
  %v3958 = vadd.f32 0.0, %v3957
  %v3959 = vpop.f32.mrb[0].mxu0
  %3960 = vmatprep.mubr.f32.mxu0 0.0
  %3961 = vmatmul.mubr.f32.gmra.mrb[0].mxu0 %v3639
  %v3962 = vpop.f32.mrb[0].mxu0
  %v3963 = vadd.f32 0.0, %v3962
  %v3964 = vpop.f32.mrb[0].mxu0
  %3965 = vmatprep.mubr.f32.mxu0 0.0
  %3966 = vmatmul.mubr.f32.gmra.mrb[0].mxu0 %v3642
  %v3967 = vpop.f32.mrb[0].mxu0
  %v3968 = vadd.f32 0.0, %v3967
  %v3969 = vpop.f32.mrb[0].mxu0
  %3970 = vmatprep.mubr.f32.mxu0 0.0
  %3971 = vmatmul.mubr.f32.gmra.mrb[0].mxu0 %v3645
  %v3972 = vpop.f32.mrb[0].mxu0
  %v3973 = vadd.f32 0.0, %v3972
  %v3974 = vpop.f32.mrb[0].mxu0
  %3975 = vmatprep.mubr.f32.mxu0 0.0
  %3976 = vmatmul.mubr.f32.gmra.mrb[0].mxu0 %v3648
  %v3977 = vpop.f32.mrb[0].mxu0
  %v3978 = vadd.f32 0.0, %v3977
  %v3979 = vpop.f32.mrb[0].mxu0
  %3980 = vmatprep.mubr.f32.mxu0 0.0
  %3981 = vmatmul.mubr.f32.gmra.mrb[0].mxu0 %v3651
  %v3982 = vpop.f32.mrb[0].mxu0
  %v3983 = vadd.f32 0.0, %v3982
  %v3984 = vpop.f32.mrb[0].mxu0
  %3985 = vmatprep.mubr.f32.mxu0 0.0
  %3986 = vmatmul.mubr.f32.gmra.mrb[0].mxu0 %v3654
  %v3987 = vpop.f32.mrb[0].mxu0
  %v3988 = vadd.f32 0.0, %v3987
  %v3989 = vpop.f32.mrb[0].mxu0
  %3990 = vmatprep.mubr.f32.mxu0 0.0
  %3991 = vmatmul.mubr.f32.gmra.mrb[0].mxu0 %v3657
  %v3992 = vpop.f32.mrb[0].mxu0
  %v3993 = vadd.f32 0.0, %v3992
  %v3994 = vpop.f32.mrb[0].mxu0
  %3995 = vmatprep.mubr.f32.mxu0 0.0
  %3996 = vmatmul.mubr.f32.gmra.mrb[0].mxu0 %v3660
  %v3997 = vpop.f32.mrb[0].mxu0
  %v3998 = vadd.f32 0.0, %v3997
  %v3999 = vpop.f32.mrb[0].mxu0
  %4000 = vmatprep.mubr.f32.mxu0 0.0
  %4001 = vmatmul.mubr.f32.gmra.mrb[0].mxu0 %v3663
  %v4002 = vpop.f32.mrb[0].mxu0
  %v4003 = vadd.f32 0.0, %v4002
  %v4004 = vpop.f32.mrb[0].mxu0
  %4005 = vmatprep.mubr.f32.mxu0 0.0
  %4006 = vmatmul.mubr.f32.gmra.mrb[0].mxu0 %v3666
  %v4007 = vpop.f32.mrb[0].mxu0
  %v4008 = vadd.f32 0.0, %v4007
  %v4009 = vpop.f32.mrb[0].mxu0
  %4010 = vmatprep.mubr.f32.mxu0 0.0
  %4011 = vmatmul.mubr.f32.gmra.mrb[0].mxu0 %v3669
  %v4012 = vpop.f32.mrb[0].mxu0
  %v4013 = vadd.f32 0.0, %v4012
  %v4014 = vpop.f32.mrb[0].mxu0
  %4015 = vmatprep.mubr.f32.mxu0 0.0
  %4016 = vmatmul.mubr.f32.gmra.mrb[0].mxu0 %v3672
  %v4017 = vpop.f32.mrb[0].mxu0
  %v4018 = vadd.f32 0.0, %v4017
  %v4019 = vpop.f32.mrb[0].mxu0
  %4020 = vmatprep.mubr.f32.mxu0 0.0
  %4021 = vmatmul.mubr.f32.gmra.mrb[0].mxu0 %v3675
  %v4022 = vpop.f32.mrb[0].mxu0
  %v4023 = vadd.f32 0.0, %v4022
  %v4024 = vpop.f32.mrb[0].mxu0
  %4025 = vmatprep.mubr.f32.mxu0 0.0
  %4026 = vmatmul.mubr.f32.gmra.mrb[0].mxu0 %v3678
  %v4027 = vpop.f32.mrb[0].mxu0
  %v4028 = vadd.f32 0.0, %v4027
  %v4029 = vpop.f32.mrb[0].mxu0
  %4030 = vmatprep.mubr.f32.mxu0 0.0
  %4031 = vmatmul.mubr.f32.gmra.mrb[0].mxu0 %v3681
  %v4032 = vpop.f32.mrb[0].mxu0
  %v4033 = vadd.f32 0.0, %v4032
  %v4034 = vpop.f32.mrb[0].mxu0
  %4035 = vmatprep.mubr.f32.mxu0 0.0
  %4036 = vmatmul.mubr.f32.gmra.mrb[0].mxu0 %v3684
  %v4037 = vpop.f32.mrb[0].mxu0
  %v4038 = vadd.f32 0.0, %v4037
  %v4039 = vpop.f32.mrb[0].mxu0
  %4040 = vmatprep.mubr.f32.mxu0 0.0
  %4041 = vmatmul.mubr.f32.gmra.mrb[0].mxu0 %v3687
  %v4042 = vpop.f32.mrb[0].mxu0
  %v4043 = vadd.f32 0.0, %v4042
  %v4044 = vpop.f32.mrb[0].mxu0
  %4045 = vmatprep.mubr.f32.mxu0 0.0
  %4046 = vmatmul.mubr.f32.gmra.mrb[0].mxu0 %v3690
  %v4047 = vpop.f32.mrb[0].mxu0
  %v4048 = vadd.f32 0.0, %v4047
  %v4049 = vpop.f32.mrb[0].mxu0
  %4050 = vmatprep.mubr.f32.mxu0 0.0
  %4051 = vmatmul.mubr.f32.gmra.mrb[0].mxu0 %v3693
  %v4052 = vpop.f32.mrb[0].mxu0
  %v4053 = vadd.f32 0.0, %v4052
  %v4054 = vpop.f32.mrb[0].mxu0
  %4055 = vmatprep.mubr.f32.mxu0 0.0
  %4056 = vmatmul.mubr.f32.gmra.mrb[0].mxu0 %v3696
  %v4057 = vpop.f32.mrb[0].mxu0
  %v4058 = vadd.f32 0.0, %v4057
  %v4059 = vpop.f32.mrb[0].mxu0
  %4060 = vmatprep.mubr.f32.mxu0 0.0
  %4061 = vmatmul.mubr.f32.gmra.mrb[0].mxu0 %v3699
  %v4062 = vpop.f32.mrb[0].mxu0
  %v4063 = vadd.f32 0.0, %v4062
  %v4064 = vpop.f32.mrb[0].mxu0
  %4065 = vmatprep.mubr.f32.mxu0 0.0
  %4066 = vmatmul.mubr.f32.gmra.mrb[0].mxu0 %v3702
  %v4067 = vpop.f32.mrb[0].mxu0
  %v4068 = vadd.f32 0.0, %v4067
  %v4069 = vpop.f32.mrb[0].mxu0
  %4070 = vmatprep.mubr.f32.mxu0 0.0
  %4071 = vmatmul.mubr.f32.gmra.mrb[0].mxu0 %v3705
  %v4072 = vpop.f32.mrb[0].mxu0
  %v4073 = vadd.f32 0.0, %v4072
  %v4074 = vpop.f32.mrb[0].mxu0
  %4075 = vmatprep.mubr.f32.mxu0 0.0
  %4076 = vmatmul.mubr.f32.gmra.mrb[0].mxu0 %v3708
  %v4077 = vpop.f32.mrb[0].mxu0
  %v4078 = vadd.f32 0.0, %v4077
  %v4079 = vpop.f32.mrb[0].mxu0
  %4080 = vmatprep.mubr.f32.mxu0 0.0
  %4081 = vmatmul.mubr.f32.gmra.mrb[0].mxu0 %v3711
  %v4082 = vpop.f32.mrb[0].mxu0
  %v4083 = vadd.f32 0.0, %v4082
  %v4084 = vpop.f32.mrb[0].mxu0
  %4085 = vmatprep.mubr.f32.mxu0 0.0
  %4086 = vmatmul.mubr.f32.gmra.mrb[0].mxu0 %v3714
  %v4087 = vpop.f32.mrb[0].mxu0
  %v4088 = vadd.f32 0.0, %v4087
  %v4089 = vpop.f32.mrb[0].mxu0
  %4090 = vmatprep.mubr.f32.mxu0 0.0
  %4091 = vmatmul.mubr.f32.gmra.mrb[0].mxu0 %v3717
  %v4092 = vpop.f32.mrb[0].mxu0
  %v4093 = vadd.f32 0.0, %v4092
  %v4094 = vpop.f32.mrb[0].mxu0
  %4095 = vmatprep.mubr.f32.mxu0 0.0
  %4096 = vmatmul.mubr.f32.gmra.mrb[0].mxu0 %v3720
  %v4097 = vpop.f32.mrb[0].mxu0
  %v4098 = vadd.f32 0.0, %v4097
  %v4099 = vpop.f32.mrb[0].mxu0
  %4100 = vmatprep.mubr.f32.mxu0 0.0
  %4101 = vmatmul.mubr.f32.gmra.mrb[0].mxu0 %v3723
  %v4102 = vpop.f32.mrb[0].mxu0
  %v4103 = vadd.f32 0.0, %v4102
  %v4104 = vpop.f32.mrb[0].mxu0
  %4105 = vmatprep.mubr.f32.mxu0 0.0
  %4106 = vmatmul.mubr.f32.gmra.mrb[0].mxu0 %v3726
  %v4107 = vpop.f32.mrb[0].mxu0
  %v4108 = vadd.f32 0.0, %v4107
  %v4109 = vpop.f32.mrb[0].mxu0
  %4110 = vmatprep.mubr.f32.mxu0 0.0
  %4111 = vmatmul.mubr.f32.gmra.mrb[0].mxu0 %v3729
  %v4112 = vpop.f32.mrb[0].mxu0
  %v4113 = vadd.f32 0.0, %v4112
  %v4114 = vpop.f32.mrb[0].mxu0
  %4115 = vmatprep.mubr.f32.mxu0 0.0
  %4116 = vmatmul.mubr.f32.gmra.mrb[0].mxu0 %v3732
  %v4117 = vpop.f32.mrb[0].mxu0
  %v4118 = vadd.f32 0.0, %v4117
  %v4119 = vpop.f32.mrb[0].mxu0
  %4120 = vmatprep.mubr.f32.mxu0 0.0
  %4121 = vmatmul.mubr.f32.gmra.mrb[0].mxu0 %v3735
  %v4122 = vpop.f32.mrb[0].mxu0
  %v4123 = vadd.f32 0.0, %v4122
  %v4124 = vpop.f32.mrb[0].mxu0
  %4125 = vdwg.mxu0
  %v4126 = vld [vmem:[%s2] sm:$0x1]
  %v4128 = vlaneseq
  %v4129 = vshrl.u32 %v4128, 7
  %v4130 = vsub.s32 0, %v4129
  %v4131 = vrot.slane %v4126, %v4130
  %v4133 = vmul.f32 %v3808, %v4131
  %v4134 = vmul.f32 %v3813, %v4131
  %v4135 = vmul.f32 %v3818, %v4131
  %v4136 = vmul.f32 %v3823, %v4131
  %v4137 = vmul.f32 %v3828, %v4131
  %v4138 = vmul.f32 %v3833, %v4131
  %v4139 = vmul.f32 %v3838, %v4131
  %v4140 = vmul.f32 %v3843, %v4131
  %v4141 = vmul.f32 %v3848, %v4131
  %v4142 = vmul.f32 %v3853, %v4131
  %v4143 = vmul.f32 %v3858, %v4131
  %v4144 = vmul.f32 %v3863, %v4131
  %v4145 = vmul.f32 %v3868, %v4131
  %v4146 = vmul.f32 %v3873, %v4131
  %v4147 = vmul.f32 %v3878, %v4131
  %v4148 = vmul.f32 %v3883, %v4131
  %v4149 = vmul.f32 %v3888, %v4131
  %v4150 = vmul.f32 %v3893, %v4131
  %v4151 = vmul.f32 %v3898, %v4131
  %v4152 = vmul.f32 %v3903, %v4131
  %v4153 = vmul.f32 %v3908, %v4131
  %v4154 = vmul.f32 %v3913, %v4131
  %v4155 = vmul.f32 %v3918, %v4131
  %v4156 = vmul.f32 %v3923, %v4131
  %v4157 = vmul.f32 %v3928, %v4131
  %v4158 = vmul.f32 %v3933, %v4131
  %v4159 = vmul.f32 %v3938, %v4131
  %v4160 = vmul.f32 %v3943, %v4131
  %v4161 = vmul.f32 %v3948, %v4131
  %v4162 = vmul.f32 %v3953, %v4131
  %v4163 = vmul.f32 %v3958, %v4131
  %v4164 = vmul.f32 %v3963, %v4131
  %v4165 = vmul.f32 %v3968, %v4131
  %v4166 = vmul.f32 %v3973, %v4131
  %v4167 = vmul.f32 %v3978, %v4131
  %v4168 = vmul.f32 %v3983, %v4131
  %v4169 = vmul.f32 %v3988, %v4131
  %v4170 = vmul.f32 %v3993, %v4131
  %v4171 = vmul.f32 %v3998, %v4131
  %v4172 = vmul.f32 %v4003, %v4131
  %v4173 = vmul.f32 %v4008, %v4131
  %v4174 = vmul.f32 %v4013, %v4131
  %v4175 = vmul.f32 %v4018, %v4131
  %v4176 = vmul.f32 %v4023, %v4131
  %v4177 = vmul.f32 %v4028, %v4131
  %v4178 = vmul.f32 %v4033, %v4131
  %v4179 = vmul.f32 %v4038, %v4131
  %v4180 = vmul.f32 %v4043, %v4131
  %v4181 = vmul.f32 %v4048, %v4131
  %v4182 = vmul.f32 %v4053, %v4131
  %v4183 = vmul.f32 %v4058, %v4131
  %v4184 = vmul.f32 %v4063, %v4131
  %v4185 = vmul.f32 %v4068, %v4131
  %v4186 = vmul.f32 %v4073, %v4131
  %v4187 = vmul.f32 %v4078, %v4131
  %v4188 = vmul.f32 %v4083, %v4131
  %v4189 = vmul.f32 %v4088, %v4131
  %v4190 = vmul.f32 %v4093, %v4131
  %v4191 = vmul.f32 %v4098, %v4131
  %v4192 = vmul.f32 %v4103, %v4131
  %v4193 = vmul.f32 %v4108, %v4131
  %v4194 = vmul.f32 %v4113, %v4131
  %v4195 = vmul.f32 %v4118, %v4131
  %v4196 = vmul.f32 %v4123, %v4131
  %v4197 = vld [vmem:[%s3] sm:$0x1]
  %v4199 = vlaneseq
  %v4200 = vshrl.u32 %v4199, 7
  %v4201 = vsub.s32 0, %v4200
  %v4202 = vrot.slane %v4197, %v4201
  %v4204 = vadd.f32 %v4133, %v4202
  %v4205 = vadd.f32 %v4134, %v4202
  %v4206 = vadd.f32 %v4135, %v4202
  %v4207 = vadd.f32 %v4136, %v4202
  %v4208 = vadd.f32 %v4137, %v4202
  %v4209 = vadd.f32 %v4138, %v4202
  %v4210 = vadd.f32 %v4139, %v4202
  %v4211 = vadd.f32 %v4140, %v4202
  %v4212 = vadd.f32 %v4141, %v4202
  %v4213 = vadd.f32 %v4142, %v4202
  %v4214 = vadd.f32 %v4143, %v4202
  %v4215 = vadd.f32 %v4144, %v4202
  %v4216 = vadd.f32 %v4145, %v4202
  %v4217 = vadd.f32 %v4146, %v4202
  %v4218 = vadd.f32 %v4147, %v4202
  %v4219 = vadd.f32 %v4148, %v4202
  %v4220 = vadd.f32 %v4149, %v4202
  %v4221 = vadd.f32 %v4150, %v4202
  %v4222 = vadd.f32 %v4151, %v4202
  %v4223 = vadd.f32 %v4152, %v4202
  %v4224 = vadd.f32 %v4153, %v4202
  %v4225 = vadd.f32 %v4154, %v4202
  %v4226 = vadd.f32 %v4155, %v4202
  %v4227 = vadd.f32 %v4156, %v4202
  %v4228 = vadd.f32 %v4157, %v4202
  %v4229 = vadd.f32 %v4158, %v4202
  %v4230 = vadd.f32 %v4159, %v4202
  %v4231 = vadd.f32 %v4160, %v4202
  %v4232 = vadd.f32 %v4161, %v4202
  %v4233 = vadd.f32 %v4162, %v4202
  %v4234 = vadd.f32 %v4163, %v4202
  %v4235 = vadd.f32 %v4164, %v4202
  %v4236 = vadd.f32 %v4165, %v4202
  %v4237 = vadd.f32 %v4166, %v4202
  %v4238 = vadd.f32 %v4167, %v4202
  %v4239 = vadd.f32 %v4168, %v4202
  %v4240 = vadd.f32 %v4169, %v4202
  %v4241 = vadd.f32 %v4170, %v4202
  %v4242 = vadd.f32 %v4171, %v4202
  %v4243 = vadd.f32 %v4172, %v4202
  %v4244 = vadd.f32 %v4173, %v4202
  %v4245 = vadd.f32 %v4174, %v4202
  %v4246 = vadd.f32 %v4175, %v4202
  %v4247 = vadd.f32 %v4176, %v4202
  %v4248 = vadd.f32 %v4177, %v4202
  %v4249 = vadd.f32 %v4178, %v4202
  %v4250 = vadd.f32 %v4179, %v4202
  %v4251 = vadd.f32 %v4180, %v4202
  %v4252 = vadd.f32 %v4181, %v4202
  %v4253 = vadd.f32 %v4182, %v4202
  %v4254 = vadd.f32 %v4183, %v4202
  %v4255 = vadd.f32 %v4184, %v4202
  %v4256 = vadd.f32 %v4185, %v4202
  %v4257 = vadd.f32 %v4186, %v4202
  %v4258 = vadd.f32 %v4187, %v4202
  %v4259 = vadd.f32 %v4188, %v4202
  %v4260 = vadd.f32 %v4189, %v4202
  %v4261 = vadd.f32 %v4190, %v4202
  %v4262 = vadd.f32 %v4191, %v4202
  %v4263 = vadd.f32 %v4192, %v4202
  %v4264 = vadd.f32 %v4193, %v4202
  %v4265 = vadd.f32 %v4194, %v4202
  %v4266 = vadd.f32 %v4195, %v4202
  %v4267 = vadd.f32 %v4196, %v4202
  %v4268 = vmax.f32 %v4204, 0.0
  %v4269 = vmax.f32 %v4205, 0.0
  %v4270 = vmax.f32 %v4206, 0.0
  %v4271 = vmax.f32 %v4207, 0.0
  %v4272 = vmax.f32 %v4208, 0.0
  %v4273 = vmax.f32 %v4209, 0.0
  %v4274 = vmax.f32 %v4210, 0.0
  %v4275 = vmax.f32 %v4211, 0.0
  %v4276 = vmax.f32 %v4212, 0.0
  %v4277 = vmax.f32 %v4213, 0.0
  %v4278 = vmax.f32 %v4214, 0.0
  %v4279 = vmax.f32 %v4215, 0.0
  %v4280 = vmax.f32 %v4216, 0.0
  %v4281 = vmax.f32 %v4217, 0.0
  %v4282 = vmax.f32 %v4218, 0.0
  %v4283 = vmax.f32 %v4219, 0.0
  %v4284 = vmax.f32 %v4220, 0.0
  %v4285 = vmax.f32 %v4221, 0.0
  %v4286 = vmax.f32 %v4222, 0.0
  %v4287 = vmax.f32 %v4223, 0.0
  %v4288 = vmax.f32 %v4224, 0.0
  %v4289 = vmax.f32 %v4225, 0.0
  %v4290 = vmax.f32 %v4226, 0.0
  %v4291 = vmax.f32 %v4227, 0.0
  %v4292 = vmax.f32 %v4228, 0.0
  %v4293 = vmax.f32 %v4229, 0.0
  %v4294 = vmax.f32 %v4230, 0.0
  %v4295 = vmax.f32 %v4231, 0.0
  %v4296 = vmax.f32 %v4232, 0.0
  %v4297 = vmax.f32 %v4233, 0.0
  %v4298 = vmax.f32 %v4234, 0.0
  %v4299 = vmax.f32 %v4235, 0.0
  %v4300 = vmax.f32 %v4236, 0.0
  %v4301 = vmax.f32 %v4237, 0.0
  %v4302 = vmax.f32 %v4238, 0.0
  %v4303 = vmax.f32 %v4239, 0.0
  %v4304 = vmax.f32 %v4240, 0.0
  %v4305 = vmax.f32 %v4241, 0.0
  %v4306 = vmax.f32 %v4242, 0.0
  %v4307 = vmax.f32 %v4243, 0.0
  %v4308 = vmax.f32 %v4244, 0.0
  %v4309 = vmax.f32 %v4245, 0.0
  %v4310 = vmax.f32 %v4246, 0.0
  %v4311 = vmax.f32 %v4247, 0.0
  %v4312 = vmax.f32 %v4248, 0.0
  %v4313 = vmax.f32 %v4249, 0.0
  %v4314 = vmax.f32 %v4250, 0.0
  %v4315 = vmax.f32 %v4251, 0.0
  %v4316 = vmax.f32 %v4252, 0.0
  %v4317 = vmax.f32 %v4253, 0.0
  %v4318 = vmax.f32 %v4254, 0.0
  %v4319 = vmax.f32 %v4255, 0.0
  %v4320 = vmax.f32 %v4256, 0.0
  %v4321 = vmax.f32 %v4257, 0.0
  %v4322 = vmax.f32 %v4258, 0.0
  %v4323 = vmax.f32 %v4259, 0.0
  %v4324 = vmax.f32 %v4260, 0.0
  %v4325 = vmax.f32 %v4261, 0.0
  %v4326 = vmax.f32 %v4262, 0.0
  %v4327 = vmax.f32 %v4263, 0.0
  %v4328 = vmax.f32 %v4264, 0.0
  %v4329 = vmax.f32 %v4265, 0.0
  %v4330 = vmax.f32 %v4266, 0.0
  %v4331 = vmax.f32 %v4267, 0.0
  %v4332 = vmin.f32 %v4268, 1.0
  %v4333 = vmin.f32 %v4269, 1.0
  %v4334 = vmin.f32 %v4270, 1.0
  %v4335 = vmin.f32 %v4271, 1.0
  %v4336 = vmin.f32 %v4272, 1.0
  %v4337 = vmin.f32 %v4273, 1.0
  %v4338 = vmin.f32 %v4274, 1.0
  %v4339 = vmin.f32 %v4275, 1.0
  %v4340 = vmin.f32 %v4276, 1.0
  %v4341 = vmin.f32 %v4277, 1.0
  %v4342 = vmin.f32 %v4278, 1.0
  %v4343 = vmin.f32 %v4279, 1.0
  %v4344 = vmin.f32 %v4280, 1.0
  %v4345 = vmin.f32 %v4281, 1.0
  %v4346 = vmin.f32 %v4282, 1.0
  %v4347 = vmin.f32 %v4283, 1.0
  %v4348 = vmin.f32 %v4284, 1.0
  %v4349 = vmin.f32 %v4285, 1.0
  %v4350 = vmin.f32 %v4286, 1.0
  %v4351 = vmin.f32 %v4287, 1.0
  %v4352 = vmin.f32 %v4288, 1.0
  %v4353 = vmin.f32 %v4289, 1.0
  %v4354 = vmin.f32 %v4290, 1.0
  %v4355 = vmin.f32 %v4291, 1.0
  %v4356 = vmin.f32 %v4292, 1.0
  %v4357 = vmin.f32 %v4293, 1.0
  %v4358 = vmin.f32 %v4294, 1.0
  %v4359 = vmin.f32 %v4295, 1.0
  %v4360 = vmin.f32 %v4296, 1.0
  %v4361 = vmin.f32 %v4297, 1.0
  %v4362 = vmin.f32 %v4298, 1.0
  %v4363 = vmin.f32 %v4299, 1.0
  %v4364 = vmin.f32 %v4300, 1.0
  %v4365 = vmin.f32 %v4301, 1.0
  %v4366 = vmin.f32 %v4302, 1.0
  %v4367 = vmin.f32 %v4303, 1.0
  %v4368 = vmin.f32 %v4304, 1.0
  %v4369 = vmin.f32 %v4305, 1.0
  %v4370 = vmin.f32 %v4306, 1.0
  %v4371 = vmin.f32 %v4307, 1.0
  %v4372 = vmin.f32 %v4308, 1.0
  %v4373 = vmin.f32 %v4309, 1.0
  %v4374 = vmin.f32 %v4310, 1.0
  %v4375 = vmin.f32 %v4311, 1.0
  %v4376 = vmin.f32 %v4312, 1.0
  %v4377 = vmin.f32 %v4313, 1.0
  %v4378 = vmin.f32 %v4314, 1.0
  %v4379 = vmin.f32 %v4315, 1.0
  %v4380 = vmin.f32 %v4316, 1.0
  %v4381 = vmin.f32 %v4317, 1.0
  %v4382 = vmin.f32 %v4318, 1.0
  %v4383 = vmin.f32 %v4319, 1.0
  %v4384 = vmin.f32 %v4320, 1.0
  %v4385 = vmin.f32 %v4321, 1.0
  %v4386 = vmin.f32 %v4322, 1.0
  %v4387 = vmin.f32 %v4323, 1.0
  %v4388 = vmin.f32 %v4324, 1.0
  %v4389 = vmin.f32 %v4325, 1.0
  %v4390 = vmin.f32 %v4326, 1.0
  %v4391 = vmin.f32 %v4327, 1.0
  %v4392 = vmin.f32 %v4328, 1.0
  %v4393 = vmin.f32 %v4329, 1.0
  %v4394 = vmin.f32 %v4330, 1.0
  %v4395 = vmin.f32 %v4331, 1.0
  %v4396 = vmul.f32 %v4332, 15.0
  %v4397 = vmul.f32 %v4333, 15.0
  %v4398 = vmul.f32 %v4334, 15.0
  %v4399 = vmul.f32 %v4335, 15.0
  %v4400 = vmul.f32 %v4336, 15.0
  %v4401 = vmul.f32 %v4337, 15.0
  %v4402 = vmul.f32 %v4338, 15.0
  %v4403 = vmul.f32 %v4339, 15.0
  %v4404 = vmul.f32 %v4340, 15.0
  %v4405 = vmul.f32 %v4341, 15.0
  %v4406 = vmul.f32 %v4342, 15.0
  %v4407 = vmul.f32 %v4343, 15.0
  %v4408 = vmul.f32 %v4344, 15.0
  %v4409 = vmul.f32 %v4345, 15.0
  %v4410 = vmul.f32 %v4346, 15.0
  %v4411 = vmul.f32 %v4347, 15.0
  %v4412 = vmul.f32 %v4348, 15.0
  %v4413 = vmul.f32 %v4349, 15.0
  %v4414 = vmul.f32 %v4350, 15.0
  %v4415 = vmul.f32 %v4351, 15.0
  %v4416 = vmul.f32 %v4352, 15.0
  %v4417 = vmul.f32 %v4353, 15.0
  %v4418 = vmul.f32 %v4354, 15.0
  %v4419 = vmul.f32 %v4355, 15.0
  %v4420 = vmul.f32 %v4356, 15.0
  %v4421 = vmul.f32 %v4357, 15.0
  %v4422 = vmul.f32 %v4358, 15.0
  %v4423 = vmul.f32 %v4359, 15.0
  %v4424 = vmul.f32 %v4360, 15.0
  %v4425 = vmul.f32 %v4361, 15.0
  %v4426 = vmul.f32 %v4362, 15.0
  %v4427 = vmul.f32 %v4363, 15.0
  %v4428 = vmul.f32 %v4364, 15.0
  %v4429 = vmul.f32 %v4365, 15.0
  %v4430 = vmul.f32 %v4366, 15.0
  %v4431 = vmul.f32 %v4367, 15.0
  %v4432 = vmul.f32 %v4368, 15.0
  %v4433 = vmul.f32 %v4369, 15.0
  %v4434 = vmul.f32 %v4370, 15.0
  %v4435 = vmul.f32 %v4371, 15.0
  %v4436 = vmul.f32 %v4372, 15.0
  %v4437 = vmul.f32 %v4373, 15.0
  %v4438 = vmul.f32 %v4374, 15.0
  %v4439 = vmul.f32 %v4375, 15.0
  %v4440 = vmul.f32 %v4376, 15.0
  %v4441 = vmul.f32 %v4377, 15.0
  %v4442 = vmul.f32 %v4378, 15.0
  %v4443 = vmul.f32 %v4379, 15.0
  %v4444 = vmul.f32 %v4380, 15.0
  %v4445 = vmul.f32 %v4381, 15.0
  %v4446 = vmul.f32 %v4382, 15.0
  %v4447 = vmul.f32 %v4383, 15.0
  %v4448 = vmul.f32 %v4384, 15.0
  %v4449 = vmul.f32 %v4385, 15.0
  %v4450 = vmul.f32 %v4386, 15.0
  %v4451 = vmul.f32 %v4387, 15.0
  %v4452 = vmul.f32 %v4388, 15.0
  %v4453 = vmul.f32 %v4389, 15.0
  %v4454 = vmul.f32 %v4390, 15.0
  %v4455 = vmul.f32 %v4391, 15.0
  %v4456 = vmul.f32 %v4392, 15.0
  %v4457 = vmul.f32 %v4393, 15.0
  %v4458 = vmul.f32 %v4394, 15.0
  %v4459 = vmul.f32 %v4395, 15.0
  %v4460 = vround.ne.pseudo %v4396
  %v4461 = vround.ne.pseudo %v4397
  %v4462 = vround.ne.pseudo %v4398
  %v4463 = vround.ne.pseudo %v4399
  %v4464 = vround.ne.pseudo %v4400
  %v4465 = vround.ne.pseudo %v4401
  %v4466 = vround.ne.pseudo %v4402
  %v4467 = vround.ne.pseudo %v4403
  %v4468 = vround.ne.pseudo %v4404
  %v4469 = vround.ne.pseudo %v4405
  %v4470 = vround.ne.pseudo %v4406
  %v4471 = vround.ne.pseudo %v4407
  %v4472 = vround.ne.pseudo %v4408
  %v4473 = vround.ne.pseudo %v4409
  %v4474 = vround.ne.pseudo %v4410
  %v4475 = vround.ne.pseudo %v4411
  %v4476 = vround.ne.pseudo %v4412
  %v4477 = vround.ne.pseudo %v4413
  %v4478 = vround.ne.pseudo %v4414
  %v4479 = vround.ne.pseudo %v4415
  %v4480 = vround.ne.pseudo %v4416
  %v4481 = vround.ne.pseudo %v4417
  %v4482 = vround.ne.pseudo %v4418
  %v4483 = vround.ne.pseudo %v4419
  %v4484 = vround.ne.pseudo %v4420
  %v4485 = vround.ne.pseudo %v4421
  %v4486 = vround.ne.pseudo %v4422
  %v4487 = vround.ne.pseudo %v4423
  %v4488 = vround.ne.pseudo %v4424
  %v4489 = vround.ne.pseudo %v4425
  %v4490 = vround.ne.pseudo %v4426
  %v4491 = vround.ne.pseudo %v4427
  %v4492 = vround.ne.pseudo %v4428
  %v4493 = vround.ne.pseudo %v4429
  %v4494 = vround.ne.pseudo %v4430
  %v4495 = vround.ne.pseudo %v4431
  %v4496 = vround.ne.pseudo %v4432
  %v4497 = vround.ne.pseudo %v4433
  %v4498 = vround.ne.pseudo %v4434
  %v4499 = vround.ne.pseudo %v4435
  %v4500 = vround.ne.pseudo %v4436
  %v4501 = vround.ne.pseudo %v4437
  %v4502 = vround.ne.pseudo %v4438
  %v4503 = vround.ne.pseudo %v4439
  %v4504 = vround.ne.pseudo %v4440
  %v4505 = vround.ne.pseudo %v4441
  %v4506 = vround.ne.pseudo %v4442
  %v4507 = vround.ne.pseudo %v4443
  %v4508 = vround.ne.pseudo %v4444
  %v4509 = vround.ne.pseudo %v4445
  %v4510 = vround.ne.pseudo %v4446
  %v4511 = vround.ne.pseudo %v4447
  %v4512 = vround.ne.pseudo %v4448
  %v4513 = vround.ne.pseudo %v4449
  %v4514 = vround.ne.pseudo %v4450
  %v4515 = vround.ne.pseudo %v4451
  %v4516 = vround.ne.pseudo %v4452
  %v4517 = vround.ne.pseudo %v4453
  %v4518 = vround.ne.pseudo %v4454
  %v4519 = vround.ne.pseudo %v4455
  %v4520 = vround.ne.pseudo %v4456
  %v4521 = vround.ne.pseudo %v4457
  %v4522 = vround.ne.pseudo %v4458
  %v4523 = vround.ne.pseudo %v4459
  %v4524 = vmul.f32 %v4460, 0.06666667
  %v4525 = vmul.f32 %v4461, 0.06666667
  %v4526 = vmul.f32 %v4462, 0.06666667
  %v4527 = vmul.f32 %v4463, 0.06666667
  %v4528 = vmul.f32 %v4464, 0.06666667
  %v4529 = vmul.f32 %v4465, 0.06666667
  %v4530 = vmul.f32 %v4466, 0.06666667
  %v4531 = vmul.f32 %v4467, 0.06666667
  %v4532 = vmul.f32 %v4468, 0.06666667
  %v4533 = vmul.f32 %v4469, 0.06666667
  %v4534 = vmul.f32 %v4470, 0.06666667
  %v4535 = vmul.f32 %v4471, 0.06666667
  %v4536 = vmul.f32 %v4472, 0.06666667
  %v4537 = vmul.f32 %v4473, 0.06666667
  %v4538 = vmul.f32 %v4474, 0.06666667
  %v4539 = vmul.f32 %v4475, 0.06666667
  %v4540 = vmul.f32 %v4476, 0.06666667
  %v4541 = vmul.f32 %v4477, 0.06666667
  %v4542 = vmul.f32 %v4478, 0.06666667
  %v4543 = vmul.f32 %v4479, 0.06666667
  %v4544 = vmul.f32 %v4480, 0.06666667
  %v4545 = vmul.f32 %v4481, 0.06666667
  %v4546 = vmul.f32 %v4482, 0.06666667
  %v4547 = vmul.f32 %v4483, 0.06666667
  %v4548 = vmul.f32 %v4484, 0.06666667
  %v4549 = vmul.f32 %v4485, 0.06666667
  %v4550 = vmul.f32 %v4486, 0.06666667
  %v4551 = vmul.f32 %v4487, 0.06666667
  %v4552 = vmul.f32 %v4488, 0.06666667
  %v4553 = vmul.f32 %v4489, 0.06666667
  %v4554 = vmul.f32 %v4490, 0.06666667
  %v4555 = vmul.f32 %v4491, 0.06666667
  %v4556 = vmul.f32 %v4492, 0.06666667
  %v4557 = vmul.f32 %v4493, 0.06666667
  %v4558 = vmul.f32 %v4494, 0.06666667
  %v4559 = vmul.f32 %v4495, 0.06666667
  %v4560 = vmul.f32 %v4496, 0.06666667
  %v4561 = vmul.f32 %v4497, 0.06666667
  %v4562 = vmul.f32 %v4498, 0.06666667
  %v4563 = vmul.f32 %v4499, 0.06666667
  %v4564 = vmul.f32 %v4500, 0.06666667
  %v4565 = vmul.f32 %v4501, 0.06666667
  %v4566 = vmul.f32 %v4502, 0.06666667
  %v4567 = vmul.f32 %v4503, 0.06666667
  %v4568 = vmul.f32 %v4504, 0.06666667
  %v4569 = vmul.f32 %v4505, 0.06666667
  %v4570 = vmul.f32 %v4506, 0.06666667
  %v4571 = vmul.f32 %v4507, 0.06666667
  %v4572 = vmul.f32 %v4508, 0.06666667
  %v4573 = vmul.f32 %v4509, 0.06666667
  %v4574 = vmul.f32 %v4510, 0.06666667
  %v4575 = vmul.f32 %v4511, 0.06666667
  %v4576 = vmul.f32 %v4512, 0.06666667
  %v4577 = vmul.f32 %v4513, 0.06666667
  %v4578 = vmul.f32 %v4514, 0.06666667
  %v4579 = vmul.f32 %v4515, 0.06666667
  %v4580 = vmul.f32 %v4516, 0.06666667
  %v4581 = vmul.f32 %v4517, 0.06666667
  %v4582 = vmul.f32 %v4518, 0.06666667
  %v4583 = vmul.f32 %v4519, 0.06666667
  %v4584 = vmul.f32 %v4520, 0.06666667
  %v4585 = vmul.f32 %v4521, 0.06666667
  %v4586 = vmul.f32 %v4522, 0.06666667
  %v4587 = vmul.f32 %v4523, 0.06666667
  %vm4588 = vcmask 64512
  %4589 = vst.msk [vmem:[#allocation3] sm:$0xff] %vm4588, 0.0
  %4590 = vst.msk [vmem:[#allocation3 + $0x8] sm:$0xff] %vm4588, 0.0
  %vm4591 = vcmask 58368
  %4592 = vst.msk [vmem:[#allocation3 + $0x10] sm:$0x3] %vm4591, 0.0
  %4593 = vst.msk [vmem:[#allocation3 + $0x18] sm:$0xff] %vm4588, 0.0
  %4594 = vst.msk [vmem:[#allocation3 + $0x20] sm:$0xff] %vm4588, 0.0
  %4595 = vst.msk [vmem:[#allocation3 + $0x28] sm:$0x3] %vm4591, 0.0
  %4596 = vst.msk [vmem:[#allocation3 + $0x30] sm:$0xff] %vm4588, 0.0
  %4597 = vst.msk [vmem:[#allocation3 + $0x38] sm:$0xff] %vm4588, 0.0
  %4598 = vst.msk [vmem:[#allocation3 + $0x40] sm:$0x3] %vm4591, 0.0
  %4599 = vst.msk [vmem:[#allocation3 + $0x48] sm:$0xff] %vm4588, 0.0
  %4600 = vst.msk [vmem:[#allocation3 + $0x50] sm:$0xff] %vm4588, 0.0
  %4601 = vst.msk [vmem:[#allocation3 + $0x58] sm:$0x3] %vm4591, 0.0
  %4602 = vst.msk [vmem:[#allocation3 + $0x60] sm:$0xff] %vm4588, 0.0
  %4603 = vst.msk [vmem:[#allocation3 + $0x68] sm:$0xff] %vm4588, 0.0
  %4604 = vst.msk [vmem:[#allocation3 + $0x70] sm:$0x3] %vm4591, 0.0
  %4605 = vst.msk [vmem:[#allocation3 + $0x78] sm:$0xff] %vm4588, 0.0
  %4606 = vst.msk [vmem:[#allocation3 + $0x80] sm:$0xff] %vm4588, 0.0
  %4607 = vst.msk [vmem:[#allocation3 + $0x88] sm:$0x3] %vm4591, 0.0
  %4608 = vst.msk [vmem:[#allocation3 + $0x90] sm:$0xff] %vm4588, 0.0
  %4609 = vst.msk [vmem:[#allocation3 + $0x98] sm:$0xff] %vm4588, 0.0
  %4610 = vst.msk [vmem:[#allocation3 + $0xa0] sm:$0x3] %vm4591, 0.0
  %4611 = vst.msk [vmem:[#allocation3 + $0xa8] sm:$0xff] %vm4588, 0.0
  %4612 = vst.msk [vmem:[#allocation3 + $0xb0] sm:$0xff] %vm4588, 0.0
  %4613 = vst.msk [vmem:[#allocation3 + $0xb8] sm:$0x3] %vm4591, 0.0
  %4614 = vst.msk [vmem:[#allocation3 + $0xc0] sm:$0xff] %vm4588, 0.0
  %4615 = vst.msk [vmem:[#allocation3 + $0xc8] sm:$0xff] %vm4588, 0.0
  %4616 = vst.msk [vmem:[#allocation3 + $0xd0] sm:$0x3] %vm4591, 0.0
  %4617 = vst.msk [vmem:[#allocation3 + $0xd8] sm:$0xff] %vm4588, 0.0
  %4618 = vst.msk [vmem:[#allocation3 + $0xe0] sm:$0xff] %vm4588, 0.0
  %4619 = vst.msk [vmem:[#allocation3 + $0xe8] sm:$0x3] %vm4591, 0.0
  %4620 = vst.msk [vmem:[#allocation3 + $0xf0] sm:$0xff] %vm4588, 0.0
  %4621 = vst.msk [vmem:[#allocation3 + $0xf8] sm:$0xff] %vm4588, 0.0
  %4622 = vst.msk [vmem:[#allocation3 + $0x100] sm:$0x3] %vm4591, 0.0
  %4623 = vst.msk [vmem:[#allocation3 + $0x108] sm:$0xff] %vm4588, 0.0
  %4624 = vst.msk [vmem:[#allocation3 + $0x110] sm:$0xff] %vm4588, 0.0
  %4625 = vst.msk [vmem:[#allocation3 + $0x118] sm:$0x3] %vm4591, 0.0
  %4626 = vst.msk [vmem:[#allocation3 + $0x120] sm:$0xff] %vm4588, 0.0
  %4627 = vst.msk [vmem:[#allocation3 + $0x128] sm:$0xff] %vm4588, 0.0
  %4628 = vst.msk [vmem:[#allocation3 + $0x130] sm:$0x3] %vm4591, 0.0
  %4629 = vst.msk [vmem:[#allocation3 + $0x138] sm:$0xff] %vm4588, 0.0
  %4630 = vst.msk [vmem:[#allocation3 + $0x140] sm:$0xff] %vm4588, 0.0
  %4631 = vst.msk [vmem:[#allocation3 + $0x148] sm:$0x3] %vm4591, 0.0
  %4632 = vst.msk [vmem:[#allocation3 + $0x150] sm:$0xff] %vm4588, 0.0
  %4633 = vst.msk [vmem:[#allocation3 + $0x158] sm:$0xff] %vm4588, 0.0
  %4634 = vst.msk [vmem:[#allocation3 + $0x160] sm:$0x3] %vm4591, 0.0
  %4635 = vst.msk [vmem:[#allocation3 + $0x168] sm:$0xff] %vm4588, 0.0
  %4636 = vst.msk [vmem:[#allocation3 + $0x170] sm:$0xff] %vm4588, 0.0
  %4637 = vst.msk [vmem:[#allocation3 + $0x178] sm:$0x3] %vm4591, 0.0
  %4638 = vst.msk [vmem:[#allocation3 + $0x180] sm:$0xff] %vm4588, 0.0
  %4639 = vst.msk [vmem:[#allocation3 + $0x188] sm:$0xff] %vm4588, 0.0
  %4640 = vst.msk [vmem:[#allocation3 + $0x190] sm:$0x3] %vm4591, 0.0
  %4641 = vst.msk [vmem:[#allocation3 + $0x198] sm:$0xff] %vm4588, 0.0
  %4642 = vst.msk [vmem:[#allocation3 + $0x1a0] sm:$0xff] %vm4588, 0.0
  %4643 = vst.msk [vmem:[#allocation3 + $0x1a8] sm:$0x3] %vm4591, 0.0
  %4644 = vst.msk [vmem:[#allocation3 + $0x1b0] sm:$0xff] %vm4588, 0.0
  %4645 = vst.msk [vmem:[#allocation3 + $0x1b8] sm:$0xff] %vm4588, 0.0
  %4646 = vst.msk [vmem:[#allocation3 + $0x1c0] sm:$0x3] %vm4591, 0.0
  %4647 = vst.msk [vmem:[#allocation3 + $0x1c8] sm:$0xff] %vm4588, 0.0
  %4648 = vst.msk [vmem:[#allocation3 + $0x1d0] sm:$0xff] %vm4588, 0.0
  %4649 = vst.msk [vmem:[#allocation3 + $0x1d8] sm:$0x3] %vm4591, 0.0
  %4650 = vst.msk [vmem:[#allocation3 + $0x1e0] sm:$0xff] %vm4588, 0.0
  %4651 = vst.msk [vmem:[#allocation3 + $0x1e8] sm:$0xff] %vm4588, 0.0
  %4652 = vst.msk [vmem:[#allocation3 + $0x1f0] sm:$0x3] %vm4591, 0.0
  %4653 = vst.msk [vmem:[#allocation3 + $0x1f8] sm:$0xff] %vm4588, 0.0
  %4654 = vst.msk [vmem:[#allocation3 + $0x200] sm:$0xff] %vm4588, 0.0
  %4655 = vst.msk [vmem:[#allocation3 + $0x208] sm:$0x3] %vm4591, 0.0
  %4656 = vst.msk [vmem:[#allocation3 + $0x210] sm:$0xff] %vm4588, 0.0
  %4657 = vst.msk [vmem:[#allocation3 + $0x218] sm:$0xff] %vm4588, 0.0
  %4658 = vst.msk [vmem:[#allocation3 + $0x220] sm:$0x3] %vm4591, 0.0
  %4659 = vst.msk [vmem:[#allocation3 + $0x228] sm:$0xff] %vm4588, 0.0
  %4660 = vst.msk [vmem:[#allocation3 + $0x230] sm:$0xff] %vm4588, 0.0
  %4661 = vst.msk [vmem:[#allocation3 + $0x238] sm:$0x3] %vm4591, 0.0
  %4662 = vst.msk [vmem:[#allocation3 + $0x240] sm:$0xff] %vm4588, 0.0
  %4663 = vst.msk [vmem:[#allocation3 + $0x248] sm:$0xff] %vm4588, 0.0
  %4664 = vst.msk [vmem:[#allocation3 + $0x250] sm:$0x3] %vm4591, 0.0
  %4665 = vst.msk [vmem:[#allocation3 + $0x258] sm:$0xff] %vm4588, 0.0
  %4666 = vst.msk [vmem:[#allocation3 + $0x260] sm:$0xff] %vm4588, 0.0
  %4667 = vst.msk [vmem:[#allocation3 + $0x268] sm:$0x3] %vm4591, 0.0
  %4668 = vst.msk [vmem:[#allocation3 + $0x270] sm:$0xff] %vm4588, 0.0
  %4669 = vst.msk [vmem:[#allocation3 + $0x278] sm:$0xff] %vm4588, 0.0
  %4670 = vst.msk [vmem:[#allocation3 + $0x280] sm:$0x3] %vm4591, 0.0
  %4671 = vst.msk [vmem:[#allocation3 + $0x288] sm:$0xff] %vm4588, 0.0
  %4672 = vst.msk [vmem:[#allocation3 + $0x290] sm:$0xff] %vm4588, 0.0
  %4673 = vst.msk [vmem:[#allocation3 + $0x298] sm:$0x3] %vm4591, 0.0
  %4674 = vst.msk [vmem:[#allocation3 + $0x2a0] sm:$0xff] %vm4588, 0.0
  %4675 = vst.msk [vmem:[#allocation3 + $0x2a8] sm:$0xff] %vm4588, 0.0
  %4676 = vst.msk [vmem:[#allocation3 + $0x2b0] sm:$0x3] %vm4591, 0.0
  %4677 = vst.msk [vmem:[#allocation3 + $0x2b8] sm:$0xff] %vm4588, 0.0
  %4678 = vst.msk [vmem:[#allocation3 + $0x2c0] sm:$0xff] %vm4588, 0.0
  %4679 = vst.msk [vmem:[#allocation3 + $0x2c8] sm:$0x3] %vm4591, 0.0
  %4680 = vst.msk [vmem:[#allocation3 + $0x2d0] sm:$0xff] %vm4588, 0.0
  %4681 = vst.msk [vmem:[#allocation3 + $0x2d8] sm:$0xff] %vm4588, 0.0
  %4682 = vst.msk [vmem:[#allocation3 + $0x2e0] sm:$0x3] %vm4591, 0.0
  %4683 = vst.msk [vmem:[#allocation3 + $0x2e8] sm:$0xff] %vm4588, 0.0
  %4684 = vst.msk [vmem:[#allocation3 + $0x2f0] sm:$0xff] %vm4588, 0.0
  %4685 = vst.msk [vmem:[#allocation3 + $0x2f8] sm:$0x3] %vm4591, 0.0
  %4686 = vst.msk [vmem:[#allocation3 + $0x300] sm:$0xff] %vm4588, 0.0
  %4687 = vst.msk [vmem:[#allocation3 + $0x308] sm:$0xff] %vm4588, 0.0
  %4688 = vst.msk [vmem:[#allocation3 + $0x310] sm:$0x3] %vm4591, 0.0
  %4689 = vst.msk [vmem:[#allocation3 + $0x318] sm:$0xff] %vm4588, 0.0
  %4690 = vst.msk [vmem:[#allocation3 + $0x320] sm:$0xff] %vm4588, 0.0
  %4691 = vst.msk [vmem:[#allocation3 + $0x328] sm:$0x3] %vm4591, 0.0
  %4692 = vst.msk [vmem:[#allocation3 + $0x330] sm:$0xff] %vm4588, 0.0
  %4693 = vst.msk [vmem:[#allocation3 + $0x338] sm:$0xff] %vm4588, 0.0
  %4694 = vst.msk [vmem:[#allocation3 + $0x340] sm:$0x3] %vm4591, 0.0
  %4695 = vst.msk [vmem:[#allocation3 + $0x348] sm:$0xff] %vm4588, 0.0
  %4696 = vst.msk [vmem:[#allocation3 + $0x350] sm:$0xff] %vm4588, 0.0
  %4697 = vst.msk [vmem:[#allocation3 + $0x358] sm:$0x3] %vm4591, 0.0
  %s4698 = scalar_lea.vmem [#allocation3], 24
  %4699 = vst.msk [vmem:[%s4698 + $0x1] sm:$0xff] %vm4588, %v4524
  %4700 = vst.msk [vmem:[%s4698 + $0x9] sm:$0xff] %vm4588, %v4525
  %4701 = vst.msk [vmem:[%s4698 + $0x19] sm:$0xff] %vm4588, %v4526
  %4702 = vst.msk [vmem:[%s4698 + $0x21] sm:$0xff] %vm4588, %v4527
  %4703 = vst.msk [vmem:[%s4698 + $0x31] sm:$0xff] %vm4588, %v4528
  %4704 = vst.msk [vmem:[%s4698 + $0x39] sm:$0xff] %vm4588, %v4529
  %4705 = vst.msk [vmem:[%s4698 + $0x49] sm:$0xff] %vm4588, %v4530
  %4706 = vst.msk [vmem:[%s4698 + $0x51] sm:$0xff] %vm4588, %v4531
  %4707 = vst.msk [vmem:[%s4698 + $0x61] sm:$0xff] %vm4588, %v4532
  %4708 = vst.msk [vmem:[%s4698 + $0x69] sm:$0xff] %vm4588, %v4533
  %4709 = vst.msk [vmem:[%s4698 + $0x79] sm:$0xff] %vm4588, %v4534
  %4710 = vst.msk [vmem:[%s4698 + $0x81] sm:$0xff] %vm4588, %v4535
  %4711 = vst.msk [vmem:[%s4698 + $0x91] sm:$0xff] %vm4588, %v4536
  %4712 = vst.msk [vmem:[%s4698 + $0x99] sm:$0xff] %vm4588, %v4537
  %4713 = vst.msk [vmem:[%s4698 + $0xa9] sm:$0xff] %vm4588, %v4538
  %4714 = vst.msk [vmem:[%s4698 + $0xb1] sm:$0xff] %vm4588, %v4539
  %4715 = vst.msk [vmem:[%s4698 + $0xc1] sm:$0xff] %vm4588, %v4540
  %4716 = vst.msk [vmem:[%s4698 + $0xc9] sm:$0xff] %vm4588, %v4541
  %4717 = vst.msk [vmem:[%s4698 + $0xd9] sm:$0xff] %vm4588, %v4542
  %4718 = vst.msk [vmem:[%s4698 + $0xe1] sm:$0xff] %vm4588, %v4543
  %4719 = vst.msk [vmem:[%s4698 + $0xf1] sm:$0xff] %vm4588, %v4544
  %4720 = vst.msk [vmem:[%s4698 + $0xf9] sm:$0xff] %vm4588, %v4545
  %4721 = vst.msk [vmem:[%s4698 + $0x109] sm:$0xff] %vm4588, %v4546
  %4722 = vst.msk [vmem:[%s4698 + $0x111] sm:$0xff] %vm4588, %v4547
  %4723 = vst.msk [vmem:[%s4698 + $0x121] sm:$0xff] %vm4588, %v4548
  %4724 = vst.msk [vmem:[%s4698 + $0x129] sm:$0xff] %vm4588, %v4549
  %4725 = vst.msk [vmem:[%s4698 + $0x139] sm:$0xff] %vm4588, %v4550
  %4726 = vst.msk [vmem:[%s4698 + $0x141] sm:$0xff] %vm4588, %v4551
  %4727 = vst.msk [vmem:[%s4698 + $0x151] sm:$0xff] %vm4588, %v4552
  %4728 = vst.msk [vmem:[%s4698 + $0x159] sm:$0xff] %vm4588, %v4553
  %4729 = vst.msk [vmem:[%s4698 + $0x169] sm:$0xff] %vm4588, %v4554
  %4730 = vst.msk [vmem:[%s4698 + $0x171] sm:$0xff] %vm4588, %v4555
  %4731 = vst.msk [vmem:[%s4698 + $0x1b1] sm:$0xff] %vm4588, %v4556
  %4732 = vst.msk [vmem:[%s4698 + $0x1b9] sm:$0xff] %vm4588, %v4557
  %4733 = vst.msk [vmem:[%s4698 + $0x1c9] sm:$0xff] %vm4588, %v4558
  %4734 = vst.msk [vmem:[%s4698 + $0x1d1] sm:$0xff] %vm4588, %v4559
  %4735 = vst.msk [vmem:[%s4698 + $0x1e1] sm:$0xff] %vm4588, %v4560
  %4736 = vst.msk [vmem:[%s4698 + $0x1e9] sm:$0xff] %vm4588, %v4561
  %4737 = vst.msk [vmem:[%s4698 + $0x1f9] sm:$0xff] %vm4588, %v4562
  %4738 = vst.msk [vmem:[%s4698 + $0x201] sm:$0xff] %vm4588, %v4563
  %4739 = vst.msk [vmem:[%s4698 + $0x211] sm:$0xff] %vm4588, %v4564
  %4740 = vst.msk [vmem:[%s4698 + $0x219] sm:$0xff] %vm4588, %v4565
  %4741 = vst.msk [vmem:[%s4698 + $0x229] sm:$0xff] %vm4588, %v4566
  %4742 = vst.msk [vmem:[%s4698 + $0x231] sm:$0xff] %vm4588, %v4567
  %4743 = vst.msk [vmem:[%s4698 + $0x241] sm:$0xff] %vm4588, %v4568
  %4744 = vst.msk [vmem:[%s4698 + $0x249] sm:$0xff] %vm4588, %v4569
  %4745 = vst.msk [vmem:[%s4698 + $0x259] sm:$0xff] %vm4588, %v4570
  %4746 = vst.msk [vmem:[%s4698 + $0x261] sm:$0xff] %vm4588, %v4571
  %4747 = vst.msk [vmem:[%s4698 + $0x271] sm:$0xff] %vm4588, %v4572
  %4748 = vst.msk [vmem:[%s4698 + $0x279] sm:$0xff] %vm4588, %v4573
  %4749 = vst.msk [vmem:[%s4698 + $0x289] sm:$0xff] %vm4588, %v4574
  %4750 = vst.msk [vmem:[%s4698 + $0x291] sm:$0xff] %vm4588, %v4575
  %4751 = vst.msk [vmem:[%s4698 + $0x2a1] sm:$0xff] %vm4588, %v4576
  %4752 = vst.msk [vmem:[%s4698 + $0x2a9] sm:$0xff] %vm4588, %v4577
  %4753 = vst.msk [vmem:[%s4698 + $0x2b9] sm:$0xff] %vm4588, %v4578
  %4754 = vst.msk [vmem:[%s4698 + $0x2c1] sm:$0xff] %vm4588, %v4579
  %4755 = vst.msk [vmem:[%s4698 + $0x2d1] sm:$0xff] %vm4588, %v4580
  %4756 = vst.msk [vmem:[%s4698 + $0x2d9] sm:$0xff] %vm4588, %v4581
  %4757 = vst.msk [vmem:[%s4698 + $0x2e9] sm:$0xff] %vm4588, %v4582
  %4758 = vst.msk [vmem:[%s4698 + $0x2f1] sm:$0xff] %vm4588, %v4583
  %4759 = vst.msk [vmem:[%s4698 + $0x301] sm:$0xff] %vm4588, %v4584
  %4760 = vst.msk [vmem:[%s4698 + $0x309] sm:$0xff] %vm4588, %v4585
  %4761 = vst.msk [vmem:[%s4698 + $0x319] sm:$0xff] %vm4588, %v4586
  %4762 = vst.msk [vmem:[%s4698 + $0x321] sm:$0xff] %vm4588, %v4587
  %v4763 = vld [vmem:[#allocation3] sm:$0xff]
  %v4764 = vld [vmem:[#allocation3 + $0x8] sm:$0xff]
  %v4765 = vld [vmem:[#allocation3 + $0x18] sm:$0xff]
  %v4766 = vld [vmem:[#allocation3 + $0x20] sm:$0xff]
  %v4767 = vld [vmem:[#allocation3 + $0x30] sm:$0xff]
  %v4768 = vld [vmem:[#allocation3 + $0x38] sm:$0xff]
  %v4769 = vld [vmem:[#allocation3 + $0x48] sm:$0xff]
  %v4770 = vld [vmem:[#allocation3 + $0x50] sm:$0xff]
  %v4771 = vld [vmem:[#allocation3 + $0x60] sm:$0xff]
  %v4772 = vld [vmem:[#allocation3 + $0x68] sm:$0xff]
  %v4773 = vld [vmem:[#allocation3 + $0x78] sm:$0xff]
  %v4774 = vld [vmem:[#allocation3 + $0x80] sm:$0xff]
  %v4775 = vld [vmem:[#allocation3 + $0x90] sm:$0xff]
  %v4776 = vld [vmem:[#allocation3 + $0x98] sm:$0xff]
  %v4777 = vld [vmem:[#allocation3 + $0xa8] sm:$0xff]
  %v4778 = vld [vmem:[#allocation3 + $0xb0] sm:$0xff]
  %v4779 = vld [vmem:[#allocation3 + $0xc0] sm:$0xff]
  %v4780 = vld [vmem:[#allocation3 + $0xc8] sm:$0xff]
  %v4781 = vld [vmem:[#allocation3 + $0xd8] sm:$0xff]
  %v4782 = vld [vmem:[#allocation3 + $0xe0] sm:$0xff]
  %v4783 = vld [vmem:[#allocation3 + $0xf0] sm:$0xff]
  %v4784 = vld [vmem:[#allocation3 + $0xf8] sm:$0xff]
  %v4785 = vld [vmem:[#allocation3 + $0x108] sm:$0xff]
  %v4786 = vld [vmem:[#allocation3 + $0x110] sm:$0xff]
  %v4787 = vld [vmem:[#allocation3 + $0x120] sm:$0xff]
  %v4788 = vld [vmem:[#allocation3 + $0x128] sm:$0xff]
  %v4789 = vld [vmem:[#allocation3 + $0x138] sm:$0xff]
  %v4790 = vld [vmem:[#allocation3 + $0x140] sm:$0xff]
  %v4791 = vld [vmem:[#allocation3 + $0x150] sm:$0xff]
  %v4792 = vld [vmem:[#allocation3 + $0x158] sm:$0xff]
  %v4793 = vld [vmem:[#allocation3 + $0x168] sm:$0xff]
  %v4794 = vld [vmem:[#allocation3 + $0x170] sm:$0xff]
  %v4795 = vld [vmem:[#allocation3 + $0x1b0] sm:$0xff]
  %v4796 = vld [vmem:[#allocation3 + $0x1b8] sm:$0xff]
  %v4797 = vld [vmem:[#allocation3 + $0x1c8] sm:$0xff]
  %v4798 = vld [vmem:[#allocation3 + $0x1d0] sm:$0xff]
  %v4799 = vld [vmem:[#allocation3 + $0x1e0] sm:$0xff]
  %v4800 = vld [vmem:[#allocation3 + $0x1e8] sm:$0xff]
  %v4801 = vld [vmem:[#allocation3 + $0x1f8] sm:$0xff]
  %v4802 = vld [vmem:[#allocation3 + $0x200] sm:$0xff]
  %v4803 = vld [vmem:[#allocation3 + $0x210] sm:$0xff]
  %v4804 = vld [vmem:[#allocation3 + $0x218] sm:$0xff]
  %v4805 = vld [vmem:[#allocation3 + $0x228] sm:$0xff]
  %v4806 = vld [vmem:[#allocation3 + $0x230] sm:$0xff]
  %v4807 = vld [vmem:[#allocation3 + $0x240] sm:$0xff]
  %v4808 = vld [vmem:[#allocation3 + $0x248] sm:$0xff]
  %v4809 = vld [vmem:[#allocation3 + $0x258] sm:$0xff]
  %v4810 = vld [vmem:[#allocation3 + $0x260] sm:$0xff]
  %v4811 = vld [vmem:[#allocation3 + $0x270] sm:$0xff]
  %v4812 = vld [vmem:[#allocation3 + $0x278] sm:$0xff]
  %v4813 = vld [vmem:[#allocation3 + $0x288] sm:$0xff]
  %v4814 = vld [vmem:[#allocation3 + $0x290] sm:$0xff]
  %v4815 = vld [vmem:[#allocation3 + $0x2a0] sm:$0xff]
  %v4816 = vld [vmem:[#allocation3 + $0x2a8] sm:$0xff]
  %v4817 = vld [vmem:[#allocation3 + $0x2b8] sm:$0xff]
  %v4818 = vld [vmem:[#allocation3 + $0x2c0] sm:$0xff]
  %v4819 = vld [vmem:[#allocation3 + $0x2d0] sm:$0xff]
  %v4820 = vld [vmem:[#allocation3 + $0x2d8] sm:$0xff]
  %v4821 = vld [vmem:[#allocation3 + $0x2e8] sm:$0xff]
  %v4822 = vld [vmem:[#allocation3 + $0x2f0] sm:$0xff]
  %v4823 = vld [vmem:[#allocation3 + $0x300] sm:$0xff]
  %v4824 = vld [vmem:[#allocation3 + $0x308] sm:$0xff]
  %v4825 = vld [vmem:[#allocation3 + $0x318] sm:$0xff]
  %v4826 = vld [vmem:[#allocation3 + $0x320] sm:$0xff]
  %4827 = vst.msk [vmem:[#allocation5] sm:$0xff] %vm4588, %v4763
  %4828 = vst.msk [vmem:[#allocation5 + $0x8] sm:$0xff] %vm4588, %v4764
  %4829 = vst.msk [vmem:[#allocation5 + $0x10] sm:$0xff] %vm4588, %v4765
  %4830 = vst.msk [vmem:[#allocation5 + $0x18] sm:$0xff] %vm4588, %v4766
  %4831 = vst.msk [vmem:[#allocation5 + $0x20] sm:$0xff] %vm4588, %v4767
  %4832 = vst.msk [vmem:[#allocation5 + $0x28] sm:$0xff] %vm4588, %v4768
  %4833 = vst.msk [vmem:[#allocation5 + $0x30] sm:$0xff] %vm4588, %v4769
  %4834 = vst.msk [vmem:[#allocation5 + $0x38] sm:$0xff] %vm4588, %v4770
  %4835 = vst.msk [vmem:[#allocation5 + $0x40] sm:$0xff] %vm4588, %v4771
  %4836 = vst.msk [vmem:[#allocation5 + $0x48] sm:$0xff] %vm4588, %v4772
  %4837 = vst.msk [vmem:[#allocation5 + $0x50] sm:$0xff] %vm4588, %v4773
  %4838 = vst.msk [vmem:[#allocation5 + $0x58] sm:$0xff] %vm4588, %v4774
  %4839 = vst.msk [vmem:[#allocation5 + $0x60] sm:$0xff] %vm4588, %v4775
  %4840 = vst.msk [vmem:[#allocation5 + $0x68] sm:$0xff] %vm4588, %v4776
  %4841 = vst.msk [vmem:[#allocation5 + $0x70] sm:$0xff] %vm4588, %v4777
  %4842 = vst.msk [vmem:[#allocation5 + $0x78] sm:$0xff] %vm4588, %v4778
  %4843 = vst.msk [vmem:[#allocation5 + $0x80] sm:$0xff] %vm4588, %v4779
  %4844 = vst.msk [vmem:[#allocation5 + $0x88] sm:$0xff] %vm4588, %v4780
  %4845 = vst.msk [vmem:[#allocation5 + $0x90] sm:$0xff] %vm4588, %v4781
  %4846 = vst.msk [vmem:[#allocation5 + $0x98] sm:$0xff] %vm4588, %v4782
  %4847 = vst.msk [vmem:[#allocation5 + $0xa0] sm:$0xff] %vm4588, %v4783
  %4848 = vst.msk [vmem:[#allocation5 + $0xa8] sm:$0xff] %vm4588, %v4784
  %4849 = vst.msk [vmem:[#allocation5 + $0xb0] sm:$0xff] %vm4588, %v4785
  %4850 = vst.msk [vmem:[#allocation5 + $0xb8] sm:$0xff] %vm4588, %v4786
  %4851 = vst.msk [vmem:[#allocation5 + $0xc0] sm:$0xff] %vm4588, %v4787
  %4852 = vst.msk [vmem:[#allocation5 + $0xc8] sm:$0xff] %vm4588, %v4788
  %4853 = vst.msk [vmem:[#allocation5 + $0xd0] sm:$0xff] %vm4588, %v4789
  %4854 = vst.msk [vmem:[#allocation5 + $0xd8] sm:$0xff] %vm4588, %v4790
  %4855 = vst.msk [vmem:[#allocation5 + $0xe0] sm:$0xff] %vm4588, %v4791
  %4856 = vst.msk [vmem:[#allocation5 + $0xe8] sm:$0xff] %vm4588, %v4792
  %4857 = vst.msk [vmem:[#allocation5 + $0xf0] sm:$0xff] %vm4588, %v4793
  %4858 = vst.msk [vmem:[#allocation5 + $0xf8] sm:$0xff] %vm4588, %v4794
  %4859 = vst.msk [vmem:[#allocation5 + $0x100] sm:$0xff] %vm4588, %v4795
  %4860 = vst.msk [vmem:[#allocation5 + $0x108] sm:$0xff] %vm4588, %v4796
  %4861 = vst.msk [vmem:[#allocation5 + $0x110] sm:$0xff] %vm4588, %v4797
  %4862 = vst.msk [vmem:[#allocation5 + $0x118] sm:$0xff] %vm4588, %v4798
  %4863 = vst.msk [vmem:[#allocation5 + $0x120] sm:$0xff] %vm4588, %v4799
  %4864 = vst.msk [vmem:[#allocation5 + $0x128] sm:$0xff] %vm4588, %v4800
  %4865 = vst.msk [vmem:[#allocation5 + $0x130] sm:$0xff] %vm4588, %v4801
  %4866 = vst.msk [vmem:[#allocation5 + $0x138] sm:$0xff] %vm4588, %v4802
  %4867 = vst.msk [vmem:[#allocation5 + $0x140] sm:$0xff] %vm4588, %v4803
  %4868 = vst.msk [vmem:[#allocation5 + $0x148] sm:$0xff] %vm4588, %v4804
  %4869 = vst.msk [vmem:[#allocation5 + $0x150] sm:$0xff] %vm4588, %v4805
  %4870 = vst.msk [vmem:[#allocation5 + $0x158] sm:$0xff] %vm4588, %v4806
  %4871 = vst.msk [vmem:[#allocation5 + $0x160] sm:$0xff] %vm4588, %v4807
  %4872 = vst.msk [vmem:[#allocation5 + $0x168] sm:$0xff] %vm4588, %v4808
  %4873 = vst.msk [vmem:[#allocation5 + $0x170] sm:$0xff] %vm4588, %v4809
  %4874 = vst.msk [vmem:[#allocation5 + $0x178] sm:$0xff] %vm4588, %v4810
  %4875 = vst.msk [vmem:[#allocation5 + $0x180] sm:$0xff] %vm4588, %v4811
  %4876 = vst.msk [vmem:[#allocation5 + $0x188] sm:$0xff] %vm4588, %v4812
  %4877 = vst.msk [vmem:[#allocation5 + $0x190] sm:$0xff] %vm4588, %v4813
  %4878 = vst.msk [vmem:[#allocation5 + $0x198] sm:$0xff] %vm4588, %v4814
  %4879 = vst.msk [vmem:[#allocation5 + $0x1a0] sm:$0xff] %vm4588, %v4815
  %4880 = vst.msk [vmem:[#allocation5 + $0x1a8] sm:$0xff] %vm4588, %v4816
  %4881 = vst.msk [vmem:[#allocation5 + $0x1b0] sm:$0xff] %vm4588, %v4817
  %4882 = vst.msk [vmem:[#allocation5 + $0x1b8] sm:$0xff] %vm4588, %v4818
  %4883 = vst.msk [vmem:[#allocation5 + $0x1c0] sm:$0xff] %vm4588, %v4819
  %4884 = vst.msk [vmem:[#allocation5 + $0x1c8] sm:$0xff] %vm4588, %v4820
  %4885 = vst.msk [vmem:[#allocation5 + $0x1d0] sm:$0xff] %vm4588, %v4821
  %4886 = vst.msk [vmem:[#allocation5 + $0x1d8] sm:$0xff] %vm4588, %v4822
  %4887 = vst.msk [vmem:[#allocation5 + $0x1e0] sm:$0xff] %vm4588, %v4823
  %4888 = vst.msk [vmem:[#allocation5 + $0x1e8] sm:$0xff] %vm4588, %v4824
  %4889 = vst.msk [vmem:[#allocation5 + $0x1f0] sm:$0xff] %vm4588, %v4825
  %4890 = vst.msk [vmem:[#allocation5 + $0x1f8] sm:$0xff] %vm4588, %v4826
  %v4891 = vld [vmem:[#allocation3 + $0x1] sm:$0xff]
  %v4892 = vld [vmem:[#allocation3 + $0x9] sm:$0xff]
  %v4893 = vld [vmem:[#allocation3 + $0x19] sm:$0xff]
  %v4894 = vld [vmem:[#allocation3 + $0x21] sm:$0xff]
  %v4895 = vld [vmem:[#allocation3 + $0x31] sm:$0xff]
  %v4896 = vld [vmem:[#allocation3 + $0x39] sm:$0xff]
  %v4897 = vld [vmem:[#allocation3 + $0x49] sm:$0xff]
  %v4898 = vld [vmem:[#allocation3 + $0x51] sm:$0xff]
  %v4899 = vld [vmem:[#allocation3 + $0x61] sm:$0xff]
  %v4900 = vld [vmem:[#allocation3 + $0x69] sm:$0xff]
  %v4901 = vld [vmem:[#allocation3 + $0x79] sm:$0xff]
  %v4902 = vld [vmem:[#allocation3 + $0x81] sm:$0xff]
  %v4903 = vld [vmem:[#allocation3 + $0x91] sm:$0xff]
  %v4904 = vld [vmem:[#allocation3 + $0x99] sm:$0xff]
  %v4905 = vld [vmem:[#allocation3 + $0xa9] sm:$0xff]
  %v4906 = vld [vmem:[#allocation3 + $0xb1] sm:$0xff]
  %v4907 = vld [vmem:[#allocation3 + $0xc1] sm:$0xff]
  %v4908 = vld [vmem:[#allocation3 + $0xc9] sm:$0xff]
  %v4909 = vld [vmem:[#allocation3 + $0xd9] sm:$0xff]
  %v4910 = vld [vmem:[#allocation3 + $0xe1] sm:$0xff]
  %v4911 = vld [vmem:[#allocation3 + $0xf1] sm:$0xff]
  %v4912 = vld [vmem:[#allocation3 + $0xf9] sm:$0xff]
  %v4913 = vld [vmem:[#allocation3 + $0x109] sm:$0xff]
  %v4914 = vld [vmem:[#allocation3 + $0x111] sm:$0xff]
  %v4915 = vld [vmem:[#allocation3 + $0x121] sm:$0xff]
  %v4916 = vld [vmem:[#allocation3 + $0x129] sm:$0xff]
  %v4917 = vld [vmem:[#allocation3 + $0x139] sm:$0xff]
  %v4918 = vld [vmem:[#allocation3 + $0x141] sm:$0xff]
  %v4919 = vld [vmem:[#allocation3 + $0x151] sm:$0xff]
  %v4920 = vld [vmem:[#allocation3 + $0x159] sm:$0xff]
  %v4921 = vld [vmem:[#allocation3 + $0x169] sm:$0xff]
  %v4922 = vld [vmem:[#allocation3 + $0x171] sm:$0xff]
  %v4923 = vld [vmem:[#allocation3 + $0x1b1] sm:$0xff]
  %v4924 = vld [vmem:[#allocation3 + $0x1b9] sm:$0xff]
  %v4925 = vld [vmem:[#allocation3 + $0x1c9] sm:$0xff]
  %v4926 = vld [vmem:[#allocation3 + $0x1d1] sm:$0xff]
  %v4927 = vld [vmem:[#allocation3 + $0x1e1] sm:$0xff]
  %v4928 = vld [vmem:[#allocation3 + $0x1e9] sm:$0xff]
  %v4929 = vld [vmem:[#allocation3 + $0x1f9] sm:$0xff]
  %v4930 = vld [vmem:[#allocation3 + $0x201] sm:$0xff]
  %v4931 = vld [vmem:[#allocation3 + $0x211] sm:$0xff]
  %v4932 = vld [vmem:[#allocation3 + $0x219] sm:$0xff]
  %v4933 = vld [vmem:[#allocation3 + $0x229] sm:$0xff]
  %v4934 = vld [vmem:[#allocation3 + $0x231] sm:$0xff]
  %v4935 = vld [vmem:[#allocation3 + $0x241] sm:$0xff]
  %v4936 = vld [vmem:[#allocation3 + $0x249] sm:$0xff]
  %v4937 = vld [vmem:[#allocation3 + $0x259] sm:$0xff]
  %v4938 = vld [vmem:[#allocation3 + $0x261] sm:$0xff]
  %v4939 = vld [vmem:[#allocation3 + $0x271] sm:$0xff]
  %v4940 = vld [vmem:[#allocation3 + $0x279] sm:$0xff]
  %v4941 = vld [vmem:[#allocation3 + $0x289] sm:$0xff]
  %v4942 = vld [vmem:[#allocation3 + $0x291] sm:$0xff]
  %v4943 = vld [vmem:[#allocation3 + $0x2a1] sm:$0xff]
  %v4944 = vld [vmem:[#allocation3 + $0x2a9] sm:$0xff]
  %v4945 = vld [vmem:[#allocation3 + $0x2b9] sm:$0xff]
  %v4946 = vld [vmem:[#allocation3 + $0x2c1] sm:$0xff]
  %v4947 = vld [vmem:[#allocation3 + $0x2d1] sm:$0xff]
  %v4948 = vld [vmem:[#allocation3 + $0x2d9] sm:$0xff]
  %v4949 = vld [vmem:[#allocation3 + $0x2e9] sm:$0xff]
  %v4950 = vld [vmem:[#allocation3 + $0x2f1] sm:$0xff]
  %v4951 = vld [vmem:[#allocation3 + $0x301] sm:$0xff]
  %v4952 = vld [vmem:[#allocation3 + $0x309] sm:$0xff]
  %v4953 = vld [vmem:[#allocation3 + $0x319] sm:$0xff]
  %v4954 = vld [vmem:[#allocation3 + $0x321] sm:$0xff]
  %5019 = vrot.lane.b32.xlu0 %v4891, 8
  %v5020 = vpop.permute.xlu0 %5019
  %5021 = vrot.lane.b32.xlu0 %v4892, 8
  %v5022 = vpop.permute.xlu0 %5021
  %5023 = vrot.lane.b32.xlu0 %v4893, 8
  %v5024 = vpop.permute.xlu0 %5023
  %5025 = vrot.lane.b32.xlu0 %v4894, 8
  %v5026 = vpop.permute.xlu0 %5025
  %5027 = vrot.lane.b32.xlu0 %v4895, 8
  %v5028 = vpop.permute.xlu0 %5027
  %5029 = vrot.lane.b32.xlu0 %v4896, 8
  %v5030 = vpop.permute.xlu0 %5029
  %5031 = vrot.lane.b32.xlu0 %v4897, 8
  %v5032 = vpop.permute.xlu0 %5031
  %5033 = vrot.lane.b32.xlu0 %v4898, 8
  %v5034 = vpop.permute.xlu0 %5033
  %5035 = vrot.lane.b32.xlu0 %v4899, 8
  %v5036 = vpop.permute.xlu0 %5035
  %5037 = vrot.lane.b32.xlu0 %v4900, 8
  %v5038 = vpop.permute.xlu0 %5037
  %5039 = vrot.lane.b32.xlu0 %v4901, 8
  %v5040 = vpop.permute.xlu0 %5039
  %5041 = vrot.lane.b32.xlu0 %v4902, 8
  %v5042 = vpop.permute.xlu0 %5041
  %5043 = vrot.lane.b32.xlu0 %v4903, 8
  %v5044 = vpop.permute.xlu0 %5043
  %5045 = vrot.lane.b32.xlu0 %v4904, 8
  %v5046 = vpop.permute.xlu0 %5045
  %5047 = vrot.lane.b32.xlu0 %v4905, 8
  %v5048 = vpop.permute.xlu0 %5047
  %5049 = vrot.lane.b32.xlu0 %v4906, 8
  %v5050 = vpop.permute.xlu0 %5049
  %5051 = vrot.lane.b32.xlu0 %v4907, 8
  %v5052 = vpop.permute.xlu0 %5051
  %5053 = vrot.lane.b32.xlu0 %v4908, 8
  %v5054 = vpop.permute.xlu0 %5053
  %5055 = vrot.lane.b32.xlu0 %v4909, 8
  %v5056 = vpop.permute.xlu0 %5055
  %5057 = vrot.lane.b32.xlu0 %v4910, 8
  %v5058 = vpop.permute.xlu0 %5057
  %5059 = vrot.lane.b32.xlu0 %v4911, 8
  %v5060 = vpop.permute.xlu0 %5059
  %5061 = vrot.lane.b32.xlu0 %v4912, 8
  %v5062 = vpop.permute.xlu0 %5061
  %5063 = vrot.lane.b32.xlu0 %v4913, 8
  %v5064 = vpop.permute.xlu0 %5063
  %5065 = vrot.lane.b32.xlu0 %v4914, 8
  %v5066 = vpop.permute.xlu0 %5065
  %5067 = vrot.lane.b32.xlu0 %v4915, 8
  %v5068 = vpop.permute.xlu0 %5067
  %5069 = vrot.lane.b32.xlu0 %v4916, 8
  %v5070 = vpop.permute.xlu0 %5069
  %5071 = vrot.lane.b32.xlu0 %v4917, 8
  %v5072 = vpop.permute.xlu0 %5071
  %5073 = vrot.lane.b32.xlu0 %v4918, 8
  %v5074 = vpop.permute.xlu0 %5073
  %5075 = vrot.lane.b32.xlu0 %v4919, 8
  %v5076 = vpop.permute.xlu0 %5075
  %5077 = vrot.lane.b32.xlu0 %v4920, 8
  %v5078 = vpop.permute.xlu0 %5077
  %5079 = vrot.lane.b32.xlu0 %v4921, 8
  %v5080 = vpop.permute.xlu0 %5079
  %5081 = vrot.lane.b32.xlu0 %v4922, 8
  %v5082 = vpop.permute.xlu0 %5081
  %5083 = vrot.lane.b32.xlu0 %v4923, 8
  %v5084 = vpop.permute.xlu0 %5083
  %5085 = vrot.lane.b32.xlu0 %v4924, 8
  %v5086 = vpop.permute.xlu0 %5085
  %5087 = vrot.lane.b32.xlu0 %v4925, 8
  %v5088 = vpop.permute.xlu0 %5087
  %5089 = vrot.lane.b32.xlu0 %v4926, 8
  %v5090 = vpop.permute.xlu0 %5089
  %5091 = vrot.lane.b32.xlu0 %v4927, 8
  %v5092 = vpop.permute.xlu0 %5091
  %5093 = vrot.lane.b32.xlu0 %v4928, 8
  %v5094 = vpop.permute.xlu0 %5093
  %5095 = vrot.lane.b32.xlu0 %v4929, 8
  %v5096 = vpop.permute.xlu0 %5095
  %5097 = vrot.lane.b32.xlu0 %v4930, 8
  %v5098 = vpop.permute.xlu0 %5097
  %5099 = vrot.lane.b32.xlu0 %v4931, 8
  %v5100 = vpop.permute.xlu0 %5099
  %5101 = vrot.lane.b32.xlu0 %v4932, 8
  %v5102 = vpop.permute.xlu0 %5101
  %5103 = vrot.lane.b32.xlu0 %v4933, 8
  %v5104 = vpop.permute.xlu0 %5103
  %5105 = vrot.lane.b32.xlu0 %v4934, 8
  %v5106 = vpop.permute.xlu0 %5105
  %5107 = vrot.lane.b32.xlu0 %v4935, 8
  %v5108 = vpop.permute.xlu0 %5107
  %5109 = vrot.lane.b32.xlu0 %v4936, 8
  %v5110 = vpop.permute.xlu0 %5109
  %5111 = vrot.lane.b32.xlu0 %v4937, 8
  %v5112 = vpop.permute.xlu0 %5111
  %5113 = vrot.lane.b32.xlu0 %v4938, 8
  %v5114 = vpop.permute.xlu0 %5113
  %5115 = vrot.lane.b32.xlu0 %v4939, 8
  %v5116 = vpop.permute.xlu0 %5115
  %5117 = vrot.lane.b32.xlu0 %v4940, 8
  %v5118 = vpop.permute.xlu0 %5117
  %5119 = vrot.lane.b32.xlu0 %v4941, 8
  %v5120 = vpop.permute.xlu0 %5119
  %5121 = vrot.lane.b32.xlu0 %v4942, 8
  %v5122 = vpop.permute.xlu0 %5121
  %5123 = vrot.lane.b32.xlu0 %v4943, 8
  %v5124 = vpop.permute.xlu0 %5123
  %5125 = vrot.lane.b32.xlu0 %v4944, 8
  %v5126 = vpop.permute.xlu0 %5125
  %5127 = vrot.lane.b32.xlu0 %v4945, 8
  %v5128 = vpop.permute.xlu0 %5127
  %5129 = vrot.lane.b32.xlu0 %v4946, 8
  %v5130 = vpop.permute.xlu0 %5129
  %5131 = vrot.lane.b32.xlu0 %v4947, 8
  %v5132 = vpop.permute.xlu0 %5131
  %5133 = vrot.lane.b32.xlu0 %v4948, 8
  %v5134 = vpop.permute.xlu0 %5133
  %5135 = vrot.lane.b32.xlu0 %v4949, 8
  %v5136 = vpop.permute.xlu0 %5135
  %5137 = vrot.lane.b32.xlu0 %v4950, 8
  %v5138 = vpop.permute.xlu0 %5137
  %5139 = vrot.lane.b32.xlu0 %v4951, 8
  %v5140 = vpop.permute.xlu0 %5139
  %5141 = vrot.lane.b32.xlu0 %v4952, 8
  %v5142 = vpop.permute.xlu0 %5141
  %5143 = vrot.lane.b32.xlu0 %v4953, 8
  %v5144 = vpop.permute.xlu0 %5143
  %5145 = vrot.lane.b32.xlu0 %v4954, 8
  %v5146 = vpop.permute.xlu0 %5145
  %vm5211 = vcmask 130112
  %5212 = vst.msk [vmem:[#allocation5] sm:$0xff] %vm5211, %v5020
  %5213 = vst.msk [vmem:[#allocation5 + $0x8] sm:$0xff] %vm5211, %v5022
  %5214 = vst.msk [vmem:[#allocation5 + $0x10] sm:$0xff] %vm5211, %v5024
  %5215 = vst.msk [vmem:[#allocation5 + $0x18] sm:$0xff] %vm5211, %v5026
  %5216 = vst.msk [vmem:[#allocation5 + $0x20] sm:$0xff] %vm5211, %v5028
  %5217 = vst.msk [vmem:[#allocation5 + $0x28] sm:$0xff] %vm5211, %v5030
  %5218 = vst.msk [vmem:[#allocation5 + $0x30] sm:$0xff] %vm5211, %v5032
  %5219 = vst.msk [vmem:[#allocation5 + $0x38] sm:$0xff] %vm5211, %v5034
  %5220 = vst.msk [vmem:[#allocation5 + $0x40] sm:$0xff] %vm5211, %v5036
  %5221 = vst.msk [vmem:[#allocation5 + $0x48] sm:$0xff] %vm5211, %v5038
  %5222 = vst.msk [vmem:[#allocation5 + $0x50] sm:$0xff] %vm5211, %v5040
  %5223 = vst.msk [vmem:[#allocation5 + $0x58] sm:$0xff] %vm5211, %v5042
  %5224 = vst.msk [vmem:[#allocation5 + $0x60] sm:$0xff] %vm5211, %v5044
  %5225 = vst.msk [vmem:[#allocation5 + $0x68] sm:$0xff] %vm5211, %v5046
  %5226 = vst.msk [vmem:[#allocation5 + $0x70] sm:$0xff] %vm5211, %v5048
  %5227 = vst.msk [vmem:[#allocation5 + $0x78] sm:$0xff] %vm5211, %v5050
  %5228 = vst.msk [vmem:[#allocation5 + $0x80] sm:$0xff] %vm5211, %v5052
  %5229 = vst.msk [vmem:[#allocation5 + $0x88] sm:$0xff] %vm5211, %v5054
  %5230 = vst.msk [vmem:[#allocation5 + $0x90] sm:$0xff] %vm5211, %v5056
  %5231 = vst.msk [vmem:[#allocation5 + $0x98] sm:$0xff] %vm5211, %v5058
  %5232 = vst.msk [vmem:[#allocation5 + $0xa0] sm:$0xff] %vm5211, %v5060
  %5233 = vst.msk [vmem:[#allocation5 + $0xa8] sm:$0xff] %vm5211, %v5062
  %5234 = vst.msk [vmem:[#allocation5 + $0xb0] sm:$0xff] %vm5211, %v5064
  %5235 = vst.msk [vmem:[#allocation5 + $0xb8] sm:$0xff] %vm5211, %v5066
  %5236 = vst.msk [vmem:[#allocation5 + $0xc0] sm:$0xff] %vm5211, %v5068
  %5237 = vst.msk [vmem:[#allocation5 + $0xc8] sm:$0xff] %vm5211, %v5070
  %5238 = vst.msk [vmem:[#allocation5 + $0xd0] sm:$0xff] %vm5211, %v5072
  %5239 = vst.msk [vmem:[#allocation5 + $0xd8] sm:$0xff] %vm5211, %v5074
  %5240 = vst.msk [vmem:[#allocation5 + $0xe0] sm:$0xff] %vm5211, %v5076
  %5241 = vst.msk [vmem:[#allocation5 + $0xe8] sm:$0xff] %vm5211, %v5078
  %5242 = vst.msk [vmem:[#allocation5 + $0xf0] sm:$0xff] %vm5211, %v5080
  %5243 = vst.msk [vmem:[#allocation5 + $0xf8] sm:$0xff] %vm5211, %v5082
  %5244 = vst.msk [vmem:[#allocation5 + $0x100] sm:$0xff] %vm5211, %v5084
  %5245 = vst.msk [vmem:[#allocation5 + $0x108] sm:$0xff] %vm5211, %v5086
  %5246 = vst.msk [vmem:[#allocation5 + $0x110] sm:$0xff] %vm5211, %v5088
  %5247 = vst.msk [vmem:[#allocation5 + $0x118] sm:$0xff] %vm5211, %v5090
  %5248 = vst.msk [vmem:[#allocation5 + $0x120] sm:$0xff] %vm5211, %v5092
  %5249 = vst.msk [vmem:[#allocation5 + $0x128] sm:$0xff] %vm5211, %v5094
  %5250 = vst.msk [vmem:[#allocation5 + $0x130] sm:$0xff] %vm5211, %v5096
  %5251 = vst.msk [vmem:[#allocation5 + $0x138] sm:$0xff] %vm5211, %v5098
  %5252 = vst.msk [vmem:[#allocation5 + $0x140] sm:$0xff] %vm5211, %v5100
  %5253 = vst.msk [vmem:[#allocation5 + $0x148] sm:$0xff] %vm5211, %v5102
  %5254 = vst.msk [vmem:[#allocation5 + $0x150] sm:$0xff] %vm5211, %v5104
  %5255 = vst.msk [vmem:[#allocation5 + $0x158] sm:$0xff] %vm5211, %v5106
  %5256 = vst.msk [vmem:[#allocation5 + $0x160] sm:$0xff] %vm5211, %v5108
  %5257 = vst.msk [vmem:[#allocation5 + $0x168] sm:$0xff] %vm5211, %v5110
  %5258 = vst.msk [vmem:[#allocation5 + $0x170] sm:$0xff] %vm5211, %v5112
  %5259 = vst.msk [vmem:[#allocation5 + $0x178] sm:$0xff] %vm5211, %v5114
  %5260 = vst.msk [vmem:[#allocation5 + $0x180] sm:$0xff] %vm5211, %v5116
  %5261 = vst.msk [vmem:[#allocation5 + $0x188] sm:$0xff] %vm5211, %v5118
  %5262 = vst.msk [vmem:[#allocation5 + $0x190] sm:$0xff] %vm5211, %v5120
  %5263 = vst.msk [vmem:[#allocation5 + $0x198] sm:$0xff] %vm5211, %v5122
  %5264 = vst.msk [vmem:[#allocation5 + $0x1a0] sm:$0xff] %vm5211, %v5124
  %5265 = vst.msk [vmem:[#allocation5 + $0x1a8] sm:$0xff] %vm5211, %v5126
  %5266 = vst.msk [vmem:[#allocation5 + $0x1b0] sm:$0xff] %vm5211, %v5128
  %5267 = vst.msk [vmem:[#allocation5 + $0x1b8] sm:$0xff] %vm5211, %v5130
  %5268 = vst.msk [vmem:[#allocation5 + $0x1c0] sm:$0xff] %vm5211, %v5132
  %5269 = vst.msk [vmem:[#allocation5 + $0x1c8] sm:$0xff] %vm5211, %v5134
  %5270 = vst.msk [vmem:[#allocation5 + $0x1d0] sm:$0xff] %vm5211, %v5136
  %5271 = vst.msk [vmem:[#allocation5 + $0x1d8] sm:$0xff] %vm5211, %v5138
  %5272 = vst.msk [vmem:[#allocation5 + $0x1e0] sm:$0xff] %vm5211, %v5140
  %5273 = vst.msk [vmem:[#allocation5 + $0x1e8] sm:$0xff] %vm5211, %v5142
  %5274 = vst.msk [vmem:[#allocation5 + $0x1f0] sm:$0xff] %vm5211, %v5144
  %5275 = vst.msk [vmem:[#allocation5 + $0x1f8] sm:$0xff] %vm5211, %v5146
  %v5276 = vld [vmem:[#allocation3 + $0x2] sm:$0xff]
  %v5277 = vld [vmem:[#allocation3 + $0xa] sm:$0xff]
  %v5278 = vld [vmem:[#allocation3 + $0x1a] sm:$0xff]
  %v5279 = vld [vmem:[#allocation3 + $0x22] sm:$0xff]
  %v5280 = vld [vmem:[#allocation3 + $0x32] sm:$0xff]
  %v5281 = vld [vmem:[#allocation3 + $0x3a] sm:$0xff]
  %v5282 = vld [vmem:[#allocation3 + $0x4a] sm:$0xff]
  %v5283 = vld [vmem:[#allocation3 + $0x52] sm:$0xff]
  %v5284 = vld [vmem:[#allocation3 + $0x62] sm:$0xff]
  %v5285 = vld [vmem:[#allocation3 + $0x6a] sm:$0xff]
  %v5286 = vld [vmem:[#allocation3 + $0x7a] sm:$0xff]
  %v5287 = vld [vmem:[#allocation3 + $0x82] sm:$0xff]
  %v5288 = vld [vmem:[#allocation3 + $0x92] sm:$0xff]
  %v5289 = vld [vmem:[#allocation3 + $0x9a] sm:$0xff]
  %v5290 = vld [vmem:[#allocation3 + $0xaa] sm:$0xff]
  %v5291 = vld [vmem:[#allocation3 + $0xb2] sm:$0xff]
  %v5292 = vld [vmem:[#allocation3 + $0xc2] sm:$0xff]
  %v5293 = vld [vmem:[#allocation3 + $0xca] sm:$0xff]
  %v5294 = vld [vmem:[#allocation3 + $0xda] sm:$0xff]
  %v5295 = vld [vmem:[#allocation3 + $0xe2] sm:$0xff]
  %v5296 = vld [vmem:[#allocation3 + $0xf2] sm:$0xff]
  %v5297 = vld [vmem:[#allocation3 + $0xfa] sm:$0xff]
  %v5298 = vld [vmem:[#allocation3 + $0x10a] sm:$0xff]
  %v5299 = vld [vmem:[#allocation3 + $0x112] sm:$0xff]
  %v5300 = vld [vmem:[#allocation3 + $0x122] sm:$0xff]
  %v5301 = vld [vmem:[#allocation3 + $0x12a] sm:$0xff]
  %v5302 = vld [vmem:[#allocation3 + $0x13a] sm:$0xff]
  %v5303 = vld [vmem:[#allocation3 + $0x142] sm:$0xff]
  %v5304 = vld [vmem:[#allocation3 + $0x152] sm:$0xff]
  %v5305 = vld [vmem:[#allocation3 + $0x15a] sm:$0xff]
  %v5306 = vld [vmem:[#allocation3 + $0x16a] sm:$0xff]
  %v5307 = vld [vmem:[#allocation3 + $0x172] sm:$0xff]
  %v5308 = vld [vmem:[#allocation3 + $0x1b2] sm:$0xff]
  %v5309 = vld [vmem:[#allocation3 + $0x1ba] sm:$0xff]
  %v5310 = vld [vmem:[#allocation3 + $0x1ca] sm:$0xff]
  %v5311 = vld [vmem:[#allocation3 + $0x1d2] sm:$0xff]
  %v5312 = vld [vmem:[#allocation3 + $0x1e2] sm:$0xff]
  %v5313 = vld [vmem:[#allocation3 + $0x1ea] sm:$0xff]
  %v5314 = vld [vmem:[#allocation3 + $0x1fa] sm:$0xff]
  %v5315 = vld [vmem:[#allocation3 + $0x202] sm:$0xff]
  %v5316 = vld [vmem:[#allocation3 + $0x212] sm:$0xff]
  %v5317 = vld [vmem:[#allocation3 + $0x21a] sm:$0xff]
  %v5318 = vld [vmem:[#allocation3 + $0x22a] sm:$0xff]
  %v5319 = vld [vmem:[#allocation3 + $0x232] sm:$0xff]
  %v5320 = vld [vmem:[#allocation3 + $0x242] sm:$0xff]
  %v5321 = vld [vmem:[#allocation3 + $0x24a] sm:$0xff]
  %v5322 = vld [vmem:[#allocation3 + $0x25a] sm:$0xff]
  %v5323 = vld [vmem:[#allocation3 + $0x262] sm:$0xff]
  %v5324 = vld [vmem:[#allocation3 + $0x272] sm:$0xff]
  %v5325 = vld [vmem:[#allocation3 + $0x27a] sm:$0xff]
  %v5326 = vld [vmem:[#allocation3 + $0x28a] sm:$0xff]
  %v5327 = vld [vmem:[#allocation3 + $0x292] sm:$0xff]
  %v5328 = vld [vmem:[#allocation3 + $0x2a2] sm:$0xff]
  %v5329 = vld [vmem:[#allocation3 + $0x2aa] sm:$0xff]
  %v5330 = vld [vmem:[#allocation3 + $0x2ba] sm:$0xff]
  %v5331 = vld [vmem:[#allocation3 + $0x2c2] sm:$0xff]
  %v5332 = vld [vmem:[#allocation3 + $0x2d2] sm:$0xff]
  %v5333 = vld [vmem:[#allocation3 + $0x2da] sm:$0xff]
  %v5334 = vld [vmem:[#allocation3 + $0x2ea] sm:$0xff]
  %v5335 = vld [vmem:[#allocation3 + $0x2f2] sm:$0xff]
  %v5336 = vld [vmem:[#allocation3 + $0x302] sm:$0xff]
  %v5337 = vld [vmem:[#allocation3 + $0x30a] sm:$0xff]
  %v5338 = vld [vmem:[#allocation3 + $0x31a] sm:$0xff]
  %v5339 = vld [vmem:[#allocation3 + $0x322] sm:$0xff]
  %5404 = vrot.lane.b32.xlu0 %v5276, 16
  %v5405 = vpop.permute.xlu0 %5404
  %5406 = vrot.lane.b32.xlu0 %v5277, 16
  %v5407 = vpop.permute.xlu0 %5406
  %5408 = vrot.lane.b32.xlu0 %v5278, 16
  %v5409 = vpop.permute.xlu0 %5408
  %5410 = vrot.lane.b32.xlu0 %v5279, 16
  %v5411 = vpop.permute.xlu0 %5410
  %5412 = vrot.lane.b32.xlu0 %v5280, 16
  %v5413 = vpop.permute.xlu0 %5412
  %5414 = vrot.lane.b32.xlu0 %v5281, 16
  %v5415 = vpop.permute.xlu0 %5414
  %5416 = vrot.lane.b32.xlu0 %v5282, 16
  %v5417 = vpop.permute.xlu0 %5416
  %5418 = vrot.lane.b32.xlu0 %v5283, 16
  %v5419 = vpop.permute.xlu0 %5418
  %5420 = vrot.lane.b32.xlu0 %v5284, 16
  %v5421 = vpop.permute.xlu0 %5420
  %5422 = vrot.lane.b32.xlu0 %v5285, 16
  %v5423 = vpop.permute.xlu0 %5422
  %5424 = vrot.lane.b32.xlu0 %v5286, 16
  %v5425 = vpop.permute.xlu0 %5424
  %5426 = vrot.lane.b32.xlu0 %v5287, 16
  %v5427 = vpop.permute.xlu0 %5426
  %5428 = vrot.lane.b32.xlu0 %v5288, 16
  %v5429 = vpop.permute.xlu0 %5428
  %5430 = vrot.lane.b32.xlu0 %v5289, 16
  %v5431 = vpop.permute.xlu0 %5430
  %5432 = vrot.lane.b32.xlu0 %v5290, 16
  %v5433 = vpop.permute.xlu0 %5432
  %5434 = vrot.lane.b32.xlu0 %v5291, 16
  %v5435 = vpop.permute.xlu0 %5434
  %5436 = vrot.lane.b32.xlu0 %v5292, 16
  %v5437 = vpop.permute.xlu0 %5436
  %5438 = vrot.lane.b32.xlu0 %v5293, 16
  %v5439 = vpop.permute.xlu0 %5438
  %5440 = vrot.lane.b32.xlu0 %v5294, 16
  %v5441 = vpop.permute.xlu0 %5440
  %5442 = vrot.lane.b32.xlu0 %v5295, 16
  %v5443 = vpop.permute.xlu0 %5442
  %5444 = vrot.lane.b32.xlu0 %v5296, 16
  %v5445 = vpop.permute.xlu0 %5444
  %5446 = vrot.lane.b32.xlu0 %v5297, 16
  %v5447 = vpop.permute.xlu0 %5446
  %5448 = vrot.lane.b32.xlu0 %v5298, 16
  %v5449 = vpop.permute.xlu0 %5448
  %5450 = vrot.lane.b32.xlu0 %v5299, 16
  %v5451 = vpop.permute.xlu0 %5450
  %5452 = vrot.lane.b32.xlu0 %v5300, 16
  %v5453 = vpop.permute.xlu0 %5452
  %5454 = vrot.lane.b32.xlu0 %v5301, 16
  %v5455 = vpop.permute.xlu0 %5454
  %5456 = vrot.lane.b32.xlu0 %v5302, 16
  %v5457 = vpop.permute.xlu0 %5456
  %5458 = vrot.lane.b32.xlu0 %v5303, 16
  %v5459 = vpop.permute.xlu0 %5458
  %5460 = vrot.lane.b32.xlu0 %v5304, 16
  %v5461 = vpop.permute.xlu0 %5460
  %5462 = vrot.lane.b32.xlu0 %v5305, 16
  %v5463 = vpop.permute.xlu0 %5462
  %5464 = vrot.lane.b32.xlu0 %v5306, 16
  %v5465 = vpop.permute.xlu0 %5464
  %5466 = vrot.lane.b32.xlu0 %v5307, 16
  %v5467 = vpop.permute.xlu0 %5466
  %5468 = vrot.lane.b32.xlu0 %v5308, 16
  %v5469 = vpop.permute.xlu0 %5468
  %5470 = vrot.lane.b32.xlu0 %v5309, 16
  %v5471 = vpop.permute.xlu0 %5470
  %5472 = vrot.lane.b32.xlu0 %v5310, 16
  %v5473 = vpop.permute.xlu0 %5472
  %5474 = vrot.lane.b32.xlu0 %v5311, 16
  %v5475 = vpop.permute.xlu0 %5474
  %5476 = vrot.lane.b32.xlu0 %v5312, 16
  %v5477 = vpop.permute.xlu0 %5476
  %5478 = vrot.lane.b32.xlu0 %v5313, 16
  %v5479 = vpop.permute.xlu0 %5478
  %5480 = vrot.lane.b32.xlu0 %v5314, 16
  %v5481 = vpop.permute.xlu0 %5480
  %5482 = vrot.lane.b32.xlu0 %v5315, 16
  %v5483 = vpop.permute.xlu0 %5482
  %5484 = vrot.lane.b32.xlu0 %v5316, 16
  %v5485 = vpop.permute.xlu0 %5484
  %5486 = vrot.lane.b32.xlu0 %v5317, 16
  %v5487 = vpop.permute.xlu0 %5486
  %5488 = vrot.lane.b32.xlu0 %v5318, 16
  %v5489 = vpop.permute.xlu0 %5488
  %5490 = vrot.lane.b32.xlu0 %v5319, 16
  %v5491 = vpop.permute.xlu0 %5490
  %5492 = vrot.lane.b32.xlu0 %v5320, 16
  %v5493 = vpop.permute.xlu0 %5492
  %5494 = vrot.lane.b32.xlu0 %v5321, 16
  %v5495 = vpop.permute.xlu0 %5494
  %5496 = vrot.lane.b32.xlu0 %v5322, 16
  %v5497 = vpop.permute.xlu0 %5496
  %5498 = vrot.lane.b32.xlu0 %v5323, 16
  %v5499 = vpop.permute.xlu0 %5498
  %5500 = vrot.lane.b32.xlu0 %v5324, 16
  %v5501 = vpop.permute.xlu0 %5500
  %5502 = vrot.lane.b32.xlu0 %v5325, 16
  %v5503 = vpop.permute.xlu0 %5502
  %5504 = vrot.lane.b32.xlu0 %v5326, 16
  %v5505 = vpop.permute.xlu0 %5504
  %5506 = vrot.lane.b32.xlu0 %v5327, 16
  %v5507 = vpop.permute.xlu0 %5506
  %5508 = vrot.lane.b32.xlu0 %v5328, 16
  %v5509 = vpop.permute.xlu0 %5508
  %5510 = vrot.lane.b32.xlu0 %v5329, 16
  %v5511 = vpop.permute.xlu0 %5510
  %5512 = vrot.lane.b32.xlu0 %v5330, 16
  %v5513 = vpop.permute.xlu0 %5512
  %5514 = vrot.lane.b32.xlu0 %v5331, 16
  %v5515 = vpop.permute.xlu0 %5514
  %5516 = vrot.lane.b32.xlu0 %v5332, 16
  %v5517 = vpop.permute.xlu0 %5516
  %5518 = vrot.lane.b32.xlu0 %v5333, 16
  %v5519 = vpop.permute.xlu0 %5518
  %5520 = vrot.lane.b32.xlu0 %v5334, 16
  %v5521 = vpop.permute.xlu0 %5520
  %5522 = vrot.lane.b32.xlu0 %v5335, 16
  %v5523 = vpop.permute.xlu0 %5522
  %5524 = vrot.lane.b32.xlu0 %v5336, 16
  %v5525 = vpop.permute.xlu0 %5524
  %5526 = vrot.lane.b32.xlu0 %v5337, 16
  %v5527 = vpop.permute.xlu0 %5526
  %5528 = vrot.lane.b32.xlu0 %v5338, 16
  %v5529 = vpop.permute.xlu0 %5528
  %5530 = vrot.lane.b32.xlu0 %v5339, 16
  %v5531 = vpop.permute.xlu0 %5530
  %vm5596 = vcmask 195712
  %5597 = vst.msk [vmem:[#allocation5] sm:$0xff] %vm5596, %v5405
  %5598 = vst.msk [vmem:[#allocation5 + $0x8] sm:$0xff] %vm5596, %v5407
  %5599 = vst.msk [vmem:[#allocation5 + $0x10] sm:$0xff] %vm5596, %v5409
  %5600 = vst.msk [vmem:[#allocation5 + $0x18] sm:$0xff] %vm5596, %v5411
  %5601 = vst.msk [vmem:[#allocation5 + $0x20] sm:$0xff] %vm5596, %v5413
  %5602 = vst.msk [vmem:[#allocation5 + $0x28] sm:$0xff] %vm5596, %v5415
  %5603 = vst.msk [vmem:[#allocation5 + $0x30] sm:$0xff] %vm5596, %v5417
  %5604 = vst.msk [vmem:[#allocation5 + $0x38] sm:$0xff] %vm5596, %v5419
  %5605 = vst.msk [vmem:[#allocation5 + $0x40] sm:$0xff] %vm5596, %v5421
  %5606 = vst.msk [vmem:[#allocation5 + $0x48] sm:$0xff] %vm5596, %v5423
  %5607 = vst.msk [vmem:[#allocation5 + $0x50] sm:$0xff] %vm5596, %v5425
  %5608 = vst.msk [vmem:[#allocation5 + $0x58] sm:$0xff] %vm5596, %v5427
  %5609 = vst.msk [vmem:[#allocation5 + $0x60] sm:$0xff] %vm5596, %v5429
  %5610 = vst.msk [vmem:[#allocation5 + $0x68] sm:$0xff] %vm5596, %v5431
  %5611 = vst.msk [vmem:[#allocation5 + $0x70] sm:$0xff] %vm5596, %v5433
  %5612 = vst.msk [vmem:[#allocation5 + $0x78] sm:$0xff] %vm5596, %v5435
  %5613 = vst.msk [vmem:[#allocation5 + $0x80] sm:$0xff] %vm5596, %v5437
  %5614 = vst.msk [vmem:[#allocation5 + $0x88] sm:$0xff] %vm5596, %v5439
  %5615 = vst.msk [vmem:[#allocation5 + $0x90] sm:$0xff] %vm5596, %v5441
  %5616 = vst.msk [vmem:[#allocation5 + $0x98] sm:$0xff] %vm5596, %v5443
  %5617 = vst.msk [vmem:[#allocation5 + $0xa0] sm:$0xff] %vm5596, %v5445
  %5618 = vst.msk [vmem:[#allocation5 + $0xa8] sm:$0xff] %vm5596, %v5447
  %5619 = vst.msk [vmem:[#allocation5 + $0xb0] sm:$0xff] %vm5596, %v5449
  %5620 = vst.msk [vmem:[#allocation5 + $0xb8] sm:$0xff] %vm5596, %v5451
  %5621 = vst.msk [vmem:[#allocation5 + $0xc0] sm:$0xff] %vm5596, %v5453
  %5622 = vst.msk [vmem:[#allocation5 + $0xc8] sm:$0xff] %vm5596, %v5455
  %5623 = vst.msk [vmem:[#allocation5 + $0xd0] sm:$0xff] %vm5596, %v5457
  %5624 = vst.msk [vmem:[#allocation5 + $0xd8] sm:$0xff] %vm5596, %v5459
  %5625 = vst.msk [vmem:[#allocation5 + $0xe0] sm:$0xff] %vm5596, %v5461
  %5626 = vst.msk [vmem:[#allocation5 + $0xe8] sm:$0xff] %vm5596, %v5463
  %5627 = vst.msk [vmem:[#allocation5 + $0xf0] sm:$0xff] %vm5596, %v5465
  %5628 = vst.msk [vmem:[#allocation5 + $0xf8] sm:$0xff] %vm5596, %v5467
  %5629 = vst.msk [vmem:[#allocation5 + $0x100] sm:$0xff] %vm5596, %v5469
  %5630 = vst.msk [vmem:[#allocation5 + $0x108] sm:$0xff] %vm5596, %v5471
  %5631 = vst.msk [vmem:[#allocation5 + $0x110] sm:$0xff] %vm5596, %v5473
  %5632 = vst.msk [vmem:[#allocation5 + $0x118] sm:$0xff] %vm5596, %v5475
  %5633 = vst.msk [vmem:[#allocation5 + $0x120] sm:$0xff] %vm5596, %v5477
  %5634 = vst.msk [vmem:[#allocation5 + $0x128] sm:$0xff] %vm5596, %v5479
  %5635 = vst.msk [vmem:[#allocation5 + $0x130] sm:$0xff] %vm5596, %v5481
  %5636 = vst.msk [vmem:[#allocation5 + $0x138] sm:$0xff] %vm5596, %v5483
  %5637 = vst.msk [vmem:[#allocation5 + $0x140] sm:$0xff] %vm5596, %v5485
  %5638 = vst.msk [vmem:[#allocation5 + $0x148] sm:$0xff] %vm5596, %v5487
  %5639 = vst.msk [vmem:[#allocation5 + $0x150] sm:$0xff] %vm5596, %v5489
  %5640 = vst.msk [vmem:[#allocation5 + $0x158] sm:$0xff] %vm5596, %v5491
  %5641 = vst.msk [vmem:[#allocation5 + $0x160] sm:$0xff] %vm5596, %v5493
  %5642 = vst.msk [vmem:[#allocation5 + $0x168] sm:$0xff] %vm5596, %v5495
  %5643 = vst.msk [vmem:[#allocation5 + $0x170] sm:$0xff] %vm5596, %v5497
  %5644 = vst.msk [vmem:[#allocation5 + $0x178] sm:$0xff] %vm5596, %v5499
  %5645 = vst.msk [vmem:[#allocation5 + $0x180] sm:$0xff] %vm5596, %v5501
  %5646 = vst.msk [vmem:[#allocation5 + $0x188] sm:$0xff] %vm5596, %v5503
  %5647 = vst.msk [vmem:[#allocation5 + $0x190] sm:$0xff] %vm5596, %v5505
  %5648 = vst.msk [vmem:[#allocation5 + $0x198] sm:$0xff] %vm5596, %v5507
  %5649 = vst.msk [vmem:[#allocation5 + $0x1a0] sm:$0xff] %vm5596, %v5509
  %5650 = vst.msk [vmem:[#allocation5 + $0x1a8] sm:$0xff] %vm5596, %v5511
  %5651 = vst.msk [vmem:[#allocation5 + $0x1b0] sm:$0xff] %vm5596, %v5513
  %5652 = vst.msk [vmem:[#allocation5 + $0x1b8] sm:$0xff] %vm5596, %v5515
  %5653 = vst.msk [vmem:[#allocation5 + $0x1c0] sm:$0xff] %vm5596, %v5517
  %5654 = vst.msk [vmem:[#allocation5 + $0x1c8] sm:$0xff] %vm5596, %v5519
  %5655 = vst.msk [vmem:[#allocation5 + $0x1d0] sm:$0xff] %vm5596, %v5521
  %5656 = vst.msk [vmem:[#allocation5 + $0x1d8] sm:$0xff] %vm5596, %v5523
  %5657 = vst.msk [vmem:[#allocation5 + $0x1e0] sm:$0xff] %vm5596, %v5525
  %5658 = vst.msk [vmem:[#allocation5 + $0x1e8] sm:$0xff] %vm5596, %v5527
  %5659 = vst.msk [vmem:[#allocation5 + $0x1f0] sm:$0xff] %vm5596, %v5529
  %5660 = vst.msk [vmem:[#allocation5 + $0x1f8] sm:$0xff] %vm5596, %v5531
  %v5661 = vld [vmem:[%s4698] sm:$0xff]
  %v5662 = vld [vmem:[%s4698 + $0x8] sm:$0xff]
  %v5663 = vld [vmem:[%s4698 + $0x18] sm:$0xff]
  %v5664 = vld [vmem:[%s4698 + $0x20] sm:$0xff]
  %v5665 = vld [vmem:[%s4698 + $0x30] sm:$0xff]
  %v5666 = vld [vmem:[%s4698 + $0x38] sm:$0xff]
  %v5667 = vld [vmem:[%s4698 + $0x48] sm:$0xff]
  %v5668 = vld [vmem:[%s4698 + $0x50] sm:$0xff]
  %v5669 = vld [vmem:[%s4698 + $0x60] sm:$0xff]
  %v5670 = vld [vmem:[%s4698 + $0x68] sm:$0xff]
  %v5671 = vld [vmem:[%s4698 + $0x78] sm:$0xff]
  %v5672 = vld [vmem:[%s4698 + $0x80] sm:$0xff]
  %v5673 = vld [vmem:[%s4698 + $0x90] sm:$0xff]
  %v5674 = vld [vmem:[%s4698 + $0x98] sm:$0xff]
  %v5675 = vld [vmem:[%s4698 + $0xa8] sm:$0xff]
  %v5676 = vld [vmem:[%s4698 + $0xb0] sm:$0xff]
  %v5677 = vld [vmem:[%s4698 + $0xc0] sm:$0xff]
  %v5678 = vld [vmem:[%s4698 + $0xc8] sm:$0xff]
  %v5679 = vld [vmem:[%s4698 + $0xd8] sm:$0xff]
  %v5680 = vld [vmem:[%s4698 + $0xe0] sm:$0xff]
  %v5681 = vld [vmem:[%s4698 + $0xf0] sm:$0xff]
  %v5682 = vld [vmem:[%s4698 + $0xf8] sm:$0xff]
  %v5683 = vld [vmem:[%s4698 + $0x108] sm:$0xff]
  %v5684 = vld [vmem:[%s4698 + $0x110] sm:$0xff]
  %v5685 = vld [vmem:[%s4698 + $0x120] sm:$0xff]
  %v5686 = vld [vmem:[%s4698 + $0x128] sm:$0xff]
  %v5687 = vld [vmem:[%s4698 + $0x138] sm:$0xff]
  %v5688 = vld [vmem:[%s4698 + $0x140] sm:$0xff]
  %v5689 = vld [vmem:[%s4698 + $0x150] sm:$0xff]
  %v5690 = vld [vmem:[%s4698 + $0x158] sm:$0xff]
  %v5691 = vld [vmem:[%s4698 + $0x168] sm:$0xff]
  %v5692 = vld [vmem:[%s4698 + $0x170] sm:$0xff]
  %v5693 = vld [vmem:[%s4698 + $0x1b0] sm:$0xff]
  %v5694 = vld [vmem:[%s4698 + $0x1b8] sm:$0xff]
  %v5695 = vld [vmem:[%s4698 + $0x1c8] sm:$0xff]
  %v5696 = vld [vmem:[%s4698 + $0x1d0] sm:$0xff]
  %v5697 = vld [vmem:[%s4698 + $0x1e0] sm:$0xff]
  %v5698 = vld [vmem:[%s4698 + $0x1e8] sm:$0xff]
  %v5699 = vld [vmem:[%s4698 + $0x1f8] sm:$0xff]
  %v5700 = vld [vmem:[%s4698 + $0x200] sm:$0xff]
  %v5701 = vld [vmem:[%s4698 + $0x210] sm:$0xff]
  %v5702 = vld [vmem:[%s4698 + $0x218] sm:$0xff]
  %v5703 = vld [vmem:[%s4698 + $0x228] sm:$0xff]
  %v5704 = vld [vmem:[%s4698 + $0x230] sm:$0xff]
  %v5705 = vld [vmem:[%s4698 + $0x240] sm:$0xff]
  %v5706 = vld [vmem:[%s4698 + $0x248] sm:$0xff]
  %v5707 = vld [vmem:[%s4698 + $0x258] sm:$0xff]
  %v5708 = vld [vmem:[%s4698 + $0x260] sm:$0xff]
  %v5709 = vld [vmem:[%s4698 + $0x270] sm:$0xff]
  %v5710 = vld [vmem:[%s4698 + $0x278] sm:$0xff]
  %v5711 = vld [vmem:[%s4698 + $0x288] sm:$0xff]
  %v5712 = vld [vmem:[%s4698 + $0x290] sm:$0xff]
  %v5713 = vld [vmem:[%s4698 + $0x2a0] sm:$0xff]
  %v5714 = vld [vmem:[%s4698 + $0x2a8] sm:$0xff]
  %v5715 = vld [vmem:[%s4698 + $0x2b8] sm:$0xff]
  %v5716 = vld [vmem:[%s4698 + $0x2c0] sm:$0xff]
  %v5717 = vld [vmem:[%s4698 + $0x2d0] sm:$0xff]
  %v5718 = vld [vmem:[%s4698 + $0x2d8] sm:$0xff]
  %v5719 = vld [vmem:[%s4698 + $0x2e8] sm:$0xff]
  %v5720 = vld [vmem:[%s4698 + $0x2f0] sm:$0xff]
  %v5721 = vld [vmem:[%s4698 + $0x300] sm:$0xff]
  %v5722 = vld [vmem:[%s4698 + $0x308] sm:$0xff]
  %v5723 = vld [vmem:[%s4698 + $0x318] sm:$0xff]
  %v5724 = vld [vmem:[%s4698 + $0x320] sm:$0xff]
  %5789 = vrot.lane.b32.xlu0 %v5661, 24
  %v5790 = vpop.permute.xlu0 %5789
  %5791 = vrot.lane.b32.xlu0 %v5662, 24
  %v5792 = vpop.permute.xlu0 %5791
  %5793 = vrot.lane.b32.xlu0 %v5663, 24
  %v5794 = vpop.permute.xlu0 %5793
  %5795 = vrot.lane.b32.xlu0 %v5664, 24
  %v5796 = vpop.permute.xlu0 %5795
  %5797 = vrot.lane.b32.xlu0 %v5665, 24
  %v5798 = vpop.permute.xlu0 %5797
  %5799 = vrot.lane.b32.xlu0 %v5666, 24
  %v5800 = vpop.permute.xlu0 %5799
  %5801 = vrot.lane.b32.xlu0 %v5667, 24
  %v5802 = vpop.permute.xlu0 %5801
  %5803 = vrot.lane.b32.xlu0 %v5668, 24
  %v5804 = vpop.permute.xlu0 %5803
  %5805 = vrot.lane.b32.xlu0 %v5669, 24
  %v5806 = vpop.permute.xlu0 %5805
  %5807 = vrot.lane.b32.xlu0 %v5670, 24
  %v5808 = vpop.permute.xlu0 %5807
  %5809 = vrot.lane.b32.xlu0 %v5671, 24
  %v5810 = vpop.permute.xlu0 %5809
  %5811 = vrot.lane.b32.xlu0 %v5672, 24
  %v5812 = vpop.permute.xlu0 %5811
  %5813 = vrot.lane.b32.xlu0 %v5673, 24
  %v5814 = vpop.permute.xlu0 %5813
  %5815 = vrot.lane.b32.xlu0 %v5674, 24
  %v5816 = vpop.permute.xlu0 %5815
  %5817 = vrot.lane.b32.xlu0 %v5675, 24
  %v5818 = vpop.permute.xlu0 %5817
  %5819 = vrot.lane.b32.xlu0 %v5676, 24
  %v5820 = vpop.permute.xlu0 %5819
  %5821 = vrot.lane.b32.xlu0 %v5677, 24
  %v5822 = vpop.permute.xlu0 %5821
  %5823 = vrot.lane.b32.xlu0 %v5678, 24
  %v5824 = vpop.permute.xlu0 %5823
  %5825 = vrot.lane.b32.xlu0 %v5679, 24
  %v5826 = vpop.permute.xlu0 %5825
  %5827 = vrot.lane.b32.xlu0 %v5680, 24
  %v5828 = vpop.permute.xlu0 %5827
  %5829 = vrot.lane.b32.xlu0 %v5681, 24
  %v5830 = vpop.permute.xlu0 %5829
  %5831 = vrot.lane.b32.xlu0 %v5682, 24
  %v5832 = vpop.permute.xlu0 %5831
  %5833 = vrot.lane.b32.xlu0 %v5683, 24
  %v5834 = vpop.permute.xlu0 %5833
  %5835 = vrot.lane.b32.xlu0 %v5684, 24
  %v5836 = vpop.permute.xlu0 %5835
  %5837 = vrot.lane.b32.xlu0 %v5685, 24
  %v5838 = vpop.permute.xlu0 %5837
  %5839 = vrot.lane.b32.xlu0 %v5686, 24
  %v5840 = vpop.permute.xlu0 %5839
  %5841 = vrot.lane.b32.xlu0 %v5687, 24
  %v5842 = vpop.permute.xlu0 %5841
  %5843 = vrot.lane.b32.xlu0 %v5688, 24
  %v5844 = vpop.permute.xlu0 %5843
  %5845 = vrot.lane.b32.xlu0 %v5689, 24
  %v5846 = vpop.permute.xlu0 %5845
  %5847 = vrot.lane.b32.xlu0 %v5690, 24
  %v5848 = vpop.permute.xlu0 %5847
  %5849 = vrot.lane.b32.xlu0 %v5691, 24
  %v5850 = vpop.permute.xlu0 %5849
  %5851 = vrot.lane.b32.xlu0 %v5692, 24
  %v5852 = vpop.permute.xlu0 %5851
  %5853 = vrot.lane.b32.xlu0 %v5693, 24
  %v5854 = vpop.permute.xlu0 %5853
  %5855 = vrot.lane.b32.xlu0 %v5694, 24
  %v5856 = vpop.permute.xlu0 %5855
  %5857 = vrot.lane.b32.xlu0 %v5695, 24
  %v5858 = vpop.permute.xlu0 %5857
  %5859 = vrot.lane.b32.xlu0 %v5696, 24
  %v5860 = vpop.permute.xlu0 %5859
  %5861 = vrot.lane.b32.xlu0 %v5697, 24
  %v5862 = vpop.permute.xlu0 %5861
  %5863 = vrot.lane.b32.xlu0 %v5698, 24
  %v5864 = vpop.permute.xlu0 %5863
  %5865 = vrot.lane.b32.xlu0 %v5699, 24
  %v5866 = vpop.permute.xlu0 %5865
  %5867 = vrot.lane.b32.xlu0 %v5700, 24
  %v5868 = vpop.permute.xlu0 %5867
  %5869 = vrot.lane.b32.xlu0 %v5701, 24
  %v5870 = vpop.permute.xlu0 %5869
  %5871 = vrot.lane.b32.xlu0 %v5702, 24
  %v5872 = vpop.permute.xlu0 %5871
  %5873 = vrot.lane.b32.xlu0 %v5703, 24
  %v5874 = vpop.permute.xlu0 %5873
  %5875 = vrot.lane.b32.xlu0 %v5704, 24
  %v5876 = vpop.permute.xlu0 %5875
  %5877 = vrot.lane.b32.xlu0 %v5705, 24
  %v5878 = vpop.permute.xlu0 %5877
  %5879 = vrot.lane.b32.xlu0 %v5706, 24
  %v5880 = vpop.permute.xlu0 %5879
  %5881 = vrot.lane.b32.xlu0 %v5707, 24
  %v5882 = vpop.permute.xlu0 %5881
  %5883 = vrot.lane.b32.xlu0 %v5708, 24
  %v5884 = vpop.permute.xlu0 %5883
  %5885 = vrot.lane.b32.xlu0 %v5709, 24
  %v5886 = vpop.permute.xlu0 %5885
  %5887 = vrot.lane.b32.xlu0 %v5710, 24
  %v5888 = vpop.permute.xlu0 %5887
  %5889 = vrot.lane.b32.xlu0 %v5711, 24
  %v5890 = vpop.permute.xlu0 %5889
  %5891 = vrot.lane.b32.xlu0 %v5712, 24
  %v5892 = vpop.permute.xlu0 %5891
  %5893 = vrot.lane.b32.xlu0 %v5713, 24
  %v5894 = vpop.permute.xlu0 %5893
  %5895 = vrot.lane.b32.xlu0 %v5714, 24
  %v5896 = vpop.permute.xlu0 %5895
  %5897 = vrot.lane.b32.xlu0 %v5715, 24
  %v5898 = vpop.permute.xlu0 %5897
  %5899 = vrot.lane.b32.xlu0 %v5716, 24
  %v5900 = vpop.permute.xlu0 %5899
  %5901 = vrot.lane.b32.xlu0 %v5717, 24
  %v5902 = vpop.permute.xlu0 %5901
  %5903 = vrot.lane.b32.xlu0 %v5718, 24
  %v5904 = vpop.permute.xlu0 %5903
  %5905 = vrot.lane.b32.xlu0 %v5719, 24
  %v5906 = vpop.permute.xlu0 %5905
  %5907 = vrot.lane.b32.xlu0 %v5720, 24
  %v5908 = vpop.permute.xlu0 %5907
  %5909 = vrot.lane.b32.xlu0 %v5721, 24
  %v5910 = vpop.permute.xlu0 %5909
  %5911 = vrot.lane.b32.xlu0 %v5722, 24
  %v5912 = vpop.permute.xlu0 %5911
  %5913 = vrot.lane.b32.xlu0 %v5723, 24
  %v5914 = vpop.permute.xlu0 %5913
  %5915 = vrot.lane.b32.xlu0 %v5724, 24
  %v5916 = vpop.permute.xlu0 %5915
  %vm5981 = vcmask 261312
  %5982 = vst.msk [vmem:[#allocation5] sm:$0xff] %vm5981, %v5790
  %5983 = vst.msk [vmem:[#allocation5 + $0x8] sm:$0xff] %vm5981, %v5792
  %5984 = vst.msk [vmem:[#allocation5 + $0x10] sm:$0xff] %vm5981, %v5794
  %5985 = vst.msk [vmem:[#allocation5 + $0x18] sm:$0xff] %vm5981, %v5796
  %5986 = vst.msk [vmem:[#allocation5 + $0x20] sm:$0xff] %vm5981, %v5798
  %5987 = vst.msk [vmem:[#allocation5 + $0x28] sm:$0xff] %vm5981, %v5800
  %5988 = vst.msk [vmem:[#allocation5 + $0x30] sm:$0xff] %vm5981, %v5802
  %5989 = vst.msk [vmem:[#allocation5 + $0x38] sm:$0xff] %vm5981, %v5804
  %5990 = vst.msk [vmem:[#allocation5 + $0x40] sm:$0xff] %vm5981, %v5806
  %5991 = vst.msk [vmem:[#allocation5 + $0x48] sm:$0xff] %vm5981, %v5808
  %5992 = vst.msk [vmem:[#allocation5 + $0x50] sm:$0xff] %vm5981, %v5810
  %5993 = vst.msk [vmem:[#allocation5 + $0x58] sm:$0xff] %vm5981, %v5812
  %5994 = vst.msk [vmem:[#allocation5 + $0x60] sm:$0xff] %vm5981, %v5814
  %5995 = vst.msk [vmem:[#allocation5 + $0x68] sm:$0xff] %vm5981, %v5816
  %5996 = vst.msk [vmem:[#allocation5 + $0x70] sm:$0xff] %vm5981, %v5818
  %5997 = vst.msk [vmem:[#allocation5 + $0x78] sm:$0xff] %vm5981, %v5820
  %5998 = vst.msk [vmem:[#allocation5 + $0x80] sm:$0xff] %vm5981, %v5822
  %5999 = vst.msk [vmem:[#allocation5 + $0x88] sm:$0xff] %vm5981, %v5824
  %6000 = vst.msk [vmem:[#allocation5 + $0x90] sm:$0xff] %vm5981, %v5826
  %6001 = vst.msk [vmem:[#allocation5 + $0x98] sm:$0xff] %vm5981, %v5828
  %6002 = vst.msk [vmem:[#allocation5 + $0xa0] sm:$0xff] %vm5981, %v5830
  %6003 = vst.msk [vmem:[#allocation5 + $0xa8] sm:$0xff] %vm5981, %v5832
  %6004 = vst.msk [vmem:[#allocation5 + $0xb0] sm:$0xff] %vm5981, %v5834
  %6005 = vst.msk [vmem:[#allocation5 + $0xb8] sm:$0xff] %vm5981, %v5836
  %6006 = vst.msk [vmem:[#allocation5 + $0xc0] sm:$0xff] %vm5981, %v5838
  %6007 = vst.msk [vmem:[#allocation5 + $0xc8] sm:$0xff] %vm5981, %v5840
  %6008 = vst.msk [vmem:[#allocation5 + $0xd0] sm:$0xff] %vm5981, %v5842
  %6009 = vst.msk [vmem:[#allocation5 + $0xd8] sm:$0xff] %vm5981, %v5844
  %6010 = vst.msk [vmem:[#allocation5 + $0xe0] sm:$0xff] %vm5981, %v5846
  %6011 = vst.msk [vmem:[#allocation5 + $0xe8] sm:$0xff] %vm5981, %v5848
  %6012 = vst.msk [vmem:[#allocation5 + $0xf0] sm:$0xff] %vm5981, %v5850
  %6013 = vst.msk [vmem:[#allocation5 + $0xf8] sm:$0xff] %vm5981, %v5852
  %6014 = vst.msk [vmem:[#allocation5 + $0x100] sm:$0xff] %vm5981, %v5854
  %6015 = vst.msk [vmem:[#allocation5 + $0x108] sm:$0xff] %vm5981, %v5856
  %6016 = vst.msk [vmem:[#allocation5 + $0x110] sm:$0xff] %vm5981, %v5858
  %6017 = vst.msk [vmem:[#allocation5 + $0x118] sm:$0xff] %vm5981, %v5860
  %6018 = vst.msk [vmem:[#allocation5 + $0x120] sm:$0xff] %vm5981, %v5862
  %6019 = vst.msk [vmem:[#allocation5 + $0x128] sm:$0xff] %vm5981, %v5864
  %6020 = vst.msk [vmem:[#allocation5 + $0x130] sm:$0xff] %vm5981, %v5866
  %6021 = vst.msk [vmem:[#allocation5 + $0x138] sm:$0xff] %vm5981, %v5868
  %6022 = vst.msk [vmem:[#allocation5 + $0x140] sm:$0xff] %vm5981, %v5870
  %6023 = vst.msk [vmem:[#allocation5 + $0x148] sm:$0xff] %vm5981, %v5872
  %6024 = vst.msk [vmem:[#allocation5 + $0x150] sm:$0xff] %vm5981, %v5874
  %6025 = vst.msk [vmem:[#allocation5 + $0x158] sm:$0xff] %vm5981, %v5876
  %6026 = vst.msk [vmem:[#allocation5 + $0x160] sm:$0xff] %vm5981, %v5878
  %6027 = vst.msk [vmem:[#allocation5 + $0x168] sm:$0xff] %vm5981, %v5880
  %6028 = vst.msk [vmem:[#allocation5 + $0x170] sm:$0xff] %vm5981, %v5882
  %6029 = vst.msk [vmem:[#allocation5 + $0x178] sm:$0xff] %vm5981, %v5884
  %6030 = vst.msk [vmem:[#allocation5 + $0x180] sm:$0xff] %vm5981, %v5886
  %6031 = vst.msk [vmem:[#allocation5 + $0x188] sm:$0xff] %vm5981, %v5888
  %6032 = vst.msk [vmem:[#allocation5 + $0x190] sm:$0xff] %vm5981, %v5890
  %6033 = vst.msk [vmem:[#allocation5 + $0x198] sm:$0xff] %vm5981, %v5892
  %6034 = vst.msk [vmem:[#allocation5 + $0x1a0] sm:$0xff] %vm5981, %v5894
  %6035 = vst.msk [vmem:[#allocation5 + $0x1a8] sm:$0xff] %vm5981, %v5896
  %6036 = vst.msk [vmem:[#allocation5 + $0x1b0] sm:$0xff] %vm5981, %v5898
  %6037 = vst.msk [vmem:[#allocation5 + $0x1b8] sm:$0xff] %vm5981, %v5900
  %6038 = vst.msk [vmem:[#allocation5 + $0x1c0] sm:$0xff] %vm5981, %v5902
  %6039 = vst.msk [vmem:[#allocation5 + $0x1c8] sm:$0xff] %vm5981, %v5904
  %6040 = vst.msk [vmem:[#allocation5 + $0x1d0] sm:$0xff] %vm5981, %v5906
  %6041 = vst.msk [vmem:[#allocation5 + $0x1d8] sm:$0xff] %vm5981, %v5908
  %6042 = vst.msk [vmem:[#allocation5 + $0x1e0] sm:$0xff] %vm5981, %v5910
  %6043 = vst.msk [vmem:[#allocation5 + $0x1e8] sm:$0xff] %vm5981, %v5912
  %6044 = vst.msk [vmem:[#allocation5 + $0x1f0] sm:$0xff] %vm5981, %v5914
  %6045 = vst.msk [vmem:[#allocation5 + $0x1f8] sm:$0xff] %vm5981, %v5916
  %v6046 = vld [vmem:[%s4698 + $0x1] sm:$0xff]
  %v6047 = vld [vmem:[%s4698 + $0x9] sm:$0xff]
  %v6048 = vld [vmem:[%s4698 + $0x19] sm:$0xff]
  %v6049 = vld [vmem:[%s4698 + $0x21] sm:$0xff]
  %v6050 = vld [vmem:[%s4698 + $0x31] sm:$0xff]
  %v6051 = vld [vmem:[%s4698 + $0x39] sm:$0xff]
  %v6052 = vld [vmem:[%s4698 + $0x49] sm:$0xff]
  %v6053 = vld [vmem:[%s4698 + $0x51] sm:$0xff]
  %v6054 = vld [vmem:[%s4698 + $0x61] sm:$0xff]
  %v6055 = vld [vmem:[%s4698 + $0x69] sm:$0xff]
  %v6056 = vld [vmem:[%s4698 + $0x79] sm:$0xff]
  %v6057 = vld [vmem:[%s4698 + $0x81] sm:$0xff]
  %v6058 = vld [vmem:[%s4698 + $0x91] sm:$0xff]
  %v6059 = vld [vmem:[%s4698 + $0x99] sm:$0xff]
  %v6060 = vld [vmem:[%s4698 + $0xa9] sm:$0xff]
  %v6061 = vld [vmem:[%s4698 + $0xb1] sm:$0xff]
  %v6062 = vld [vmem:[%s4698 + $0xc1] sm:$0xff]
  %v6063 = vld [vmem:[%s4698 + $0xc9] sm:$0xff]
  %v6064 = vld [vmem:[%s4698 + $0xd9] sm:$0xff]
  %v6065 = vld [vmem:[%s4698 + $0xe1] sm:$0xff]
  %v6066 = vld [vmem:[%s4698 + $0xf1] sm:$0xff]
  %v6067 = vld [vmem:[%s4698 + $0xf9] sm:$0xff]
  %v6068 = vld [vmem:[%s4698 + $0x109] sm:$0xff]
  %v6069 = vld [vmem:[%s4698 + $0x111] sm:$0xff]
  %v6070 = vld [vmem:[%s4698 + $0x121] sm:$0xff]
  %v6071 = vld [vmem:[%s4698 + $0x129] sm:$0xff]
  %v6072 = vld [vmem:[%s4698 + $0x139] sm:$0xff]
  %v6073 = vld [vmem:[%s4698 + $0x141] sm:$0xff]
  %v6074 = vld [vmem:[%s4698 + $0x151] sm:$0xff]
  %v6075 = vld [vmem:[%s4698 + $0x159] sm:$0xff]
  %v6076 = vld [vmem:[%s4698 + $0x169] sm:$0xff]
  %v6077 = vld [vmem:[%s4698 + $0x171] sm:$0xff]
  %v6078 = vld [vmem:[%s4698 + $0x1b1] sm:$0xff]
  %v6079 = vld [vmem:[%s4698 + $0x1b9] sm:$0xff]
  %v6080 = vld [vmem:[%s4698 + $0x1c9] sm:$0xff]
  %v6081 = vld [vmem:[%s4698 + $0x1d1] sm:$0xff]
  %v6082 = vld [vmem:[%s4698 + $0x1e1] sm:$0xff]
  %v6083 = vld [vmem:[%s4698 + $0x1e9] sm:$0xff]
  %v6084 = vld [vmem:[%s4698 + $0x1f9] sm:$0xff]
  %v6085 = vld [vmem:[%s4698 + $0x201] sm:$0xff]
  %v6086 = vld [vmem:[%s4698 + $0x211] sm:$0xff]
  %v6087 = vld [vmem:[%s4698 + $0x219] sm:$0xff]
  %v6088 = vld [vmem:[%s4698 + $0x229] sm:$0xff]
  %v6089 = vld [vmem:[%s4698 + $0x231] sm:$0xff]
  %v6090 = vld [vmem:[%s4698 + $0x241] sm:$0xff]
  %v6091 = vld [vmem:[%s4698 + $0x249] sm:$0xff]
  %v6092 = vld [vmem:[%s4698 + $0x259] sm:$0xff]
  %v6093 = vld [vmem:[%s4698 + $0x261] sm:$0xff]
  %v6094 = vld [vmem:[%s4698 + $0x271] sm:$0xff]
  %v6095 = vld [vmem:[%s4698 + $0x279] sm:$0xff]
  %v6096 = vld [vmem:[%s4698 + $0x289] sm:$0xff]
  %v6097 = vld [vmem:[%s4698 + $0x291] sm:$0xff]
  %v6098 = vld [vmem:[%s4698 + $0x2a1] sm:$0xff]
  %v6099 = vld [vmem:[%s4698 + $0x2a9] sm:$0xff]
  %v6100 = vld [vmem:[%s4698 + $0x2b9] sm:$0xff]
  %v6101 = vld [vmem:[%s4698 + $0x2c1] sm:$0xff]
  %v6102 = vld [vmem:[%s4698 + $0x2d1] sm:$0xff]
  %v6103 = vld [vmem:[%s4698 + $0x2d9] sm:$0xff]
  %v6104 = vld [vmem:[%s4698 + $0x2e9] sm:$0xff]
  %v6105 = vld [vmem:[%s4698 + $0x2f1] sm:$0xff]
  %v6106 = vld [vmem:[%s4698 + $0x301] sm:$0xff]
  %v6107 = vld [vmem:[%s4698 + $0x309] sm:$0xff]
  %v6108 = vld [vmem:[%s4698 + $0x319] sm:$0xff]
  %v6109 = vld [vmem:[%s4698 + $0x321] sm:$0xff]
  %6174 = vrot.lane.b32.xlu0 %v6046, 32
  %v6175 = vpop.permute.xlu0 %6174
  %6176 = vrot.lane.b32.xlu0 %v6047, 32
  %v6177 = vpop.permute.xlu0 %6176
  %6178 = vrot.lane.b32.xlu0 %v6048, 32
  %v6179 = vpop.permute.xlu0 %6178
  %6180 = vrot.lane.b32.xlu0 %v6049, 32
  %v6181 = vpop.permute.xlu0 %6180
  %6182 = vrot.lane.b32.xlu0 %v6050, 32
  %v6183 = vpop.permute.xlu0 %6182
  %6184 = vrot.lane.b32.xlu0 %v6051, 32
  %v6185 = vpop.permute.xlu0 %6184
  %6186 = vrot.lane.b32.xlu0 %v6052, 32
  %v6187 = vpop.permute.xlu0 %6186
  %6188 = vrot.lane.b32.xlu0 %v6053, 32
  %v6189 = vpop.permute.xlu0 %6188
  %6190 = vrot.lane.b32.xlu0 %v6054, 32
  %v6191 = vpop.permute.xlu0 %6190
  %6192 = vrot.lane.b32.xlu0 %v6055, 32
  %v6193 = vpop.permute.xlu0 %6192
  %6194 = vrot.lane.b32.xlu0 %v6056, 32
  %v6195 = vpop.permute.xlu0 %6194
  %6196 = vrot.lane.b32.xlu0 %v6057, 32
  %v6197 = vpop.permute.xlu0 %6196
  %6198 = vrot.lane.b32.xlu0 %v6058, 32
  %v6199 = vpop.permute.xlu0 %6198
  %6200 = vrot.lane.b32.xlu0 %v6059, 32
  %v6201 = vpop.permute.xlu0 %6200
  %6202 = vrot.lane.b32.xlu0 %v6060, 32
  %v6203 = vpop.permute.xlu0 %6202
  %6204 = vrot.lane.b32.xlu0 %v6061, 32
  %v6205 = vpop.permute.xlu0 %6204
  %6206 = vrot.lane.b32.xlu0 %v6062, 32
  %v6207 = vpop.permute.xlu0 %6206
  %6208 = vrot.lane.b32.xlu0 %v6063, 32
  %v6209 = vpop.permute.xlu0 %6208
  %6210 = vrot.lane.b32.xlu0 %v6064, 32
  %v6211 = vpop.permute.xlu0 %6210
  %6212 = vrot.lane.b32.xlu0 %v6065, 32
  %v6213 = vpop.permute.xlu0 %6212
  %6214 = vrot.lane.b32.xlu0 %v6066, 32
  %v6215 = vpop.permute.xlu0 %6214
  %6216 = vrot.lane.b32.xlu0 %v6067, 32
  %v6217 = vpop.permute.xlu0 %6216
  %6218 = vrot.lane.b32.xlu0 %v6068, 32
  %v6219 = vpop.permute.xlu0 %6218
  %6220 = vrot.lane.b32.xlu0 %v6069, 32
  %v6221 = vpop.permute.xlu0 %6220
  %6222 = vrot.lane.b32.xlu0 %v6070, 32
  %v6223 = vpop.permute.xlu0 %6222
  %6224 = vrot.lane.b32.xlu0 %v6071, 32
  %v6225 = vpop.permute.xlu0 %6224
  %6226 = vrot.lane.b32.xlu0 %v6072, 32
  %v6227 = vpop.permute.xlu0 %6226
  %6228 = vrot.lane.b32.xlu0 %v6073, 32
  %v6229 = vpop.permute.xlu0 %6228
  %6230 = vrot.lane.b32.xlu0 %v6074, 32
  %v6231 = vpop.permute.xlu0 %6230
  %6232 = vrot.lane.b32.xlu0 %v6075, 32
  %v6233 = vpop.permute.xlu0 %6232
  %6234 = vrot.lane.b32.xlu0 %v6076, 32
  %v6235 = vpop.permute.xlu0 %6234
  %6236 = vrot.lane.b32.xlu0 %v6077, 32
  %v6237 = vpop.permute.xlu0 %6236
  %6238 = vrot.lane.b32.xlu0 %v6078, 32
  %v6239 = vpop.permute.xlu0 %6238
  %6240 = vrot.lane.b32.xlu0 %v6079, 32
  %v6241 = vpop.permute.xlu0 %6240
  %6242 = vrot.lane.b32.xlu0 %v6080, 32
  %v6243 = vpop.permute.xlu0 %6242
  %6244 = vrot.lane.b32.xlu0 %v6081, 32
  %v6245 = vpop.permute.xlu0 %6244
  %6246 = vrot.lane.b32.xlu0 %v6082, 32
  %v6247 = vpop.permute.xlu0 %6246
  %6248 = vrot.lane.b32.xlu0 %v6083, 32
  %v6249 = vpop.permute.xlu0 %6248
  %6250 = vrot.lane.b32.xlu0 %v6084, 32
  %v6251 = vpop.permute.xlu0 %6250
  %6252 = vrot.lane.b32.xlu0 %v6085, 32
  %v6253 = vpop.permute.xlu0 %6252
  %6254 = vrot.lane.b32.xlu0 %v6086, 32
  %v6255 = vpop.permute.xlu0 %6254
  %6256 = vrot.lane.b32.xlu0 %v6087, 32
  %v6257 = vpop.permute.xlu0 %6256
  %6258 = vrot.lane.b32.xlu0 %v6088, 32
  %v6259 = vpop.permute.xlu0 %6258
  %6260 = vrot.lane.b32.xlu0 %v6089, 32
  %v6261 = vpop.permute.xlu0 %6260
  %6262 = vrot.lane.b32.xlu0 %v6090, 32
  %v6263 = vpop.permute.xlu0 %6262
  %6264 = vrot.lane.b32.xlu0 %v6091, 32
  %v6265 = vpop.permute.xlu0 %6264
  %6266 = vrot.lane.b32.xlu0 %v6092, 32
  %v6267 = vpop.permute.xlu0 %6266
  %6268 = vrot.lane.b32.xlu0 %v6093, 32
  %v6269 = vpop.permute.xlu0 %6268
  %6270 = vrot.lane.b32.xlu0 %v6094, 32
  %v6271 = vpop.permute.xlu0 %6270
  %6272 = vrot.lane.b32.xlu0 %v6095, 32
  %v6273 = vpop.permute.xlu0 %6272
  %6274 = vrot.lane.b32.xlu0 %v6096, 32
  %v6275 = vpop.permute.xlu0 %6274
  %6276 = vrot.lane.b32.xlu0 %v6097, 32
  %v6277 = vpop.permute.xlu0 %6276
  %6278 = vrot.lane.b32.xlu0 %v6098, 32
  %v6279 = vpop.permute.xlu0 %6278
  %6280 = vrot.lane.b32.xlu0 %v6099, 32
  %v6281 = vpop.permute.xlu0 %6280
  %6282 = vrot.lane.b32.xlu0 %v6100, 32
  %v6283 = vpop.permute.xlu0 %6282
  %6284 = vrot.lane.b32.xlu0 %v6101, 32
  %v6285 = vpop.permute.xlu0 %6284
  %6286 = vrot.lane.b32.xlu0 %v6102, 32
  %v6287 = vpop.permute.xlu0 %6286
  %6288 = vrot.lane.b32.xlu0 %v6103, 32
  %v6289 = vpop.permute.xlu0 %6288
  %6290 = vrot.lane.b32.xlu0 %v6104, 32
  %v6291 = vpop.permute.xlu0 %6290
  %6292 = vrot.lane.b32.xlu0 %v6105, 32
  %v6293 = vpop.permute.xlu0 %6292
  %6294 = vrot.lane.b32.xlu0 %v6106, 32
  %v6295 = vpop.permute.xlu0 %6294
  %6296 = vrot.lane.b32.xlu0 %v6107, 32
  %v6297 = vpop.permute.xlu0 %6296
  %6298 = vrot.lane.b32.xlu0 %v6108, 32
  %v6299 = vpop.permute.xlu0 %6298
  %6300 = vrot.lane.b32.xlu0 %v6109, 32
  %v6301 = vpop.permute.xlu0 %6300
  %vm6366 = vcmask 326912
  %6367 = vst.msk [vmem:[#allocation5] sm:$0xff] %vm6366, %v6175
  %6368 = vst.msk [vmem:[#allocation5 + $0x8] sm:$0xff] %vm6366, %v6177
  %6369 = vst.msk [vmem:[#allocation5 + $0x10] sm:$0xff] %vm6366, %v6179
  %6370 = vst.msk [vmem:[#allocation5 + $0x18] sm:$0xff] %vm6366, %v6181
  %6371 = vst.msk [vmem:[#allocation5 + $0x20] sm:$0xff] %vm6366, %v6183
  %6372 = vst.msk [vmem:[#allocation5 + $0x28] sm:$0xff] %vm6366, %v6185
  %6373 = vst.msk [vmem:[#allocation5 + $0x30] sm:$0xff] %vm6366, %v6187
  %6374 = vst.msk [vmem:[#allocation5 + $0x38] sm:$0xff] %vm6366, %v6189
  %6375 = vst.msk [vmem:[#allocation5 + $0x40] sm:$0xff] %vm6366, %v6191
  %6376 = vst.msk [vmem:[#allocation5 + $0x48] sm:$0xff] %vm6366, %v6193
  %6377 = vst.msk [vmem:[#allocation5 + $0x50] sm:$0xff] %vm6366, %v6195
  %6378 = vst.msk [vmem:[#allocation5 + $0x58] sm:$0xff] %vm6366, %v6197
  %6379 = vst.msk [vmem:[#allocation5 + $0x60] sm:$0xff] %vm6366, %v6199
  %6380 = vst.msk [vmem:[#allocation5 + $0x68] sm:$0xff] %vm6366, %v6201
  %6381 = vst.msk [vmem:[#allocation5 + $0x70] sm:$0xff] %vm6366, %v6203
  %6382 = vst.msk [vmem:[#allocation5 + $0x78] sm:$0xff] %vm6366, %v6205
  %6383 = vst.msk [vmem:[#allocation5 + $0x80] sm:$0xff] %vm6366, %v6207
  %6384 = vst.msk [vmem:[#allocation5 + $0x88] sm:$0xff] %vm6366, %v6209
  %6385 = vst.msk [vmem:[#allocation5 + $0x90] sm:$0xff] %vm6366, %v6211
  %6386 = vst.msk [vmem:[#allocation5 + $0x98] sm:$0xff] %vm6366, %v6213
  %6387 = vst.msk [vmem:[#allocation5 + $0xa0] sm:$0xff] %vm6366, %v6215
  %6388 = vst.msk [vmem:[#allocation5 + $0xa8] sm:$0xff] %vm6366, %v6217
  %6389 = vst.msk [vmem:[#allocation5 + $0xb0] sm:$0xff] %vm6366, %v6219
  %6390 = vst.msk [vmem:[#allocation5 + $0xb8] sm:$0xff] %vm6366, %v6221
  %6391 = vst.msk [vmem:[#allocation5 + $0xc0] sm:$0xff] %vm6366, %v6223
  %6392 = vst.msk [vmem:[#allocation5 + $0xc8] sm:$0xff] %vm6366, %v6225
  %6393 = vst.msk [vmem:[#allocation5 + $0xd0] sm:$0xff] %vm6366, %v6227
  %6394 = vst.msk [vmem:[#allocation5 + $0xd8] sm:$0xff] %vm6366, %v6229
  %6395 = vst.msk [vmem:[#allocation5 + $0xe0] sm:$0xff] %vm6366, %v6231
  %6396 = vst.msk [vmem:[#allocation5 + $0xe8] sm:$0xff] %vm6366, %v6233
  %6397 = vst.msk [vmem:[#allocation5 + $0xf0] sm:$0xff] %vm6366, %v6235
  %6398 = vst.msk [vmem:[#allocation5 + $0xf8] sm:$0xff] %vm6366, %v6237
  %6399 = vst.msk [vmem:[#allocation5 + $0x100] sm:$0xff] %vm6366, %v6239
  %6400 = vst.msk [vmem:[#allocation5 + $0x108] sm:$0xff] %vm6366, %v6241
  %6401 = vst.msk [vmem:[#allocation5 + $0x110] sm:$0xff] %vm6366, %v6243
  %6402 = vst.msk [vmem:[#allocation5 + $0x118] sm:$0xff] %vm6366, %v6245
  %6403 = vst.msk [vmem:[#allocation5 + $0x120] sm:$0xff] %vm6366, %v6247
  %6404 = vst.msk [vmem:[#allocation5 + $0x128] sm:$0xff] %vm6366, %v6249
  %6405 = vst.msk [vmem:[#allocation5 + $0x130] sm:$0xff] %vm6366, %v6251
  %6406 = vst.msk [vmem:[#allocation5 + $0x138] sm:$0xff] %vm6366, %v6253
  %6407 = vst.msk [vmem:[#allocation5 + $0x140] sm:$0xff] %vm6366, %v6255
  %6408 = vst.msk [vmem:[#allocation5 + $0x148] sm:$0xff] %vm6366, %v6257
  %6409 = vst.msk [vmem:[#allocation5 + $0x150] sm:$0xff] %vm6366, %v6259
  %6410 = vst.msk [vmem:[#allocation5 + $0x158] sm:$0xff] %vm6366, %v6261
  %6411 = vst.msk [vmem:[#allocation5 + $0x160] sm:$0xff] %vm6366, %v6263
  %6412 = vst.msk [vmem:[#allocation5 + $0x168] sm:$0xff] %vm6366, %v6265
  %6413 = vst.msk [vmem:[#allocation5 + $0x170] sm:$0xff] %vm6366, %v6267
  %6414 = vst.msk [vmem:[#allocation5 + $0x178] sm:$0xff] %vm6366, %v6269
  %6415 = vst.msk [vmem:[#allocation5 + $0x180] sm:$0xff] %vm6366, %v6271
  %6416 = vst.msk [vmem:[#allocation5 + $0x188] sm:$0xff] %vm6366, %v6273
  %6417 = vst.msk [vmem:[#allocation5 + $0x190] sm:$0xff] %vm6366, %v6275
  %6418 = vst.msk [vmem:[#allocation5 + $0x198] sm:$0xff] %vm6366, %v6277
  %6419 = vst.msk [vmem:[#allocation5 + $0x1a0] sm:$0xff] %vm6366, %v6279
  %6420 = vst.msk [vmem:[#allocation5 + $0x1a8] sm:$0xff] %vm6366, %v6281
  %6421 = vst.msk [vmem:[#allocation5 + $0x1b0] sm:$0xff] %vm6366, %v6283
  %6422 = vst.msk [vmem:[#allocation5 + $0x1b8] sm:$0xff] %vm6366, %v6285
  %6423 = vst.msk [vmem:[#allocation5 + $0x1c0] sm:$0xff] %vm6366, %v6287
  %6424 = vst.msk [vmem:[#allocation5 + $0x1c8] sm:$0xff] %vm6366, %v6289
  %6425 = vst.msk [vmem:[#allocation5 + $0x1d0] sm:$0xff] %vm6366, %v6291
  %6426 = vst.msk [vmem:[#allocation5 + $0x1d8] sm:$0xff] %vm6366, %v6293
  %6427 = vst.msk [vmem:[#allocation5 + $0x1e0] sm:$0xff] %vm6366, %v6295
  %6428 = vst.msk [vmem:[#allocation5 + $0x1e8] sm:$0xff] %vm6366, %v6297
  %6429 = vst.msk [vmem:[#allocation5 + $0x1f0] sm:$0xff] %vm6366, %v6299
  %6430 = vst.msk [vmem:[#allocation5 + $0x1f8] sm:$0xff] %vm6366, %v6301
  %v6431 = vld [vmem:[%s4698 + $0x2] sm:$0xff]
  %v6432 = vld [vmem:[%s4698 + $0xa] sm:$0xff]
  %v6433 = vld [vmem:[%s4698 + $0x1a] sm:$0xff]
  %v6434 = vld [vmem:[%s4698 + $0x22] sm:$0xff]
  %v6435 = vld [vmem:[%s4698 + $0x32] sm:$0xff]
  %v6436 = vld [vmem:[%s4698 + $0x3a] sm:$0xff]
  %v6437 = vld [vmem:[%s4698 + $0x4a] sm:$0xff]
  %v6438 = vld [vmem:[%s4698 + $0x52] sm:$0xff]
  %v6439 = vld [vmem:[%s4698 + $0x62] sm:$0xff]
  %v6440 = vld [vmem:[%s4698 + $0x6a] sm:$0xff]
  %v6441 = vld [vmem:[%s4698 + $0x7a] sm:$0xff]
  %v6442 = vld [vmem:[%s4698 + $0x82] sm:$0xff]
  %v6443 = vld [vmem:[%s4698 + $0x92] sm:$0xff]
  %v6444 = vld [vmem:[%s4698 + $0x9a] sm:$0xff]
  %v6445 = vld [vmem:[%s4698 + $0xaa] sm:$0xff]
  %v6446 = vld [vmem:[%s4698 + $0xb2] sm:$0xff]
  %v6447 = vld [vmem:[%s4698 + $0xc2] sm:$0xff]
  %v6448 = vld [vmem:[%s4698 + $0xca] sm:$0xff]
  %v6449 = vld [vmem:[%s4698 + $0xda] sm:$0xff]
  %v6450 = vld [vmem:[%s4698 + $0xe2] sm:$0xff]
  %v6451 = vld [vmem:[%s4698 + $0xf2] sm:$0xff]
  %v6452 = vld [vmem:[%s4698 + $0xfa] sm:$0xff]
  %v6453 = vld [vmem:[%s4698 + $0x10a] sm:$0xff]
  %v6454 = vld [vmem:[%s4698 + $0x112] sm:$0xff]
  %v6455 = vld [vmem:[%s4698 + $0x122] sm:$0xff]
  %v6456 = vld [vmem:[%s4698 + $0x12a] sm:$0xff]
  %v6457 = vld [vmem:[%s4698 + $0x13a] sm:$0xff]
  %v6458 = vld [vmem:[%s4698 + $0x142] sm:$0xff]
  %v6459 = vld [vmem:[%s4698 + $0x152] sm:$0xff]
  %v6460 = vld [vmem:[%s4698 + $0x15a] sm:$0xff]
  %v6461 = vld [vmem:[%s4698 + $0x16a] sm:$0xff]
  %v6462 = vld [vmem:[%s4698 + $0x172] sm:$0xff]
  %v6463 = vld [vmem:[%s4698 + $0x1b2] sm:$0xff]
  %v6464 = vld [vmem:[%s4698 + $0x1ba] sm:$0xff]
  %v6465 = vld [vmem:[%s4698 + $0x1ca] sm:$0xff]
  %v6466 = vld [vmem:[%s4698 + $0x1d2] sm:$0xff]
  %v6467 = vld [vmem:[%s4698 + $0x1e2] sm:$0xff]
  %v6468 = vld [vmem:[%s4698 + $0x1ea] sm:$0xff]
  %v6469 = vld [vmem:[%s4698 + $0x1fa] sm:$0xff]
  %v6470 = vld [vmem:[%s4698 + $0x202] sm:$0xff]
  %v6471 = vld [vmem:[%s4698 + $0x212] sm:$0xff]
  %v6472 = vld [vmem:[%s4698 + $0x21a] sm:$0xff]
  %v6473 = vld [vmem:[%s4698 + $0x22a] sm:$0xff]
  %v6474 = vld [vmem:[%s4698 + $0x232] sm:$0xff]
  %v6475 = vld [vmem:[%s4698 + $0x242] sm:$0xff]
  %v6476 = vld [vmem:[%s4698 + $0x24a] sm:$0xff]
  %v6477 = vld [vmem:[%s4698 + $0x25a] sm:$0xff]
  %v6478 = vld [vmem:[%s4698 + $0x262] sm:$0xff]
  %v6479 = vld [vmem:[%s4698 + $0x272] sm:$0xff]
  %v6480 = vld [vmem:[%s4698 + $0x27a] sm:$0xff]
  %v6481 = vld [vmem:[%s4698 + $0x28a] sm:$0xff]
  %v6482 = vld [vmem:[%s4698 + $0x292] sm:$0xff]
  %v6483 = vld [vmem:[%s4698 + $0x2a2] sm:$0xff]
  %v6484 = vld [vmem:[%s4698 + $0x2aa] sm:$0xff]
  %v6485 = vld [vmem:[%s4698 + $0x2ba] sm:$0xff]
  %v6486 = vld [vmem:[%s4698 + $0x2c2] sm:$0xff]
  %v6487 = vld [vmem:[%s4698 + $0x2d2] sm:$0xff]
  %v6488 = vld [vmem:[%s4698 + $0x2da] sm:$0xff]
  %v6489 = vld [vmem:[%s4698 + $0x2ea] sm:$0xff]
  %v6490 = vld [vmem:[%s4698 + $0x2f2] sm:$0xff]
  %v6491 = vld [vmem:[%s4698 + $0x302] sm:$0xff]
  %v6492 = vld [vmem:[%s4698 + $0x30a] sm:$0xff]
  %v6493 = vld [vmem:[%s4698 + $0x31a] sm:$0xff]
  %v6494 = vld [vmem:[%s4698 + $0x322] sm:$0xff]
  %6559 = vrot.lane.b32.xlu0 %v6431, 40
  %v6560 = vpop.permute.xlu0 %6559
  %6561 = vrot.lane.b32.xlu0 %v6432, 40
  %v6562 = vpop.permute.xlu0 %6561
  %6563 = vrot.lane.b32.xlu0 %v6433, 40
  %v6564 = vpop.permute.xlu0 %6563
  %6565 = vrot.lane.b32.xlu0 %v6434, 40
  %v6566 = vpop.permute.xlu0 %6565
  %6567 = vrot.lane.b32.xlu0 %v6435, 40
  %v6568 = vpop.permute.xlu0 %6567
  %6569 = vrot.lane.b32.xlu0 %v6436, 40
  %v6570 = vpop.permute.xlu0 %6569
  %6571 = vrot.lane.b32.xlu0 %v6437, 40
  %v6572 = vpop.permute.xlu0 %6571
  %6573 = vrot.lane.b32.xlu0 %v6438, 40
  %v6574 = vpop.permute.xlu0 %6573
  %6575 = vrot.lane.b32.xlu0 %v6439, 40
  %v6576 = vpop.permute.xlu0 %6575
  %6577 = vrot.lane.b32.xlu0 %v6440, 40
  %v6578 = vpop.permute.xlu0 %6577
  %6579 = vrot.lane.b32.xlu0 %v6441, 40
  %v6580 = vpop.permute.xlu0 %6579
  %6581 = vrot.lane.b32.xlu0 %v6442, 40
  %v6582 = vpop.permute.xlu0 %6581
  %6583 = vrot.lane.b32.xlu0 %v6443, 40
  %v6584 = vpop.permute.xlu0 %6583
  %6585 = vrot.lane.b32.xlu0 %v6444, 40
  %v6586 = vpop.permute.xlu0 %6585
  %6587 = vrot.lane.b32.xlu0 %v6445, 40
  %v6588 = vpop.permute.xlu0 %6587
  %6589 = vrot.lane.b32.xlu0 %v6446, 40
  %v6590 = vpop.permute.xlu0 %6589
  %6591 = vrot.lane.b32.xlu0 %v6447, 40
  %v6592 = vpop.permute.xlu0 %6591
  %6593 = vrot.lane.b32.xlu0 %v6448, 40
  %v6594 = vpop.permute.xlu0 %6593
  %6595 = vrot.lane.b32.xlu0 %v6449, 40
  %v6596 = vpop.permute.xlu0 %6595
  %6597 = vrot.lane.b32.xlu0 %v6450, 40
  %v6598 = vpop.permute.xlu0 %6597
  %6599 = vrot.lane.b32.xlu0 %v6451, 40
  %v6600 = vpop.permute.xlu0 %6599
  %6601 = vrot.lane.b32.xlu0 %v6452, 40
  %v6602 = vpop.permute.xlu0 %6601
  %6603 = vrot.lane.b32.xlu0 %v6453, 40
  %v6604 = vpop.permute.xlu0 %6603
  %6605 = vrot.lane.b32.xlu0 %v6454, 40
  %v6606 = vpop.permute.xlu0 %6605
  %6607 = vrot.lane.b32.xlu0 %v6455, 40
  %v6608 = vpop.permute.xlu0 %6607
  %6609 = vrot.lane.b32.xlu0 %v6456, 40
  %v6610 = vpop.permute.xlu0 %6609
  %6611 = vrot.lane.b32.xlu0 %v6457, 40
  %v6612 = vpop.permute.xlu0 %6611
  %6613 = vrot.lane.b32.xlu0 %v6458, 40
  %v6614 = vpop.permute.xlu0 %6613
  %6615 = vrot.lane.b32.xlu0 %v6459, 40
  %v6616 = vpop.permute.xlu0 %6615
  %6617 = vrot.lane.b32.xlu0 %v6460, 40
  %v6618 = vpop.permute.xlu0 %6617
  %6619 = vrot.lane.b32.xlu0 %v6461, 40
  %v6620 = vpop.permute.xlu0 %6619
  %6621 = vrot.lane.b32.xlu0 %v6462, 40
  %v6622 = vpop.permute.xlu0 %6621
  %6623 = vrot.lane.b32.xlu0 %v6463, 40
  %v6624 = vpop.permute.xlu0 %6623
  %6625 = vrot.lane.b32.xlu0 %v6464, 40
  %v6626 = vpop.permute.xlu0 %6625
  %6627 = vrot.lane.b32.xlu0 %v6465, 40
  %v6628 = vpop.permute.xlu0 %6627
  %6629 = vrot.lane.b32.xlu0 %v6466, 40
  %v6630 = vpop.permute.xlu0 %6629
  %6631 = vrot.lane.b32.xlu0 %v6467, 40
  %v6632 = vpop.permute.xlu0 %6631
  %6633 = vrot.lane.b32.xlu0 %v6468, 40
  %v6634 = vpop.permute.xlu0 %6633
  %6635 = vrot.lane.b32.xlu0 %v6469, 40
  %v6636 = vpop.permute.xlu0 %6635
  %6637 = vrot.lane.b32.xlu0 %v6470, 40
  %v6638 = vpop.permute.xlu0 %6637
  %6639 = vrot.lane.b32.xlu0 %v6471, 40
  %v6640 = vpop.permute.xlu0 %6639
  %6641 = vrot.lane.b32.xlu0 %v6472, 40
  %v6642 = vpop.permute.xlu0 %6641
  %6643 = vrot.lane.b32.xlu0 %v6473, 40
  %v6644 = vpop.permute.xlu0 %6643
  %6645 = vrot.lane.b32.xlu0 %v6474, 40
  %v6646 = vpop.permute.xlu0 %6645
  %6647 = vrot.lane.b32.xlu0 %v6475, 40
  %v6648 = vpop.permute.xlu0 %6647
  %6649 = vrot.lane.b32.xlu0 %v6476, 40
  %v6650 = vpop.permute.xlu0 %6649
  %6651 = vrot.lane.b32.xlu0 %v6477, 40
  %v6652 = vpop.permute.xlu0 %6651
  %6653 = vrot.lane.b32.xlu0 %v6478, 40
  %v6654 = vpop.permute.xlu0 %6653
  %6655 = vrot.lane.b32.xlu0 %v6479, 40
  %v6656 = vpop.permute.xlu0 %6655
  %6657 = vrot.lane.b32.xlu0 %v6480, 40
  %v6658 = vpop.permute.xlu0 %6657
  %6659 = vrot.lane.b32.xlu0 %v6481, 40
  %v6660 = vpop.permute.xlu0 %6659
  %6661 = vrot.lane.b32.xlu0 %v6482, 40
  %v6662 = vpop.permute.xlu0 %6661
  %6663 = vrot.lane.b32.xlu0 %v6483, 40
  %v6664 = vpop.permute.xlu0 %6663
  %6665 = vrot.lane.b32.xlu0 %v6484, 40
  %v6666 = vpop.permute.xlu0 %6665
  %6667 = vrot.lane.b32.xlu0 %v6485, 40
  %v6668 = vpop.permute.xlu0 %6667
  %6669 = vrot.lane.b32.xlu0 %v6486, 40
  %v6670 = vpop.permute.xlu0 %6669
  %6671 = vrot.lane.b32.xlu0 %v6487, 40
  %v6672 = vpop.permute.xlu0 %6671
  %6673 = vrot.lane.b32.xlu0 %v6488, 40
  %v6674 = vpop.permute.xlu0 %6673
  %6675 = vrot.lane.b32.xlu0 %v6489, 40
  %v6676 = vpop.permute.xlu0 %6675
  %6677 = vrot.lane.b32.xlu0 %v6490, 40
  %v6678 = vpop.permute.xlu0 %6677
  %6679 = vrot.lane.b32.xlu0 %v6491, 40
  %v6680 = vpop.permute.xlu0 %6679
  %6681 = vrot.lane.b32.xlu0 %v6492, 40
  %v6682 = vpop.permute.xlu0 %6681
  %6683 = vrot.lane.b32.xlu0 %v6493, 40
  %v6684 = vpop.permute.xlu0 %6683
  %6685 = vrot.lane.b32.xlu0 %v6494, 40
  %v6686 = vpop.permute.xlu0 %6685
  %vm6751 = vcmask 392512
  %6752 = vst.msk [vmem:[#allocation5] sm:$0xff] %vm6751, %v6560
  %6753 = vst.msk [vmem:[#allocation5 + $0x8] sm:$0xff] %vm6751, %v6562
  %6754 = vst.msk [vmem:[#allocation5 + $0x10] sm:$0xff] %vm6751, %v6564
  %6755 = vst.msk [vmem:[#allocation5 + $0x18] sm:$0xff] %vm6751, %v6566
  %6756 = vst.msk [vmem:[#allocation5 + $0x20] sm:$0xff] %vm6751, %v6568
  %6757 = vst.msk [vmem:[#allocation5 + $0x28] sm:$0xff] %vm6751, %v6570
  %6758 = vst.msk [vmem:[#allocation5 + $0x30] sm:$0xff] %vm6751, %v6572
  %6759 = vst.msk [vmem:[#allocation5 + $0x38] sm:$0xff] %vm6751, %v6574
  %6760 = vst.msk [vmem:[#allocation5 + $0x40] sm:$0xff] %vm6751, %v6576
  %6761 = vst.msk [vmem:[#allocation5 + $0x48] sm:$0xff] %vm6751, %v6578
  %6762 = vst.msk [vmem:[#allocation5 + $0x50] sm:$0xff] %vm6751, %v6580
  %6763 = vst.msk [vmem:[#allocation5 + $0x58] sm:$0xff] %vm6751, %v6582
  %6764 = vst.msk [vmem:[#allocation5 + $0x60] sm:$0xff] %vm6751, %v6584
  %6765 = vst.msk [vmem:[#allocation5 + $0x68] sm:$0xff] %vm6751, %v6586
  %6766 = vst.msk [vmem:[#allocation5 + $0x70] sm:$0xff] %vm6751, %v6588
  %6767 = vst.msk [vmem:[#allocation5 + $0x78] sm:$0xff] %vm6751, %v6590
  %6768 = vst.msk [vmem:[#allocation5 + $0x80] sm:$0xff] %vm6751, %v6592
  %6769 = vst.msk [vmem:[#allocation5 + $0x88] sm:$0xff] %vm6751, %v6594
  %6770 = vst.msk [vmem:[#allocation5 + $0x90] sm:$0xff] %vm6751, %v6596
  %6771 = vst.msk [vmem:[#allocation5 + $0x98] sm:$0xff] %vm6751, %v6598
  %6772 = vst.msk [vmem:[#allocation5 + $0xa0] sm:$0xff] %vm6751, %v6600
  %6773 = vst.msk [vmem:[#allocation5 + $0xa8] sm:$0xff] %vm6751, %v6602
  %6774 = vst.msk [vmem:[#allocation5 + $0xb0] sm:$0xff] %vm6751, %v6604
  %6775 = vst.msk [vmem:[#allocation5 + $0xb8] sm:$0xff] %vm6751, %v6606
  %6776 = vst.msk [vmem:[#allocation5 + $0xc0] sm:$0xff] %vm6751, %v6608
  %6777 = vst.msk [vmem:[#allocation5 + $0xc8] sm:$0xff] %vm6751, %v6610
  %6778 = vst.msk [vmem:[#allocation5 + $0xd0] sm:$0xff] %vm6751, %v6612
  %6779 = vst.msk [vmem:[#allocation5 + $0xd8] sm:$0xff] %vm6751, %v6614
  %6780 = vst.msk [vmem:[#allocation5 + $0xe0] sm:$0xff] %vm6751, %v6616
  %6781 = vst.msk [vmem:[#allocation5 + $0xe8] sm:$0xff] %vm6751, %v6618
  %6782 = vst.msk [vmem:[#allocation5 + $0xf0] sm:$0xff] %vm6751, %v6620
  %6783 = vst.msk [vmem:[#allocation5 + $0xf8] sm:$0xff] %vm6751, %v6622
  %6784 = vst.msk [vmem:[#allocation5 + $0x100] sm:$0xff] %vm6751, %v6624
  %6785 = vst.msk [vmem:[#allocation5 + $0x108] sm:$0xff] %vm6751, %v6626
  %6786 = vst.msk [vmem:[#allocation5 + $0x110] sm:$0xff] %vm6751, %v6628
  %6787 = vst.msk [vmem:[#allocation5 + $0x118] sm:$0xff] %vm6751, %v6630
  %6788 = vst.msk [vmem:[#allocation5 + $0x120] sm:$0xff] %vm6751, %v6632
  %6789 = vst.msk [vmem:[#allocation5 + $0x128] sm:$0xff] %vm6751, %v6634
  %6790 = vst.msk [vmem:[#allocation5 + $0x130] sm:$0xff] %vm6751, %v6636
  %6791 = vst.msk [vmem:[#allocation5 + $0x138] sm:$0xff] %vm6751, %v6638
  %6792 = vst.msk [vmem:[#allocation5 + $0x140] sm:$0xff] %vm6751, %v6640
  %6793 = vst.msk [vmem:[#allocation5 + $0x148] sm:$0xff] %vm6751, %v6642
  %6794 = vst.msk [vmem:[#allocation5 + $0x150] sm:$0xff] %vm6751, %v6644
  %6795 = vst.msk [vmem:[#allocation5 + $0x158] sm:$0xff] %vm6751, %v6646
  %6796 = vst.msk [vmem:[#allocation5 + $0x160] sm:$0xff] %vm6751, %v6648
  %6797 = vst.msk [vmem:[#allocation5 + $0x168] sm:$0xff] %vm6751, %v6650
  %6798 = vst.msk [vmem:[#allocation5 + $0x170] sm:$0xff] %vm6751, %v6652
  %6799 = vst.msk [vmem:[#allocation5 + $0x178] sm:$0xff] %vm6751, %v6654
  %6800 = vst.msk [vmem:[#allocation5 + $0x180] sm:$0xff] %vm6751, %v6656
  %6801 = vst.msk [vmem:[#allocation5 + $0x188] sm:$0xff] %vm6751, %v6658
  %6802 = vst.msk [vmem:[#allocation5 + $0x190] sm:$0xff] %vm6751, %v6660
  %6803 = vst.msk [vmem:[#allocation5 + $0x198] sm:$0xff] %vm6751, %v6662
  %6804 = vst.msk [vmem:[#allocation5 + $0x1a0] sm:$0xff] %vm6751, %v6664
  %6805 = vst.msk [vmem:[#allocation5 + $0x1a8] sm:$0xff] %vm6751, %v6666
  %6806 = vst.msk [vmem:[#allocation5 + $0x1b0] sm:$0xff] %vm6751, %v6668
  %6807 = vst.msk [vmem:[#allocation5 + $0x1b8] sm:$0xff] %vm6751, %v6670
  %6808 = vst.msk [vmem:[#allocation5 + $0x1c0] sm:$0xff] %vm6751, %v6672
  %6809 = vst.msk [vmem:[#allocation5 + $0x1c8] sm:$0xff] %vm6751, %v6674
  %6810 = vst.msk [vmem:[#allocation5 + $0x1d0] sm:$0xff] %vm6751, %v6676
  %6811 = vst.msk [vmem:[#allocation5 + $0x1d8] sm:$0xff] %vm6751, %v6678
  %6812 = vst.msk [vmem:[#allocation5 + $0x1e0] sm:$0xff] %vm6751, %v6680
  %6813 = vst.msk [vmem:[#allocation5 + $0x1e8] sm:$0xff] %vm6751, %v6682
  %6814 = vst.msk [vmem:[#allocation5 + $0x1f0] sm:$0xff] %vm6751, %v6684
  %6815 = vst.msk [vmem:[#allocation5 + $0x1f8] sm:$0xff] %vm6751, %v6686
  %s6816 = scalar_lea.vmem [#allocation3], 48
  %v6817 = vld [vmem:[%s6816] sm:$0xff]
  %v6818 = vld [vmem:[%s6816 + $0x8] sm:$0xff]
  %v6819 = vld [vmem:[%s6816 + $0x18] sm:$0xff]
  %v6820 = vld [vmem:[%s6816 + $0x20] sm:$0xff]
  %v6821 = vld [vmem:[%s6816 + $0x30] sm:$0xff]
  %v6822 = vld [vmem:[%s6816 + $0x38] sm:$0xff]
  %v6823 = vld [vmem:[%s6816 + $0x48] sm:$0xff]
  %v6824 = vld [vmem:[%s6816 + $0x50] sm:$0xff]
  %v6825 = vld [vmem:[%s6816 + $0x60] sm:$0xff]
  %v6826 = vld [vmem:[%s6816 + $0x68] sm:$0xff]
  %v6827 = vld [vmem:[%s6816 + $0x78] sm:$0xff]
  %v6828 = vld [vmem:[%s6816 + $0x80] sm:$0xff]
  %v6829 = vld [vmem:[%s6816 + $0x90] sm:$0xff]
  %v6830 = vld [vmem:[%s6816 + $0x98] sm:$0xff]
  %v6831 = vld [vmem:[%s6816 + $0xa8] sm:$0xff]
  %v6832 = vld [vmem:[%s6816 + $0xb0] sm:$0xff]
  %v6833 = vld [vmem:[%s6816 + $0xc0] sm:$0xff]
  %v6834 = vld [vmem:[%s6816 + $0xc8] sm:$0xff]
  %v6835 = vld [vmem:[%s6816 + $0xd8] sm:$0xff]
  %v6836 = vld [vmem:[%s6816 + $0xe0] sm:$0xff]
  %v6837 = vld [vmem:[%s6816 + $0xf0] sm:$0xff]
  %v6838 = vld [vmem:[%s6816 + $0xf8] sm:$0xff]
  %v6839 = vld [vmem:[%s6816 + $0x108] sm:$0xff]
  %v6840 = vld [vmem:[%s6816 + $0x110] sm:$0xff]
  %v6841 = vld [vmem:[%s6816 + $0x120] sm:$0xff]
  %v6842 = vld [vmem:[%s6816 + $0x128] sm:$0xff]
  %v6843 = vld [vmem:[%s6816 + $0x138] sm:$0xff]
  %v6844 = vld [vmem:[%s6816 + $0x140] sm:$0xff]
  %v6845 = vld [vmem:[%s6816 + $0x150] sm:$0xff]
  %v6846 = vld [vmem:[%s6816 + $0x158] sm:$0xff]
  %v6847 = vld [vmem:[%s6816 + $0x168] sm:$0xff]
  %v6848 = vld [vmem:[%s6816 + $0x170] sm:$0xff]
  %v6849 = vld [vmem:[%s6816 + $0x1b0] sm:$0xff]
  %v6850 = vld [vmem:[%s6816 + $0x1b8] sm:$0xff]
  %v6851 = vld [vmem:[%s6816 + $0x1c8] sm:$0xff]
  %v6852 = vld [vmem:[%s6816 + $0x1d0] sm:$0xff]
  %v6853 = vld [vmem:[%s6816 + $0x1e0] sm:$0xff]
  %v6854 = vld [vmem:[%s6816 + $0x1e8] sm:$0xff]
  %v6855 = vld [vmem:[%s6816 + $0x1f8] sm:$0xff]
  %v6856 = vld [vmem:[%s6816 + $0x200] sm:$0xff]
  %v6857 = vld [vmem:[%s6816 + $0x210] sm:$0xff]
  %v6858 = vld [vmem:[%s6816 + $0x218] sm:$0xff]
  %v6859 = vld [vmem:[%s6816 + $0x228] sm:$0xff]
  %v6860 = vld [vmem:[%s6816 + $0x230] sm:$0xff]
  %v6861 = vld [vmem:[%s6816 + $0x240] sm:$0xff]
  %v6862 = vld [vmem:[%s6816 + $0x248] sm:$0xff]
  %v6863 = vld [vmem:[%s6816 + $0x258] sm:$0xff]
  %v6864 = vld [vmem:[%s6816 + $0x260] sm:$0xff]
  %v6865 = vld [vmem:[%s6816 + $0x270] sm:$0xff]
  %v6866 = vld [vmem:[%s6816 + $0x278] sm:$0xff]
  %v6867 = vld [vmem:[%s6816 + $0x288] sm:$0xff]
  %v6868 = vld [vmem:[%s6816 + $0x290] sm:$0xff]
  %v6869 = vld [vmem:[%s6816 + $0x2a0] sm:$0xff]
  %v6870 = vld [vmem:[%s6816 + $0x2a8] sm:$0xff]
  %v6871 = vld [vmem:[%s6816 + $0x2b8] sm:$0xff]
  %v6872 = vld [vmem:[%s6816 + $0x2c0] sm:$0xff]
  %v6873 = vld [vmem:[%s6816 + $0x2d0] sm:$0xff]
  %v6874 = vld [vmem:[%s6816 + $0x2d8] sm:$0xff]
  %v6875 = vld [vmem:[%s6816 + $0x2e8] sm:$0xff]
  %v6876 = vld [vmem:[%s6816 + $0x2f0] sm:$0xff]
  %v6877 = vld [vmem:[%s6816 + $0x300] sm:$0xff]
  %v6878 = vld [vmem:[%s6816 + $0x308] sm:$0xff]
  %v6879 = vld [vmem:[%s6816 + $0x318] sm:$0xff]
  %v6880 = vld [vmem:[%s6816 + $0x320] sm:$0xff]
  %6945 = vrot.lane.b32.xlu0 %v6817, 48
  %v6946 = vpop.permute.xlu0 %6945
  %6947 = vrot.lane.b32.xlu0 %v6818, 48
  %v6948 = vpop.permute.xlu0 %6947
  %6949 = vrot.lane.b32.xlu0 %v6819, 48
  %v6950 = vpop.permute.xlu0 %6949
  %6951 = vrot.lane.b32.xlu0 %v6820, 48
  %v6952 = vpop.permute.xlu0 %6951
  %6953 = vrot.lane.b32.xlu0 %v6821, 48
  %v6954 = vpop.permute.xlu0 %6953
  %6955 = vrot.lane.b32.xlu0 %v6822, 48
  %v6956 = vpop.permute.xlu0 %6955
  %6957 = vrot.lane.b32.xlu0 %v6823, 48
  %v6958 = vpop.permute.xlu0 %6957
  %6959 = vrot.lane.b32.xlu0 %v6824, 48
  %v6960 = vpop.permute.xlu0 %6959
  %6961 = vrot.lane.b32.xlu0 %v6825, 48
  %v6962 = vpop.permute.xlu0 %6961
  %6963 = vrot.lane.b32.xlu0 %v6826, 48
  %v6964 = vpop.permute.xlu0 %6963
  %6965 = vrot.lane.b32.xlu0 %v6827, 48
  %v6966 = vpop.permute.xlu0 %6965
  %6967 = vrot.lane.b32.xlu0 %v6828, 48
  %v6968 = vpop.permute.xlu0 %6967
  %6969 = vrot.lane.b32.xlu0 %v6829, 48
  %v6970 = vpop.permute.xlu0 %6969
  %6971 = vrot.lane.b32.xlu0 %v6830, 48
  %v6972 = vpop.permute.xlu0 %6971
  %6973 = vrot.lane.b32.xlu0 %v6831, 48
  %v6974 = vpop.permute.xlu0 %6973
  %6975 = vrot.lane.b32.xlu0 %v6832, 48
  %v6976 = vpop.permute.xlu0 %6975
  %6977 = vrot.lane.b32.xlu0 %v6833, 48
  %v6978 = vpop.permute.xlu0 %6977
  %6979 = vrot.lane.b32.xlu0 %v6834, 48
  %v6980 = vpop.permute.xlu0 %6979
  %6981 = vrot.lane.b32.xlu0 %v6835, 48
  %v6982 = vpop.permute.xlu0 %6981
  %6983 = vrot.lane.b32.xlu0 %v6836, 48
  %v6984 = vpop.permute.xlu0 %6983
  %6985 = vrot.lane.b32.xlu0 %v6837, 48
  %v6986 = vpop.permute.xlu0 %6985
  %6987 = vrot.lane.b32.xlu0 %v6838, 48
  %v6988 = vpop.permute.xlu0 %6987
  %6989 = vrot.lane.b32.xlu0 %v6839, 48
  %v6990 = vpop.permute.xlu0 %6989
  %6991 = vrot.lane.b32.xlu0 %v6840, 48
  %v6992 = vpop.permute.xlu0 %6991
  %6993 = vrot.lane.b32.xlu0 %v6841, 48
  %v6994 = vpop.permute.xlu0 %6993
  %6995 = vrot.lane.b32.xlu0 %v6842, 48
  %v6996 = vpop.permute.xlu0 %6995
  %6997 = vrot.lane.b32.xlu0 %v6843, 48
  %v6998 = vpop.permute.xlu0 %6997
  %6999 = vrot.lane.b32.xlu0 %v6844, 48
  %v7000 = vpop.permute.xlu0 %6999
  %7001 = vrot.lane.b32.xlu0 %v6845, 48
  %v7002 = vpop.permute.xlu0 %7001
  %7003 = vrot.lane.b32.xlu0 %v6846, 48
  %v7004 = vpop.permute.xlu0 %7003
  %7005 = vrot.lane.b32.xlu0 %v6847, 48
  %v7006 = vpop.permute.xlu0 %7005
  %7007 = vrot.lane.b32.xlu0 %v6848, 48
  %v7008 = vpop.permute.xlu0 %7007
  %7009 = vrot.lane.b32.xlu0 %v6849, 48
  %v7010 = vpop.permute.xlu0 %7009
  %7011 = vrot.lane.b32.xlu0 %v6850, 48
  %v7012 = vpop.permute.xlu0 %7011
  %7013 = vrot.lane.b32.xlu0 %v6851, 48
  %v7014 = vpop.permute.xlu0 %7013
  %7015 = vrot.lane.b32.xlu0 %v6852, 48
  %v7016 = vpop.permute.xlu0 %7015
  %7017 = vrot.lane.b32.xlu0 %v6853, 48
  %v7018 = vpop.permute.xlu0 %7017
  %7019 = vrot.lane.b32.xlu0 %v6854, 48
  %v7020 = vpop.permute.xlu0 %7019
  %7021 = vrot.lane.b32.xlu0 %v6855, 48
  %v7022 = vpop.permute.xlu0 %7021
  %7023 = vrot.lane.b32.xlu0 %v6856, 48
  %v7024 = vpop.permute.xlu0 %7023
  %7025 = vrot.lane.b32.xlu0 %v6857, 48
  %v7026 = vpop.permute.xlu0 %7025
  %7027 = vrot.lane.b32.xlu0 %v6858, 48
  %v7028 = vpop.permute.xlu0 %7027
  %7029 = vrot.lane.b32.xlu0 %v6859, 48
  %v7030 = vpop.permute.xlu0 %7029
  %7031 = vrot.lane.b32.xlu0 %v6860, 48
  %v7032 = vpop.permute.xlu0 %7031
  %7033 = vrot.lane.b32.xlu0 %v6861, 48
  %v7034 = vpop.permute.xlu0 %7033
  %7035 = vrot.lane.b32.xlu0 %v6862, 48
  %v7036 = vpop.permute.xlu0 %7035
  %7037 = vrot.lane.b32.xlu0 %v6863, 48
  %v7038 = vpop.permute.xlu0 %7037
  %7039 = vrot.lane.b32.xlu0 %v6864, 48
  %v7040 = vpop.permute.xlu0 %7039
  %7041 = vrot.lane.b32.xlu0 %v6865, 48
  %v7042 = vpop.permute.xlu0 %7041
  %7043 = vrot.lane.b32.xlu0 %v6866, 48
  %v7044 = vpop.permute.xlu0 %7043
  %7045 = vrot.lane.b32.xlu0 %v6867, 48
  %v7046 = vpop.permute.xlu0 %7045
  %7047 = vrot.lane.b32.xlu0 %v6868, 48
  %v7048 = vpop.permute.xlu0 %7047
  %7049 = vrot.lane.b32.xlu0 %v6869, 48
  %v7050 = vpop.permute.xlu0 %7049
  %7051 = vrot.lane.b32.xlu0 %v6870, 48
  %v7052 = vpop.permute.xlu0 %7051
  %7053 = vrot.lane.b32.xlu0 %v6871, 48
  %v7054 = vpop.permute.xlu0 %7053
  %7055 = vrot.lane.b32.xlu0 %v6872, 48
  %v7056 = vpop.permute.xlu0 %7055
  %7057 = vrot.lane.b32.xlu0 %v6873, 48
  %v7058 = vpop.permute.xlu0 %7057
  %7059 = vrot.lane.b32.xlu0 %v6874, 48
  %v7060 = vpop.permute.xlu0 %7059
  %7061 = vrot.lane.b32.xlu0 %v6875, 48
  %v7062 = vpop.permute.xlu0 %7061
  %7063 = vrot.lane.b32.xlu0 %v6876, 48
  %v7064 = vpop.permute.xlu0 %7063
  %7065 = vrot.lane.b32.xlu0 %v6877, 48
  %v7066 = vpop.permute.xlu0 %7065
  %7067 = vrot.lane.b32.xlu0 %v6878, 48
  %v7068 = vpop.permute.xlu0 %7067
  %7069 = vrot.lane.b32.xlu0 %v6879, 48
  %v7070 = vpop.permute.xlu0 %7069
  %7071 = vrot.lane.b32.xlu0 %v6880, 48
  %v7072 = vpop.permute.xlu0 %7071
  %vm7137 = vcmask 458112
  %7138 = vst.msk [vmem:[#allocation5] sm:$0xff] %vm7137, %v6946
  %7139 = vst.msk [vmem:[#allocation5 + $0x8] sm:$0xff] %vm7137, %v6948
  %7140 = vst.msk [vmem:[#allocation5 + $0x10] sm:$0xff] %vm7137, %v6950
  %7141 = vst.msk [vmem:[#allocation5 + $0x18] sm:$0xff] %vm7137, %v6952
  %7142 = vst.msk [vmem:[#allocation5 + $0x20] sm:$0xff] %vm7137, %v6954
  %7143 = vst.msk [vmem:[#allocation5 + $0x28] sm:$0xff] %vm7137, %v6956
  %7144 = vst.msk [vmem:[#allocation5 + $0x30] sm:$0xff] %vm7137, %v6958
  %7145 = vst.msk [vmem:[#allocation5 + $0x38] sm:$0xff] %vm7137, %v6960
  %7146 = vst.msk [vmem:[#allocation5 + $0x40] sm:$0xff] %vm7137, %v6962
  %7147 = vst.msk [vmem:[#allocation5 + $0x48] sm:$0xff] %vm7137, %v6964
  %7148 = vst.msk [vmem:[#allocation5 + $0x50] sm:$0xff] %vm7137, %v6966
  %7149 = vst.msk [vmem:[#allocation5 + $0x58] sm:$0xff] %vm7137, %v6968
  %7150 = vst.msk [vmem:[#allocation5 + $0x60] sm:$0xff] %vm7137, %v6970
  %7151 = vst.msk [vmem:[#allocation5 + $0x68] sm:$0xff] %vm7137, %v6972
  %7152 = vst.msk [vmem:[#allocation5 + $0x70] sm:$0xff] %vm7137, %v6974
  %7153 = vst.msk [vmem:[#allocation5 + $0x78] sm:$0xff] %vm7137, %v6976
  %7154 = vst.msk [vmem:[#allocation5 + $0x80] sm:$0xff] %vm7137, %v6978
  %7155 = vst.msk [vmem:[#allocation5 + $0x88] sm:$0xff] %vm7137, %v6980
  %7156 = vst.msk [vmem:[#allocation5 + $0x90] sm:$0xff] %vm7137, %v6982
  %7157 = vst.msk [vmem:[#allocation5 + $0x98] sm:$0xff] %vm7137, %v6984
  %7158 = vst.msk [vmem:[#allocation5 + $0xa0] sm:$0xff] %vm7137, %v6986
  %7159 = vst.msk [vmem:[#allocation5 + $0xa8] sm:$0xff] %vm7137, %v6988
  %7160 = vst.msk [vmem:[#allocation5 + $0xb0] sm:$0xff] %vm7137, %v6990
  %7161 = vst.msk [vmem:[#allocation5 + $0xb8] sm:$0xff] %vm7137, %v6992
  %7162 = vst.msk [vmem:[#allocation5 + $0xc0] sm:$0xff] %vm7137, %v6994
  %7163 = vst.msk [vmem:[#allocation5 + $0xc8] sm:$0xff] %vm7137, %v6996
  %7164 = vst.msk [vmem:[#allocation5 + $0xd0] sm:$0xff] %vm7137, %v6998
  %7165 = vst.msk [vmem:[#allocation5 + $0xd8] sm:$0xff] %vm7137, %v7000
  %7166 = vst.msk [vmem:[#allocation5 + $0xe0] sm:$0xff] %vm7137, %v7002
  %7167 = vst.msk [vmem:[#allocation5 + $0xe8] sm:$0xff] %vm7137, %v7004
  %7168 = vst.msk [vmem:[#allocation5 + $0xf0] sm:$0xff] %vm7137, %v7006
  %7169 = vst.msk [vmem:[#allocation5 + $0xf8] sm:$0xff] %vm7137, %v7008
  %7170 = vst.msk [vmem:[#allocation5 + $0x100] sm:$0xff] %vm7137, %v7010
  %7171 = vst.msk [vmem:[#allocation5 + $0x108] sm:$0xff] %vm7137, %v7012
  %7172 = vst.msk [vmem:[#allocation5 + $0x110] sm:$0xff] %vm7137, %v7014
  %7173 = vst.msk [vmem:[#allocation5 + $0x118] sm:$0xff] %vm7137, %v7016
  %7174 = vst.msk [vmem:[#allocation5 + $0x120] sm:$0xff] %vm7137, %v7018
  %7175 = vst.msk [vmem:[#allocation5 + $0x128] sm:$0xff] %vm7137, %v7020
  %7176 = vst.msk [vmem:[#allocation5 + $0x130] sm:$0xff] %vm7137, %v7022
  %7177 = vst.msk [vmem:[#allocation5 + $0x138] sm:$0xff] %vm7137, %v7024
  %7178 = vst.msk [vmem:[#allocation5 + $0x140] sm:$0xff] %vm7137, %v7026
  %7179 = vst.msk [vmem:[#allocation5 + $0x148] sm:$0xff] %vm7137, %v7028
  %7180 = vst.msk [vmem:[#allocation5 + $0x150] sm:$0xff] %vm7137, %v7030
  %7181 = vst.msk [vmem:[#allocation5 + $0x158] sm:$0xff] %vm7137, %v7032
  %7182 = vst.msk [vmem:[#allocation5 + $0x160] sm:$0xff] %vm7137, %v7034
  %7183 = vst.msk [vmem:[#allocation5 + $0x168] sm:$0xff] %vm7137, %v7036
  %7184 = vst.msk [vmem:[#allocation5 + $0x170] sm:$0xff] %vm7137, %v7038
  %7185 = vst.msk [vmem:[#allocation5 + $0x178] sm:$0xff] %vm7137, %v7040
  %7186 = vst.msk [vmem:[#allocation5 + $0x180] sm:$0xff] %vm7137, %v7042
  %7187 = vst.msk [vmem:[#allocation5 + $0x188] sm:$0xff] %vm7137, %v7044
  %7188 = vst.msk [vmem:[#allocation5 + $0x190] sm:$0xff] %vm7137, %v7046
  %7189 = vst.msk [vmem:[#allocation5 + $0x198] sm:$0xff] %vm7137, %v7048
  %7190 = vst.msk [vmem:[#allocation5 + $0x1a0] sm:$0xff] %vm7137, %v7050
  %7191 = vst.msk [vmem:[#allocation5 + $0x1a8] sm:$0xff] %vm7137, %v7052
  %7192 = vst.msk [vmem:[#allocation5 + $0x1b0] sm:$0xff] %vm7137, %v7054
  %7193 = vst.msk [vmem:[#allocation5 + $0x1b8] sm:$0xff] %vm7137, %v7056
  %7194 = vst.msk [vmem:[#allocation5 + $0x1c0] sm:$0xff] %vm7137, %v7058
  %7195 = vst.msk [vmem:[#allocation5 + $0x1c8] sm:$0xff] %vm7137, %v7060
  %7196 = vst.msk [vmem:[#allocation5 + $0x1d0] sm:$0xff] %vm7137, %v7062
  %7197 = vst.msk [vmem:[#allocation5 + $0x1d8] sm:$0xff] %vm7137, %v7064
  %7198 = vst.msk [vmem:[#allocation5 + $0x1e0] sm:$0xff] %vm7137, %v7066
  %7199 = vst.msk [vmem:[#allocation5 + $0x1e8] sm:$0xff] %vm7137, %v7068
  %7200 = vst.msk [vmem:[#allocation5 + $0x1f0] sm:$0xff] %vm7137, %v7070
  %7201 = vst.msk [vmem:[#allocation5 + $0x1f8] sm:$0xff] %vm7137, %v7072
  %v7202 = vld [vmem:[%s6816 + $0x1] sm:$0xff]
  %v7203 = vld [vmem:[%s6816 + $0x9] sm:$0xff]
  %v7204 = vld [vmem:[%s6816 + $0x19] sm:$0xff]
  %v7205 = vld [vmem:[%s6816 + $0x21] sm:$0xff]
  %v7206 = vld [vmem:[%s6816 + $0x31] sm:$0xff]
  %v7207 = vld [vmem:[%s6816 + $0x39] sm:$0xff]
  %v7208 = vld [vmem:[%s6816 + $0x49] sm:$0xff]
  %v7209 = vld [vmem:[%s6816 + $0x51] sm:$0xff]
  %v7210 = vld [vmem:[%s6816 + $0x61] sm:$0xff]
  %v7211 = vld [vmem:[%s6816 + $0x69] sm:$0xff]
  %v7212 = vld [vmem:[%s6816 + $0x79] sm:$0xff]
  %v7213 = vld [vmem:[%s6816 + $0x81] sm:$0xff]
  %v7214 = vld [vmem:[%s6816 + $0x91] sm:$0xff]
  %v7215 = vld [vmem:[%s6816 + $0x99] sm:$0xff]
  %v7216 = vld [vmem:[%s6816 + $0xa9] sm:$0xff]
  %v7217 = vld [vmem:[%s6816 + $0xb1] sm:$0xff]
  %v7218 = vld [vmem:[%s6816 + $0xc1] sm:$0xff]
  %v7219 = vld [vmem:[%s6816 + $0xc9] sm:$0xff]
  %v7220 = vld [vmem:[%s6816 + $0xd9] sm:$0xff]
  %v7221 = vld [vmem:[%s6816 + $0xe1] sm:$0xff]
  %v7222 = vld [vmem:[%s6816 + $0xf1] sm:$0xff]
  %v7223 = vld [vmem:[%s6816 + $0xf9] sm:$0xff]
  %v7224 = vld [vmem:[%s6816 + $0x109] sm:$0xff]
  %v7225 = vld [vmem:[%s6816 + $0x111] sm:$0xff]
  %v7226 = vld [vmem:[%s6816 + $0x121] sm:$0xff]
  %v7227 = vld [vmem:[%s6816 + $0x129] sm:$0xff]
  %v7228 = vld [vmem:[%s6816 + $0x139] sm:$0xff]
  %v7229 = vld [vmem:[%s6816 + $0x141] sm:$0xff]
  %v7230 = vld [vmem:[%s6816 + $0x151] sm:$0xff]
  %v7231 = vld [vmem:[%s6816 + $0x159] sm:$0xff]
  %v7232 = vld [vmem:[%s6816 + $0x169] sm:$0xff]
  %v7233 = vld [vmem:[%s6816 + $0x171] sm:$0xff]
  %v7234 = vld [vmem:[%s6816 + $0x1b1] sm:$0xff]
  %v7235 = vld [vmem:[%s6816 + $0x1b9] sm:$0xff]
  %v7236 = vld [vmem:[%s6816 + $0x1c9] sm:$0xff]
  %v7237 = vld [vmem:[%s6816 + $0x1d1] sm:$0xff]
  %v7238 = vld [vmem:[%s6816 + $0x1e1] sm:$0xff]
  %v7239 = vld [vmem:[%s6816 + $0x1e9] sm:$0xff]
  %v7240 = vld [vmem:[%s6816 + $0x1f9] sm:$0xff]
  %v7241 = vld [vmem:[%s6816 + $0x201] sm:$0xff]
  %v7242 = vld [vmem:[%s6816 + $0x211] sm:$0xff]
  %v7243 = vld [vmem:[%s6816 + $0x219] sm:$0xff]
  %v7244 = vld [vmem:[%s6816 + $0x229] sm:$0xff]
  %v7245 = vld [vmem:[%s6816 + $0x231] sm:$0xff]
  %v7246 = vld [vmem:[%s6816 + $0x241] sm:$0xff]
  %v7247 = vld [vmem:[%s6816 + $0x249] sm:$0xff]
  %v7248 = vld [vmem:[%s6816 + $0x259] sm:$0xff]
  %v7249 = vld [vmem:[%s6816 + $0x261] sm:$0xff]
  %v7250 = vld [vmem:[%s6816 + $0x271] sm:$0xff]
  %v7251 = vld [vmem:[%s6816 + $0x279] sm:$0xff]
  %v7252 = vld [vmem:[%s6816 + $0x289] sm:$0xff]
  %v7253 = vld [vmem:[%s6816 + $0x291] sm:$0xff]
  %v7254 = vld [vmem:[%s6816 + $0x2a1] sm:$0xff]
  %v7255 = vld [vmem:[%s6816 + $0x2a9] sm:$0xff]
  %v7256 = vld [vmem:[%s6816 + $0x2b9] sm:$0xff]
  %v7257 = vld [vmem:[%s6816 + $0x2c1] sm:$0xff]
  %v7258 = vld [vmem:[%s6816 + $0x2d1] sm:$0xff]
  %v7259 = vld [vmem:[%s6816 + $0x2d9] sm:$0xff]
  %v7260 = vld [vmem:[%s6816 + $0x2e9] sm:$0xff]
  %v7261 = vld [vmem:[%s6816 + $0x2f1] sm:$0xff]
  %v7262 = vld [vmem:[%s6816 + $0x301] sm:$0xff]
  %v7263 = vld [vmem:[%s6816 + $0x309] sm:$0xff]
  %v7264 = vld [vmem:[%s6816 + $0x319] sm:$0xff]
  %v7265 = vld [vmem:[%s6816 + $0x321] sm:$0xff]
  %7330 = vrot.lane.b32.xlu0 %v7202, 56
  %v7331 = vpop.permute.xlu0 %7330
  %7332 = vrot.lane.b32.xlu0 %v7203, 56
  %v7333 = vpop.permute.xlu0 %7332
  %7334 = vrot.lane.b32.xlu0 %v7204, 56
  %v7335 = vpop.permute.xlu0 %7334
  %7336 = vrot.lane.b32.xlu0 %v7205, 56
  %v7337 = vpop.permute.xlu0 %7336
  %7338 = vrot.lane.b32.xlu0 %v7206, 56
  %v7339 = vpop.permute.xlu0 %7338
  %7340 = vrot.lane.b32.xlu0 %v7207, 56
  %v7341 = vpop.permute.xlu0 %7340
  %7342 = vrot.lane.b32.xlu0 %v7208, 56
  %v7343 = vpop.permute.xlu0 %7342
  %7344 = vrot.lane.b32.xlu0 %v7209, 56
  %v7345 = vpop.permute.xlu0 %7344
  %7346 = vrot.lane.b32.xlu0 %v7210, 56
  %v7347 = vpop.permute.xlu0 %7346
  %7348 = vrot.lane.b32.xlu0 %v7211, 56
  %v7349 = vpop.permute.xlu0 %7348
  %7350 = vrot.lane.b32.xlu0 %v7212, 56
  %v7351 = vpop.permute.xlu0 %7350
  %7352 = vrot.lane.b32.xlu0 %v7213, 56
  %v7353 = vpop.permute.xlu0 %7352
  %7354 = vrot.lane.b32.xlu0 %v7214, 56
  %v7355 = vpop.permute.xlu0 %7354
  %7356 = vrot.lane.b32.xlu0 %v7215, 56
  %v7357 = vpop.permute.xlu0 %7356
  %7358 = vrot.lane.b32.xlu0 %v7216, 56
  %v7359 = vpop.permute.xlu0 %7358
  %7360 = vrot.lane.b32.xlu0 %v7217, 56
  %v7361 = vpop.permute.xlu0 %7360
  %7362 = vrot.lane.b32.xlu0 %v7218, 56
  %v7363 = vpop.permute.xlu0 %7362
  %7364 = vrot.lane.b32.xlu0 %v7219, 56
  %v7365 = vpop.permute.xlu0 %7364
  %7366 = vrot.lane.b32.xlu0 %v7220, 56
  %v7367 = vpop.permute.xlu0 %7366
  %7368 = vrot.lane.b32.xlu0 %v7221, 56
  %v7369 = vpop.permute.xlu0 %7368
  %7370 = vrot.lane.b32.xlu0 %v7222, 56
  %v7371 = vpop.permute.xlu0 %7370
  %7372 = vrot.lane.b32.xlu0 %v7223, 56
  %v7373 = vpop.permute.xlu0 %7372
  %7374 = vrot.lane.b32.xlu0 %v7224, 56
  %v7375 = vpop.permute.xlu0 %7374
  %7376 = vrot.lane.b32.xlu0 %v7225, 56
  %v7377 = vpop.permute.xlu0 %7376
  %7378 = vrot.lane.b32.xlu0 %v7226, 56
  %v7379 = vpop.permute.xlu0 %7378
  %7380 = vrot.lane.b32.xlu0 %v7227, 56
  %v7381 = vpop.permute.xlu0 %7380
  %7382 = vrot.lane.b32.xlu0 %v7228, 56
  %v7383 = vpop.permute.xlu0 %7382
  %7384 = vrot.lane.b32.xlu0 %v7229, 56
  %v7385 = vpop.permute.xlu0 %7384
  %7386 = vrot.lane.b32.xlu0 %v7230, 56
  %v7387 = vpop.permute.xlu0 %7386
  %7388 = vrot.lane.b32.xlu0 %v7231, 56
  %v7389 = vpop.permute.xlu0 %7388
  %7390 = vrot.lane.b32.xlu0 %v7232, 56
  %v7391 = vpop.permute.xlu0 %7390
  %7392 = vrot.lane.b32.xlu0 %v7233, 56
  %v7393 = vpop.permute.xlu0 %7392
  %7394 = vrot.lane.b32.xlu0 %v7234, 56
  %v7395 = vpop.permute.xlu0 %7394
  %7396 = vrot.lane.b32.xlu0 %v7235, 56
  %v7397 = vpop.permute.xlu0 %7396
  %7398 = vrot.lane.b32.xlu0 %v7236, 56
  %v7399 = vpop.permute.xlu0 %7398
  %7400 = vrot.lane.b32.xlu0 %v7237, 56
  %v7401 = vpop.permute.xlu0 %7400
  %7402 = vrot.lane.b32.xlu0 %v7238, 56
  %v7403 = vpop.permute.xlu0 %7402
  %7404 = vrot.lane.b32.xlu0 %v7239, 56
  %v7405 = vpop.permute.xlu0 %7404
  %7406 = vrot.lane.b32.xlu0 %v7240, 56
  %v7407 = vpop.permute.xlu0 %7406
  %7408 = vrot.lane.b32.xlu0 %v7241, 56
  %v7409 = vpop.permute.xlu0 %7408
  %7410 = vrot.lane.b32.xlu0 %v7242, 56
  %v7411 = vpop.permute.xlu0 %7410
  %7412 = vrot.lane.b32.xlu0 %v7243, 56
  %v7413 = vpop.permute.xlu0 %7412
  %7414 = vrot.lane.b32.xlu0 %v7244, 56
  %v7415 = vpop.permute.xlu0 %7414
  %7416 = vrot.lane.b32.xlu0 %v7245, 56
  %v7417 = vpop.permute.xlu0 %7416
  %7418 = vrot.lane.b32.xlu0 %v7246, 56
  %v7419 = vpop.permute.xlu0 %7418
  %7420 = vrot.lane.b32.xlu0 %v7247, 56
  %v7421 = vpop.permute.xlu0 %7420
  %7422 = vrot.lane.b32.xlu0 %v7248, 56
  %v7423 = vpop.permute.xlu0 %7422
  %7424 = vrot.lane.b32.xlu0 %v7249, 56
  %v7425 = vpop.permute.xlu0 %7424
  %7426 = vrot.lane.b32.xlu0 %v7250, 56
  %v7427 = vpop.permute.xlu0 %7426
  %7428 = vrot.lane.b32.xlu0 %v7251, 56
  %v7429 = vpop.permute.xlu0 %7428
  %7430 = vrot.lane.b32.xlu0 %v7252, 56
  %v7431 = vpop.permute.xlu0 %7430
  %7432 = vrot.lane.b32.xlu0 %v7253, 56
  %v7433 = vpop.permute.xlu0 %7432
  %7434 = vrot.lane.b32.xlu0 %v7254, 56
  %v7435 = vpop.permute.xlu0 %7434
  %7436 = vrot.lane.b32.xlu0 %v7255, 56
  %v7437 = vpop.permute.xlu0 %7436
  %7438 = vrot.lane.b32.xlu0 %v7256, 56
  %v7439 = vpop.permute.xlu0 %7438
  %7440 = vrot.lane.b32.xlu0 %v7257, 56
  %v7441 = vpop.permute.xlu0 %7440
  %7442 = vrot.lane.b32.xlu0 %v7258, 56
  %v7443 = vpop.permute.xlu0 %7442
  %7444 = vrot.lane.b32.xlu0 %v7259, 56
  %v7445 = vpop.permute.xlu0 %7444
  %7446 = vrot.lane.b32.xlu0 %v7260, 56
  %v7447 = vpop.permute.xlu0 %7446
  %7448 = vrot.lane.b32.xlu0 %v7261, 56
  %v7449 = vpop.permute.xlu0 %7448
  %7450 = vrot.lane.b32.xlu0 %v7262, 56
  %v7451 = vpop.permute.xlu0 %7450
  %7452 = vrot.lane.b32.xlu0 %v7263, 56
  %v7453 = vpop.permute.xlu0 %7452
  %7454 = vrot.lane.b32.xlu0 %v7264, 56
  %v7455 = vpop.permute.xlu0 %7454
  %7456 = vrot.lane.b32.xlu0 %v7265, 56
  %v7457 = vpop.permute.xlu0 %7456
  %vm7522 = vcmask 523712
  %7523 = vst.msk [vmem:[#allocation5] sm:$0xff] %vm7522, %v7331
  %7524 = vst.msk [vmem:[#allocation5 + $0x8] sm:$0xff] %vm7522, %v7333
  %7525 = vst.msk [vmem:[#allocation5 + $0x10] sm:$0xff] %vm7522, %v7335
  %7526 = vst.msk [vmem:[#allocation5 + $0x18] sm:$0xff] %vm7522, %v7337
  %7527 = vst.msk [vmem:[#allocation5 + $0x20] sm:$0xff] %vm7522, %v7339
  %7528 = vst.msk [vmem:[#allocation5 + $0x28] sm:$0xff] %vm7522, %v7341
  %7529 = vst.msk [vmem:[#allocation5 + $0x30] sm:$0xff] %vm7522, %v7343
  %7530 = vst.msk [vmem:[#allocation5 + $0x38] sm:$0xff] %vm7522, %v7345
  %7531 = vst.msk [vmem:[#allocation5 + $0x40] sm:$0xff] %vm7522, %v7347
  %7532 = vst.msk [vmem:[#allocation5 + $0x48] sm:$0xff] %vm7522, %v7349
  %7533 = vst.msk [vmem:[#allocation5 + $0x50] sm:$0xff] %vm7522, %v7351
  %7534 = vst.msk [vmem:[#allocation5 + $0x58] sm:$0xff] %vm7522, %v7353
  %7535 = vst.msk [vmem:[#allocation5 + $0x60] sm:$0xff] %vm7522, %v7355
  %7536 = vst.msk [vmem:[#allocation5 + $0x68] sm:$0xff] %vm7522, %v7357
  %7537 = vst.msk [vmem:[#allocation5 + $0x70] sm:$0xff] %vm7522, %v7359
  %7538 = vst.msk [vmem:[#allocation5 + $0x78] sm:$0xff] %vm7522, %v7361
  %7539 = vst.msk [vmem:[#allocation5 + $0x80] sm:$0xff] %vm7522, %v7363
  %7540 = vst.msk [vmem:[#allocation5 + $0x88] sm:$0xff] %vm7522, %v7365
  %7541 = vst.msk [vmem:[#allocation5 + $0x90] sm:$0xff] %vm7522, %v7367
  %7542 = vst.msk [vmem:[#allocation5 + $0x98] sm:$0xff] %vm7522, %v7369
  %7543 = vst.msk [vmem:[#allocation5 + $0xa0] sm:$0xff] %vm7522, %v7371
  %7544 = vst.msk [vmem:[#allocation5 + $0xa8] sm:$0xff] %vm7522, %v7373
  %7545 = vst.msk [vmem:[#allocation5 + $0xb0] sm:$0xff] %vm7522, %v7375
  %7546 = vst.msk [vmem:[#allocation5 + $0xb8] sm:$0xff] %vm7522, %v7377
  %7547 = vst.msk [vmem:[#allocation5 + $0xc0] sm:$0xff] %vm7522, %v7379
  %7548 = vst.msk [vmem:[#allocation5 + $0xc8] sm:$0xff] %vm7522, %v7381
  %7549 = vst.msk [vmem:[#allocation5 + $0xd0] sm:$0xff] %vm7522, %v7383
  %7550 = vst.msk [vmem:[#allocation5 + $0xd8] sm:$0xff] %vm7522, %v7385
  %7551 = vst.msk [vmem:[#allocation5 + $0xe0] sm:$0xff] %vm7522, %v7387
  %7552 = vst.msk [vmem:[#allocation5 + $0xe8] sm:$0xff] %vm7522, %v7389
  %7553 = vst.msk [vmem:[#allocation5 + $0xf0] sm:$0xff] %vm7522, %v7391
  %7554 = vst.msk [vmem:[#allocation5 + $0xf8] sm:$0xff] %vm7522, %v7393
  %7555 = vst.msk [vmem:[#allocation5 + $0x100] sm:$0xff] %vm7522, %v7395
  %7556 = vst.msk [vmem:[#allocation5 + $0x108] sm:$0xff] %vm7522, %v7397
  %7557 = vst.msk [vmem:[#allocation5 + $0x110] sm:$0xff] %vm7522, %v7399
  %7558 = vst.msk [vmem:[#allocation5 + $0x118] sm:$0xff] %vm7522, %v7401
  %7559 = vst.msk [vmem:[#allocation5 + $0x120] sm:$0xff] %vm7522, %v7403
  %7560 = vst.msk [vmem:[#allocation5 + $0x128] sm:$0xff] %vm7522, %v7405
  %7561 = vst.msk [vmem:[#allocation5 + $0x130] sm:$0xff] %vm7522, %v7407
  %7562 = vst.msk [vmem:[#allocation5 + $0x138] sm:$0xff] %vm7522, %v7409
  %7563 = vst.msk [vmem:[#allocation5 + $0x140] sm:$0xff] %vm7522, %v7411
  %7564 = vst.msk [vmem:[#allocation5 + $0x148] sm:$0xff] %vm7522, %v7413
  %7565 = vst.msk [vmem:[#allocation5 + $0x150] sm:$0xff] %vm7522, %v7415
  %7566 = vst.msk [vmem:[#allocation5 + $0x158] sm:$0xff] %vm7522, %v7417
  %7567 = vst.msk [vmem:[#allocation5 + $0x160] sm:$0xff] %vm7522, %v7419
  %7568 = vst.msk [vmem:[#allocation5 + $0x168] sm:$0xff] %vm7522, %v7421
  %7569 = vst.msk [vmem:[#allocation5 + $0x170] sm:$0xff] %vm7522, %v7423
  %7570 = vst.msk [vmem:[#allocation5 + $0x178] sm:$0xff] %vm7522, %v7425
  %7571 = vst.msk [vmem:[#allocation5 + $0x180] sm:$0xff] %vm7522, %v7427
  %7572 = vst.msk [vmem:[#allocation5 + $0x188] sm:$0xff] %vm7522, %v7429
  %7573 = vst.msk [vmem:[#allocation5 + $0x190] sm:$0xff] %vm7522, %v7431
  %7574 = vst.msk [vmem:[#allocation5 + $0x198] sm:$0xff] %vm7522, %v7433
  %7575 = vst.msk [vmem:[#allocation5 + $0x1a0] sm:$0xff] %vm7522, %v7435
  %7576 = vst.msk [vmem:[#allocation5 + $0x1a8] sm:$0xff] %vm7522, %v7437
  %7577 = vst.msk [vmem:[#allocation5 + $0x1b0] sm:$0xff] %vm7522, %v7439
  %7578 = vst.msk [vmem:[#allocation5 + $0x1b8] sm:$0xff] %vm7522, %v7441
  %7579 = vst.msk [vmem:[#allocation5 + $0x1c0] sm:$0xff] %vm7522, %v7443
  %7580 = vst.msk [vmem:[#allocation5 + $0x1c8] sm:$0xff] %vm7522, %v7445
  %7581 = vst.msk [vmem:[#allocation5 + $0x1d0] sm:$0xff] %vm7522, %v7447
  %7582 = vst.msk [vmem:[#allocation5 + $0x1d8] sm:$0xff] %vm7522, %v7449
  %7583 = vst.msk [vmem:[#allocation5 + $0x1e0] sm:$0xff] %vm7522, %v7451
  %7584 = vst.msk [vmem:[#allocation5 + $0x1e8] sm:$0xff] %vm7522, %v7453
  %7585 = vst.msk [vmem:[#allocation5 + $0x1f0] sm:$0xff] %vm7522, %v7455
  %7586 = vst.msk [vmem:[#allocation5 + $0x1f8] sm:$0xff] %vm7522, %v7457
  %v7587 = vld [vmem:[%s6816 + $0x2] sm:$0xff]
  %v7588 = vld [vmem:[%s6816 + $0xa] sm:$0xff]
  %v7589 = vld [vmem:[%s6816 + $0x1a] sm:$0xff]
  %v7590 = vld [vmem:[%s6816 + $0x22] sm:$0xff]
  %v7591 = vld [vmem:[%s6816 + $0x32] sm:$0xff]
  %v7592 = vld [vmem:[%s6816 + $0x3a] sm:$0xff]
  %v7593 = vld [vmem:[%s6816 + $0x4a] sm:$0xff]
  %v7594 = vld [vmem:[%s6816 + $0x52] sm:$0xff]
  %v7595 = vld [vmem:[%s6816 + $0x62] sm:$0xff]
  %v7596 = vld [vmem:[%s6816 + $0x6a] sm:$0xff]
  %v7597 = vld [vmem:[%s6816 + $0x7a] sm:$0xff]
  %v7598 = vld [vmem:[%s6816 + $0x82] sm:$0xff]
  %v7599 = vld [vmem:[%s6816 + $0x92] sm:$0xff]
  %v7600 = vld [vmem:[%s6816 + $0x9a] sm:$0xff]
  %v7601 = vld [vmem:[%s6816 + $0xaa] sm:$0xff]
  %v7602 = vld [vmem:[%s6816 + $0xb2] sm:$0xff]
  %v7603 = vld [vmem:[%s6816 + $0xc2] sm:$0xff]
  %v7604 = vld [vmem:[%s6816 + $0xca] sm:$0xff]
  %v7605 = vld [vmem:[%s6816 + $0xda] sm:$0xff]
  %v7606 = vld [vmem:[%s6816 + $0xe2] sm:$0xff]
  %v7607 = vld [vmem:[%s6816 + $0xf2] sm:$0xff]
  %v7608 = vld [vmem:[%s6816 + $0xfa] sm:$0xff]
  %v7609 = vld [vmem:[%s6816 + $0x10a] sm:$0xff]
  %v7610 = vld [vmem:[%s6816 + $0x112] sm:$0xff]
  %v7611 = vld [vmem:[%s6816 + $0x122] sm:$0xff]
  %v7612 = vld [vmem:[%s6816 + $0x12a] sm:$0xff]
  %v7613 = vld [vmem:[%s6816 + $0x13a] sm:$0xff]
  %v7614 = vld [vmem:[%s6816 + $0x142] sm:$0xff]
  %v7615 = vld [vmem:[%s6816 + $0x152] sm:$0xff]
  %v7616 = vld [vmem:[%s6816 + $0x15a] sm:$0xff]
  %v7617 = vld [vmem:[%s6816 + $0x16a] sm:$0xff]
  %v7618 = vld [vmem:[%s6816 + $0x172] sm:$0xff]
  %v7619 = vld [vmem:[%s6816 + $0x1b2] sm:$0xff]
  %v7620 = vld [vmem:[%s6816 + $0x1ba] sm:$0xff]
  %v7621 = vld [vmem:[%s6816 + $0x1ca] sm:$0xff]
  %v7622 = vld [vmem:[%s6816 + $0x1d2] sm:$0xff]
  %v7623 = vld [vmem:[%s6816 + $0x1e2] sm:$0xff]
  %v7624 = vld [vmem:[%s6816 + $0x1ea] sm:$0xff]
  %v7625 = vld [vmem:[%s6816 + $0x1fa] sm:$0xff]
  %v7626 = vld [vmem:[%s6816 + $0x202] sm:$0xff]
  %v7627 = vld [vmem:[%s6816 + $0x212] sm:$0xff]
  %v7628 = vld [vmem:[%s6816 + $0x21a] sm:$0xff]
  %v7629 = vld [vmem:[%s6816 + $0x22a] sm:$0xff]
  %v7630 = vld [vmem:[%s6816 + $0x232] sm:$0xff]
  %v7631 = vld [vmem:[%s6816 + $0x242] sm:$0xff]
  %v7632 = vld [vmem:[%s6816 + $0x24a] sm:$0xff]
  %v7633 = vld [vmem:[%s6816 + $0x25a] sm:$0xff]
  %v7634 = vld [vmem:[%s6816 + $0x262] sm:$0xff]
  %v7635 = vld [vmem:[%s6816 + $0x272] sm:$0xff]
  %v7636 = vld [vmem:[%s6816 + $0x27a] sm:$0xff]
  %v7637 = vld [vmem:[%s6816 + $0x28a] sm:$0xff]
  %v7638 = vld [vmem:[%s6816 + $0x292] sm:$0xff]
  %v7639 = vld [vmem:[%s6816 + $0x2a2] sm:$0xff]
  %v7640 = vld [vmem:[%s6816 + $0x2aa] sm:$0xff]
  %v7641 = vld [vmem:[%s6816 + $0x2ba] sm:$0xff]
  %v7642 = vld [vmem:[%s6816 + $0x2c2] sm:$0xff]
  %v7643 = vld [vmem:[%s6816 + $0x2d2] sm:$0xff]
  %v7644 = vld [vmem:[%s6816 + $0x2da] sm:$0xff]
  %v7645 = vld [vmem:[%s6816 + $0x2ea] sm:$0xff]
  %v7646 = vld [vmem:[%s6816 + $0x2f2] sm:$0xff]
  %v7647 = vld [vmem:[%s6816 + $0x302] sm:$0xff]
  %v7648 = vld [vmem:[%s6816 + $0x30a] sm:$0xff]
  %v7649 = vld [vmem:[%s6816 + $0x31a] sm:$0xff]
  %v7650 = vld [vmem:[%s6816 + $0x322] sm:$0xff]
  %7715 = vrot.lane.b32.xlu0 %v7587, 64
  %v7716 = vpop.permute.xlu0 %7715
  %7717 = vrot.lane.b32.xlu0 %v7588, 64
  %v7718 = vpop.permute.xlu0 %7717
  %7719 = vrot.lane.b32.xlu0 %v7589, 64
  %v7720 = vpop.permute.xlu0 %7719
  %7721 = vrot.lane.b32.xlu0 %v7590, 64
  %v7722 = vpop.permute.xlu0 %7721
  %7723 = vrot.lane.b32.xlu0 %v7591, 64
  %v7724 = vpop.permute.xlu0 %7723
  %7725 = vrot.lane.b32.xlu0 %v7592, 64
  %v7726 = vpop.permute.xlu0 %7725
  %7727 = vrot.lane.b32.xlu0 %v7593, 64
  %v7728 = vpop.permute.xlu0 %7727
  %7729 = vrot.lane.b32.xlu0 %v7594, 64
  %v7730 = vpop.permute.xlu0 %7729
  %7731 = vrot.lane.b32.xlu0 %v7595, 64
  %v7732 = vpop.permute.xlu0 %7731
  %7733 = vrot.lane.b32.xlu0 %v7596, 64
  %v7734 = vpop.permute.xlu0 %7733
  %7735 = vrot.lane.b32.xlu0 %v7597, 64
  %v7736 = vpop.permute.xlu0 %7735
  %7737 = vrot.lane.b32.xlu0 %v7598, 64
  %v7738 = vpop.permute.xlu0 %7737
  %7739 = vrot.lane.b32.xlu0 %v7599, 64
  %v7740 = vpop.permute.xlu0 %7739
  %7741 = vrot.lane.b32.xlu0 %v7600, 64
  %v7742 = vpop.permute.xlu0 %7741
  %7743 = vrot.lane.b32.xlu0 %v7601, 64
  %v7744 = vpop.permute.xlu0 %7743
  %7745 = vrot.lane.b32.xlu0 %v7602, 64
  %v7746 = vpop.permute.xlu0 %7745
  %7747 = vrot.lane.b32.xlu0 %v7603, 64
  %v7748 = vpop.permute.xlu0 %7747
  %7749 = vrot.lane.b32.xlu0 %v7604, 64
  %v7750 = vpop.permute.xlu0 %7749
  %7751 = vrot.lane.b32.xlu0 %v7605, 64
  %v7752 = vpop.permute.xlu0 %7751
  %7753 = vrot.lane.b32.xlu0 %v7606, 64
  %v7754 = vpop.permute.xlu0 %7753
  %7755 = vrot.lane.b32.xlu0 %v7607, 64
  %v7756 = vpop.permute.xlu0 %7755
  %7757 = vrot.lane.b32.xlu0 %v7608, 64
  %v7758 = vpop.permute.xlu0 %7757
  %7759 = vrot.lane.b32.xlu0 %v7609, 64
  %v7760 = vpop.permute.xlu0 %7759
  %7761 = vrot.lane.b32.xlu0 %v7610, 64
  %v7762 = vpop.permute.xlu0 %7761
  %7763 = vrot.lane.b32.xlu0 %v7611, 64
  %v7764 = vpop.permute.xlu0 %7763
  %7765 = vrot.lane.b32.xlu0 %v7612, 64
  %v7766 = vpop.permute.xlu0 %7765
  %7767 = vrot.lane.b32.xlu0 %v7613, 64
  %v7768 = vpop.permute.xlu0 %7767
  %7769 = vrot.lane.b32.xlu0 %v7614, 64
  %v7770 = vpop.permute.xlu0 %7769
  %7771 = vrot.lane.b32.xlu0 %v7615, 64
  %v7772 = vpop.permute.xlu0 %7771
  %7773 = vrot.lane.b32.xlu0 %v7616, 64
  %v7774 = vpop.permute.xlu0 %7773
  %7775 = vrot.lane.b32.xlu0 %v7617, 64
  %v7776 = vpop.permute.xlu0 %7775
  %7777 = vrot.lane.b32.xlu0 %v7618, 64
  %v7778 = vpop.permute.xlu0 %7777
  %7779 = vrot.lane.b32.xlu0 %v7619, 64
  %v7780 = vpop.permute.xlu0 %7779
  %7781 = vrot.lane.b32.xlu0 %v7620, 64
  %v7782 = vpop.permute.xlu0 %7781
  %7783 = vrot.lane.b32.xlu0 %v7621, 64
  %v7784 = vpop.permute.xlu0 %7783
  %7785 = vrot.lane.b32.xlu0 %v7622, 64
  %v7786 = vpop.permute.xlu0 %7785
  %7787 = vrot.lane.b32.xlu0 %v7623, 64
  %v7788 = vpop.permute.xlu0 %7787
  %7789 = vrot.lane.b32.xlu0 %v7624, 64
  %v7790 = vpop.permute.xlu0 %7789
  %7791 = vrot.lane.b32.xlu0 %v7625, 64
  %v7792 = vpop.permute.xlu0 %7791
  %7793 = vrot.lane.b32.xlu0 %v7626, 64
  %v7794 = vpop.permute.xlu0 %7793
  %7795 = vrot.lane.b32.xlu0 %v7627, 64
  %v7796 = vpop.permute.xlu0 %7795
  %7797 = vrot.lane.b32.xlu0 %v7628, 64
  %v7798 = vpop.permute.xlu0 %7797
  %7799 = vrot.lane.b32.xlu0 %v7629, 64
  %v7800 = vpop.permute.xlu0 %7799
  %7801 = vrot.lane.b32.xlu0 %v7630, 64
  %v7802 = vpop.permute.xlu0 %7801
  %7803 = vrot.lane.b32.xlu0 %v7631, 64
  %v7804 = vpop.permute.xlu0 %7803
  %7805 = vrot.lane.b32.xlu0 %v7632, 64
  %v7806 = vpop.permute.xlu0 %7805
  %7807 = vrot.lane.b32.xlu0 %v7633, 64
  %v7808 = vpop.permute.xlu0 %7807
  %7809 = vrot.lane.b32.xlu0 %v7634, 64
  %v7810 = vpop.permute.xlu0 %7809
  %7811 = vrot.lane.b32.xlu0 %v7635, 64
  %v7812 = vpop.permute.xlu0 %7811
  %7813 = vrot.lane.b32.xlu0 %v7636, 64
  %v7814 = vpop.permute.xlu0 %7813
  %7815 = vrot.lane.b32.xlu0 %v7637, 64
  %v7816 = vpop.permute.xlu0 %7815
  %7817 = vrot.lane.b32.xlu0 %v7638, 64
  %v7818 = vpop.permute.xlu0 %7817
  %7819 = vrot.lane.b32.xlu0 %v7639, 64
  %v7820 = vpop.permute.xlu0 %7819
  %7821 = vrot.lane.b32.xlu0 %v7640, 64
  %v7822 = vpop.permute.xlu0 %7821
  %7823 = vrot.lane.b32.xlu0 %v7641, 64
  %v7824 = vpop.permute.xlu0 %7823
  %7825 = vrot.lane.b32.xlu0 %v7642, 64
  %v7826 = vpop.permute.xlu0 %7825
  %7827 = vrot.lane.b32.xlu0 %v7643, 64
  %v7828 = vpop.permute.xlu0 %7827
  %7829 = vrot.lane.b32.xlu0 %v7644, 64
  %v7830 = vpop.permute.xlu0 %7829
  %7831 = vrot.lane.b32.xlu0 %v7645, 64
  %v7832 = vpop.permute.xlu0 %7831
  %7833 = vrot.lane.b32.xlu0 %v7646, 64
  %v7834 = vpop.permute.xlu0 %7833
  %7835 = vrot.lane.b32.xlu0 %v7647, 64
  %v7836 = vpop.permute.xlu0 %7835
  %7837 = vrot.lane.b32.xlu0 %v7648, 64
  %v7838 = vpop.permute.xlu0 %7837
  %7839 = vrot.lane.b32.xlu0 %v7649, 64
  %v7840 = vpop.permute.xlu0 %7839
  %7841 = vrot.lane.b32.xlu0 %v7650, 64
  %v7842 = vpop.permute.xlu0 %7841
  %vm7907 = vcmask 589312
  %7908 = vst.msk [vmem:[#allocation5] sm:$0xff] %vm7907, %v7716
  %7909 = vst.msk [vmem:[#allocation5 + $0x8] sm:$0xff] %vm7907, %v7718
  %7910 = vst.msk [vmem:[#allocation5 + $0x10] sm:$0xff] %vm7907, %v7720
  %7911 = vst.msk [vmem:[#allocation5 + $0x18] sm:$0xff] %vm7907, %v7722
  %7912 = vst.msk [vmem:[#allocation5 + $0x20] sm:$0xff] %vm7907, %v7724
  %7913 = vst.msk [vmem:[#allocation5 + $0x28] sm:$0xff] %vm7907, %v7726
  %7914 = vst.msk [vmem:[#allocation5 + $0x30] sm:$0xff] %vm7907, %v7728
  %7915 = vst.msk [vmem:[#allocation5 + $0x38] sm:$0xff] %vm7907, %v7730
  %7916 = vst.msk [vmem:[#allocation5 + $0x40] sm:$0xff] %vm7907, %v7732
  %7917 = vst.msk [vmem:[#allocation5 + $0x48] sm:$0xff] %vm7907, %v7734
  %7918 = vst.msk [vmem:[#allocation5 + $0x50] sm:$0xff] %vm7907, %v7736
  %7919 = vst.msk [vmem:[#allocation5 + $0x58] sm:$0xff] %vm7907, %v7738
  %7920 = vst.msk [vmem:[#allocation5 + $0x60] sm:$0xff] %vm7907, %v7740
  %7921 = vst.msk [vmem:[#allocation5 + $0x68] sm:$0xff] %vm7907, %v7742
  %7922 = vst.msk [vmem:[#allocation5 + $0x70] sm:$0xff] %vm7907, %v7744
  %7923 = vst.msk [vmem:[#allocation5 + $0x78] sm:$0xff] %vm7907, %v7746
  %7924 = vst.msk [vmem:[#allocation5 + $0x80] sm:$0xff] %vm7907, %v7748
  %7925 = vst.msk [vmem:[#allocation5 + $0x88] sm:$0xff] %vm7907, %v7750
  %7926 = vst.msk [vmem:[#allocation5 + $0x90] sm:$0xff] %vm7907, %v7752
  %7927 = vst.msk [vmem:[#allocation5 + $0x98] sm:$0xff] %vm7907, %v7754
  %7928 = vst.msk [vmem:[#allocation5 + $0xa0] sm:$0xff] %vm7907, %v7756
  %7929 = vst.msk [vmem:[#allocation5 + $0xa8] sm:$0xff] %vm7907, %v7758
  %7930 = vst.msk [vmem:[#allocation5 + $0xb0] sm:$0xff] %vm7907, %v7760
  %7931 = vst.msk [vmem:[#allocation5 + $0xb8] sm:$0xff] %vm7907, %v7762
  %7932 = vst.msk [vmem:[#allocation5 + $0xc0] sm:$0xff] %vm7907, %v7764
  %7933 = vst.msk [vmem:[#allocation5 + $0xc8] sm:$0xff] %vm7907, %v7766
  %7934 = vst.msk [vmem:[#allocation5 + $0xd0] sm:$0xff] %vm7907, %v7768
  %7935 = vst.msk [vmem:[#allocation5 + $0xd8] sm:$0xff] %vm7907, %v7770
  %7936 = vst.msk [vmem:[#allocation5 + $0xe0] sm:$0xff] %vm7907, %v7772
  %7937 = vst.msk [vmem:[#allocation5 + $0xe8] sm:$0xff] %vm7907, %v7774
  %7938 = vst.msk [vmem:[#allocation5 + $0xf0] sm:$0xff] %vm7907, %v7776
  %7939 = vst.msk [vmem:[#allocation5 + $0xf8] sm:$0xff] %vm7907, %v7778
  %7940 = vst.msk [vmem:[#allocation5 + $0x100] sm:$0xff] %vm7907, %v7780
  %7941 = vst.msk [vmem:[#allocation5 + $0x108] sm:$0xff] %vm7907, %v7782
  %7942 = vst.msk [vmem:[#allocation5 + $0x110] sm:$0xff] %vm7907, %v7784
  %7943 = vst.msk [vmem:[#allocation5 + $0x118] sm:$0xff] %vm7907, %v7786
  %7944 = vst.msk [vmem:[#allocation5 + $0x120] sm:$0xff] %vm7907, %v7788
  %7945 = vst.msk [vmem:[#allocation5 + $0x128] sm:$0xff] %vm7907, %v7790
  %7946 = vst.msk [vmem:[#allocation5 + $0x130] sm:$0xff] %vm7907, %v7792
  %7947 = vst.msk [vmem:[#allocation5 + $0x138] sm:$0xff] %vm7907, %v7794
  %7948 = vst.msk [vmem:[#allocation5 + $0x140] sm:$0xff] %vm7907, %v7796
  %7949 = vst.msk [vmem:[#allocation5 + $0x148] sm:$0xff] %vm7907, %v7798
  %7950 = vst.msk [vmem:[#allocation5 + $0x150] sm:$0xff] %vm7907, %v7800
  %7951 = vst.msk [vmem:[#allocation5 + $0x158] sm:$0xff] %vm7907, %v7802
  %7952 = vst.msk [vmem:[#allocation5 + $0x160] sm:$0xff] %vm7907, %v7804
  %7953 = vst.msk [vmem:[#allocation5 + $0x168] sm:$0xff] %vm7907, %v7806
  %7954 = vst.msk [vmem:[#allocation5 + $0x170] sm:$0xff] %vm7907, %v7808
  %7955 = vst.msk [vmem:[#allocation5 + $0x178] sm:$0xff] %vm7907, %v7810
  %7956 = vst.msk [vmem:[#allocation5 + $0x180] sm:$0xff] %vm7907, %v7812
  %7957 = vst.msk [vmem:[#allocation5 + $0x188] sm:$0xff] %vm7907, %v7814
  %7958 = vst.msk [vmem:[#allocation5 + $0x190] sm:$0xff] %vm7907, %v7816
  %7959 = vst.msk [vmem:[#allocation5 + $0x198] sm:$0xff] %vm7907, %v7818
  %7960 = vst.msk [vmem:[#allocation5 + $0x1a0] sm:$0xff] %vm7907, %v7820
  %7961 = vst.msk [vmem:[#allocation5 + $0x1a8] sm:$0xff] %vm7907, %v7822
  %7962 = vst.msk [vmem:[#allocation5 + $0x1b0] sm:$0xff] %vm7907, %v7824
  %7963 = vst.msk [vmem:[#allocation5 + $0x1b8] sm:$0xff] %vm7907, %v7826
  %7964 = vst.msk [vmem:[#allocation5 + $0x1c0] sm:$0xff] %vm7907, %v7828
  %7965 = vst.msk [vmem:[#allocation5 + $0x1c8] sm:$0xff] %vm7907, %v7830
  %7966 = vst.msk [vmem:[#allocation5 + $0x1d0] sm:$0xff] %vm7907, %v7832
  %7967 = vst.msk [vmem:[#allocation5 + $0x1d8] sm:$0xff] %vm7907, %v7834
  %7968 = vst.msk [vmem:[#allocation5 + $0x1e0] sm:$0xff] %vm7907, %v7836
  %7969 = vst.msk [vmem:[#allocation5 + $0x1e8] sm:$0xff] %vm7907, %v7838
  %7970 = vst.msk [vmem:[#allocation5 + $0x1f0] sm:$0xff] %vm7907, %v7840
  %7971 = vst.msk [vmem:[#allocation5 + $0x1f8] sm:$0xff] %vm7907, %v7842
  %v7972 = vld [vmem:[#allocation5] sm:$0xff]
  %v7973 = vld [vmem:[#allocation5 + $0x8] sm:$0xff]
  %v7974 = vld [vmem:[#allocation5 + $0x10] sm:$0xff]
  %v7975 = vld [vmem:[#allocation5 + $0x18] sm:$0xff]
  %v7976 = vld [vmem:[#allocation5 + $0x20] sm:$0xff]
  %v7977 = vld [vmem:[#allocation5 + $0x28] sm:$0xff]
  %v7978 = vld [vmem:[#allocation5 + $0x30] sm:$0xff]
  %v7979 = vld [vmem:[#allocation5 + $0x38] sm:$0xff]
  %v7980 = vld [vmem:[#allocation5 + $0x40] sm:$0xff]
  %v7981 = vld [vmem:[#allocation5 + $0x48] sm:$0xff]
  %v7982 = vld [vmem:[#allocation5 + $0x50] sm:$0xff]
  %v7983 = vld [vmem:[#allocation5 + $0x58] sm:$0xff]
  %v7984 = vld [vmem:[#allocation5 + $0x60] sm:$0xff]
  %v7985 = vld [vmem:[#allocation5 + $0x68] sm:$0xff]
  %v7986 = vld [vmem:[#allocation5 + $0x70] sm:$0xff]
  %v7987 = vld [vmem:[#allocation5 + $0x78] sm:$0xff]
  %v7988 = vld [vmem:[#allocation5 + $0x80] sm:$0xff]
  %v7989 = vld [vmem:[#allocation5 + $0x88] sm:$0xff]
  %v7990 = vld [vmem:[#allocation5 + $0x90] sm:$0xff]
  %v7991 = vld [vmem:[#allocation5 + $0x98] sm:$0xff]
  %v7992 = vld [vmem:[#allocation5 + $0xa0] sm:$0xff]
  %v7993 = vld [vmem:[#allocation5 + $0xa8] sm:$0xff]
  %v7994 = vld [vmem:[#allocation5 + $0xb0] sm:$0xff]
  %v7995 = vld [vmem:[#allocation5 + $0xb8] sm:$0xff]
  %v7996 = vld [vmem:[#allocation5 + $0xc0] sm:$0xff]
  %v7997 = vld [vmem:[#allocation5 + $0xc8] sm:$0xff]
  %v7998 = vld [vmem:[#allocation5 + $0xd0] sm:$0xff]
  %v7999 = vld [vmem:[#allocation5 + $0xd8] sm:$0xff]
  %v8000 = vld [vmem:[#allocation5 + $0xe0] sm:$0xff]
  %v8001 = vld [vmem:[#allocation5 + $0xe8] sm:$0xff]
  %v8002 = vld [vmem:[#allocation5 + $0xf0] sm:$0xff]
  %v8003 = vld [vmem:[#allocation5 + $0xf8] sm:$0xff]
  %v8004 = vld [vmem:[#allocation5 + $0x100] sm:$0xff]
  %v8005 = vld [vmem:[#allocation5 + $0x108] sm:$0xff]
  %v8006 = vld [vmem:[#allocation5 + $0x110] sm:$0xff]
  %v8007 = vld [vmem:[#allocation5 + $0x118] sm:$0xff]
  %v8008 = vld [vmem:[#allocation5 + $0x120] sm:$0xff]
  %v8009 = vld [vmem:[#allocation5 + $0x128] sm:$0xff]
  %v8010 = vld [vmem:[#allocation5 + $0x130] sm:$0xff]
  %v8011 = vld [vmem:[#allocation5 + $0x138] sm:$0xff]
  %v8012 = vld [vmem:[#allocation5 + $0x140] sm:$0xff]
  %v8013 = vld [vmem:[#allocation5 + $0x148] sm:$0xff]
  %v8014 = vld [vmem:[#allocation5 + $0x150] sm:$0xff]
  %v8015 = vld [vmem:[#allocation5 + $0x158] sm:$0xff]
  %v8016 = vld [vmem:[#allocation5 + $0x160] sm:$0xff]
  %v8017 = vld [vmem:[#allocation5 + $0x168] sm:$0xff]
  %v8018 = vld [vmem:[#allocation5 + $0x170] sm:$0xff]
  %v8019 = vld [vmem:[#allocation5 + $0x178] sm:$0xff]
  %v8020 = vld [vmem:[#allocation5 + $0x180] sm:$0xff]
  %v8021 = vld [vmem:[#allocation5 + $0x188] sm:$0xff]
  %v8022 = vld [vmem:[#allocation5 + $0x190] sm:$0xff]
  %v8023 = vld [vmem:[#allocation5 + $0x198] sm:$0xff]
  %v8024 = vld [vmem:[#allocation5 + $0x1a0] sm:$0xff]
  %v8025 = vld [vmem:[#allocation5 + $0x1a8] sm:$0xff]
  %v8026 = vld [vmem:[#allocation5 + $0x1b0] sm:$0xff]
  %v8027 = vld [vmem:[#allocation5 + $0x1b8] sm:$0xff]
  %v8028 = vld [vmem:[#allocation5 + $0x1c0] sm:$0xff]
  %v8029 = vld [vmem:[#allocation5 + $0x1c8] sm:$0xff]
  %v8030 = vld [vmem:[#allocation5 + $0x1d0] sm:$0xff]
  %v8031 = vld [vmem:[#allocation5 + $0x1d8] sm:$0xff]
  %v8032 = vld [vmem:[#allocation5 + $0x1e0] sm:$0xff]
  %v8033 = vld [vmem:[#allocation5 + $0x1e8] sm:$0xff]
  %v8034 = vld [vmem:[#allocation5 + $0x1f0] sm:$0xff]
  %v8035 = vld [vmem:[#allocation5 + $0x1f8] sm:$0xff]
  %v8036 = vpack.c.bf16 %v7973, %v7972
  %v8037 = vpack.c.bf16 %v7975, %v7974
  %v8038 = vpack.c.bf16 %v7977, %v7976
  %v8039 = vpack.c.bf16 %v7979, %v7978
  %v8040 = vpack.c.bf16 %v7981, %v7980
  %v8041 = vpack.c.bf16 %v7983, %v7982
  %v8042 = vpack.c.bf16 %v7985, %v7984
  %v8043 = vpack.c.bf16 %v7987, %v7986
  %v8044 = vpack.c.bf16 %v7989, %v7988
  %v8045 = vpack.c.bf16 %v7991, %v7990
  %v8046 = vpack.c.bf16 %v7993, %v7992
  %v8047 = vpack.c.bf16 %v7995, %v7994
  %v8048 = vpack.c.bf16 %v7997, %v7996
  %v8049 = vpack.c.bf16 %v7999, %v7998
  %v8050 = vpack.c.bf16 %v8001, %v8000
  %v8051 = vpack.c.bf16 %v8003, %v8002
  %v8052 = vpack.c.bf16 %v8005, %v8004
  %v8053 = vpack.c.bf16 %v8007, %v8006
  %v8054 = vpack.c.bf16 %v8009, %v8008
  %v8055 = vpack.c.bf16 %v8011, %v8010
  %v8056 = vpack.c.bf16 %v8013, %v8012
  %v8057 = vpack.c.bf16 %v8015, %v8014
  %v8058 = vpack.c.bf16 %v8017, %v8016
  %v8059 = vpack.c.bf16 %v8019, %v8018
  %v8060 = vpack.c.bf16 %v8021, %v8020
  %v8061 = vpack.c.bf16 %v8023, %v8022
  %v8062 = vpack.c.bf16 %v8025, %v8024
  %v8063 = vpack.c.bf16 %v8027, %v8026
  %v8064 = vpack.c.bf16 %v8029, %v8028
  %v8065 = vpack.c.bf16 %v8031, %v8030
  %v8066 = vpack.c.bf16 %v8033, %v8032
  %v8067 = vpack.c.bf16 %v8035, %v8034
  %v8068 = vld [vmem:[%s4] sm:$0xf]
  %v8069 = vld [vmem:[%s4 + $0x4] sm:$0xf]
  %v8070 = vld [vmem:[%s4 + $0x8] sm:$0xf]
  %v8071 = vld [vmem:[%s4 + $0xc] sm:$0xf]
  %v8072 = vld [vmem:[%s4 + $0x10] sm:$0xf]
  %v8073 = vld [vmem:[%s4 + $0x14] sm:$0xf]
  %v8074 = vld [vmem:[%s4 + $0x18] sm:$0xf]
  %v8075 = vld [vmem:[%s4 + $0x1c] sm:$0xf]
  %v8076 = vld [vmem:[%s4 + $0x20] sm:$0xf]
  %v8086 = vunpack.c.l.b16 %v8068
  %v8087 = vunpack.c.l.b16 %v8069
  %v8088 = vunpack.c.l.b16 %v8070
  %v8089 = vunpack.c.l.b16 %v8071
  %v8090 = vunpack.c.l.b16 %v8072
  %v8091 = vunpack.c.l.b16 %v8073
  %v8092 = vunpack.c.l.b16 %v8074
  %v8093 = vunpack.c.l.b16 %v8075
  %v8094 = vunpack.c.l.b16 %v8076
  %v8095 = vpack.c.b16 %v8087, %v8086
  %v8096 = vpack.c.b16 %v8089, %v8088
  %v8097 = vpack.c.b16 %v8091, %v8090
  %v8098 = vpack.c.b16 %v8093, %v8092
  %v8099 = vpack.c.b16 %v8094, %v8094
  %vm8104 = vcmask 588800
  %v8106 = vsel %vm8104, %v8036, 0
  %v8109 = vsel %vm8104, %v8037, 0
  %v8112 = vsel %vm8104, %v8038, 0
  %v8115 = vsel %vm8104, %v8039, 0
  %v8118 = vsel %vm8104, %v8040, 0
  %v8121 = vsel %vm8104, %v8041, 0
  %v8124 = vsel %vm8104, %v8042, 0
  %v8127 = vsel %vm8104, %v8043, 0
  %v8130 = vsel %vm8104, %v8044, 0
  %v8133 = vsel %vm8104, %v8045, 0
  %v8136 = vsel %vm8104, %v8046, 0
  %v8139 = vsel %vm8104, %v8047, 0
  %v8142 = vsel %vm8104, %v8048, 0
  %v8145 = vsel %vm8104, %v8049, 0
  %v8148 = vsel %vm8104, %v8050, 0
  %v8151 = vsel %vm8104, %v8051, 0
  %v8154 = vsel %vm8104, %v8052, 0
  %v8157 = vsel %vm8104, %v8053, 0
  %v8160 = vsel %vm8104, %v8054, 0
  %v8163 = vsel %vm8104, %v8055, 0
  %v8166 = vsel %vm8104, %v8056, 0
  %v8169 = vsel %vm8104, %v8057, 0
  %v8172 = vsel %vm8104, %v8058, 0
  %v8175 = vsel %vm8104, %v8059, 0
  %v8178 = vsel %vm8104, %v8060, 0
  %v8181 = vsel %vm8104, %v8061, 0
  %v8184 = vsel %vm8104, %v8062, 0
  %v8187 = vsel %vm8104, %v8063, 0
  %v8190 = vsel %vm8104, %v8064, 0
  %v8193 = vsel %vm8104, %v8065, 0
  %v8196 = vsel %vm8104, %v8066, 0
  %v8199 = vsel %vm8104, %v8067, 0
  %v8202 = vsel %vm3737, %v8099, 0
  %8204 = vmatprep.subr.bf16.mxu0 0
  %8205 = vmatpush1.bf16.msra.mxu0 %v8095
  %8206 = vmatprep.subr.bf16.mxu0 0
  %8207 = vmatpush1.bf16.msra.mxu0 %v8096
  %8208 = vmatprep.subr.bf16.mxu0 0
  %8209 = vmatpush1.bf16.msra.mxu0 %v8097
  %8210 = vmatprep.subr.bf16.mxu0 0
  %8211 = vmatpush1.bf16.msra.mxu0 %v8098
  %8212 = vmatprep.subr.bf16.mxu0 0
  %8213 = vmatpush1.bf16.msra.mxu0 %v8202
  %8214 = vmatprep.subr.bf16.mxu0 0
  %8215 = vmatpush1.bf16.msra.mxu0 0
  %8216 = vmatprep.subr.bf16.mxu0 0
  %8217 = vmatpush1.bf16.msra.mxu0 0
  %8218 = vmatprep.subr.bf16.mxu0 0
  %8219 = vmatpush1.bf16.msra.mxu0 0
  %8220 = vmatprep.subr.bf16.mxu0 0
  %8221 = vmatpush1.bf16.msra.mxu0 0
  %8222 = vmatprep.subr.bf16.mxu0 0
  %8223 = vmatpush1.bf16.msra.mxu0 0
  %8224 = vmatprep.subr.bf16.mxu0 0
  %8225 = vmatpush1.bf16.msra.mxu0 0
  %8226 = vmatprep.subr.bf16.mxu0 0
  %8227 = vmatpush1.bf16.msra.mxu0 0
  %8228 = vmatprep.subr.bf16.mxu0 0
  %8229 = vmatpush1.bf16.msra.mxu0 0
  %8230 = vmatprep.subr.bf16.mxu0 0
  %8231 = vmatpush1.bf16.msra.mxu0 0
  %8232 = vmatprep.subr.bf16.mxu0 0
  %8233 = vmatpush1.bf16.msra.mxu0 0
  %8234 = vmatprep.subr.bf16.mxu0 0
  %8235 = vmatpush1.bf16.msra.mxu0 0
  %8236 = vmatprep.mubr.bf16.mxu0 0
  %8237 = vmatmul.mubr.bf16.gmra.mrb[0].mxu0 %v8106
  %v8238 = vpop.f32.mrb[0].mxu0
  %v8239 = vadd.f32 0.0, %v8238
  %v8240 = vpop.f32.mrb[0].mxu0
  %v8241 = vpop.f32.mrb[0].mxu0
  %v8242 = vadd.f32 0.0, %v8241
  %v8243 = vpop.f32.mrb[0].mxu0
  %8244 = vmatprep.mubr.bf16.mxu0 0
  %8245 = vmatmul.mubr.bf16.gmra.mrb[0].mxu0 %v8109
  %v8246 = vpop.f32.mrb[0].mxu0
  %v8247 = vadd.f32 0.0, %v8246
  %v8248 = vpop.f32.mrb[0].mxu0
  %v8249 = vpop.f32.mrb[0].mxu0
  %v8250 = vadd.f32 0.0, %v8249
  %v8251 = vpop.f32.mrb[0].mxu0
  %8252 = vmatprep.mubr.bf16.mxu0 0
  %8253 = vmatmul.mubr.bf16.gmra.mrb[0].mxu0 %v8112
  %v8254 = vpop.f32.mrb[0].mxu0
  %v8255 = vadd.f32 0.0, %v8254
  %v8256 = vpop.f32.mrb[0].mxu0
  %v8257 = vpop.f32.mrb[0].mxu0
  %v8258 = vadd.f32 0.0, %v8257
  %v8259 = vpop.f32.mrb[0].mxu0
  %8260 = vmatprep.mubr.bf16.mxu0 0
  %8261 = vmatmul.mubr.bf16.gmra.mrb[0].mxu0 %v8115
  %v8262 = vpop.f32.mrb[0].mxu0
  %v8263 = vadd.f32 0.0, %v8262
  %v8264 = vpop.f32.mrb[0].mxu0
  %v8265 = vpop.f32.mrb[0].mxu0
  %v8266 = vadd.f32 0.0, %v8265
  %v8267 = vpop.f32.mrb[0].mxu0
  %8268 = vmatprep.mubr.bf16.mxu0 0
  %8269 = vmatmul.mubr.bf16.gmra.mrb[0].mxu0 %v8118
  %v8270 = vpop.f32.mrb[0].mxu0
  %v8271 = vadd.f32 0.0, %v8270
  %v8272 = vpop.f32.mrb[0].mxu0
  %v8273 = vpop.f32.mrb[0].mxu0
  %v8274 = vadd.f32 0.0, %v8273
  %v8275 = vpop.f32.mrb[0].mxu0
  %8276 = vmatprep.mubr.bf16.mxu0 0
  %8277 = vmatmul.mubr.bf16.gmra.mrb[0].mxu0 %v8121
  %v8278 = vpop.f32.mrb[0].mxu0
  %v8279 = vadd.f32 0.0, %v8278
  %v8280 = vpop.f32.mrb[0].mxu0
  %v8281 = vpop.f32.mrb[0].mxu0
  %v8282 = vadd.f32 0.0, %v8281
  %v8283 = vpop.f32.mrb[0].mxu0
  %8284 = vmatprep.mubr.bf16.mxu0 0
  %8285 = vmatmul.mubr.bf16.gmra.mrb[0].mxu0 %v8124
  %v8286 = vpop.f32.mrb[0].mxu0
  %v8287 = vadd.f32 0.0, %v8286
  %v8288 = vpop.f32.mrb[0].mxu0
  %v8289 = vpop.f32.mrb[0].mxu0
  %v8290 = vadd.f32 0.0, %v8289
  %v8291 = vpop.f32.mrb[0].mxu0
  %8292 = vmatprep.mubr.bf16.mxu0 0
  %8293 = vmatmul.mubr.bf16.gmra.mrb[0].mxu0 %v8127
  %v8294 = vpop.f32.mrb[0].mxu0
  %v8295 = vadd.f32 0.0, %v8294
  %v8296 = vpop.f32.mrb[0].mxu0
  %v8297 = vpop.f32.mrb[0].mxu0
  %v8298 = vadd.f32 0.0, %v8297
  %v8299 = vpop.f32.mrb[0].mxu0
  %8300 = vmatprep.mubr.bf16.mxu0 0
  %8301 = vmatmul.mubr.bf16.gmra.mrb[0].mxu0 %v8130
  %v8302 = vpop.f32.mrb[0].mxu0
  %v8303 = vadd.f32 0.0, %v8302
  %v8304 = vpop.f32.mrb[0].mxu0
  %v8305 = vpop.f32.mrb[0].mxu0
  %v8306 = vadd.f32 0.0, %v8305
  %v8307 = vpop.f32.mrb[0].mxu0
  %8308 = vmatprep.mubr.bf16.mxu0 0
  %8309 = vmatmul.mubr.bf16.gmra.mrb[0].mxu0 %v8133
  %v8310 = vpop.f32.mrb[0].mxu0
  %v8311 = vadd.f32 0.0, %v8310
  %v8312 = vpop.f32.mrb[0].mxu0
  %v8313 = vpop.f32.mrb[0].mxu0
  %v8314 = vadd.f32 0.0, %v8313
  %v8315 = vpop.f32.mrb[0].mxu0
  %8316 = vmatprep.mubr.bf16.mxu0 0
  %8317 = vmatmul.mubr.bf16.gmra.mrb[0].mxu0 %v8136
  %v8318 = vpop.f32.mrb[0].mxu0
  %v8319 = vadd.f32 0.0, %v8318
  %v8320 = vpop.f32.mrb[0].mxu0
  %v8321 = vpop.f32.mrb[0].mxu0
  %v8322 = vadd.f32 0.0, %v8321
  %v8323 = vpop.f32.mrb[0].mxu0
  %8324 = vmatprep.mubr.bf16.mxu0 0
  %8325 = vmatmul.mubr.bf16.gmra.mrb[0].mxu0 %v8139
  %v8326 = vpop.f32.mrb[0].mxu0
  %v8327 = vadd.f32 0.0, %v8326
  %v8328 = vpop.f32.mrb[0].mxu0
  %v8329 = vpop.f32.mrb[0].mxu0
  %v8330 = vadd.f32 0.0, %v8329
  %v8331 = vpop.f32.mrb[0].mxu0
  %8332 = vmatprep.mubr.bf16.mxu0 0
  %8333 = vmatmul.mubr.bf16.gmra.mrb[0].mxu0 %v8142
  %v8334 = vpop.f32.mrb[0].mxu0
  %v8335 = vadd.f32 0.0, %v8334
  %v8336 = vpop.f32.mrb[0].mxu0
  %v8337 = vpop.f32.mrb[0].mxu0
  %v8338 = vadd.f32 0.0, %v8337
  %v8339 = vpop.f32.mrb[0].mxu0
  %8340 = vmatprep.mubr.bf16.mxu0 0
  %8341 = vmatmul.mubr.bf16.gmra.mrb[0].mxu0 %v8145
  %v8342 = vpop.f32.mrb[0].mxu0
  %v8343 = vadd.f32 0.0, %v8342
  %v8344 = vpop.f32.mrb[0].mxu0
  %v8345 = vpop.f32.mrb[0].mxu0
  %v8346 = vadd.f32 0.0, %v8345
  %v8347 = vpop.f32.mrb[0].mxu0
  %8348 = vmatprep.mubr.bf16.mxu0 0
  %8349 = vmatmul.mubr.bf16.gmra.mrb[0].mxu0 %v8148
  %v8350 = vpop.f32.mrb[0].mxu0
  %v8351 = vadd.f32 0.0, %v8350
  %v8352 = vpop.f32.mrb[0].mxu0
  %v8353 = vpop.f32.mrb[0].mxu0
  %v8354 = vadd.f32 0.0, %v8353
  %v8355 = vpop.f32.mrb[0].mxu0
  %8356 = vmatprep.mubr.bf16.mxu0 0
  %8357 = vmatmul.mubr.bf16.gmra.mrb[0].mxu0 %v8151
  %v8358 = vpop.f32.mrb[0].mxu0
  %v8359 = vadd.f32 0.0, %v8358
  %v8360 = vpop.f32.mrb[0].mxu0
  %v8361 = vpop.f32.mrb[0].mxu0
  %v8362 = vadd.f32 0.0, %v8361
  %v8363 = vpop.f32.mrb[0].mxu0
  %8364 = vmatprep.mubr.bf16.mxu0 0
  %8365 = vmatmul.mubr.bf16.gmra.mrb[0].mxu0 %v8154
  %v8366 = vpop.f32.mrb[0].mxu0
  %v8367 = vadd.f32 0.0, %v8366
  %v8368 = vpop.f32.mrb[0].mxu0
  %v8369 = vpop.f32.mrb[0].mxu0
  %v8370 = vadd.f32 0.0, %v8369
  %v8371 = vpop.f32.mrb[0].mxu0
  %8372 = vmatprep.mubr.bf16.mxu0 0
  %8373 = vmatmul.mubr.bf16.gmra.mrb[0].mxu0 %v8157
  %v8374 = vpop.f32.mrb[0].mxu0
  %v8375 = vadd.f32 0.0, %v8374
  %v8376 = vpop.f32.mrb[0].mxu0
  %v8377 = vpop.f32.mrb[0].mxu0
  %v8378 = vadd.f32 0.0, %v8377
  %v8379 = vpop.f32.mrb[0].mxu0
  %8380 = vmatprep.mubr.bf16.mxu0 0
  %8381 = vmatmul.mubr.bf16.gmra.mrb[0].mxu0 %v8160
  %v8382 = vpop.f32.mrb[0].mxu0
  %v8383 = vadd.f32 0.0, %v8382
  %v8384 = vpop.f32.mrb[0].mxu0
  %v8385 = vpop.f32.mrb[0].mxu0
  %v8386 = vadd.f32 0.0, %v8385
  %v8387 = vpop.f32.mrb[0].mxu0
  %8388 = vmatprep.mubr.bf16.mxu0 0
  %8389 = vmatmul.mubr.bf16.gmra.mrb[0].mxu0 %v8163
  %v8390 = vpop.f32.mrb[0].mxu0
  %v8391 = vadd.f32 0.0, %v8390
  %v8392 = vpop.f32.mrb[0].mxu0
  %v8393 = vpop.f32.mrb[0].mxu0
  %v8394 = vadd.f32 0.0, %v8393
  %v8395 = vpop.f32.mrb[0].mxu0
  %8396 = vmatprep.mubr.bf16.mxu0 0
  %8397 = vmatmul.mubr.bf16.gmra.mrb[0].mxu0 %v8166
  %v8398 = vpop.f32.mrb[0].mxu0
  %v8399 = vadd.f32 0.0, %v8398
  %v8400 = vpop.f32.mrb[0].mxu0
  %v8401 = vpop.f32.mrb[0].mxu0
  %v8402 = vadd.f32 0.0, %v8401
  %v8403 = vpop.f32.mrb[0].mxu0
  %8404 = vmatprep.mubr.bf16.mxu0 0
  %8405 = vmatmul.mubr.bf16.gmra.mrb[0].mxu0 %v8169
  %v8406 = vpop.f32.mrb[0].mxu0
  %v8407 = vadd.f32 0.0, %v8406
  %v8408 = vpop.f32.mrb[0].mxu0
  %v8409 = vpop.f32.mrb[0].mxu0
  %v8410 = vadd.f32 0.0, %v8409
  %v8411 = vpop.f32.mrb[0].mxu0
  %8412 = vmatprep.mubr.bf16.mxu0 0
  %8413 = vmatmul.mubr.bf16.gmra.mrb[0].mxu0 %v8172
  %v8414 = vpop.f32.mrb[0].mxu0
  %v8415 = vadd.f32 0.0, %v8414
  %v8416 = vpop.f32.mrb[0].mxu0
  %v8417 = vpop.f32.mrb[0].mxu0
  %v8418 = vadd.f32 0.0, %v8417
  %v8419 = vpop.f32.mrb[0].mxu0
  %8420 = vmatprep.mubr.bf16.mxu0 0
  %8421 = vmatmul.mubr.bf16.gmra.mrb[0].mxu0 %v8175
  %v8422 = vpop.f32.mrb[0].mxu0
  %v8423 = vadd.f32 0.0, %v8422
  %v8424 = vpop.f32.mrb[0].mxu0
  %v8425 = vpop.f32.mrb[0].mxu0
  %v8426 = vadd.f32 0.0, %v8425
  %v8427 = vpop.f32.mrb[0].mxu0
  %8428 = vmatprep.mubr.bf16.mxu0 0
  %8429 = vmatmul.mubr.bf16.gmra.mrb[0].mxu0 %v8178
  %v8430 = vpop.f32.mrb[0].mxu0
  %v8431 = vadd.f32 0.0, %v8430
  %v8432 = vpop.f32.mrb[0].mxu0
  %v8433 = vpop.f32.mrb[0].mxu0
  %v8434 = vadd.f32 0.0, %v8433
  %v8435 = vpop.f32.mrb[0].mxu0
  %8436 = vmatprep.mubr.bf16.mxu0 0
  %8437 = vmatmul.mubr.bf16.gmra.mrb[0].mxu0 %v8181
  %v8438 = vpop.f32.mrb[0].mxu0
  %v8439 = vadd.f32 0.0, %v8438
  %v8440 = vpop.f32.mrb[0].mxu0
  %v8441 = vpop.f32.mrb[0].mxu0
  %v8442 = vadd.f32 0.0, %v8441
  %v8443 = vpop.f32.mrb[0].mxu0
  %8444 = vmatprep.mubr.bf16.mxu0 0
  %8445 = vmatmul.mubr.bf16.gmra.mrb[0].mxu0 %v8184
  %v8446 = vpop.f32.mrb[0].mxu0
  %v8447 = vadd.f32 0.0, %v8446
  %v8448 = vpop.f32.mrb[0].mxu0
  %v8449 = vpop.f32.mrb[0].mxu0
  %v8450 = vadd.f32 0.0, %v8449
  %v8451 = vpop.f32.mrb[0].mxu0
  %8452 = vmatprep.mubr.bf16.mxu0 0
  %8453 = vmatmul.mubr.bf16.gmra.mrb[0].mxu0 %v8187
  %v8454 = vpop.f32.mrb[0].mxu0
  %v8455 = vadd.f32 0.0, %v8454
  %v8456 = vpop.f32.mrb[0].mxu0
  %v8457 = vpop.f32.mrb[0].mxu0
  %v8458 = vadd.f32 0.0, %v8457
  %v8459 = vpop.f32.mrb[0].mxu0
  %8460 = vmatprep.mubr.bf16.mxu0 0
  %8461 = vmatmul.mubr.bf16.gmra.mrb[0].mxu0 %v8190
  %v8462 = vpop.f32.mrb[0].mxu0
  %v8463 = vadd.f32 0.0, %v8462
  %v8464 = vpop.f32.mrb[0].mxu0
  %v8465 = vpop.f32.mrb[0].mxu0
  %v8466 = vadd.f32 0.0, %v8465
  %v8467 = vpop.f32.mrb[0].mxu0
  %8468 = vmatprep.mubr.bf16.mxu0 0
  %8469 = vmatmul.mubr.bf16.gmra.mrb[0].mxu0 %v8193
  %v8470 = vpop.f32.mrb[0].mxu0
  %v8471 = vadd.f32 0.0, %v8470
  %v8472 = vpop.f32.mrb[0].mxu0
  %v8473 = vpop.f32.mrb[0].mxu0
  %v8474 = vadd.f32 0.0, %v8473
  %v8475 = vpop.f32.mrb[0].mxu0
  %8476 = vmatprep.mubr.bf16.mxu0 0
  %8477 = vmatmul.mubr.bf16.gmra.mrb[0].mxu0 %v8196
  %v8478 = vpop.f32.mrb[0].mxu0
  %v8479 = vadd.f32 0.0, %v8478
  %v8480 = vpop.f32.mrb[0].mxu0
  %v8481 = vpop.f32.mrb[0].mxu0
  %v8482 = vadd.f32 0.0, %v8481
  %v8483 = vpop.f32.mrb[0].mxu0
  %8484 = vmatprep.mubr.bf16.mxu0 0
  %8485 = vmatmul.mubr.bf16.gmra.mrb[0].mxu0 %v8199
  %v8486 = vpop.f32.mrb[0].mxu0
  %v8487 = vadd.f32 0.0, %v8486
  %v8488 = vpop.f32.mrb[0].mxu0
  %v8489 = vpop.f32.mrb[0].mxu0
  %v8490 = vadd.f32 0.0, %v8489
  %v8491 = vpop.f32.mrb[0].mxu0
  %8492 = vdwg.mxu0
  %v8493 = vld [vmem:[%s5] sm:$0x1]
  %v8495 = vlaneseq
  %v8496 = vshrl.u32 %v8495, 7
  %v8497 = vsub.s32 0, %v8496
  %v8498 = vrot.slane %v8493, %v8497
  %v8500 = vmul.f32 %v8239, %v8498
  %v8501 = vmul.f32 %v8242, %v8498
  %v8502 = vmul.f32 %v8247, %v8498
  %v8503 = vmul.f32 %v8250, %v8498
  %v8504 = vmul.f32 %v8255, %v8498
  %v8505 = vmul.f32 %v8258, %v8498
  %v8506 = vmul.f32 %v8263, %v8498
  %v8507 = vmul.f32 %v8266, %v8498
  %v8508 = vmul.f32 %v8271, %v8498
  %v8509 = vmul.f32 %v8274, %v8498
  %v8510 = vmul.f32 %v8279, %v8498
  %v8511 = vmul.f32 %v8282, %v8498
  %v8512 = vmul.f32 %v8287, %v8498
  %v8513 = vmul.f32 %v8290, %v8498
  %v8514 = vmul.f32 %v8295, %v8498
  %v8515 = vmul.f32 %v8298, %v8498
  %v8516 = vmul.f32 %v8303, %v8498
  %v8517 = vmul.f32 %v8306, %v8498
  %v8518 = vmul.f32 %v8311, %v8498
  %v8519 = vmul.f32 %v8314, %v8498
  %v8520 = vmul.f32 %v8319, %v8498
  %v8521 = vmul.f32 %v8322, %v8498
  %v8522 = vmul.f32 %v8327, %v8498
  %v8523 = vmul.f32 %v8330, %v8498
  %v8524 = vmul.f32 %v8335, %v8498
  %v8525 = vmul.f32 %v8338, %v8498
  %v8526 = vmul.f32 %v8343, %v8498
  %v8527 = vmul.f32 %v8346, %v8498
  %v8528 = vmul.f32 %v8351, %v8498
  %v8529 = vmul.f32 %v8354, %v8498
  %v8530 = vmul.f32 %v8359, %v8498
  %v8531 = vmul.f32 %v8362, %v8498
  %v8532 = vmul.f32 %v8367, %v8498
  %v8533 = vmul.f32 %v8370, %v8498
  %v8534 = vmul.f32 %v8375, %v8498
  %v8535 = vmul.f32 %v8378, %v8498
  %v8536 = vmul.f32 %v8383, %v8498
  %v8537 = vmul.f32 %v8386, %v8498
  %v8538 = vmul.f32 %v8391, %v8498
  %v8539 = vmul.f32 %v8394, %v8498
  %v8540 = vmul.f32 %v8399, %v8498
  %v8541 = vmul.f32 %v8402, %v8498
  %v8542 = vmul.f32 %v8407, %v8498
  %v8543 = vmul.f32 %v8410, %v8498
  %v8544 = vmul.f32 %v8415, %v8498
  %v8545 = vmul.f32 %v8418, %v8498
  %v8546 = vmul.f32 %v8423, %v8498
  %v8547 = vmul.f32 %v8426, %v8498
  %v8548 = vmul.f32 %v8431, %v8498
  %v8549 = vmul.f32 %v8434, %v8498
  %v8550 = vmul.f32 %v8439, %v8498
  %v8551 = vmul.f32 %v8442, %v8498
  %v8552 = vmul.f32 %v8447, %v8498
  %v8553 = vmul.f32 %v8450, %v8498
  %v8554 = vmul.f32 %v8455, %v8498
  %v8555 = vmul.f32 %v8458, %v8498
  %v8556 = vmul.f32 %v8463, %v8498
  %v8557 = vmul.f32 %v8466, %v8498
  %v8558 = vmul.f32 %v8471, %v8498
  %v8559 = vmul.f32 %v8474, %v8498
  %v8560 = vmul.f32 %v8479, %v8498
  %v8561 = vmul.f32 %v8482, %v8498
  %v8562 = vmul.f32 %v8487, %v8498
  %v8563 = vmul.f32 %v8490, %v8498
  %v8564 = vld [vmem:[%s6] sm:$0x1]
  %v8566 = vlaneseq
  %v8567 = vshrl.u32 %v8566, 7
  %v8568 = vsub.s32 0, %v8567
  %v8569 = vrot.slane %v8564, %v8568
  %v8571 = vadd.f32 %v8500, %v8569
  %v8572 = vadd.f32 %v8501, %v8569
  %v8573 = vadd.f32 %v8502, %v8569
  %v8574 = vadd.f32 %v8503, %v8569
  %v8575 = vadd.f32 %v8504, %v8569
  %v8576 = vadd.f32 %v8505, %v8569
  %v8577 = vadd.f32 %v8506, %v8569
  %v8578 = vadd.f32 %v8507, %v8569
  %v8579 = vadd.f32 %v8508, %v8569
  %v8580 = vadd.f32 %v8509, %v8569
  %v8581 = vadd.f32 %v8510, %v8569
  %v8582 = vadd.f32 %v8511, %v8569
  %v8583 = vadd.f32 %v8512, %v8569
  %v8584 = vadd.f32 %v8513, %v8569
  %v8585 = vadd.f32 %v8514, %v8569
  %v8586 = vadd.f32 %v8515, %v8569
  %v8587 = vadd.f32 %v8516, %v8569
  %v8588 = vadd.f32 %v8517, %v8569
  %v8589 = vadd.f32 %v8518, %v8569
  %v8590 = vadd.f32 %v8519, %v8569
  %v8591 = vadd.f32 %v8520, %v8569
  %v8592 = vadd.f32 %v8521, %v8569
  %v8593 = vadd.f32 %v8522, %v8569
  %v8594 = vadd.f32 %v8523, %v8569
  %v8595 = vadd.f32 %v8524, %v8569
  %v8596 = vadd.f32 %v8525, %v8569
  %v8597 = vadd.f32 %v8526, %v8569
  %v8598 = vadd.f32 %v8527, %v8569
  %v8599 = vadd.f32 %v8528, %v8569
  %v8600 = vadd.f32 %v8529, %v8569
  %v8601 = vadd.f32 %v8530, %v8569
  %v8602 = vadd.f32 %v8531, %v8569
  %v8603 = vadd.f32 %v8532, %v8569
  %v8604 = vadd.f32 %v8533, %v8569
  %v8605 = vadd.f32 %v8534, %v8569
  %v8606 = vadd.f32 %v8535, %v8569
  %v8607 = vadd.f32 %v8536, %v8569
  %v8608 = vadd.f32 %v8537, %v8569
  %v8609 = vadd.f32 %v8538, %v8569
  %v8610 = vadd.f32 %v8539, %v8569
  %v8611 = vadd.f32 %v8540, %v8569
  %v8612 = vadd.f32 %v8541, %v8569
  %v8613 = vadd.f32 %v8542, %v8569
  %v8614 = vadd.f32 %v8543, %v8569
  %v8615 = vadd.f32 %v8544, %v8569
  %v8616 = vadd.f32 %v8545, %v8569
  %v8617 = vadd.f32 %v8546, %v8569
  %v8618 = vadd.f32 %v8547, %v8569
  %v8619 = vadd.f32 %v8548, %v8569
  %v8620 = vadd.f32 %v8549, %v8569
  %v8621 = vadd.f32 %v8550, %v8569
  %v8622 = vadd.f32 %v8551, %v8569
  %v8623 = vadd.f32 %v8552, %v8569
  %v8624 = vadd.f32 %v8553, %v8569
  %v8625 = vadd.f32 %v8554, %v8569
  %v8626 = vadd.f32 %v8555, %v8569
  %v8627 = vadd.f32 %v8556, %v8569
  %v8628 = vadd.f32 %v8557, %v8569
  %v8629 = vadd.f32 %v8558, %v8569
  %v8630 = vadd.f32 %v8559, %v8569
  %v8631 = vadd.f32 %v8560, %v8569
  %v8632 = vadd.f32 %v8561, %v8569
  %v8633 = vadd.f32 %v8562, %v8569
  %v8634 = vadd.f32 %v8563, %v8569
  %v8635 = vmax.f32 %v8571, 0.0
  %v8636 = vmax.f32 %v8572, 0.0
  %v8637 = vmax.f32 %v8573, 0.0
  %v8638 = vmax.f32 %v8574, 0.0
  %v8639 = vmax.f32 %v8575, 0.0
  %v8640 = vmax.f32 %v8576, 0.0
  %v8641 = vmax.f32 %v8577, 0.0
  %v8642 = vmax.f32 %v8578, 0.0
  %v8643 = vmax.f32 %v8579, 0.0
  %v8644 = vmax.f32 %v8580, 0.0
  %v8645 = vmax.f32 %v8581, 0.0
  %v8646 = vmax.f32 %v8582, 0.0
  %v8647 = vmax.f32 %v8583, 0.0
  %v8648 = vmax.f32 %v8584, 0.0
  %v8649 = vmax.f32 %v8585, 0.0
  %v8650 = vmax.f32 %v8586, 0.0
  %v8651 = vmax.f32 %v8587, 0.0
  %v8652 = vmax.f32 %v8588, 0.0
  %v8653 = vmax.f32 %v8589, 0.0
  %v8654 = vmax.f32 %v8590, 0.0
  %v8655 = vmax.f32 %v8591, 0.0
  %v8656 = vmax.f32 %v8592, 0.0
  %v8657 = vmax.f32 %v8593, 0.0
  %v8658 = vmax.f32 %v8594, 0.0
  %v8659 = vmax.f32 %v8595, 0.0
  %v8660 = vmax.f32 %v8596, 0.0
  %v8661 = vmax.f32 %v8597, 0.0
  %v8662 = vmax.f32 %v8598, 0.0
  %v8663 = vmax.f32 %v8599, 0.0
  %v8664 = vmax.f32 %v8600, 0.0
  %v8665 = vmax.f32 %v8601, 0.0
  %v8666 = vmax.f32 %v8602, 0.0
  %v8667 = vmax.f32 %v8603, 0.0
  %v8668 = vmax.f32 %v8604, 0.0
  %v8669 = vmax.f32 %v8605, 0.0
  %v8670 = vmax.f32 %v8606, 0.0
  %v8671 = vmax.f32 %v8607, 0.0
  %v8672 = vmax.f32 %v8608, 0.0
  %v8673 = vmax.f32 %v8609, 0.0
  %v8674 = vmax.f32 %v8610, 0.0
  %v8675 = vmax.f32 %v8611, 0.0
  %v8676 = vmax.f32 %v8612, 0.0
  %v8677 = vmax.f32 %v8613, 0.0
  %v8678 = vmax.f32 %v8614, 0.0
  %v8679 = vmax.f32 %v8615, 0.0
  %v8680 = vmax.f32 %v8616, 0.0
  %v8681 = vmax.f32 %v8617, 0.0
  %v8682 = vmax.f32 %v8618, 0.0
  %v8683 = vmax.f32 %v8619, 0.0
  %v8684 = vmax.f32 %v8620, 0.0
  %v8685 = vmax.f32 %v8621, 0.0
  %v8686 = vmax.f32 %v8622, 0.0
  %v8687 = vmax.f32 %v8623, 0.0
  %v8688 = vmax.f32 %v8624, 0.0
  %v8689 = vmax.f32 %v8625, 0.0
  %v8690 = vmax.f32 %v8626, 0.0
  %v8691 = vmax.f32 %v8627, 0.0
  %v8692 = vmax.f32 %v8628, 0.0
  %v8693 = vmax.f32 %v8629, 0.0
  %v8694 = vmax.f32 %v8630, 0.0
  %v8695 = vmax.f32 %v8631, 0.0
  %v8696 = vmax.f32 %v8632, 0.0
  %v8697 = vmax.f32 %v8633, 0.0
  %v8698 = vmax.f32 %v8634, 0.0
  %v8699 = vmin.f32 %v8635, 1.0
  %v8700 = vmin.f32 %v8636, 1.0
  %v8701 = vmin.f32 %v8637, 1.0
  %v8702 = vmin.f32 %v8638, 1.0
  %v8703 = vmin.f32 %v8639, 1.0
  %v8704 = vmin.f32 %v8640, 1.0
  %v8705 = vmin.f32 %v8641, 1.0
  %v8706 = vmin.f32 %v8642, 1.0
  %v8707 = vmin.f32 %v8643, 1.0
  %v8708 = vmin.f32 %v8644, 1.0
  %v8709 = vmin.f32 %v8645, 1.0
  %v8710 = vmin.f32 %v8646, 1.0
  %v8711 = vmin.f32 %v8647, 1.0
  %v8712 = vmin.f32 %v8648, 1.0
  %v8713 = vmin.f32 %v8649, 1.0
  %v8714 = vmin.f32 %v8650, 1.0
  %v8715 = vmin.f32 %v8651, 1.0
  %v8716 = vmin.f32 %v8652, 1.0
  %v8717 = vmin.f32 %v8653, 1.0
  %v8718 = vmin.f32 %v8654, 1.0
  %v8719 = vmin.f32 %v8655, 1.0
  %v8720 = vmin.f32 %v8656, 1.0
  %v8721 = vmin.f32 %v8657, 1.0
  %v8722 = vmin.f32 %v8658, 1.0
  %v8723 = vmin.f32 %v8659, 1.0
  %v8724 = vmin.f32 %v8660, 1.0
  %v8725 = vmin.f32 %v8661, 1.0
  %v8726 = vmin.f32 %v8662, 1.0
  %v8727 = vmin.f32 %v8663, 1.0
  %v8728 = vmin.f32 %v8664, 1.0
  %v8729 = vmin.f32 %v8665, 1.0
  %v8730 = vmin.f32 %v8666, 1.0
  %v8731 = vmin.f32 %v8667, 1.0
  %v8732 = vmin.f32 %v8668, 1.0
  %v8733 = vmin.f32 %v8669, 1.0
  %v8734 = vmin.f32 %v8670, 1.0
  %v8735 = vmin.f32 %v8671, 1.0
  %v8736 = vmin.f32 %v8672, 1.0
  %v8737 = vmin.f32 %v8673, 1.0
  %v8738 = vmin.f32 %v8674, 1.0
  %v8739 = vmin.f32 %v8675, 1.0
  %v8740 = vmin.f32 %v8676, 1.0
  %v8741 = vmin.f32 %v8677, 1.0
  %v8742 = vmin.f32 %v8678, 1.0
  %v8743 = vmin.f32 %v8679, 1.0
  %v8744 = vmin.f32 %v8680, 1.0
  %v8745 = vmin.f32 %v8681, 1.0
  %v8746 = vmin.f32 %v8682, 1.0
  %v8747 = vmin.f32 %v8683, 1.0
  %v8748 = vmin.f32 %v8684, 1.0
  %v8749 = vmin.f32 %v8685, 1.0
  %v8750 = vmin.f32 %v8686, 1.0
  %v8751 = vmin.f32 %v8687, 1.0
  %v8752 = vmin.f32 %v8688, 1.0
  %v8753 = vmin.f32 %v8689, 1.0
  %v8754 = vmin.f32 %v8690, 1.0
  %v8755 = vmin.f32 %v8691, 1.0
  %v8756 = vmin.f32 %v8692, 1.0
  %v8757 = vmin.f32 %v8693, 1.0
  %v8758 = vmin.f32 %v8694, 1.0
  %v8759 = vmin.f32 %v8695, 1.0
  %v8760 = vmin.f32 %v8696, 1.0
  %v8761 = vmin.f32 %v8697, 1.0
  %v8762 = vmin.f32 %v8698, 1.0
  %v8763 = vmul.f32 %v8699, 15.0
  %v8764 = vmul.f32 %v8700, 15.0
  %v8765 = vmul.f32 %v8701, 15.0
  %v8766 = vmul.f32 %v8702, 15.0
  %v8767 = vmul.f32 %v8703, 15.0
  %v8768 = vmul.f32 %v8704, 15.0
  %v8769 = vmul.f32 %v8705, 15.0
  %v8770 = vmul.f32 %v8706, 15.0
  %v8771 = vmul.f32 %v8707, 15.0
  %v8772 = vmul.f32 %v8708, 15.0
  %v8773 = vmul.f32 %v8709, 15.0
  %v8774 = vmul.f32 %v8710, 15.0
  %v8775 = vmul.f32 %v8711, 15.0
  %v8776 = vmul.f32 %v8712, 15.0
  %v8777 = vmul.f32 %v8713, 15.0
  %v8778 = vmul.f32 %v8714, 15.0
  %v8779 = vmul.f32 %v8715, 15.0
  %v8780 = vmul.f32 %v8716, 15.0
  %v8781 = vmul.f32 %v8717, 15.0
  %v8782 = vmul.f32 %v8718, 15.0
  %v8783 = vmul.f32 %v8719, 15.0
  %v8784 = vmul.f32 %v8720, 15.0
  %v8785 = vmul.f32 %v8721, 15.0
  %v8786 = vmul.f32 %v8722, 15.0
  %v8787 = vmul.f32 %v8723, 15.0
  %v8788 = vmul.f32 %v8724, 15.0
  %v8789 = vmul.f32 %v8725, 15.0
  %v8790 = vmul.f32 %v8726, 15.0
  %v8791 = vmul.f32 %v8727, 15.0
  %v8792 = vmul.f32 %v8728, 15.0
  %v8793 = vmul.f32 %v8729, 15.0
  %v8794 = vmul.f32 %v8730, 15.0
  %v8795 = vmul.f32 %v8731, 15.0
  %v8796 = vmul.f32 %v8732, 15.0
  %v8797 = vmul.f32 %v8733, 15.0
  %v8798 = vmul.f32 %v8734, 15.0
  %v8799 = vmul.f32 %v8735, 15.0
  %v8800 = vmul.f32 %v8736, 15.0
  %v8801 = vmul.f32 %v8737, 15.0
  %v8802 = vmul.f32 %v8738, 15.0
  %v8803 = vmul.f32 %v8739, 15.0
  %v8804 = vmul.f32 %v8740, 15.0
  %v8805 = vmul.f32 %v8741, 15.0
  %v8806 = vmul.f32 %v8742, 15.0
  %v8807 = vmul.f32 %v8743, 15.0
  %v8808 = vmul.f32 %v8744, 15.0
  %v8809 = vmul.f32 %v8745, 15.0
  %v8810 = vmul.f32 %v8746, 15.0
  %v8811 = vmul.f32 %v8747, 15.0
  %v8812 = vmul.f32 %v8748, 15.0
  %v8813 = vmul.f32 %v8749, 15.0
  %v8814 = vmul.f32 %v8750, 15.0
  %v8815 = vmul.f32 %v8751, 15.0
  %v8816 = vmul.f32 %v8752, 15.0
  %v8817 = vmul.f32 %v8753, 15.0
  %v8818 = vmul.f32 %v8754, 15.0
  %v8819 = vmul.f32 %v8755, 15.0
  %v8820 = vmul.f32 %v8756, 15.0
  %v8821 = vmul.f32 %v8757, 15.0
  %v8822 = vmul.f32 %v8758, 15.0
  %v8823 = vmul.f32 %v8759, 15.0
  %v8824 = vmul.f32 %v8760, 15.0
  %v8825 = vmul.f32 %v8761, 15.0
  %v8826 = vmul.f32 %v8762, 15.0
  %v8827 = vround.ne.pseudo %v8763
  %v8828 = vround.ne.pseudo %v8764
  %v8829 = vround.ne.pseudo %v8765
  %v8830 = vround.ne.pseudo %v8766
  %v8831 = vround.ne.pseudo %v8767
  %v8832 = vround.ne.pseudo %v8768
  %v8833 = vround.ne.pseudo %v8769
  %v8834 = vround.ne.pseudo %v8770
  %v8835 = vround.ne.pseudo %v8771
  %v8836 = vround.ne.pseudo %v8772
  %v8837 = vround.ne.pseudo %v8773
  %v8838 = vround.ne.pseudo %v8774
  %v8839 = vround.ne.pseudo %v8775
  %v8840 = vround.ne.pseudo %v8776
  %v8841 = vround.ne.pseudo %v8777
  %v8842 = vround.ne.pseudo %v8778
  %v8843 = vround.ne.pseudo %v8779
  %v8844 = vround.ne.pseudo %v8780
  %v8845 = vround.ne.pseudo %v8781
  %v8846 = vround.ne.pseudo %v8782
  %v8847 = vround.ne.pseudo %v8783
  %v8848 = vround.ne.pseudo %v8784
  %v8849 = vround.ne.pseudo %v8785
  %v8850 = vround.ne.pseudo %v8786
  %v8851 = vround.ne.pseudo %v8787
  %v8852 = vround.ne.pseudo %v8788
  %v8853 = vround.ne.pseudo %v8789
  %v8854 = vround.ne.pseudo %v8790
  %v8855 = vround.ne.pseudo %v8791
  %v8856 = vround.ne.pseudo %v8792
  %v8857 = vround.ne.pseudo %v8793
  %v8858 = vround.ne.pseudo %v8794
  %v8859 = vround.ne.pseudo %v8795
  %v8860 = vround.ne.pseudo %v8796
  %v8861 = vround.ne.pseudo %v8797
  %v8862 = vround.ne.pseudo %v8798
  %v8863 = vround.ne.pseudo %v8799
  %v8864 = vround.ne.pseudo %v8800
  %v8865 = vround.ne.pseudo %v8801
  %v8866 = vround.ne.pseudo %v8802
  %v8867 = vround.ne.pseudo %v8803
  %v8868 = vround.ne.pseudo %v8804
  %v8869 = vround.ne.pseudo %v8805
  %v8870 = vround.ne.pseudo %v8806
  %v8871 = vround.ne.pseudo %v8807
  %v8872 = vround.ne.pseudo %v8808
  %v8873 = vround.ne.pseudo %v8809
  %v8874 = vround.ne.pseudo %v8810
  %v8875 = vround.ne.pseudo %v8811
  %v8876 = vround.ne.pseudo %v8812
  %v8877 = vround.ne.pseudo %v8813
  %v8878 = vround.ne.pseudo %v8814
  %v8879 = vround.ne.pseudo %v8815
  %v8880 = vround.ne.pseudo %v8816
  %v8881 = vround.ne.pseudo %v8817
  %v8882 = vround.ne.pseudo %v8818
  %v8883 = vround.ne.pseudo %v8819
  %v8884 = vround.ne.pseudo %v8820
  %v8885 = vround.ne.pseudo %v8821
  %v8886 = vround.ne.pseudo %v8822
  %v8887 = vround.ne.pseudo %v8823
  %v8888 = vround.ne.pseudo %v8824
  %v8889 = vround.ne.pseudo %v8825
  %v8890 = vround.ne.pseudo %v8826
  %v8891 = vmul.f32 %v8827, 0.06666667
  %v8892 = vmul.f32 %v8828, 0.06666667
  %v8893 = vmul.f32 %v8829, 0.06666667
  %v8894 = vmul.f32 %v8830, 0.06666667
  %v8895 = vmul.f32 %v8831, 0.06666667
  %v8896 = vmul.f32 %v8832, 0.06666667
  %v8897 = vmul.f32 %v8833, 0.06666667
  %v8898 = vmul.f32 %v8834, 0.06666667
  %v8899 = vmul.f32 %v8835, 0.06666667
  %v8900 = vmul.f32 %v8836, 0.06666667
  %v8901 = vmul.f32 %v8837, 0.06666667
  %v8902 = vmul.f32 %v8838, 0.06666667
  %v8903 = vmul.f32 %v8839, 0.06666667
  %v8904 = vmul.f32 %v8840, 0.06666667
  %v8905 = vmul.f32 %v8841, 0.06666667
  %v8906 = vmul.f32 %v8842, 0.06666667
  %v8907 = vmul.f32 %v8843, 0.06666667
  %v8908 = vmul.f32 %v8844, 0.06666667
  %v8909 = vmul.f32 %v8845, 0.06666667
  %v8910 = vmul.f32 %v8846, 0.06666667
  %v8911 = vmul.f32 %v8847, 0.06666667
  %v8912 = vmul.f32 %v8848, 0.06666667
  %v8913 = vmul.f32 %v8849, 0.06666667
  %v8914 = vmul.f32 %v8850, 0.06666667
  %v8915 = vmul.f32 %v8851, 0.06666667
  %v8916 = vmul.f32 %v8852, 0.06666667
  %v8917 = vmul.f32 %v8853, 0.06666667
  %v8918 = vmul.f32 %v8854, 0.06666667
  %v8919 = vmul.f32 %v8855, 0.06666667
  %v8920 = vmul.f32 %v8856, 0.06666667
  %v8921 = vmul.f32 %v8857, 0.06666667
  %v8922 = vmul.f32 %v8858, 0.06666667
  %v8923 = vmul.f32 %v8859, 0.06666667
  %v8924 = vmul.f32 %v8860, 0.06666667
  %v8925 = vmul.f32 %v8861, 0.06666667
  %v8926 = vmul.f32 %v8862, 0.06666667
  %v8927 = vmul.f32 %v8863, 0.06666667
  %v8928 = vmul.f32 %v8864, 0.06666667
  %v8929 = vmul.f32 %v8865, 0.06666667
  %v8930 = vmul.f32 %v8866, 0.06666667
  %v8931 = vmul.f32 %v8867, 0.06666667
  %v8932 = vmul.f32 %v8868, 0.06666667
  %v8933 = vmul.f32 %v8869, 0.06666667
  %v8934 = vmul.f32 %v8870, 0.06666667
  %v8935 = vmul.f32 %v8871, 0.06666667
  %v8936 = vmul.f32 %v8872, 0.06666667
  %v8937 = vmul.f32 %v8873, 0.06666667
  %v8938 = vmul.f32 %v8874, 0.06666667
  %v8939 = vmul.f32 %v8875, 0.06666667
  %v8940 = vmul.f32 %v8876, 0.06666667
  %v8941 = vmul.f32 %v8877, 0.06666667
  %v8942 = vmul.f32 %v8878, 0.06666667
  %v8943 = vmul.f32 %v8879, 0.06666667
  %v8944 = vmul.f32 %v8880, 0.06666667
  %v8945 = vmul.f32 %v8881, 0.06666667
  %v8946 = vmul.f32 %v8882, 0.06666667
  %v8947 = vmul.f32 %v8883, 0.06666667
  %v8948 = vmul.f32 %v8884, 0.06666667
  %v8949 = vmul.f32 %v8885, 0.06666667
  %v8950 = vmul.f32 %v8886, 0.06666667
  %v8951 = vmul.f32 %v8887, 0.06666667
  %v8952 = vmul.f32 %v8888, 0.06666667
  %v8953 = vmul.f32 %v8889, 0.06666667
  %v8954 = vmul.f32 %v8890, 0.06666667
  %vm8955 = vcmask 130048
  %8956 = vst.msk [vmem:[%s7] sm:$0xff] %vm8955, %v8891
  %8957 = vst.msk [vmem:[%s7 + $0x8] sm:$0xff] %vm8955, %v8892
  %8958 = vst.msk [vmem:[%s7 + $0x10] sm:$0xff] %vm8955, %v8893
  %8959 = vst.msk [vmem:[%s7 + $0x18] sm:$0xff] %vm8955, %v8894
  %8960 = vst.msk [vmem:[%s7 + $0x20] sm:$0xff] %vm8955, %v8895
  %8961 = vst.msk [vmem:[%s7 + $0x28] sm:$0xff] %vm8955, %v8896
  %8962 = vst.msk [vmem:[%s7 + $0x30] sm:$0xff] %vm8955, %v8897
  %8963 = vst.msk [vmem:[%s7 + $0x38] sm:$0xff] %vm8955, %v8898
  %8964 = vst.msk [vmem:[%s7 + $0x40] sm:$0xff] %vm8955, %v8899
  %8965 = vst.msk [vmem:[%s7 + $0x48] sm:$0xff] %vm8955, %v8900
  %8966 = vst.msk [vmem:[%s7 + $0x50] sm:$0xff] %vm8955, %v8901
  %8967 = vst.msk [vmem:[%s7 + $0x58] sm:$0xff] %vm8955, %v8902
  %8968 = vst.msk [vmem:[%s7 + $0x60] sm:$0xff] %vm8955, %v8903
  %8969 = vst.msk [vmem:[%s7 + $0x68] sm:$0xff] %vm8955, %v8904
  %8970 = vst.msk [vmem:[%s7 + $0x70] sm:$0xff] %vm8955, %v8905
  %8971 = vst.msk [vmem:[%s7 + $0x78] sm:$0xff] %vm8955, %v8906
  %8972 = vst.msk [vmem:[%s7 + $0x80] sm:$0xff] %vm8955, %v8907
  %8973 = vst.msk [vmem:[%s7 + $0x88] sm:$0xff] %vm8955, %v8908
  %8974 = vst.msk [vmem:[%s7 + $0x90] sm:$0xff] %vm8955, %v8909
  %8975 = vst.msk [vmem:[%s7 + $0x98] sm:$0xff] %vm8955, %v8910
  %8976 = vst.msk [vmem:[%s7 + $0xa0] sm:$0xff] %vm8955, %v8911
  %8977 = vst.msk [vmem:[%s7 + $0xa8] sm:$0xff] %vm8955, %v8912
  %8978 = vst.msk [vmem:[%s7 + $0xb0] sm:$0xff] %vm8955, %v8913
  %8979 = vst.msk [vmem:[%s7 + $0xb8] sm:$0xff] %vm8955, %v8914
  %8980 = vst.msk [vmem:[%s7 + $0xc0] sm:$0xff] %vm8955, %v8915
  %8981 = vst.msk [vmem:[%s7 + $0xc8] sm:$0xff] %vm8955, %v8916
  %8982 = vst.msk [vmem:[%s7 + $0xd0] sm:$0xff] %vm8955, %v8917
  %8983 = vst.msk [vmem:[%s7 + $0xd8] sm:$0xff] %vm8955, %v8918
  %8984 = vst.msk [vmem:[%s7 + $0xe0] sm:$0xff] %vm8955, %v8919
  %8985 = vst.msk [vmem:[%s7 + $0xe8] sm:$0xff] %vm8955, %v8920
  %8986 = vst.msk [vmem:[%s7 + $0xf0] sm:$0xff] %vm8955, %v8921
  %8987 = vst.msk [vmem:[%s7 + $0xf8] sm:$0xff] %vm8955, %v8922
  %8988 = vst.msk [vmem:[%s7 + $0x100] sm:$0xff] %vm8955, %v8923
  %8989 = vst.msk [vmem:[%s7 + $0x108] sm:$0xff] %vm8955, %v8924
  %8990 = vst.msk [vmem:[%s7 + $0x110] sm:$0xff] %vm8955, %v8925
  %8991 = vst.msk [vmem:[%s7 + $0x118] sm:$0xff] %vm8955, %v8926
  %8992 = vst.msk [vmem:[%s7 + $0x120] sm:$0xff] %vm8955, %v8927
  %8993 = vst.msk [vmem:[%s7 + $0x128] sm:$0xff] %vm8955, %v8928
  %8994 = vst.msk [vmem:[%s7 + $0x130] sm:$0xff] %vm8955, %v8929
  %8995 = vst.msk [vmem:[%s7 + $0x138] sm:$0xff] %vm8955, %v8930
  %8996 = vst.msk [vmem:[%s7 + $0x140] sm:$0xff] %vm8955, %v8931
  %8997 = vst.msk [vmem:[%s7 + $0x148] sm:$0xff] %vm8955, %v8932
  %8998 = vst.msk [vmem:[%s7 + $0x150] sm:$0xff] %vm8955, %v8933
  %8999 = vst.msk [vmem:[%s7 + $0x158] sm:$0xff] %vm8955, %v8934
  %9000 = vst.msk [vmem:[%s7 + $0x160] sm:$0xff] %vm8955, %v8935
  %9001 = vst.msk [vmem:[%s7 + $0x168] sm:$0xff] %vm8955, %v8936
  %9002 = vst.msk [vmem:[%s7 + $0x170] sm:$0xff] %vm8955, %v8937
  %9003 = vst.msk [vmem:[%s7 + $0x178] sm:$0xff] %vm8955, %v8938
  %9004 = vst.msk [vmem:[%s7 + $0x180] sm:$0xff] %vm8955, %v8939
  %9005 = vst.msk [vmem:[%s7 + $0x188] sm:$0xff] %vm8955, %v8940
  %9006 = vst.msk [vmem:[%s7 + $0x190] sm:$0xff] %vm8955, %v8941
  %9007 = vst.msk [vmem:[%s7 + $0x198] sm:$0xff] %vm8955, %v8942
  %9008 = vst.msk [vmem:[%s7 + $0x1a0] sm:$0xff] %vm8955, %v8943
  %9009 = vst.msk [vmem:[%s7 + $0x1a8] sm:$0xff] %vm8955, %v8944
  %9010 = vst.msk [vmem:[%s7 + $0x1b0] sm:$0xff] %vm8955, %v8945
  %9011 = vst.msk [vmem:[%s7 + $0x1b8] sm:$0xff] %vm8955, %v8946
  %9012 = vst.msk [vmem:[%s7 + $0x1c0] sm:$0xff] %vm8955, %v8947
  %9013 = vst.msk [vmem:[%s7 + $0x1c8] sm:$0xff] %vm8955, %v8948
  %9014 = vst.msk [vmem:[%s7 + $0x1d0] sm:$0xff] %vm8955, %v8949
  %9015 = vst.msk [vmem:[%s7 + $0x1d8] sm:$0xff] %vm8955, %v8950
  %9016 = vst.msk [vmem:[%s7 + $0x1e0] sm:$0xff] %vm8955, %v8951
  %9017 = vst.msk [vmem:[%s7 + $0x1e8] sm:$0xff] %vm8955, %v8952
  %9018 = vst.msk [vmem:[%s7 + $0x1f0] sm:$0xff] %vm8955, %v8953
  %9019 = vst.msk [vmem:[%s7 + $0x1f8] sm:$0xff] %vm8955, %v8954
  // Predicated region
  $region30: #{qat_forward.1} parent=0 // pred_check
    _
  $region31: #{qat_forward.1} parent=0 // pred_check_branch
    %9021 = sbr.rel (0) target = $region33
  $region32: #{qat_forward.1} parent=0 // pred_region
    _
  $region33: #{qat_forward.1} parent=0 // pred_fallthru
    _
  // Predicated region
  $region34: #{qat_forward.1} parent=0 // pred_check
    _
  $region35: #{qat_forward.1} parent=0 // pred_check_branch
    %9023 = sbr.rel (0) target = $region37
  $region36: #{qat_forward.1} parent=0 // pred_region
    _
  $region37: #{qat_forward.1} parent=0 // pred_fallthru
    _

</llo_original>
